<compile_context>
chip_gen: v5e
topology: v5e:2x2
jax: 0.10.0
libtpu: 0.0.40
codegen_flags: <defaults>
</compile_context>

<pallas_src>
from functools import partial

import jax
import jax.numpy as jnp
from jax.experimental import pallas as pl
from jax.experimental.pallas import tpu as pltpu


# --------------------------------------------------------------------------- #
# Kernel
# --------------------------------------------------------------------------- #
def wattention_kernel(x_ref, w_ref, o_ref, *, num_heads, flatten_out):
    # x_ref: (TB, W, C)   TB row-windows per grid step
    # w_ref: (C, 3C)      qkv weight, host-transposed, scale folded into q cols
    # o_ref: (TB, W*C)    lane-dense output slab   (or (TB, W, C) on fallback)
    TB, W, C = x_ref.shape
    hd = C // num_heads

    # Fused qkv projection: ONE MXU GEMM over all TB*W tokens of the block.
    x2 = x_ref[...].reshape(TB * W, C)                    # leading-dim merge: free
    qkv = jnp.dot(x2, w_ref[...], preferred_element_type=jnp.float32)  # (TB*W, 3C)

    # Stack heads into the leading (batch) axis so the whole attention is a
    # single batched contraction pair over TB*num_heads windows.  Only
    # leading-axis concats are used (no 4-D mid-dim transpose).
    def head_stack(base):
        return jnp.concatenate(
            [qkv[:, base + h * hd: base + (h + 1) * hd].reshape(TB, W, hd)
             for h in range(num_heads)],
            axis=0)                                        # (nh*TB, W, hd)

    q = head_stack(0)          # attention scale already folded into q weight
    k = head_stack(C)
    v = head_stack(2 * C)

    # scores: contraction over the last dim of both operands -> no k.T needed
    s = jnp.einsum('bqd,bkd->bqk', q, k,
                   preferred_element_type=jnp.float32)     # (nh*TB, W, W)

    # numerically-stable softmax; 1/l is folded into the (smaller) PV output
    m = jnp.max(s, axis=-1, keepdims=True)
    p = jnp.exp(s - m)
    l = jnp.sum(p, axis=-1, keepdims=True)                 # (nh*TB, W, 1)

    o = jnp.einsum('bqk,bkd->bqd', p, v,
                   preferred_element_type=jnp.float32)     # (nh*TB, W, hd)
    o = o * pl.reciprocal(l, approx=True)                  # EUP slot, off the VPU path

    # Re-interleave heads back into channel order: out[b, w, h*hd + d].
    out3 = jnp.concatenate([o[h * TB:(h + 1) * TB] for h in range(num_heads)],
                           axis=-1)                        # (TB, W, C)

    if flatten_out:
        # lane-dense store: one (TB, W*C) slab instead of a C(<128)-wide last dim
        o_ref[...] = out3.reshape(TB, W * C).astype(o_ref.dtype)
    else:
        o_ref[...] = out3.astype(o_ref.dtype)


# --------------------------------------------------------------------------- #
# VMEM budgeting / tiling heuristics
# --------------------------------------------------------------------------- #
_LANE = 128


def _pad_lane(n):
    return -(-n // _LANE) * _LANE


def _vmem_capacity_bytes():
    try:
        cap = getattr(pltpu.get_tpu_info(), "vmem_capacity_bytes", None)
        if cap:
            return int(cap)
    except Exception:
        pass
    return 64 * 1024 * 1024   # conservative default (v7x per-TensorCore VMEM)


def _step_bytes(tb, w, c, nh):
    """Rough per-grid-step VMEM footprint (f32 compute), lane padding included."""
    hd = c // nh
    in_blk  = 2 * tb * w * _pad_lane(c) * 4            # double-buffered input block
    out_blk = 2 * tb * _pad_lane(w * c) * 4            # double-buffered output slab
    weight  = 2 * c * _pad_lane(3 * c) * 4             # qkv weight (worst case 2x)
    qkv     = tb * w * _pad_lane(3 * c) * 4            # fused projection
    heads   = 3 * nh * tb * w * _pad_lane(hd) * 4      # head-stacked q/k/v
    scores  = 2 * nh * tb * w * _pad_lane(w) * 4       # scores + exp(scores)
    outs    = nh * tb * w * _pad_lane(hd) * 4 + tb * _pad_lane(w * c) * 4
    return in_blk + out_blk + weight + qkv + heads + scores + outs


def _pick_window_batch(n_windows, w, c, nh, budget_bytes,
                       min_steps=4, min_rows=128):
    """Largest power-of-two TB (>=8, for an 8-aligned 2nd-minor out dim) that
    fits the VMEM budget, then shrink while keeping >= min_rows GEMM rows until
    there are at least `min_steps` grid steps (2 per v7x TensorCore + overlap)."""
    tb = 8
    while tb * 2 <= max(n_windows, 8) and _step_bytes(tb * 2, w, c, nh) <= budget_bytes:
        tb *= 2
    while (tb > 8 and pl.cdiv(n_windows, tb) < min_steps
           and (tb // 2) * w >= min_rows):
        tb //= 2
    return tb


# --------------------------------------------------------------------------- #
# Wrapper
# --------------------------------------------------------------------------- #
def wattention_forward(x_nchw, w_qkv, num_heads):
    B, C, H, W = x_nchw.shape
    assert C % num_heads == 0
    scale = (C // num_heads) ** (-0.5)

    n_windows = B * H
    # NCHW -> (B*H, W, C): same as x.permute(0,2,3,1).reshape(-1, W, C)
    # TODO(synk): fold this NCHW<->row-window relayout (and its inverse on the
    # output) into the kernel; it needs an in-kernel (C, W)->(W, C) relayout
    # that lowers reliably and would remove one full HBM round-trip (biggest
    # remaining cost on v5e for these low-arithmetic-intensity shapes).
    x_rows = jnp.transpose(x_nchw, (0, 2, 3, 1)).reshape(n_windows, W, C)

    # Host-side weight prep: transpose to lane-major (C, 3C) and fold the
    # attention scale into the q columns so the kernel never multiplies by it.
    w_t = jnp.transpose(w_qkv).astype(x_nchw.dtype)                   # (C, 3C)
    w_t = jnp.concatenate([w_t[:, :C] * scale, w_t[:, C:]], axis=1)

    # VMEM-budget-aware window batch + explicit scoped-VMEM limit.
    cap = _vmem_capacity_bytes()
    budget = int(0.45 * cap)
    TB = _pick_window_batch(n_windows, W, C, num_heads, budget)
    vmem_limit = max(32 * 1024 * 1024, min(int(0.85 * cap), 128 * 1024 * 1024))

    # Pad B*H to a multiple of TB (zero rows attend to zero values -> zero
    # output, sliced off below), so prime/awkward window counts don't collapse TB.
    n_pad = pl.cdiv(n_windows, TB) * TB
    if n_pad != n_windows:
        x_rows = jnp.pad(x_rows, ((0, n_pad - n_windows), (0, 0), (0, 0)))
    grid = (n_pad // TB,)

    def _build_call(flatten_out, single_buffer_weight):
        if single_buffer_weight:
            # constant block index -> a second buffer is pure VMEM waste
            w_spec = pl.BlockSpec((C, 3 * C), lambda i: (0, 0),
                                  pipeline_mode=pl.Buffered(1))
        else:
            w_spec = pl.BlockSpec((C, 3 * C), lambda i: (0, 0))
        if flatten_out:
            out_shape = jax.ShapeDtypeStruct((n_pad, W * C), x_nchw.dtype)
            out_spec = pl.BlockSpec((TB, W * C), lambda i: (i, 0))
        else:
            out_shape = jax.ShapeDtypeStruct((n_pad, W, C), x_nchw.dtype)
            out_spec = pl.BlockSpec((TB, W, C), lambda i: (i, 0, 0))
        return pl.pallas_call(
            partial(wattention_kernel, num_heads=num_heads,
                    flatten_out=flatten_out),
            out_shape=out_shape,
            grid_spec=pltpu.PrefetchScalarGridSpec(
                num_scalar_prefetch=0,
                grid=grid,
                in_specs=[pl.BlockSpec((TB, W, C), lambda i: (i, 0, 0)), w_spec],
                out_specs=out_spec,
            ),
            compiler_params=pltpu.CompilerParams(
                dimension_semantics=("parallel",),
                vmem_limit_bytes=vmem_limit),
        )

    # Preferred config first (lane-dense output slab + single-buffered weight);
    # fall back to the previously-proven layout if this Mosaic build rejects
    # the minor-dim reshape or Buffered(1).  (Detection requires eager calls.)
    configs = (dict(flatten_out=True, single_buffer_weight=True),
               dict(flatten_out=False, single_buffer_weight=False))
    out_rows, last_err = None, None
    for cfg in configs:
        try:
            out_rows = _build_call(**cfg)(x_rows, w_t)
            break
        except Exception as e:      # lowering / compile rejection
            last_err = e
    if out_rows is None:
        raise last_err

    # (B*H, W*C) or (B*H, W, C) -> (B, H, W, C) -> NCHW (module's final permute)
    out_rows = out_rows[:n_windows].reshape(B, H, W, C)
    return jnp.transpose(out_rows, (0, 3, 1, 2))


# --------------------------------------------------------------------------- #
# Pure-JAX reference (mirrors the PyTorch forward exactly)
# --------------------------------------------------------------------------- #
def wattention_ref(x_nchw, w_qkv, num_heads):
    B, C, H, W = x_nchw.shape
    hd = C // num_heads
    scale = hd ** (-0.5)
    x = jnp.transpose(x_nchw, (0, 2, 3, 1)).reshape(-1, W, C)
    qkv = x @ w_qkv.T                                                # (B*H, W, 3C)
    qkv = qkv.reshape(B, H, W, 3, num_heads, hd).transpose(3, 0, 1, 4, 2, 5)
    q, k, v = qkv[0], qkv[1], qkv[2]                                 # (B, H, nh, W, hd)
    attn = (q @ jnp.swapaxes(k, -2, -1)) * scale                     # (B, H, nh, W, W)
    attn = jax.nn.softmax(attn, axis=-1)
    out = attn @ v                                                   # (B, H, nh, W, hd)
    out = jnp.swapaxes(out, 2, 3).reshape(B, H, W, C).transpose(0, 3, 1, 2)
    return out


if __name__ == "__main__":
    # Small shapes consistent with the module (dim divisible by num_heads).
    B, C, H, W = 2, 32, 16, 16
    num_heads = 4

    key = jax.random.PRNGKey(0)
    kx, kw = jax.random.split(key)
    x = jax.random.normal(kx, (B, C, H, W), dtype=jnp.float32)
    # deterministic synthetic qkv weight (nn.Linear(dim, 3*dim, bias=False))
    w_qkv = jax.random.normal(kw, (3 * C, C), dtype=jnp.float32) * 0.02

    out = wattention_forward(x, w_qkv, num_heads)
    out = jax.block_until_ready(out)

    ref = wattention_ref(x, w_qkv, num_heads)
    assert out.shape == (B, C, H, W)
    # Tolerance accounts for the EUP approx reciprocal in the softmax
    # normalization (relative error <~1e-3); structural bugs would be O(0.1).
    err = float(jnp.max(jnp.abs(out - ref)))
    assert jnp.allclose(out, ref, atol=5e-3, rtol=5e-3), f"max err {err}"

    print("KERNEL_OK")
</pallas_src>

<mosaic_0001>
module attributes {stable_mosaic.version = 11 : i64} {
  func.func @wattention_kernel(%arg0: i32, %arg1: memref<8x16x32xf32, #tpu.memory_space<vmem>>, %arg2: memref<32x96xf32, #tpu.memory_space<vmem>>, %arg3: memref<8x512xf32, #tpu.memory_space<vmem>>) attributes {dimension_semantics = [#tpu.dimension_semantics<parallel>], iteration_bounds = array<i64: 4>, scalar_prefetch = 0 : i64, scratch_operands = 0 : i64, tpu.core_type = #tpu.core_type<tc>, window_params = [{transform_indices = @transform_0, window_bounds = array<i64: 8, 16, 32>}, {pipeline_mode = #tpu.pipeline_mode<synchronous>, transform_indices = @transform_1, window_bounds = array<i64: 32, 96>}, {transform_indices = @transform_2, window_bounds = array<i64: 8, 512>}]} {
    %c0 = arith.constant 0 : index
    %c0_0 = arith.constant 0 : index
    %c0_1 = arith.constant 0 : index
    %0 = vector.load %arg1[%c0, %c0_0, %c0_1] : memref<8x16x32xf32, #tpu.memory_space<vmem>>, vector<8x16x32xf32>
    %1 = vector.shape_cast %0 : vector<8x16x32xf32> to vector<128x32xf32>
    %c0_2 = arith.constant 0 : index
    %c0_3 = arith.constant 0 : index
    %2 = vector.load %arg2[%c0_2, %c0_3] : memref<32x96xf32, #tpu.memory_space<vmem>>, vector<32x96xf32>
    %cst = arith.constant dense<0.000000e+00> : vector<128x96xf32>
    %3 = tpu.matmul %1, %2, %cst {dimension_numbers = #tpu.dot_dimension_numbers<[1], [0], [0], [1], [0, 0, 1, 1], [], []>} : vector<128x32xf32>, vector<32x96xf32>, vector<128x96xf32> -> vector<128x96xf32>
    %4 = vector.extract_strided_slice %3 {offsets = [0, 0], sizes = [128, 8], strides = [1, 1]} : vector<128x96xf32> to vector<128x8xf32>
    %5 = vector.shape_cast %4 : vector<128x8xf32> to vector<8x16x8xf32>
    %6 = vector.extract_strided_slice %3 {offsets = [0, 8], sizes = [128, 8], strides = [1, 1]} : vector<128x96xf32> to vector<128x8xf32>
    %7 = vector.shape_cast %6 : vector<128x8xf32> to vector<8x16x8xf32>
    %8 = vector.extract_strided_slice %3 {offsets = [0, 16], sizes = [128, 8], strides = [1, 1]} : vector<128x96xf32> to vector<128x8xf32>
    %9 = vector.shape_cast %8 : vector<128x8xf32> to vector<8x16x8xf32>
    %10 = vector.extract_strided_slice %3 {offsets = [0, 24], sizes = [128, 8], strides = [1, 1]} : vector<128x96xf32> to vector<128x8xf32>
    %11 = vector.shape_cast %10 : vector<128x8xf32> to vector<8x16x8xf32>
    %12 = tpu.concatenate %5, %7, %9, %11 in 0 : vector<8x16x8xf32>, vector<8x16x8xf32>, vector<8x16x8xf32>, vector<8x16x8xf32> -> vector<32x16x8xf32>
    %13 = vector.extract_strided_slice %3 {offsets = [0, 32], sizes = [128, 8], strides = [1, 1]} : vector<128x96xf32> to vector<128x8xf32>
    %14 = vector.shape_cast %13 : vector<128x8xf32> to vector<8x16x8xf32>
    %15 = vector.extract_strided_slice %3 {offsets = [0, 40], sizes = [128, 8], strides = [1, 1]} : vector<128x96xf32> to vector<128x8xf32>
    %16 = vector.shape_cast %15 : vector<128x8xf32> to vector<8x16x8xf32>
    %17 = vector.extract_strided_slice %3 {offsets = [0, 48], sizes = [128, 8], strides = [1, 1]} : vector<128x96xf32> to vector<128x8xf32>
    %18 = vector.shape_cast %17 : vector<128x8xf32> to vector<8x16x8xf32>
    %19 = vector.extract_strided_slice %3 {offsets = [0, 56], sizes = [128, 8], strides = [1, 1]} : vector<128x96xf32> to vector<128x8xf32>
    %20 = vector.shape_cast %19 : vector<128x8xf32> to vector<8x16x8xf32>
    %21 = tpu.concatenate %14, %16, %18, %20 in 0 : vector<8x16x8xf32>, vector<8x16x8xf32>, vector<8x16x8xf32>, vector<8x16x8xf32> -> vector<32x16x8xf32>
    %22 = vector.extract_strided_slice %3 {offsets = [0, 64], sizes = [128, 8], strides = [1, 1]} : vector<128x96xf32> to vector<128x8xf32>
    %23 = vector.shape_cast %22 : vector<128x8xf32> to vector<8x16x8xf32>
    %24 = vector.extract_strided_slice %3 {offsets = [0, 72], sizes = [128, 8], strides = [1, 1]} : vector<128x96xf32> to vector<128x8xf32>
    %25 = vector.shape_cast %24 : vector<128x8xf32> to vector<8x16x8xf32>
    %26 = vector.extract_strided_slice %3 {offsets = [0, 80], sizes = [128, 8], strides = [1, 1]} : vector<128x96xf32> to vector<128x8xf32>
    %27 = vector.shape_cast %26 : vector<128x8xf32> to vector<8x16x8xf32>
    %28 = vector.extract_strided_slice %3 {offsets = [0, 88], sizes = [128, 8], strides = [1, 1]} : vector<128x96xf32> to vector<128x8xf32>
    %29 = vector.shape_cast %28 : vector<128x8xf32> to vector<8x16x8xf32>
    %30 = tpu.concatenate %23, %25, %27, %29 in 0 : vector<8x16x8xf32>, vector<8x16x8xf32>, vector<8x16x8xf32>, vector<8x16x8xf32> -> vector<32x16x8xf32>
    "tpu.trace_start"() <{level = 10 : i32, message = "bqd,bkd->bqk"}> : () -> ()
    %cst_4 = arith.constant dense<0.000000e+00> : vector<32x16x16xf32>
    %31 = tpu.matmul %12, %21, %cst_4 {dimension_numbers = #tpu.dot_dimension_numbers<[2], [2], [1], [1], [0, 0, 0, 1, 1, 1], [0], [0]>} : vector<32x16x8xf32>, vector<32x16x8xf32>, vector<32x16x16xf32> -> vector<32x16x16xf32>
    "tpu.trace_stop"() : () -> ()
    %cst_5 = arith.constant dense<0xFF800000> : vector<32x16xf32>
    %32 = vector.multi_reduction <maximumf>, %31, %cst_5 [2] : vector<32x16x16xf32> to vector<32x16xf32>
    %33 = vector.shape_cast %32 : vector<32x16xf32> to vector<32x16x1xf32>
    %34 = vector.broadcast %33 : vector<32x16x1xf32> to vector<32x16x16xf32>
    %35 = arith.subf %31, %34 : vector<32x16x16xf32>
    %36 = math.exp %35 : vector<32x16x16xf32>
    %cst_6 = arith.constant dense<0.000000e+00> : vector<32x16xf32>
    %37 = vector.multi_reduction <add>, %36, %cst_6 [2] : vector<32x16x16xf32> to vector<32x16xf32>
    %38 = vector.shape_cast %37 : vector<32x16xf32> to vector<32x16x1xf32>
    "tpu.trace_start"() <{level = 10 : i32, message = "bqk,bkd->bqd"}> : () -> ()
    %cst_7 = arith.constant dense<0.000000e+00> : vector<32x16x8xf32>
    %39 = tpu.matmul %36, %30, %cst_7 {dimension_numbers = #tpu.dot_dimension_numbers<[2], [1], [1], [2], [0, 0, 0, 1, 1, 2], [0], [0]>} : vector<32x16x16xf32>, vector<32x16x8xf32>, vector<32x16x8xf32> -> vector<32x16x8xf32>
    "tpu.trace_stop"() : () -> ()
    %40 = tpu.reciprocal %38 {approx = true} : vector<32x16x1xf32> -> vector<32x16x1xf32>
    %41 = vector.broadcast %40 : vector<32x16x1xf32> to vector<32x16x8xf32>
    %42 = arith.mulf %39, %41 : vector<32x16x8xf32>
    %43 = vector.extract_strided_slice %42 {offsets = [0, 0, 0], sizes = [8, 16, 8], strides = [1, 1, 1]} : vector<32x16x8xf32> to vector<8x16x8xf32>
    %44 = vector.extract_strided_slice %42 {offsets = [8, 0, 0], sizes = [8, 16, 8], strides = [1, 1, 1]} : vector<32x16x8xf32> to vector<8x16x8xf32>
    %45 = vector.extract_strided_slice %42 {offsets = [16, 0, 0], sizes = [8, 16, 8], strides = [1, 1, 1]} : vector<32x16x8xf32> to vector<8x16x8xf32>
    %46 = vector.extract_strided_slice %42 {offsets = [24, 0, 0], sizes = [8, 16, 8], strides = [1, 1, 1]} : vector<32x16x8xf32> to vector<8x16x8xf32>
    %47 = tpu.concatenate %43, %44, %45, %46 in 2 : vector<8x16x8xf32>, vector<8x16x8xf32>, vector<8x16x8xf32>, vector<8x16x8xf32> -> vector<8x16x32xf32>
    %48 = vector.shape_cast %47 : vector<8x16x32xf32> to vector<8x512xf32>
    %c0_8 = arith.constant 0 : index
    %c0_9 = arith.constant 0 : index
    %49 = vector.load %arg3[%c0_8, %c0_9] : memref<8x512xf32, #tpu.memory_space<vmem>>, vector<8x512xf32>
    tpu.vector_store %arg3[%c0_8, %c0_9], %48 {strides = array<i32>} : memref<8x512xf32, #tpu.memory_space<vmem>>, vector<8x512xf32>,
    return
  }
  func.func @transform_0(%arg0: i32) -> (i32, i32, i32) {
    %c0_i32 = arith.constant 0 : i32
    %c0_i32_0 = arith.constant 0 : i32
    %c0_i32_1 = arith.constant 0 : i32
    return %arg0, %c0_i32, %c0_i32_0 : i32, i32, i32
  }
  func.func @transform_1(%arg0: i32) -> (i32, i32) {
    %c0_i32 = arith.constant 0 : i32
    %c0_i32_0 = arith.constant 0 : i32
    %c0_i32_1 = arith.constant 0 : i32
    return %c0_i32, %c0_i32_0 : i32, i32
  }
  func.func @transform_2(%arg0: i32) -> (i32, i32) {
    %c0_i32 = arith.constant 0 : i32
    %c0_i32_0 = arith.constant 0 : i32
    return %arg0, %c0_i32 : i32, i32
  }
}

module attributes {stable_mosaic.version = 11 : i64} {
  func.func @wattention_kernel(%arg0: i32, %arg1: memref<8x16x32xf32, #tpu.memory_space<vmem>>, %arg2: memref<32x96xf32, #tpu.memory_space<vmem>>, %arg3: memref<8x16x32xf32, #tpu.memory_space<vmem>>) attributes {dimension_semantics = [#tpu.dimension_semantics<parallel>], iteration_bounds = array<i64: 4>, scalar_prefetch = 0 : i64, scratch_operands = 0 : i64, tpu.core_type = #tpu.core_type<tc>, window_params = [{transform_indices = @transform_0, window_bounds = array<i64: 8, 16, 32>}, {pipeline_mode = #tpu.pipeline_mode<synchronous>, transform_indices = @transform_1, window_bounds = array<i64: 32, 96>}, {transform_indices = @transform_2, window_bounds = array<i64: 8, 16, 32>}]} {
    %c0 = arith.constant 0 : index
    %c0_0 = arith.constant 0 : index
    %c0_1 = arith.constant 0 : index
    %0 = vector.load %arg1[%c0, %c0_0, %c0_1] : memref<8x16x32xf32, #tpu.memory_space<vmem>>, vector<8x16x32xf32>
    %1 = vector.shape_cast %0 : vector<8x16x32xf32> to vector<128x32xf32>
    %c0_2 = arith.constant 0 : index
    %c0_3 = arith.constant 0 : index
    %2 = vector.load %arg2[%c0_2, %c0_3] : memref<32x96xf32, #tpu.memory_space<vmem>>, vector<32x96xf32>
    %cst = arith.constant dense<0.000000e+00> : vector<128x96xf32>
    %3 = tpu.matmul %1, %2, %cst {dimension_numbers = #tpu.dot_dimension_numbers<[1], [0], [0], [1], [0, 0, 1, 1], [], []>} : vector<128x32xf32>, vector<32x96xf32>, vector<128x96xf32> -> vector<128x96xf32>
    %4 = vector.extract_strided_slice %3 {offsets = [0, 0], sizes = [128, 8], strides = [1, 1]} : vector<128x96xf32> to vector<128x8xf32>
    %5 = vector.shape_cast %4 : vector<128x8xf32> to vector<8x16x8xf32>
    %6 = vector.extract_strided_slice %3 {offsets = [0, 8], sizes = [128, 8], strides = [1, 1]} : vector<128x96xf32> to vector<128x8xf32>
    %7 = vector.shape_cast %6 : vector<128x8xf32> to vector<8x16x8xf32>
    %8 = vector.extract_strided_slice %3 {offsets = [0, 16], sizes = [128, 8], strides = [1, 1]} : vector<128x96xf32> to vector<128x8xf32>
    %9 = vector.shape_cast %8 : vector<128x8xf32> to vector<8x16x8xf32>
    %10 = vector.extract_strided_slice %3 {offsets = [0, 24], sizes = [128, 8], strides = [1, 1]} : vector<128x96xf32> to vector<128x8xf32>
    %11 = vector.shape_cast %10 : vector<128x8xf32> to vector<8x16x8xf32>
    %12 = tpu.concatenate %5, %7, %9, %11 in 0 : vector<8x16x8xf32>, vector<8x16x8xf32>, vector<8x16x8xf32>, vector<8x16x8xf32> -> vector<32x16x8xf32>
    %13 = vector.extract_strided_slice %3 {offsets = [0, 32], sizes = [128, 8], strides = [1, 1]} : vector<128x96xf32> to vector<128x8xf32>
    %14 = vector.shape_cast %13 : vector<128x8xf32> to vector<8x16x8xf32>
    %15 = vector.extract_strided_slice %3 {offsets = [0, 40], sizes = [128, 8], strides = [1, 1]} : vector<128x96xf32> to vector<128x8xf32>
    %16 = vector.shape_cast %15 : vector<128x8xf32> to vector<8x16x8xf32>
    %17 = vector.extract_strided_slice %3 {offsets = [0, 48], sizes = [128, 8], strides = [1, 1]} : vector<128x96xf32> to vector<128x8xf32>
    %18 = vector.shape_cast %17 : vector<128x8xf32> to vector<8x16x8xf32>
    %19 = vector.extract_strided_slice %3 {offsets = [0, 56], sizes = [128, 8], strides = [1, 1]} : vector<128x96xf32> to vector<128x8xf32>
    %20 = vector.shape_cast %19 : vector<128x8xf32> to vector<8x16x8xf32>
    %21 = tpu.concatenate %14, %16, %18, %20 in 0 : vector<8x16x8xf32>, vector<8x16x8xf32>, vector<8x16x8xf32>, vector<8x16x8xf32> -> vector<32x16x8xf32>
    %22 = vector.extract_strided_slice %3 {offsets = [0, 64], sizes = [128, 8], strides = [1, 1]} : vector<128x96xf32> to vector<128x8xf32>
    %23 = vector.shape_cast %22 : vector<128x8xf32> to vector<8x16x8xf32>
    %24 = vector.extract_strided_slice %3 {offsets = [0, 72], sizes = [128, 8], strides = [1, 1]} : vector<128x96xf32> to vector<128x8xf32>
    %25 = vector.shape_cast %24 : vector<128x8xf32> to vector<8x16x8xf32>
    %26 = vector.extract_strided_slice %3 {offsets = [0, 80], sizes = [128, 8], strides = [1, 1]} : vector<128x96xf32> to vector<128x8xf32>
    %27 = vector.shape_cast %26 : vector<128x8xf32> to vector<8x16x8xf32>
    %28 = vector.extract_strided_slice %3 {offsets = [0, 88], sizes = [128, 8], strides = [1, 1]} : vector<128x96xf32> to vector<128x8xf32>
    %29 = vector.shape_cast %28 : vector<128x8xf32> to vector<8x16x8xf32>
    %30 = tpu.concatenate %23, %25, %27, %29 in 0 : vector<8x16x8xf32>, vector<8x16x8xf32>, vector<8x16x8xf32>, vector<8x16x8xf32> -> vector<32x16x8xf32>
    "tpu.trace_start"() <{level = 10 : i32, message = "bqd,bkd->bqk"}> : () -> ()
    %cst_4 = arith.constant dense<0.000000e+00> : vector<32x16x16xf32>
    %31 = tpu.matmul %12, %21, %cst_4 {dimension_numbers = #tpu.dot_dimension_numbers<[2], [2], [1], [1], [0, 0, 0, 1, 1, 1], [0], [0]>} : vector<32x16x8xf32>, vector<32x16x8xf32>, vector<32x16x16xf32> -> vector<32x16x16xf32>
    "tpu.trace_stop"() : () -> ()
    %cst_5 = arith.constant dense<0xFF800000> : vector<32x16xf32>
    %32 = vector.multi_reduction <maximumf>, %31, %cst_5 [2] : vector<32x16x16xf32> to vector<32x16xf32>
    %33 = vector.shape_cast %32 : vector<32x16xf32> to vector<32x16x1xf32>
    %34 = vector.broadcast %33 : vector<32x16x1xf32> to vector<32x16x16xf32>
    %35 = arith.subf %31, %34 : vector<32x16x16xf32>
    %36 = math.exp %35 : vector<32x16x16xf32>
    %cst_6 = arith.constant dense<0.000000e+00> : vector<32x16xf32>
    %37 = vector.multi_reduction <add>, %36, %cst_6 [2] : vector<32x16x16xf32> to vector<32x16xf32>
    %38 = vector.shape_cast %37 : vector<32x16xf32> to vector<32x16x1xf32>
    "tpu.trace_start"() <{level = 10 : i32, message = "bqk,bkd->bqd"}> : () -> ()
    %cst_7 = arith.constant dense<0.000000e+00> : vector<32x16x8xf32>
    %39 = tpu.matmul %36, %30, %cst_7 {dimension_numbers = #tpu.dot_dimension_numbers<[2], [1], [1], [2], [0, 0, 0, 1, 1, 2], [0], [0]>} : vector<32x16x16xf32>, vector<32x16x8xf32>, vector<32x16x8xf32> -> vector<32x16x8xf32>
    "tpu.trace_stop"() : () -> ()
    %40 = tpu.reciprocal %38 {approx = true} : vector<32x16x1xf32> -> vector<32x16x1xf32>
    %41 = vector.broadcast %40 : vector<32x16x1xf32> to vector<32x16x8xf32>
    %42 = arith.mulf %39, %41 : vector<32x16x8xf32>
    %43 = vector.extract_strided_slice %42 {offsets = [0, 0, 0], sizes = [8, 16, 8], strides = [1, 1, 1]} : vector<32x16x8xf32> to vector<8x16x8xf32>
    %44 = vector.extract_strided_slice %42 {offsets = [8, 0, 0], sizes = [8, 16, 8], strides = [1, 1, 1]} : vector<32x16x8xf32> to vector<8x16x8xf32>
    %45 = vector.extract_strided_slice %42 {offsets = [16, 0, 0], sizes = [8, 16, 8], strides = [1, 1, 1]} : vector<32x16x8xf32> to vector<8x16x8xf32>
    %46 = vector.extract_strided_slice %42 {offsets = [24, 0, 0], sizes = [8, 16, 8], strides = [1, 1, 1]} : vector<32x16x8xf32> to vector<8x16x8xf32>
    %47 = tpu.concatenate %43, %44, %45, %46 in 2 : vector<8x16x8xf32>, vector<8x16x8xf32>, vector<8x16x8xf32>, vector<8x16x8xf32> -> vector<8x16x32xf32>
    %c0_8 = arith.constant 0 : index
    %c0_9 = arith.constant 0 : index
    %c0_10 = arith.constant 0 : index
    %48 = vector.load %arg3[%c0_8, %c0_9, %c0_10] : memref<8x16x32xf32, #tpu.memory_space<vmem>>, vector<8x16x32xf32>
    tpu.vector_store %arg3[%c0_8, %c0_9, %c0_10], %47 {strides = array<i32>} : memref<8x16x32xf32, #tpu.memory_space<vmem>>, vector<8x16x32xf32>,
    return
  }
  func.func @transform_0(%arg0: i32) -> (i32, i32, i32) {
    %c0_i32 = arith.constant 0 : i32
    %c0_i32_0 = arith.constant 0 : i32
    %c0_i32_1 = arith.constant 0 : i32
    return %arg0, %c0_i32, %c0_i32_0 : i32, i32, i32
  }
  func.func @transform_1(%arg0: i32) -> (i32, i32) {
    %c0_i32 = arith.constant 0 : i32
    %c0_i32_0 = arith.constant 0 : i32
    %c0_i32_1 = arith.constant 0 : i32
    return %c0_i32, %c0_i32_0 : i32, i32
  }
  func.func @transform_2(%arg0: i32) -> (i32, i32, i32) {
    %c0_i32 = arith.constant 0 : i32
    %c0_i32_0 = arith.constant 0 : i32
    %c0_i32_1 = arith.constant 0 : i32
    return %arg0, %c0_i32, %c0_i32_0 : i32, i32, i32
  }
}

</mosaic_0001>

<llo_original>
// kernel: tpu_custom_call.1
$region0: #{tpu_custom_call.1}
  #allocation0 [shape = 'u32[]', space=smem, size = 0x4, offset = 0x4, fixed_abs, tag = 'smem constant byte address 0x4 - core index']
  #allocation1 [shape = 'u32[72,128]{1,0:T(1,128)}', space=vmem, size = 0x9000, scoped, tag = 'internal scratch']
  %s0 = inlined_call_operand.hbm [shape: f32[32,16,32], index: 0, kind: input, shape index: {}]
  %s1 = inlined_call_operand.hbm [shape: f32[32,96], index: 1, kind: input, shape index: {}]
  %s2 = inlined_call_operand.hbm [shape: f32[32,512], index: 2, kind: output, shape index: {}]
  %s3 = sld [smem:[#allocation0]]
  $region49: #{tpu_custom_call.1} parent=0
    _
  %s5 = ssub.s32 1, %s3
  %s6 = scalar_select 0, %s5, %s3
  $region1: #{tpu_custom_call.1} parent=0
    #allocation2 [shape = 'u8[131072]{0}', space=vmem, size = 0x20000, scoped, tag = 'input window, operand 0']
    #allocation3 [shape = 's32[2]{0}', space=sflag, size = 0x8, scoped, tag = 'scoped memory for tpu_custom_call.1']
    #allocation4 [shape = 's32[2]{0}', space=sflag, size = 0x8, scoped, tag = 'scoped memory for tpu_custom_call.1']
    #allocation5 [shape = 'u8[16384]{0}', space=vmem, size = 0x4000, scoped, tag = 'input window, operand 1, single buffered']
    #allocation6 [shape = 's32[1]{0}', space=sflag, size = 0x4, scoped, tag = 'scoped memory for tpu_custom_call.1']
    #allocation7 [shape = 'u8[32768]{0}', space=vmem, size = 0x8000, scoped, tag = 'output window, operand 0']
    %7 = vsyncpa [#allocation3], 0
    %s8 = scalar_lea.sflag [#allocation3], 1
    %9 = vsyncpa %s8, 0
    %10 = vsyncpa [#allocation6], 0
    %11 = vsyncpa [#allocation4], 0
    %s12 = scalar_lea.sflag [#allocation4], 1
    %13 = vsyncpa %s12, 0
    loop: start=0, step=1, limit=6
    $region2: #{tpu_custom_call.1} parent=1 // loop_pre_header
      _
    $region3: #{tpu_custom_call.1} parent=1 // loop_header
      %s15 = sphi 0, %s19
      %p16 = scmp.ge.s32.totalorder %s15, 6
      %s25 = sphi 0, %s27
      %s28 = sphi 0, %s25
      %s29 = sphi 0, %s28
      %s45 = sphi 0, %s29
      %s49 = sphi 0, %s49
      %s51 = sphi 0, %s49
      %s52 = sphi 0, %s51
      %s66 = sphi 0, %s52
      %s72 = sphi 0, %s74
      %s75 = sphi 0, %s72
      %s76 = sphi 0, %s75
      %s92 = sphi 0, %s76
    $region4: #{tpu_custom_call.1} parent=1 // loop_header_branch
      %18 = sbr.rel (%p16) target = $region8
    $region5: #{tpu_custom_call.1} parent=1 // loop_body
      %s20 = ssub.s32 %s15, 1
      %s21 = ssub.s32 %s15, 2
      %s22 = sadd.s32 %s15, 1
      %s23 = ssub.s32 %s15, %s22
      %p24 = scmp.eq.s32.totalorder %s23, 0
      %s26 = sadd.s32 %s25, 1
      %s27 = scalar_select %p24, %s25, %s26
      %p30 = pneg %p24
      %p31 = scmp.eq.s32.totalorder %s15, 3
      %p32 = por %p30, %p31
      %p33 = scmp.ne.s32.totalorder %s25, %s28
      %p34 = scmp.eq.s32.totalorder %s15, 0
      %p35 = por %p33, %p34
      %p36 = scmp.ne.s32.totalorder %s25, %s28
      %p37 = scmp.eq.s32.totalorder %s20, 3
      %p38 = por %p36, %p37
      %p39 = scmp.ne.s32.totalorder %s28, %s29
      %p40 = scmp.eq.s32.totalorder %s20, 0
      %p41 = por %p39, %p40
      %p42 = scmp.ne.s32.totalorder %s28, %s29
      %p43 = scmp.eq.s32.totalorder %s21, 3
      %p44 = por %p42, %p43
      %p46 = scmp.ne.s32.totalorder %s29, %s45
      %p47 = scmp.eq.s32.totalorder %s21, 0
      %p48 = por %p46, %p47
      %s50 = sadd.s32 %s49, 1
      %p53 = scmp.eq.s32.totalorder %s15, 3
      %p54 = scmp.ne.s32.totalorder %s49, %s51
      %p55 = scmp.eq.s32.totalorder %s15, 0
      %p56 = por %p54, %p55
      %p57 = scmp.ne.s32.totalorder %s49, %s51
      %p58 = scmp.eq.s32.totalorder %s20, 3
      %p59 = por %p57, %p58
      %p60 = scmp.ne.s32.totalorder %s51, %s52
      %p61 = scmp.eq.s32.totalorder %s20, 0
      %p62 = por %p60, %p61
      %p63 = scmp.ne.s32.totalorder %s51, %s52
      %p64 = scmp.eq.s32.totalorder %s21, 3
      %p65 = por %p63, %p64
      %p67 = scmp.ne.s32.totalorder %s52, %s66
      %p68 = scmp.eq.s32.totalorder %s21, 0
      %p69 = por %p67, %p68
      %s70 = ssub.s32 %s15, %s22
      %p71 = scmp.eq.s32.totalorder %s70, 0
      %s73 = sadd.s32 %s72, 1
      %s74 = scalar_select %p71, %s72, %s73
      %p77 = pneg %p71
      %p78 = scmp.eq.s32.totalorder %s15, 3
      %p79 = por %p77, %p78
      %p80 = scmp.ne.s32.totalorder %s72, %s75
      %p81 = scmp.eq.s32.totalorder %s15, 0
      %p82 = por %p80, %p81
      %p83 = scmp.ne.s32.totalorder %s72, %s75
      %p84 = scmp.eq.s32.totalorder %s20, 3
      %p85 = por %p83, %p84
      %p86 = scmp.ne.s32.totalorder %s75, %s76
      %p87 = scmp.eq.s32.totalorder %s20, 0
      %p88 = por %p86, %p87
      %p89 = scmp.ne.s32.totalorder %s75, %s76
      %p90 = scmp.eq.s32.totalorder %s21, 3
      %p91 = por %p89, %p90
      %p93 = scmp.ne.s32.totalorder %s76, %s92
      %p94 = scmp.eq.s32.totalorder %s21, 0
      %p95 = por %p93, %p94
      %p96 = scmp.le.s32.totalorder 1, %s15
      %p97 = scmp.lt.s32.totalorder %s15, 5
      %p98 = pnand %p96, %p97
      %p99 = pneg %p98
      // Predicated region
      $region9: #{tpu_custom_call.1} parent=5 // pred_check
        _
      $region10: #{tpu_custom_call.1} parent=5 // pred_check_branch
        %101 = sbr.rel (%p98) target = $region12
      $region11: #{tpu_custom_call.1} parent=5 // pred_region
        %s102 = ssub.s32 %s15, 1
        // Predicated region
        $region13: #{tpu_custom_call.1} parent=11 // pred_check
          %p103 = pneg %p62
        $region14: #{tpu_custom_call.1} parent=11 // pred_check_branch
          %105 = sbr.rel (%p103) target = $region16
        $region15: #{tpu_custom_call.1} parent=11 // pred_region
          %107 = vsyncadd [#allocation6], 0
          %s108 = sshll.u32 %s1, 4
          %s109 = int_to_ptr.hbm [resolvable:$true] %s108
          %s110 = sshll.u32 [#allocation5], 4
          %s111 = int_to_ptr.vmem [resolvable:$true] %s110
          %116 = dma.hbm_to_vmem [thread:$0]  %s109, 512, %s111, [#allocation6], 128, 128, 8
        $region16: #{tpu_custom_call.1} parent=11 // pred_fallthru
          _
      $region12: #{tpu_custom_call.1} parent=5 // pred_fallthru
        _
      %p117 = scmp.lt.s32.totalorder %s15, 4
      // Predicated region
      $region17: #{tpu_custom_call.1} parent=5 // pred_check
        %p118 = pneg %p117
      $region18: #{tpu_custom_call.1} parent=5 // pred_check_branch
        %120 = sbr.rel (%p118) target = $region20
      $region19: #{tpu_custom_call.1} parent=5 // pred_region
        // Predicated region
        $region21: #{tpu_custom_call.1} parent=19 // pred_check
          %p121 = pneg %p35
        $region22: #{tpu_custom_call.1} parent=19 // pred_check_branch
          %123 = sbr.rel (%p121) target = $region24
        $region23: #{tpu_custom_call.1} parent=19 // pred_region
          %s124 = sand.u32 %s25, 1
          %s125 = scalar_lea.sflag [#allocation3], %s124
          %s126 = sand.u32 %s25, 1
          %s127 = smul.addr %s126, 128
          %s128 = scalar_lea.vmem [#allocation2], %s127
          %s129 = smul.u32 8, %s15
          %131 = vsyncadd %s125, 0
          %s132 = smul.addr %s129, 2
          %s133 = smul.addr %s132, 8
          %s134 = scalar_lea.hbm %s0, %s133
          %s135 = sshll.u32 %s134, 4
          %s136 = int_to_ptr.hbm [resolvable:$true] %s135
          %s137 = sshll.u32 %s128, 4
          %s138 = int_to_ptr.vmem [resolvable:$true] %s137
          %143 = dma.hbm_to_vmem [thread:$0]  %s136, 2048, %s138, %s125, 128, 128, 8
        $region24: #{tpu_custom_call.1} parent=19 // pred_fallthru
          _
      $region20: #{tpu_custom_call.1} parent=5 // pred_fallthru
        _
      %p144 = scmp.le.s32.totalorder 1, %s15
      %p145 = scmp.lt.s32.totalorder %s15, 5
      %p146 = pnand %p144, %p145
      %p147 = pneg %p146
      // Predicated region
      $region25: #{tpu_custom_call.1} parent=5 // pred_check
        _
      $region26: #{tpu_custom_call.1} parent=5 // pred_check_branch
        %149 = sbr.rel (%p146) target = $region28
      $region27: #{tpu_custom_call.1} parent=5 // pred_region
        %s150 = ssub.s32 %s15, 1
        %s151 = sand.u32 %s28, 1
        %s152 = scalar_lea.sflag [#allocation3], %s151
        %s153 = sand.u32 %s28, 1
        %s154 = smul.addr %s153, 128
        %s155 = scalar_lea.vmem [#allocation2], %s154
        // Predicated region
        $region29: #{tpu_custom_call.1} parent=27 // pred_check
          %p156 = pneg %p41
        $region30: #{tpu_custom_call.1} parent=27 // pred_check_branch
          %158 = sbr.rel (%p156) target = $region32
        $region31: #{tpu_custom_call.1} parent=27 // pred_region
          %160 = dma.done %s152, 2048
        $region32: #{tpu_custom_call.1} parent=27 // pred_fallthru
          _
        // Predicated region
        $region33: #{tpu_custom_call.1} parent=27 // pred_check
          %p161 = pneg %p62
        $region34: #{tpu_custom_call.1} parent=27 // pred_check_branch
          %163 = sbr.rel (%p161) target = $region36
        $region35: #{tpu_custom_call.1} parent=27 // pred_region
          %165 = dma.done [#allocation6], 512
        $region36: #{tpu_custom_call.1} parent=27 // pred_fallthru
          _
        %s166 = sand.u32 %s28, 1
        %s167 = scalar_lea.sflag [#allocation3], %s166
        %s168 = sand.u32 %s28, 1
        %s169 = smul.addr %s168, 128
        %s170 = scalar_lea.vmem [#allocation2], %s169
        %p171 = pneg %p41
        %p172 = pneg %p38
        %p173 = pneg %p62
        %p174 = pneg %p59
        %p175 = pneg %p88
        %p176 = pneg %p85
        %s177 = sand.u32 %s75, 1
        %s178 = scalar_lea.sflag [#allocation4], %s177
        %s179 = sand.u32 %s75, 1
        %s180 = smul.addr %s179, 32
        %s181 = scalar_lea.vmem [#allocation7], %s180
        %s182 = smul.u32 8, %s20
        %v183 = vld [vmem:[%s155] sm:$0xff]
        %v184 = vld [vmem:[%s155 + $0x8] sm:$0xff]
        %v185 = vld [vmem:[%s155 + $0x10] sm:$0xff]
        %v186 = vld [vmem:[%s155 + $0x18] sm:$0xff]
        %v187 = vld [vmem:[%s155 + $0x20] sm:$0xff]
        %v188 = vld [vmem:[%s155 + $0x28] sm:$0xff]
        %v189 = vld [vmem:[%s155 + $0x30] sm:$0xff]
        %v190 = vld [vmem:[%s155 + $0x38] sm:$0xff]
        %v191 = vld [vmem:[%s155 + $0x40] sm:$0xff]
        %v192 = vld [vmem:[%s155 + $0x48] sm:$0xff]
        %v193 = vld [vmem:[%s155 + $0x50] sm:$0xff]
        %v194 = vld [vmem:[%s155 + $0x58] sm:$0xff]
        %v195 = vld [vmem:[%s155 + $0x60] sm:$0xff]
        %v196 = vld [vmem:[%s155 + $0x68] sm:$0xff]
        %v197 = vld [vmem:[%s155 + $0x70] sm:$0xff]
        %v198 = vld [vmem:[%s155 + $0x78] sm:$0xff]
        %v199 = vld [vmem:[#allocation5] sm:$0xff]
        %v200 = vld [vmem:[#allocation5 + $0x8] sm:$0xff]
        %v201 = vld [vmem:[#allocation5 + $0x10] sm:$0xff]
        %v202 = vld [vmem:[#allocation5 + $0x18] sm:$0xff]
        %vm203 = vcmask 261120
        %v205 = vsel %vm203, %v183, 0
        %v208 = vsel %vm203, %v184, 0
        %v211 = vsel %vm203, %v185, 0
        %v214 = vsel %vm203, %v186, 0
        %v217 = vsel %vm203, %v187, 0
        %v220 = vsel %vm203, %v188, 0
        %v223 = vsel %vm203, %v189, 0
        %v226 = vsel %vm203, %v190, 0
        %v229 = vsel %vm203, %v191, 0
        %v232 = vsel %vm203, %v192, 0
        %v235 = vsel %vm203, %v193, 0
        %v238 = vsel %vm203, %v194, 0
        %v241 = vsel %vm203, %v195, 0
        %v244 = vsel %vm203, %v196, 0
        %v247 = vsel %vm203, %v197, 0
        %v250 = vsel %vm203, %v198, 0
        %252 = vmatpush.msra.mxu0 0.0
        %253 = vmatpush.msra.mxu0 0.0
        %254 = vmatpush.msra.mxu0 0.0
        %255 = vmatpush.msra.mxu0 0.0
        %256 = vmatpush.msra.mxu0 0.0
        %257 = vmatpush.msra.mxu0 0.0
        %258 = vmatpush.msra.mxu0 0.0
        %259 = vmatpush.msra.mxu0 0.0
        %260 = vmatpush.msra.mxu0 0.0
        %261 = vmatpush.msra.mxu0 0.0
        %262 = vmatpush.msra.mxu0 0.0
        %263 = vmatpush.msra.mxu0 0.0
        %264 = vmatpush.msra.mxu0 %v202
        %265 = vmatpush.msra.mxu0 %v201
        %266 = vmatpush.msra.mxu0 %v200
        %267 = vmatpush.msra.mxu0 %v199
        %268 = vmatmul.f32.gmra.mxu0 %v205
        %v269 = vpop.f32.mrf.mxu0
        %v270 = vadd.f32 0.0, %v269
        %271 = vmatmul.f32.gmra.mxu0 %v208
        %v272 = vpop.f32.mrf.mxu0
        %v273 = vadd.f32 0.0, %v272
        %274 = vmatmul.f32.gmra.mxu0 %v211
        %v275 = vpop.f32.mrf.mxu0
        %v276 = vadd.f32 0.0, %v275
        %277 = vmatmul.f32.gmra.mxu0 %v214
        %v278 = vpop.f32.mrf.mxu0
        %v279 = vadd.f32 0.0, %v278
        %280 = vmatmul.f32.gmra.mxu0 %v217
        %v281 = vpop.f32.mrf.mxu0
        %v282 = vadd.f32 0.0, %v281
        %283 = vmatmul.f32.gmra.mxu0 %v220
        %v284 = vpop.f32.mrf.mxu0
        %v285 = vadd.f32 0.0, %v284
        %286 = vmatmul.f32.gmra.mxu0 %v223
        %v287 = vpop.f32.mrf.mxu0
        %v288 = vadd.f32 0.0, %v287
        %289 = vmatmul.f32.gmra.mxu0 %v226
        %v290 = vpop.f32.mrf.mxu0
        %v291 = vadd.f32 0.0, %v290
        %292 = vmatmul.f32.gmra.mxu0 %v229
        %v293 = vpop.f32.mrf.mxu0
        %v294 = vadd.f32 0.0, %v293
        %295 = vmatmul.f32.gmra.mxu0 %v232
        %v296 = vpop.f32.mrf.mxu0
        %v297 = vadd.f32 0.0, %v296
        %298 = vmatmul.f32.gmra.mxu0 %v235
        %v299 = vpop.f32.mrf.mxu0
        %v300 = vadd.f32 0.0, %v299
        %301 = vmatmul.f32.gmra.mxu0 %v238
        %v302 = vpop.f32.mrf.mxu0
        %v303 = vadd.f32 0.0, %v302
        %304 = vmatmul.f32.gmra.mxu0 %v241
        %v305 = vpop.f32.mrf.mxu0
        %v306 = vadd.f32 0.0, %v305
        %307 = vmatmul.f32.gmra.mxu0 %v244
        %v308 = vpop.f32.mrf.mxu0
        %v309 = vadd.f32 0.0, %v308
        %310 = vmatmul.f32.gmra.mxu0 %v247
        %v311 = vpop.f32.mrf.mxu0
        %v312 = vadd.f32 0.0, %v311
        %313 = vmatmul.f32.gmra.mxu0 %v250
        %v314 = vpop.f32.mrf.mxu0
        %v315 = vadd.f32 0.0, %v314
        %316 = vdwg.mxu0
        %333 = vrot.lane.b32.xlu0 %v270, 120
        %v334 = vpop.permute.xlu0 %333
        %335 = vrot.lane.b32.xlu0 %v273, 120
        %v336 = vpop.permute.xlu0 %335
        %337 = vrot.lane.b32.xlu0 %v276, 120
        %v338 = vpop.permute.xlu0 %337
        %339 = vrot.lane.b32.xlu0 %v279, 120
        %v340 = vpop.permute.xlu0 %339
        %341 = vrot.lane.b32.xlu0 %v282, 120
        %v342 = vpop.permute.xlu0 %341
        %343 = vrot.lane.b32.xlu0 %v285, 120
        %v344 = vpop.permute.xlu0 %343
        %345 = vrot.lane.b32.xlu0 %v288, 120
        %v346 = vpop.permute.xlu0 %345
        %347 = vrot.lane.b32.xlu0 %v291, 120
        %v348 = vpop.permute.xlu0 %347
        %349 = vrot.lane.b32.xlu0 %v294, 120
        %v350 = vpop.permute.xlu0 %349
        %351 = vrot.lane.b32.xlu0 %v297, 120
        %v352 = vpop.permute.xlu0 %351
        %353 = vrot.lane.b32.xlu0 %v300, 120
        %v354 = vpop.permute.xlu0 %353
        %355 = vrot.lane.b32.xlu0 %v303, 120
        %v356 = vpop.permute.xlu0 %355
        %357 = vrot.lane.b32.xlu0 %v306, 120
        %v358 = vpop.permute.xlu0 %357
        %359 = vrot.lane.b32.xlu0 %v309, 120
        %v360 = vpop.permute.xlu0 %359
        %361 = vrot.lane.b32.xlu0 %v312, 120
        %v362 = vpop.permute.xlu0 %361
        %363 = vrot.lane.b32.xlu0 %v315, 120
        %v364 = vpop.permute.xlu0 %363
        %365 = vrot.lane.b32.xlu0 %v270, 112
        %v366 = vpop.permute.xlu0 %365
        %367 = vrot.lane.b32.xlu0 %v273, 112
        %v368 = vpop.permute.xlu0 %367
        %369 = vrot.lane.b32.xlu0 %v276, 112
        %v370 = vpop.permute.xlu0 %369
        %371 = vrot.lane.b32.xlu0 %v279, 112
        %v372 = vpop.permute.xlu0 %371
        %373 = vrot.lane.b32.xlu0 %v282, 112
        %v374 = vpop.permute.xlu0 %373
        %375 = vrot.lane.b32.xlu0 %v285, 112
        %v376 = vpop.permute.xlu0 %375
        %377 = vrot.lane.b32.xlu0 %v288, 112
        %v378 = vpop.permute.xlu0 %377
        %379 = vrot.lane.b32.xlu0 %v291, 112
        %v380 = vpop.permute.xlu0 %379
        %381 = vrot.lane.b32.xlu0 %v294, 112
        %v382 = vpop.permute.xlu0 %381
        %383 = vrot.lane.b32.xlu0 %v297, 112
        %v384 = vpop.permute.xlu0 %383
        %385 = vrot.lane.b32.xlu0 %v300, 112
        %v386 = vpop.permute.xlu0 %385
        %387 = vrot.lane.b32.xlu0 %v303, 112
        %v388 = vpop.permute.xlu0 %387
        %389 = vrot.lane.b32.xlu0 %v306, 112
        %v390 = vpop.permute.xlu0 %389
        %391 = vrot.lane.b32.xlu0 %v309, 112
        %v392 = vpop.permute.xlu0 %391
        %393 = vrot.lane.b32.xlu0 %v312, 112
        %v394 = vpop.permute.xlu0 %393
        %395 = vrot.lane.b32.xlu0 %v315, 112
        %v396 = vpop.permute.xlu0 %395
        %397 = vrot.lane.b32.xlu0 %v270, 104
        %v398 = vpop.permute.xlu0 %397
        %399 = vrot.lane.b32.xlu0 %v273, 104
        %v400 = vpop.permute.xlu0 %399
        %401 = vrot.lane.b32.xlu0 %v276, 104
        %v402 = vpop.permute.xlu0 %401
        %403 = vrot.lane.b32.xlu0 %v279, 104
        %v404 = vpop.permute.xlu0 %403
        %405 = vrot.lane.b32.xlu0 %v282, 104
        %v406 = vpop.permute.xlu0 %405
        %407 = vrot.lane.b32.xlu0 %v285, 104
        %v408 = vpop.permute.xlu0 %407
        %409 = vrot.lane.b32.xlu0 %v288, 104
        %v410 = vpop.permute.xlu0 %409
        %411 = vrot.lane.b32.xlu0 %v291, 104
        %v412 = vpop.permute.xlu0 %411
        %413 = vrot.lane.b32.xlu0 %v294, 104
        %v414 = vpop.permute.xlu0 %413
        %415 = vrot.lane.b32.xlu0 %v297, 104
        %v416 = vpop.permute.xlu0 %415
        %417 = vrot.lane.b32.xlu0 %v300, 104
        %v418 = vpop.permute.xlu0 %417
        %419 = vrot.lane.b32.xlu0 %v303, 104
        %v420 = vpop.permute.xlu0 %419
        %421 = vrot.lane.b32.xlu0 %v306, 104
        %v422 = vpop.permute.xlu0 %421
        %423 = vrot.lane.b32.xlu0 %v309, 104
        %v424 = vpop.permute.xlu0 %423
        %425 = vrot.lane.b32.xlu0 %v312, 104
        %v426 = vpop.permute.xlu0 %425
        %427 = vrot.lane.b32.xlu0 %v315, 104
        %v428 = vpop.permute.xlu0 %427
        %429 = vrot.lane.b32.xlu0 %v270, 96
        %v430 = vpop.permute.xlu0 %429
        %431 = vrot.lane.b32.xlu0 %v273, 96
        %v432 = vpop.permute.xlu0 %431
        %vm433 = vcmask 64512
        %v434 = vsel %vm433, %v270, 0
        %v436 = vsel %vm433, %v273, 0
        %v438 = vsel %vm433, %v430, 0
        %v440 = vsel %vm433, %v432, 0
        %442 = vmatpush.xpose.msra.mxu0 0.0
        %443 = vmatpush.xpose.msra.mxu0 0.0
        %444 = vmatpush.xpose.msra.mxu0 0.0
        %445 = vmatpush.xpose.msra.mxu0 0.0
        %446 = vmatpush.xpose.msra.mxu0 0.0
        %447 = vmatpush.xpose.msra.mxu0 0.0
        %448 = vmatpush.xpose.msra.mxu0 0.0
        %449 = vmatpush.xpose.msra.mxu0 0.0
        %450 = vmatpush.xpose.msra.mxu0 0.0
        %451 = vmatpush.xpose.msra.mxu0 0.0
        %452 = vmatpush.xpose.msra.mxu0 0.0
        %453 = vmatpush.xpose.msra.mxu0 0.0
        %454 = vmatpush.xpose.msra.mxu0 0.0
        %455 = vmatpush.xpose.msra.mxu0 0.0
        %456 = vmatpush.xpose.msra.mxu0 %v440
        %457 = vmatpush.xpose.msra.mxu0 %v438
        %458 = vmatmul.f32.gmra.mxu0 %v434
        %v459 = vpop.f32.mrf.mxu0
        %v460 = vadd.f32 0.0, %v459
        %461 = vmatmul.f32.gmra.mxu0 %v436
        %v462 = vpop.f32.mrf.mxu0
        %v463 = vadd.f32 0.0, %v462
        %464 = vdwg.mxu0
        %465 = vrot.lane.b32.xlu0 %v276, 96
        %v466 = vpop.permute.xlu0 %465
        %467 = vrot.lane.b32.xlu0 %v279, 96
        %v468 = vpop.permute.xlu0 %467
        %v469 = vsel %vm433, %v276, 0
        %v471 = vsel %vm433, %v279, 0
        %v473 = vsel %vm433, %v466, 0
        %v475 = vsel %vm433, %v468, 0
        %477 = vmatpush.xpose.msra.mxu0 0.0
        %478 = vmatpush.xpose.msra.mxu0 0.0
        %479 = vmatpush.xpose.msra.mxu0 0.0
        %480 = vmatpush.xpose.msra.mxu0 0.0
        %481 = vmatpush.xpose.msra.mxu0 0.0
        %482 = vmatpush.xpose.msra.mxu0 0.0
        %483 = vmatpush.xpose.msra.mxu0 0.0
        %484 = vmatpush.xpose.msra.mxu0 0.0
        %485 = vmatpush.xpose.msra.mxu0 0.0
        %486 = vmatpush.xpose.msra.mxu0 0.0
        %487 = vmatpush.xpose.msra.mxu0 0.0
        %488 = vmatpush.xpose.msra.mxu0 0.0
        %489 = vmatpush.xpose.msra.mxu0 0.0
        %490 = vmatpush.xpose.msra.mxu0 0.0
        %491 = vmatpush.xpose.msra.mxu0 %v475
        %492 = vmatpush.xpose.msra.mxu0 %v473
        %493 = vmatmul.f32.gmra.mxu0 %v469
        %v494 = vpop.f32.mrf.mxu0
        %v495 = vadd.f32 0.0, %v494
        %496 = vmatmul.f32.gmra.mxu0 %v471
        %v497 = vpop.f32.mrf.mxu0
        %v498 = vadd.f32 0.0, %v497
        %499 = vdwg.mxu0
        %500 = vrot.lane.b32.xlu0 %v282, 96
        %v501 = vpop.permute.xlu0 %500
        %502 = vrot.lane.b32.xlu0 %v285, 96
        %v503 = vpop.permute.xlu0 %502
        %v504 = vsel %vm433, %v282, 0
        %v506 = vsel %vm433, %v285, 0
        %v508 = vsel %vm433, %v501, 0
        %v510 = vsel %vm433, %v503, 0
        %512 = vmatpush.xpose.msra.mxu0 0.0
        %513 = vmatpush.xpose.msra.mxu0 0.0
        %514 = vmatpush.xpose.msra.mxu0 0.0
        %515 = vmatpush.xpose.msra.mxu0 0.0
        %516 = vmatpush.xpose.msra.mxu0 0.0
        %517 = vmatpush.xpose.msra.mxu0 0.0
        %518 = vmatpush.xpose.msra.mxu0 0.0
        %519 = vmatpush.xpose.msra.mxu0 0.0
        %520 = vmatpush.xpose.msra.mxu0 0.0
        %521 = vmatpush.xpose.msra.mxu0 0.0
        %522 = vmatpush.xpose.msra.mxu0 0.0
        %523 = vmatpush.xpose.msra.mxu0 0.0
        %524 = vmatpush.xpose.msra.mxu0 0.0
        %525 = vmatpush.xpose.msra.mxu0 0.0
        %526 = vmatpush.xpose.msra.mxu0 %v510
        %527 = vmatpush.xpose.msra.mxu0 %v508
        %528 = vmatmul.f32.gmra.mxu0 %v504
        %v529 = vpop.f32.mrf.mxu0
        %v530 = vadd.f32 0.0, %v529
        %531 = vmatmul.f32.gmra.mxu0 %v506
        %v532 = vpop.f32.mrf.mxu0
        %v533 = vadd.f32 0.0, %v532
        %534 = vdwg.mxu0
        %535 = vrot.lane.b32.xlu0 %v288, 96
        %v536 = vpop.permute.xlu0 %535
        %537 = vrot.lane.b32.xlu0 %v291, 96
        %v538 = vpop.permute.xlu0 %537
        %v539 = vsel %vm433, %v288, 0
        %v541 = vsel %vm433, %v291, 0
        %v543 = vsel %vm433, %v536, 0
        %v545 = vsel %vm433, %v538, 0
        %547 = vmatpush.xpose.msra.mxu0 0.0
        %548 = vmatpush.xpose.msra.mxu0 0.0
        %549 = vmatpush.xpose.msra.mxu0 0.0
        %550 = vmatpush.xpose.msra.mxu0 0.0
        %551 = vmatpush.xpose.msra.mxu0 0.0
        %552 = vmatpush.xpose.msra.mxu0 0.0
        %553 = vmatpush.xpose.msra.mxu0 0.0
        %554 = vmatpush.xpose.msra.mxu0 0.0
        %555 = vmatpush.xpose.msra.mxu0 0.0
        %556 = vmatpush.xpose.msra.mxu0 0.0
        %557 = vmatpush.xpose.msra.mxu0 0.0
        %558 = vmatpush.xpose.msra.mxu0 0.0
        %559 = vmatpush.xpose.msra.mxu0 0.0
        %560 = vmatpush.xpose.msra.mxu0 0.0
        %561 = vmatpush.xpose.msra.mxu0 %v545
        %562 = vmatpush.xpose.msra.mxu0 %v543
        %563 = vmatmul.f32.gmra.mxu0 %v539
        %v564 = vpop.f32.mrf.mxu0
        %v565 = vadd.f32 0.0, %v564
        %566 = vmatmul.f32.gmra.mxu0 %v541
        %v567 = vpop.f32.mrf.mxu0
        %v568 = vadd.f32 0.0, %v567
        %569 = vdwg.mxu0
        %570 = vrot.lane.b32.xlu0 %v294, 96
        %v571 = vpop.permute.xlu0 %570
        %572 = vrot.lane.b32.xlu0 %v297, 96
        %v573 = vpop.permute.xlu0 %572
        %v574 = vsel %vm433, %v294, 0
        %v576 = vsel %vm433, %v297, 0
        %v578 = vsel %vm433, %v571, 0
        %v580 = vsel %vm433, %v573, 0
        %582 = vmatpush.xpose.msra.mxu0 0.0
        %583 = vmatpush.xpose.msra.mxu0 0.0
        %584 = vmatpush.xpose.msra.mxu0 0.0
        %585 = vmatpush.xpose.msra.mxu0 0.0
        %586 = vmatpush.xpose.msra.mxu0 0.0
        %587 = vmatpush.xpose.msra.mxu0 0.0
        %588 = vmatpush.xpose.msra.mxu0 0.0
        %589 = vmatpush.xpose.msra.mxu0 0.0
        %590 = vmatpush.xpose.msra.mxu0 0.0
        %591 = vmatpush.xpose.msra.mxu0 0.0
        %592 = vmatpush.xpose.msra.mxu0 0.0
        %593 = vmatpush.xpose.msra.mxu0 0.0
        %594 = vmatpush.xpose.msra.mxu0 0.0
        %595 = vmatpush.xpose.msra.mxu0 0.0
        %596 = vmatpush.xpose.msra.mxu0 %v580
        %597 = vmatpush.xpose.msra.mxu0 %v578
        %598 = vmatmul.f32.gmra.mxu0 %v574
        %v599 = vpop.f32.mrf.mxu0
        %v600 = vadd.f32 0.0, %v599
        %601 = vmatmul.f32.gmra.mxu0 %v576
        %v602 = vpop.f32.mrf.mxu0
        %v603 = vadd.f32 0.0, %v602
        %604 = vdwg.mxu0
        %605 = vrot.lane.b32.xlu0 %v300, 96
        %v606 = vpop.permute.xlu0 %605
        %607 = vrot.lane.b32.xlu0 %v303, 96
        %v608 = vpop.permute.xlu0 %607
        %v609 = vsel %vm433, %v300, 0
        %v611 = vsel %vm433, %v303, 0
        %v613 = vsel %vm433, %v606, 0
        %v615 = vsel %vm433, %v608, 0
        %617 = vmatpush.xpose.msra.mxu0 0.0
        %618 = vmatpush.xpose.msra.mxu0 0.0
        %619 = vmatpush.xpose.msra.mxu0 0.0
        %620 = vmatpush.xpose.msra.mxu0 0.0
        %621 = vmatpush.xpose.msra.mxu0 0.0
        %622 = vmatpush.xpose.msra.mxu0 0.0
        %623 = vmatpush.xpose.msra.mxu0 0.0
        %624 = vmatpush.xpose.msra.mxu0 0.0
        %625 = vmatpush.xpose.msra.mxu0 0.0
        %626 = vmatpush.xpose.msra.mxu0 0.0
        %627 = vmatpush.xpose.msra.mxu0 0.0
        %628 = vmatpush.xpose.msra.mxu0 0.0
        %629 = vmatpush.xpose.msra.mxu0 0.0
        %630 = vmatpush.xpose.msra.mxu0 0.0
        %631 = vmatpush.xpose.msra.mxu0 %v615
        %632 = vmatpush.xpose.msra.mxu0 %v613
        %633 = vmatmul.f32.gmra.mxu0 %v609
        %v634 = vpop.f32.mrf.mxu0
        %v635 = vadd.f32 0.0, %v634
        %636 = vmatmul.f32.gmra.mxu0 %v611
        %v637 = vpop.f32.mrf.mxu0
        %v638 = vadd.f32 0.0, %v637
        %639 = vdwg.mxu0
        %640 = vrot.lane.b32.xlu0 %v306, 96
        %v641 = vpop.permute.xlu0 %640
        %642 = vrot.lane.b32.xlu0 %v309, 96
        %v643 = vpop.permute.xlu0 %642
        %v644 = vsel %vm433, %v306, 0
        %v646 = vsel %vm433, %v309, 0
        %v648 = vsel %vm433, %v641, 0
        %v650 = vsel %vm433, %v643, 0
        %652 = vmatpush.xpose.msra.mxu0 0.0
        %653 = vmatpush.xpose.msra.mxu0 0.0
        %654 = vmatpush.xpose.msra.mxu0 0.0
        %655 = vmatpush.xpose.msra.mxu0 0.0
        %656 = vmatpush.xpose.msra.mxu0 0.0
        %657 = vmatpush.xpose.msra.mxu0 0.0
        %658 = vmatpush.xpose.msra.mxu0 0.0
        %659 = vmatpush.xpose.msra.mxu0 0.0
        %660 = vmatpush.xpose.msra.mxu0 0.0
        %661 = vmatpush.xpose.msra.mxu0 0.0
        %662 = vmatpush.xpose.msra.mxu0 0.0
        %663 = vmatpush.xpose.msra.mxu0 0.0
        %664 = vmatpush.xpose.msra.mxu0 0.0
        %665 = vmatpush.xpose.msra.mxu0 0.0
        %666 = vmatpush.xpose.msra.mxu0 %v650
        %667 = vmatpush.xpose.msra.mxu0 %v648
        %668 = vmatmul.f32.gmra.mxu0 %v644
        %v669 = vpop.f32.mrf.mxu0
        %v670 = vadd.f32 0.0, %v669
        %671 = vmatmul.f32.gmra.mxu0 %v646
        %v672 = vpop.f32.mrf.mxu0
        %v673 = vadd.f32 0.0, %v672
        %674 = vdwg.mxu0
        %675 = vrot.lane.b32.xlu0 %v312, 96
        %v676 = vpop.permute.xlu0 %675
        %677 = vrot.lane.b32.xlu0 %v315, 96
        %v678 = vpop.permute.xlu0 %677
        %v679 = vsel %vm433, %v312, 0
        %v681 = vsel %vm433, %v315, 0
        %v683 = vsel %vm433, %v676, 0
        %v685 = vsel %vm433, %v678, 0
        %687 = vmatpush.xpose.msra.mxu0 0.0
        %688 = vmatpush.xpose.msra.mxu0 0.0
        %689 = vmatpush.xpose.msra.mxu0 0.0
        %690 = vmatpush.xpose.msra.mxu0 0.0
        %691 = vmatpush.xpose.msra.mxu0 0.0
        %692 = vmatpush.xpose.msra.mxu0 0.0
        %693 = vmatpush.xpose.msra.mxu0 0.0
        %694 = vmatpush.xpose.msra.mxu0 0.0
        %695 = vmatpush.xpose.msra.mxu0 0.0
        %696 = vmatpush.xpose.msra.mxu0 0.0
        %697 = vmatpush.xpose.msra.mxu0 0.0
        %698 = vmatpush.xpose.msra.mxu0 0.0
        %699 = vmatpush.xpose.msra.mxu0 0.0
        %700 = vmatpush.xpose.msra.mxu0 0.0
        %701 = vmatpush.xpose.msra.mxu0 %v685
        %702 = vmatpush.xpose.msra.mxu0 %v683
        %703 = vmatmul.f32.gmra.mxu0 %v679
        %v704 = vpop.f32.mrf.mxu0
        %v705 = vadd.f32 0.0, %v704
        %706 = vmatmul.f32.gmra.mxu0 %v681
        %v707 = vpop.f32.mrf.mxu0
        %v708 = vadd.f32 0.0, %v707
        %709 = vdwg.mxu0
        %710 = vrot.lane.b32.xlu0 %v334, 96
        %v711 = vpop.permute.xlu0 %710
        %712 = vrot.lane.b32.xlu0 %v336, 96
        %v713 = vpop.permute.xlu0 %712
        %v714 = vsel %vm433, %v334, 0
        %v716 = vsel %vm433, %v336, 0
        %v718 = vsel %vm433, %v711, 0
        %v720 = vsel %vm433, %v713, 0
        %722 = vmatpush.xpose.msra.mxu0 0.0
        %723 = vmatpush.xpose.msra.mxu0 0.0
        %724 = vmatpush.xpose.msra.mxu0 0.0
        %725 = vmatpush.xpose.msra.mxu0 0.0
        %726 = vmatpush.xpose.msra.mxu0 0.0
        %727 = vmatpush.xpose.msra.mxu0 0.0
        %728 = vmatpush.xpose.msra.mxu0 0.0
        %729 = vmatpush.xpose.msra.mxu0 0.0
        %730 = vmatpush.xpose.msra.mxu0 0.0
        %731 = vmatpush.xpose.msra.mxu0 0.0
        %732 = vmatpush.xpose.msra.mxu0 0.0
        %733 = vmatpush.xpose.msra.mxu0 0.0
        %734 = vmatpush.xpose.msra.mxu0 0.0
        %735 = vmatpush.xpose.msra.mxu0 0.0
        %736 = vmatpush.xpose.msra.mxu0 %v720
        %737 = vmatpush.xpose.msra.mxu0 %v718
        %738 = vmatmul.f32.gmra.mxu0 %v714
        %v739 = vpop.f32.mrf.mxu0
        %v740 = vadd.f32 0.0, %v739
        %741 = vmatmul.f32.gmra.mxu0 %v716
        %v742 = vpop.f32.mrf.mxu0
        %v743 = vadd.f32 0.0, %v742
        %744 = vdwg.mxu0
        %745 = vrot.lane.b32.xlu0 %v338, 96
        %v746 = vpop.permute.xlu0 %745
        %747 = vrot.lane.b32.xlu0 %v340, 96
        %v748 = vpop.permute.xlu0 %747
        %v749 = vsel %vm433, %v338, 0
        %v751 = vsel %vm433, %v340, 0
        %v753 = vsel %vm433, %v746, 0
        %v755 = vsel %vm433, %v748, 0
        %757 = vmatpush.xpose.msra.mxu0 0.0
        %758 = vmatpush.xpose.msra.mxu0 0.0
        %759 = vmatpush.xpose.msra.mxu0 0.0
        %760 = vmatpush.xpose.msra.mxu0 0.0
        %761 = vmatpush.xpose.msra.mxu0 0.0
        %762 = vmatpush.xpose.msra.mxu0 0.0
        %763 = vmatpush.xpose.msra.mxu0 0.0
        %764 = vmatpush.xpose.msra.mxu0 0.0
        %765 = vmatpush.xpose.msra.mxu0 0.0
        %766 = vmatpush.xpose.msra.mxu0 0.0
        %767 = vmatpush.xpose.msra.mxu0 0.0
        %768 = vmatpush.xpose.msra.mxu0 0.0
        %769 = vmatpush.xpose.msra.mxu0 0.0
        %770 = vmatpush.xpose.msra.mxu0 0.0
        %771 = vmatpush.xpose.msra.mxu0 %v755
        %772 = vmatpush.xpose.msra.mxu0 %v753
        %773 = vmatmul.f32.gmra.mxu0 %v749
        %v774 = vpop.f32.mrf.mxu0
        %v775 = vadd.f32 0.0, %v774
        %776 = vmatmul.f32.gmra.mxu0 %v751
        %v777 = vpop.f32.mrf.mxu0
        %v778 = vadd.f32 0.0, %v777
        %779 = vdwg.mxu0
        %780 = vrot.lane.b32.xlu0 %v342, 96
        %v781 = vpop.permute.xlu0 %780
        %782 = vrot.lane.b32.xlu0 %v344, 96
        %v783 = vpop.permute.xlu0 %782
        %v784 = vsel %vm433, %v342, 0
        %v786 = vsel %vm433, %v344, 0
        %v788 = vsel %vm433, %v781, 0
        %v790 = vsel %vm433, %v783, 0
        %792 = vmatpush.xpose.msra.mxu0 0.0
        %793 = vmatpush.xpose.msra.mxu0 0.0
        %794 = vmatpush.xpose.msra.mxu0 0.0
        %795 = vmatpush.xpose.msra.mxu0 0.0
        %796 = vmatpush.xpose.msra.mxu0 0.0
        %797 = vmatpush.xpose.msra.mxu0 0.0
        %798 = vmatpush.xpose.msra.mxu0 0.0
        %799 = vmatpush.xpose.msra.mxu0 0.0
        %800 = vmatpush.xpose.msra.mxu0 0.0
        %801 = vmatpush.xpose.msra.mxu0 0.0
        %802 = vmatpush.xpose.msra.mxu0 0.0
        %803 = vmatpush.xpose.msra.mxu0 0.0
        %804 = vmatpush.xpose.msra.mxu0 0.0
        %805 = vmatpush.xpose.msra.mxu0 0.0
        %806 = vmatpush.xpose.msra.mxu0 %v790
        %807 = vmatpush.xpose.msra.mxu0 %v788
        %808 = vmatmul.f32.gmra.mxu0 %v784
        %v809 = vpop.f32.mrf.mxu0
        %v810 = vadd.f32 0.0, %v809
        %811 = vmatmul.f32.gmra.mxu0 %v786
        %v812 = vpop.f32.mrf.mxu0
        %v813 = vadd.f32 0.0, %v812
        %814 = vdwg.mxu0
        %815 = vrot.lane.b32.xlu0 %v346, 96
        %v816 = vpop.permute.xlu0 %815
        %817 = vrot.lane.b32.xlu0 %v348, 96
        %v818 = vpop.permute.xlu0 %817
        %v819 = vsel %vm433, %v346, 0
        %v821 = vsel %vm433, %v348, 0
        %v823 = vsel %vm433, %v816, 0
        %v825 = vsel %vm433, %v818, 0
        %827 = vmatpush.xpose.msra.mxu0 0.0
        %828 = vmatpush.xpose.msra.mxu0 0.0
        %829 = vmatpush.xpose.msra.mxu0 0.0
        %830 = vmatpush.xpose.msra.mxu0 0.0
        %831 = vmatpush.xpose.msra.mxu0 0.0
        %832 = vmatpush.xpose.msra.mxu0 0.0
        %833 = vmatpush.xpose.msra.mxu0 0.0
        %834 = vmatpush.xpose.msra.mxu0 0.0
        %835 = vmatpush.xpose.msra.mxu0 0.0
        %836 = vmatpush.xpose.msra.mxu0 0.0
        %837 = vmatpush.xpose.msra.mxu0 0.0
        %838 = vmatpush.xpose.msra.mxu0 0.0
        %839 = vmatpush.xpose.msra.mxu0 0.0
        %840 = vmatpush.xpose.msra.mxu0 0.0
        %841 = vmatpush.xpose.msra.mxu0 %v825
        %842 = vmatpush.xpose.msra.mxu0 %v823
        %843 = vmatmul.f32.gmra.mxu0 %v819
        %v844 = vpop.f32.mrf.mxu0
        %v845 = vadd.f32 0.0, %v844
        %846 = vmatmul.f32.gmra.mxu0 %v821
        %v847 = vpop.f32.mrf.mxu0
        %v848 = vadd.f32 0.0, %v847
        %849 = vdwg.mxu0
        %850 = vrot.lane.b32.xlu0 %v350, 96
        %v851 = vpop.permute.xlu0 %850
        %852 = vrot.lane.b32.xlu0 %v352, 96
        %v853 = vpop.permute.xlu0 %852
        %v854 = vsel %vm433, %v350, 0
        %v856 = vsel %vm433, %v352, 0
        %v858 = vsel %vm433, %v851, 0
        %v860 = vsel %vm433, %v853, 0
        %862 = vmatpush.xpose.msra.mxu0 0.0
        %863 = vmatpush.xpose.msra.mxu0 0.0
        %864 = vmatpush.xpose.msra.mxu0 0.0
        %865 = vmatpush.xpose.msra.mxu0 0.0
        %866 = vmatpush.xpose.msra.mxu0 0.0
        %867 = vmatpush.xpose.msra.mxu0 0.0
        %868 = vmatpush.xpose.msra.mxu0 0.0
        %869 = vmatpush.xpose.msra.mxu0 0.0
        %870 = vmatpush.xpose.msra.mxu0 0.0
        %871 = vmatpush.xpose.msra.mxu0 0.0
        %872 = vmatpush.xpose.msra.mxu0 0.0
        %873 = vmatpush.xpose.msra.mxu0 0.0
        %874 = vmatpush.xpose.msra.mxu0 0.0
        %875 = vmatpush.xpose.msra.mxu0 0.0
        %876 = vmatpush.xpose.msra.mxu0 %v860
        %877 = vmatpush.xpose.msra.mxu0 %v858
        %878 = vmatmul.f32.gmra.mxu0 %v854
        %v879 = vpop.f32.mrf.mxu0
        %v880 = vadd.f32 0.0, %v879
        %881 = vmatmul.f32.gmra.mxu0 %v856
        %v882 = vpop.f32.mrf.mxu0
        %v883 = vadd.f32 0.0, %v882
        %884 = vdwg.mxu0
        %885 = vrot.lane.b32.xlu0 %v354, 96
        %v886 = vpop.permute.xlu0 %885
        %887 = vrot.lane.b32.xlu0 %v356, 96
        %v888 = vpop.permute.xlu0 %887
        %v889 = vsel %vm433, %v354, 0
        %v891 = vsel %vm433, %v356, 0
        %v893 = vsel %vm433, %v886, 0
        %v895 = vsel %vm433, %v888, 0
        %897 = vmatpush.xpose.msra.mxu0 0.0
        %898 = vmatpush.xpose.msra.mxu0 0.0
        %899 = vmatpush.xpose.msra.mxu0 0.0
        %900 = vmatpush.xpose.msra.mxu0 0.0
        %901 = vmatpush.xpose.msra.mxu0 0.0
        %902 = vmatpush.xpose.msra.mxu0 0.0
        %903 = vmatpush.xpose.msra.mxu0 0.0
        %904 = vmatpush.xpose.msra.mxu0 0.0
        %905 = vmatpush.xpose.msra.mxu0 0.0
        %906 = vmatpush.xpose.msra.mxu0 0.0
        %907 = vmatpush.xpose.msra.mxu0 0.0
        %908 = vmatpush.xpose.msra.mxu0 0.0
        %909 = vmatpush.xpose.msra.mxu0 0.0
        %910 = vmatpush.xpose.msra.mxu0 0.0
        %911 = vmatpush.xpose.msra.mxu0 %v895
        %912 = vmatpush.xpose.msra.mxu0 %v893
        %913 = vmatmul.f32.gmra.mxu0 %v889
        %v914 = vpop.f32.mrf.mxu0
        %v915 = vadd.f32 0.0, %v914
        %916 = vmatmul.f32.gmra.mxu0 %v891
        %v917 = vpop.f32.mrf.mxu0
        %v918 = vadd.f32 0.0, %v917
        %919 = vdwg.mxu0
        %920 = vrot.lane.b32.xlu0 %v358, 96
        %v921 = vpop.permute.xlu0 %920
        %922 = vrot.lane.b32.xlu0 %v360, 96
        %v923 = vpop.permute.xlu0 %922
        %v924 = vsel %vm433, %v358, 0
        %v926 = vsel %vm433, %v360, 0
        %v928 = vsel %vm433, %v921, 0
        %v930 = vsel %vm433, %v923, 0
        %932 = vmatpush.xpose.msra.mxu0 0.0
        %933 = vmatpush.xpose.msra.mxu0 0.0
        %934 = vmatpush.xpose.msra.mxu0 0.0
        %935 = vmatpush.xpose.msra.mxu0 0.0
        %936 = vmatpush.xpose.msra.mxu0 0.0
        %937 = vmatpush.xpose.msra.mxu0 0.0
        %938 = vmatpush.xpose.msra.mxu0 0.0
        %939 = vmatpush.xpose.msra.mxu0 0.0
        %940 = vmatpush.xpose.msra.mxu0 0.0
        %941 = vmatpush.xpose.msra.mxu0 0.0
        %942 = vmatpush.xpose.msra.mxu0 0.0
        %943 = vmatpush.xpose.msra.mxu0 0.0
        %944 = vmatpush.xpose.msra.mxu0 0.0
        %945 = vmatpush.xpose.msra.mxu0 0.0
        %946 = vmatpush.xpose.msra.mxu0 %v930
        %947 = vmatpush.xpose.msra.mxu0 %v928
        %948 = vmatmul.f32.gmra.mxu0 %v924
        %v949 = vpop.f32.mrf.mxu0
        %v950 = vadd.f32 0.0, %v949
        %951 = vmatmul.f32.gmra.mxu0 %v926
        %v952 = vpop.f32.mrf.mxu0
        %v953 = vadd.f32 0.0, %v952
        %954 = vdwg.mxu0
        %955 = vrot.lane.b32.xlu0 %v362, 96
        %v956 = vpop.permute.xlu0 %955
        %957 = vrot.lane.b32.xlu0 %v364, 96
        %v958 = vpop.permute.xlu0 %957
        %v959 = vsel %vm433, %v362, 0
        %v961 = vsel %vm433, %v364, 0
        %v963 = vsel %vm433, %v956, 0
        %v965 = vsel %vm433, %v958, 0
        %967 = vmatpush.xpose.msra.mxu0 0.0
        %968 = vmatpush.xpose.msra.mxu0 0.0
        %969 = vmatpush.xpose.msra.mxu0 0.0
        %970 = vmatpush.xpose.msra.mxu0 0.0
        %971 = vmatpush.xpose.msra.mxu0 0.0
        %972 = vmatpush.xpose.msra.mxu0 0.0
        %973 = vmatpush.xpose.msra.mxu0 0.0
        %974 = vmatpush.xpose.msra.mxu0 0.0
        %975 = vmatpush.xpose.msra.mxu0 0.0
        %976 = vmatpush.xpose.msra.mxu0 0.0
        %977 = vmatpush.xpose.msra.mxu0 0.0
        %978 = vmatpush.xpose.msra.mxu0 0.0
        %979 = vmatpush.xpose.msra.mxu0 0.0
        %980 = vmatpush.xpose.msra.mxu0 0.0
        %981 = vmatpush.xpose.msra.mxu0 %v965
        %982 = vmatpush.xpose.msra.mxu0 %v963
        %983 = vmatmul.f32.gmra.mxu0 %v959
        %v984 = vpop.f32.mrf.mxu0
        %v985 = vadd.f32 0.0, %v984
        %986 = vmatmul.f32.gmra.mxu0 %v961
        %v987 = vpop.f32.mrf.mxu0
        %v988 = vadd.f32 0.0, %v987
        %989 = vdwg.mxu0
        %990 = vrot.lane.b32.xlu0 %v366, 96
        %v991 = vpop.permute.xlu0 %990
        %992 = vrot.lane.b32.xlu0 %v368, 96
        %v993 = vpop.permute.xlu0 %992
        %v994 = vsel %vm433, %v366, 0
        %v996 = vsel %vm433, %v368, 0
        %v998 = vsel %vm433, %v991, 0
        %v1000 = vsel %vm433, %v993, 0
        %1002 = vmatpush.xpose.msra.mxu0 0.0
        %1003 = vmatpush.xpose.msra.mxu0 0.0
        %1004 = vmatpush.xpose.msra.mxu0 0.0
        %1005 = vmatpush.xpose.msra.mxu0 0.0
        %1006 = vmatpush.xpose.msra.mxu0 0.0
        %1007 = vmatpush.xpose.msra.mxu0 0.0
        %1008 = vmatpush.xpose.msra.mxu0 0.0
        %1009 = vmatpush.xpose.msra.mxu0 0.0
        %1010 = vmatpush.xpose.msra.mxu0 0.0
        %1011 = vmatpush.xpose.msra.mxu0 0.0
        %1012 = vmatpush.xpose.msra.mxu0 0.0
        %1013 = vmatpush.xpose.msra.mxu0 0.0
        %1014 = vmatpush.xpose.msra.mxu0 0.0
        %1015 = vmatpush.xpose.msra.mxu0 0.0
        %1016 = vmatpush.xpose.msra.mxu0 %v1000
        %1017 = vmatpush.xpose.msra.mxu0 %v998
        %1018 = vmatmul.f32.gmra.mxu0 %v994
        %v1019 = vpop.f32.mrf.mxu0
        %v1020 = vadd.f32 0.0, %v1019
        %1021 = vmatmul.f32.gmra.mxu0 %v996
        %v1022 = vpop.f32.mrf.mxu0
        %v1023 = vadd.f32 0.0, %v1022
        %1024 = vdwg.mxu0
        %1025 = vrot.lane.b32.xlu0 %v370, 96
        %v1026 = vpop.permute.xlu0 %1025
        %1027 = vrot.lane.b32.xlu0 %v372, 96
        %v1028 = vpop.permute.xlu0 %1027
        %v1029 = vsel %vm433, %v370, 0
        %v1031 = vsel %vm433, %v372, 0
        %v1033 = vsel %vm433, %v1026, 0
        %v1035 = vsel %vm433, %v1028, 0
        %1037 = vmatpush.xpose.msra.mxu0 0.0
        %1038 = vmatpush.xpose.msra.mxu0 0.0
        %1039 = vmatpush.xpose.msra.mxu0 0.0
        %1040 = vmatpush.xpose.msra.mxu0 0.0
        %1041 = vmatpush.xpose.msra.mxu0 0.0
        %1042 = vmatpush.xpose.msra.mxu0 0.0
        %1043 = vmatpush.xpose.msra.mxu0 0.0
        %1044 = vmatpush.xpose.msra.mxu0 0.0
        %1045 = vmatpush.xpose.msra.mxu0 0.0
        %1046 = vmatpush.xpose.msra.mxu0 0.0
        %1047 = vmatpush.xpose.msra.mxu0 0.0
        %1048 = vmatpush.xpose.msra.mxu0 0.0
        %1049 = vmatpush.xpose.msra.mxu0 0.0
        %1050 = vmatpush.xpose.msra.mxu0 0.0
        %1051 = vmatpush.xpose.msra.mxu0 %v1035
        %1052 = vmatpush.xpose.msra.mxu0 %v1033
        %1053 = vmatmul.f32.gmra.mxu0 %v1029
        %v1054 = vpop.f32.mrf.mxu0
        %v1055 = vadd.f32 0.0, %v1054
        %1056 = vmatmul.f32.gmra.mxu0 %v1031
        %v1057 = vpop.f32.mrf.mxu0
        %v1058 = vadd.f32 0.0, %v1057
        %1059 = vdwg.mxu0
        %1060 = vrot.lane.b32.xlu0 %v374, 96
        %v1061 = vpop.permute.xlu0 %1060
        %1062 = vrot.lane.b32.xlu0 %v376, 96
        %v1063 = vpop.permute.xlu0 %1062
        %v1064 = vsel %vm433, %v374, 0
        %v1066 = vsel %vm433, %v376, 0
        %v1068 = vsel %vm433, %v1061, 0
        %v1070 = vsel %vm433, %v1063, 0
        %1072 = vmatpush.xpose.msra.mxu0 0.0
        %1073 = vmatpush.xpose.msra.mxu0 0.0
        %1074 = vmatpush.xpose.msra.mxu0 0.0
        %1075 = vmatpush.xpose.msra.mxu0 0.0
        %1076 = vmatpush.xpose.msra.mxu0 0.0
        %1077 = vmatpush.xpose.msra.mxu0 0.0
        %1078 = vmatpush.xpose.msra.mxu0 0.0
        %1079 = vmatpush.xpose.msra.mxu0 0.0
        %1080 = vmatpush.xpose.msra.mxu0 0.0
        %1081 = vmatpush.xpose.msra.mxu0 0.0
        %1082 = vmatpush.xpose.msra.mxu0 0.0
        %1083 = vmatpush.xpose.msra.mxu0 0.0
        %1084 = vmatpush.xpose.msra.mxu0 0.0
        %1085 = vmatpush.xpose.msra.mxu0 0.0
        %1086 = vmatpush.xpose.msra.mxu0 %v1070
        %1087 = vmatpush.xpose.msra.mxu0 %v1068
        %1088 = vmatmul.f32.gmra.mxu0 %v1064
        %v1089 = vpop.f32.mrf.mxu0
        %v1090 = vadd.f32 0.0, %v1089
        %1091 = vmatmul.f32.gmra.mxu0 %v1066
        %v1092 = vpop.f32.mrf.mxu0
        %v1093 = vadd.f32 0.0, %v1092
        %1094 = vdwg.mxu0
        %1095 = vrot.lane.b32.xlu0 %v378, 96
        %v1096 = vpop.permute.xlu0 %1095
        %1097 = vrot.lane.b32.xlu0 %v380, 96
        %v1098 = vpop.permute.xlu0 %1097
        %v1099 = vsel %vm433, %v378, 0
        %v1101 = vsel %vm433, %v380, 0
        %v1103 = vsel %vm433, %v1096, 0
        %v1105 = vsel %vm433, %v1098, 0
        %1107 = vmatpush.xpose.msra.mxu0 0.0
        %1108 = vmatpush.xpose.msra.mxu0 0.0
        %1109 = vmatpush.xpose.msra.mxu0 0.0
        %1110 = vmatpush.xpose.msra.mxu0 0.0
        %1111 = vmatpush.xpose.msra.mxu0 0.0
        %1112 = vmatpush.xpose.msra.mxu0 0.0
        %1113 = vmatpush.xpose.msra.mxu0 0.0
        %1114 = vmatpush.xpose.msra.mxu0 0.0
        %1115 = vmatpush.xpose.msra.mxu0 0.0
        %1116 = vmatpush.xpose.msra.mxu0 0.0
        %1117 = vmatpush.xpose.msra.mxu0 0.0
        %1118 = vmatpush.xpose.msra.mxu0 0.0
        %1119 = vmatpush.xpose.msra.mxu0 0.0
        %1120 = vmatpush.xpose.msra.mxu0 0.0
        %1121 = vmatpush.xpose.msra.mxu0 %v1105
        %1122 = vmatpush.xpose.msra.mxu0 %v1103
        %1123 = vmatmul.f32.gmra.mxu0 %v1099
        %v1124 = vpop.f32.mrf.mxu0
        %v1125 = vadd.f32 0.0, %v1124
        %1126 = vmatmul.f32.gmra.mxu0 %v1101
        %v1127 = vpop.f32.mrf.mxu0
        %v1128 = vadd.f32 0.0, %v1127
        %1129 = vdwg.mxu0
        %1130 = vrot.lane.b32.xlu0 %v382, 96
        %v1131 = vpop.permute.xlu0 %1130
        %1132 = vrot.lane.b32.xlu0 %v384, 96
        %v1133 = vpop.permute.xlu0 %1132
        %v1134 = vsel %vm433, %v382, 0
        %v1136 = vsel %vm433, %v384, 0
        %v1138 = vsel %vm433, %v1131, 0
        %v1140 = vsel %vm433, %v1133, 0
        %1142 = vmatpush.xpose.msra.mxu0 0.0
        %1143 = vmatpush.xpose.msra.mxu0 0.0
        %1144 = vmatpush.xpose.msra.mxu0 0.0
        %1145 = vmatpush.xpose.msra.mxu0 0.0
        %1146 = vmatpush.xpose.msra.mxu0 0.0
        %1147 = vmatpush.xpose.msra.mxu0 0.0
        %1148 = vmatpush.xpose.msra.mxu0 0.0
        %1149 = vmatpush.xpose.msra.mxu0 0.0
        %1150 = vmatpush.xpose.msra.mxu0 0.0
        %1151 = vmatpush.xpose.msra.mxu0 0.0
        %1152 = vmatpush.xpose.msra.mxu0 0.0
        %1153 = vmatpush.xpose.msra.mxu0 0.0
        %1154 = vmatpush.xpose.msra.mxu0 0.0
        %1155 = vmatpush.xpose.msra.mxu0 0.0
        %1156 = vmatpush.xpose.msra.mxu0 %v1140
        %1157 = vmatpush.xpose.msra.mxu0 %v1138
        %1158 = vmatmul.f32.gmra.mxu0 %v1134
        %v1159 = vpop.f32.mrf.mxu0
        %v1160 = vadd.f32 0.0, %v1159
        %1161 = vmatmul.f32.gmra.mxu0 %v1136
        %v1162 = vpop.f32.mrf.mxu0
        %v1163 = vadd.f32 0.0, %v1162
        %1164 = vdwg.mxu0
        %1165 = vrot.lane.b32.xlu0 %v386, 96
        %v1166 = vpop.permute.xlu0 %1165
        %1167 = vrot.lane.b32.xlu0 %v388, 96
        %v1168 = vpop.permute.xlu0 %1167
        %v1169 = vsel %vm433, %v386, 0
        %v1171 = vsel %vm433, %v388, 0
        %v1173 = vsel %vm433, %v1166, 0
        %v1175 = vsel %vm433, %v1168, 0
        %1177 = vmatpush.xpose.msra.mxu0 0.0
        %1178 = vmatpush.xpose.msra.mxu0 0.0
        %1179 = vmatpush.xpose.msra.mxu0 0.0
        %1180 = vmatpush.xpose.msra.mxu0 0.0
        %1181 = vmatpush.xpose.msra.mxu0 0.0
        %1182 = vmatpush.xpose.msra.mxu0 0.0
        %1183 = vmatpush.xpose.msra.mxu0 0.0
        %1184 = vmatpush.xpose.msra.mxu0 0.0
        %1185 = vmatpush.xpose.msra.mxu0 0.0
        %1186 = vmatpush.xpose.msra.mxu0 0.0
        %1187 = vmatpush.xpose.msra.mxu0 0.0
        %1188 = vmatpush.xpose.msra.mxu0 0.0
        %1189 = vmatpush.xpose.msra.mxu0 0.0
        %1190 = vmatpush.xpose.msra.mxu0 0.0
        %1191 = vmatpush.xpose.msra.mxu0 %v1175
        %1192 = vmatpush.xpose.msra.mxu0 %v1173
        %1193 = vmatmul.f32.gmra.mxu0 %v1169
        %v1194 = vpop.f32.mrf.mxu0
        %v1195 = vadd.f32 0.0, %v1194
        %1196 = vmatmul.f32.gmra.mxu0 %v1171
        %v1197 = vpop.f32.mrf.mxu0
        %v1198 = vadd.f32 0.0, %v1197
        %1199 = vdwg.mxu0
        %1200 = vrot.lane.b32.xlu0 %v390, 96
        %v1201 = vpop.permute.xlu0 %1200
        %1202 = vrot.lane.b32.xlu0 %v392, 96
        %v1203 = vpop.permute.xlu0 %1202
        %v1204 = vsel %vm433, %v390, 0
        %v1206 = vsel %vm433, %v392, 0
        %v1208 = vsel %vm433, %v1201, 0
        %v1210 = vsel %vm433, %v1203, 0
        %1212 = vmatpush.xpose.msra.mxu0 0.0
        %1213 = vmatpush.xpose.msra.mxu0 0.0
        %1214 = vmatpush.xpose.msra.mxu0 0.0
        %1215 = vmatpush.xpose.msra.mxu0 0.0
        %1216 = vmatpush.xpose.msra.mxu0 0.0
        %1217 = vmatpush.xpose.msra.mxu0 0.0
        %1218 = vmatpush.xpose.msra.mxu0 0.0
        %1219 = vmatpush.xpose.msra.mxu0 0.0
        %1220 = vmatpush.xpose.msra.mxu0 0.0
        %1221 = vmatpush.xpose.msra.mxu0 0.0
        %1222 = vmatpush.xpose.msra.mxu0 0.0
        %1223 = vmatpush.xpose.msra.mxu0 0.0
        %1224 = vmatpush.xpose.msra.mxu0 0.0
        %1225 = vmatpush.xpose.msra.mxu0 0.0
        %1226 = vmatpush.xpose.msra.mxu0 %v1210
        %1227 = vmatpush.xpose.msra.mxu0 %v1208
        %1228 = vmatmul.f32.gmra.mxu0 %v1204
        %v1229 = vpop.f32.mrf.mxu0
        %v1230 = vadd.f32 0.0, %v1229
        %1231 = vmatmul.f32.gmra.mxu0 %v1206
        %v1232 = vpop.f32.mrf.mxu0
        %v1233 = vadd.f32 0.0, %v1232
        %1234 = vdwg.mxu0
        %1235 = vrot.lane.b32.xlu0 %v394, 96
        %v1236 = vpop.permute.xlu0 %1235
        %1237 = vrot.lane.b32.xlu0 %v396, 96
        %v1238 = vpop.permute.xlu0 %1237
        %v1239 = vsel %vm433, %v394, 0
        %v1241 = vsel %vm433, %v396, 0
        %v1243 = vsel %vm433, %v1236, 0
        %v1245 = vsel %vm433, %v1238, 0
        %1247 = vmatpush.xpose.msra.mxu0 0.0
        %1248 = vmatpush.xpose.msra.mxu0 0.0
        %1249 = vmatpush.xpose.msra.mxu0 0.0
        %1250 = vmatpush.xpose.msra.mxu0 0.0
        %1251 = vmatpush.xpose.msra.mxu0 0.0
        %1252 = vmatpush.xpose.msra.mxu0 0.0
        %1253 = vmatpush.xpose.msra.mxu0 0.0
        %1254 = vmatpush.xpose.msra.mxu0 0.0
        %1255 = vmatpush.xpose.msra.mxu0 0.0
        %1256 = vmatpush.xpose.msra.mxu0 0.0
        %1257 = vmatpush.xpose.msra.mxu0 0.0
        %1258 = vmatpush.xpose.msra.mxu0 0.0
        %1259 = vmatpush.xpose.msra.mxu0 0.0
        %1260 = vmatpush.xpose.msra.mxu0 0.0
        %1261 = vmatpush.xpose.msra.mxu0 %v1245
        %1262 = vmatpush.xpose.msra.mxu0 %v1243
        %1263 = vmatmul.f32.gmra.mxu0 %v1239
        %v1264 = vpop.f32.mrf.mxu0
        %v1265 = vadd.f32 0.0, %v1264
        %1266 = vmatmul.f32.gmra.mxu0 %v1241
        %v1267 = vpop.f32.mrf.mxu0
        %v1268 = vadd.f32 0.0, %v1267
        %1269 = vdwg.mxu0
        %1270 = vrot.lane.b32.xlu0 %v398, 96
        %v1271 = vpop.permute.xlu0 %1270
        %1272 = vrot.lane.b32.xlu0 %v400, 96
        %v1273 = vpop.permute.xlu0 %1272
        %v1274 = vsel %vm433, %v398, 0
        %v1276 = vsel %vm433, %v400, 0
        %v1278 = vsel %vm433, %v1271, 0
        %v1280 = vsel %vm433, %v1273, 0
        %1282 = vmatpush.xpose.msra.mxu0 0.0
        %1283 = vmatpush.xpose.msra.mxu0 0.0
        %1284 = vmatpush.xpose.msra.mxu0 0.0
        %1285 = vmatpush.xpose.msra.mxu0 0.0
        %1286 = vmatpush.xpose.msra.mxu0 0.0
        %1287 = vmatpush.xpose.msra.mxu0 0.0
        %1288 = vmatpush.xpose.msra.mxu0 0.0
        %1289 = vmatpush.xpose.msra.mxu0 0.0
        %1290 = vmatpush.xpose.msra.mxu0 0.0
        %1291 = vmatpush.xpose.msra.mxu0 0.0
        %1292 = vmatpush.xpose.msra.mxu0 0.0
        %1293 = vmatpush.xpose.msra.mxu0 0.0
        %1294 = vmatpush.xpose.msra.mxu0 0.0
        %1295 = vmatpush.xpose.msra.mxu0 0.0
        %1296 = vmatpush.xpose.msra.mxu0 %v1280
        %1297 = vmatpush.xpose.msra.mxu0 %v1278
        %1298 = vmatmul.f32.gmra.mxu0 %v1274
        %v1299 = vpop.f32.mrf.mxu0
        %v1300 = vadd.f32 0.0, %v1299
        %1301 = vmatmul.f32.gmra.mxu0 %v1276
        %v1302 = vpop.f32.mrf.mxu0
        %v1303 = vadd.f32 0.0, %v1302
        %1304 = vdwg.mxu0
        %1305 = vrot.lane.b32.xlu0 %v402, 96
        %v1306 = vpop.permute.xlu0 %1305
        %1307 = vrot.lane.b32.xlu0 %v404, 96
        %v1308 = vpop.permute.xlu0 %1307
        %v1309 = vsel %vm433, %v402, 0
        %v1311 = vsel %vm433, %v404, 0
        %v1313 = vsel %vm433, %v1306, 0
        %v1315 = vsel %vm433, %v1308, 0
        %1317 = vmatpush.xpose.msra.mxu0 0.0
        %1318 = vmatpush.xpose.msra.mxu0 0.0
        %1319 = vmatpush.xpose.msra.mxu0 0.0
        %1320 = vmatpush.xpose.msra.mxu0 0.0
        %1321 = vmatpush.xpose.msra.mxu0 0.0
        %1322 = vmatpush.xpose.msra.mxu0 0.0
        %1323 = vmatpush.xpose.msra.mxu0 0.0
        %1324 = vmatpush.xpose.msra.mxu0 0.0
        %1325 = vmatpush.xpose.msra.mxu0 0.0
        %1326 = vmatpush.xpose.msra.mxu0 0.0
        %1327 = vmatpush.xpose.msra.mxu0 0.0
        %1328 = vmatpush.xpose.msra.mxu0 0.0
        %1329 = vmatpush.xpose.msra.mxu0 0.0
        %1330 = vmatpush.xpose.msra.mxu0 0.0
        %1331 = vmatpush.xpose.msra.mxu0 %v1315
        %1332 = vmatpush.xpose.msra.mxu0 %v1313
        %1333 = vmatmul.f32.gmra.mxu0 %v1309
        %v1334 = vpop.f32.mrf.mxu0
        %v1335 = vadd.f32 0.0, %v1334
        %1336 = vmatmul.f32.gmra.mxu0 %v1311
        %v1337 = vpop.f32.mrf.mxu0
        %v1338 = vadd.f32 0.0, %v1337
        %1339 = vdwg.mxu0
        %1340 = vrot.lane.b32.xlu0 %v406, 96
        %v1341 = vpop.permute.xlu0 %1340
        %1342 = vrot.lane.b32.xlu0 %v408, 96
        %v1343 = vpop.permute.xlu0 %1342
        %v1344 = vsel %vm433, %v406, 0
        %v1346 = vsel %vm433, %v408, 0
        %v1348 = vsel %vm433, %v1341, 0
        %v1350 = vsel %vm433, %v1343, 0
        %1352 = vmatpush.xpose.msra.mxu0 0.0
        %1353 = vmatpush.xpose.msra.mxu0 0.0
        %1354 = vmatpush.xpose.msra.mxu0 0.0
        %1355 = vmatpush.xpose.msra.mxu0 0.0
        %1356 = vmatpush.xpose.msra.mxu0 0.0
        %1357 = vmatpush.xpose.msra.mxu0 0.0
        %1358 = vmatpush.xpose.msra.mxu0 0.0
        %1359 = vmatpush.xpose.msra.mxu0 0.0
        %1360 = vmatpush.xpose.msra.mxu0 0.0
        %1361 = vmatpush.xpose.msra.mxu0 0.0
        %1362 = vmatpush.xpose.msra.mxu0 0.0
        %1363 = vmatpush.xpose.msra.mxu0 0.0
        %1364 = vmatpush.xpose.msra.mxu0 0.0
        %1365 = vmatpush.xpose.msra.mxu0 0.0
        %1366 = vmatpush.xpose.msra.mxu0 %v1350
        %1367 = vmatpush.xpose.msra.mxu0 %v1348
        %1368 = vmatmul.f32.gmra.mxu0 %v1344
        %v1369 = vpop.f32.mrf.mxu0
        %v1370 = vadd.f32 0.0, %v1369
        %1371 = vmatmul.f32.gmra.mxu0 %v1346
        %v1372 = vpop.f32.mrf.mxu0
        %v1373 = vadd.f32 0.0, %v1372
        %1374 = vdwg.mxu0
        %1375 = vrot.lane.b32.xlu0 %v410, 96
        %v1376 = vpop.permute.xlu0 %1375
        %1377 = vrot.lane.b32.xlu0 %v412, 96
        %v1378 = vpop.permute.xlu0 %1377
        %v1379 = vsel %vm433, %v410, 0
        %v1381 = vsel %vm433, %v412, 0
        %v1383 = vsel %vm433, %v1376, 0
        %v1385 = vsel %vm433, %v1378, 0
        %1387 = vmatpush.xpose.msra.mxu0 0.0
        %1388 = vmatpush.xpose.msra.mxu0 0.0
        %1389 = vmatpush.xpose.msra.mxu0 0.0
        %1390 = vmatpush.xpose.msra.mxu0 0.0
        %1391 = vmatpush.xpose.msra.mxu0 0.0
        %1392 = vmatpush.xpose.msra.mxu0 0.0
        %1393 = vmatpush.xpose.msra.mxu0 0.0
        %1394 = vmatpush.xpose.msra.mxu0 0.0
        %1395 = vmatpush.xpose.msra.mxu0 0.0
        %1396 = vmatpush.xpose.msra.mxu0 0.0
        %1397 = vmatpush.xpose.msra.mxu0 0.0
        %1398 = vmatpush.xpose.msra.mxu0 0.0
        %1399 = vmatpush.xpose.msra.mxu0 0.0
        %1400 = vmatpush.xpose.msra.mxu0 0.0
        %1401 = vmatpush.xpose.msra.mxu0 %v1385
        %1402 = vmatpush.xpose.msra.mxu0 %v1383
        %1403 = vmatmul.f32.gmra.mxu0 %v1379
        %v1404 = vpop.f32.mrf.mxu0
        %v1405 = vadd.f32 0.0, %v1404
        %1406 = vmatmul.f32.gmra.mxu0 %v1381
        %v1407 = vpop.f32.mrf.mxu0
        %v1408 = vadd.f32 0.0, %v1407
        %1409 = vdwg.mxu0
        %1410 = vrot.lane.b32.xlu0 %v414, 96
        %v1411 = vpop.permute.xlu0 %1410
        %1412 = vrot.lane.b32.xlu0 %v416, 96
        %v1413 = vpop.permute.xlu0 %1412
        %v1414 = vsel %vm433, %v414, 0
        %v1416 = vsel %vm433, %v416, 0
        %v1418 = vsel %vm433, %v1411, 0
        %v1420 = vsel %vm433, %v1413, 0
        %1422 = vmatpush.xpose.msra.mxu0 0.0
        %1423 = vmatpush.xpose.msra.mxu0 0.0
        %1424 = vmatpush.xpose.msra.mxu0 0.0
        %1425 = vmatpush.xpose.msra.mxu0 0.0
        %1426 = vmatpush.xpose.msra.mxu0 0.0
        %1427 = vmatpush.xpose.msra.mxu0 0.0
        %1428 = vmatpush.xpose.msra.mxu0 0.0
        %1429 = vmatpush.xpose.msra.mxu0 0.0
        %1430 = vmatpush.xpose.msra.mxu0 0.0
        %1431 = vmatpush.xpose.msra.mxu0 0.0
        %1432 = vmatpush.xpose.msra.mxu0 0.0
        %1433 = vmatpush.xpose.msra.mxu0 0.0
        %1434 = vmatpush.xpose.msra.mxu0 0.0
        %1435 = vmatpush.xpose.msra.mxu0 0.0
        %1436 = vmatpush.xpose.msra.mxu0 %v1420
        %1437 = vmatpush.xpose.msra.mxu0 %v1418
        %1438 = vmatmul.f32.gmra.mxu0 %v1414
        %v1439 = vpop.f32.mrf.mxu0
        %v1440 = vadd.f32 0.0, %v1439
        %1441 = vmatmul.f32.gmra.mxu0 %v1416
        %v1442 = vpop.f32.mrf.mxu0
        %v1443 = vadd.f32 0.0, %v1442
        %1444 = vdwg.mxu0
        %1445 = vrot.lane.b32.xlu0 %v418, 96
        %v1446 = vpop.permute.xlu0 %1445
        %1447 = vrot.lane.b32.xlu0 %v420, 96
        %v1448 = vpop.permute.xlu0 %1447
        %v1449 = vsel %vm433, %v418, 0
        %v1451 = vsel %vm433, %v420, 0
        %v1453 = vsel %vm433, %v1446, 0
        %v1455 = vsel %vm433, %v1448, 0
        %1457 = vmatpush.xpose.msra.mxu0 0.0
        %1458 = vmatpush.xpose.msra.mxu0 0.0
        %1459 = vmatpush.xpose.msra.mxu0 0.0
        %1460 = vmatpush.xpose.msra.mxu0 0.0
        %1461 = vmatpush.xpose.msra.mxu0 0.0
        %1462 = vmatpush.xpose.msra.mxu0 0.0
        %1463 = vmatpush.xpose.msra.mxu0 0.0
        %1464 = vmatpush.xpose.msra.mxu0 0.0
        %1465 = vmatpush.xpose.msra.mxu0 0.0
        %1466 = vmatpush.xpose.msra.mxu0 0.0
        %1467 = vmatpush.xpose.msra.mxu0 0.0
        %1468 = vmatpush.xpose.msra.mxu0 0.0
        %1469 = vmatpush.xpose.msra.mxu0 0.0
        %1470 = vmatpush.xpose.msra.mxu0 0.0
        %1471 = vmatpush.xpose.msra.mxu0 %v1455
        %1472 = vmatpush.xpose.msra.mxu0 %v1453
        %1473 = vmatmul.f32.gmra.mxu0 %v1449
        %v1474 = vpop.f32.mrf.mxu0
        %v1475 = vadd.f32 0.0, %v1474
        %1476 = vmatmul.f32.gmra.mxu0 %v1451
        %v1477 = vpop.f32.mrf.mxu0
        %v1478 = vadd.f32 0.0, %v1477
        %1479 = vdwg.mxu0
        %1480 = vrot.lane.b32.xlu0 %v422, 96
        %v1481 = vpop.permute.xlu0 %1480
        %1482 = vrot.lane.b32.xlu0 %v424, 96
        %v1483 = vpop.permute.xlu0 %1482
        %v1484 = vsel %vm433, %v422, 0
        %v1486 = vsel %vm433, %v424, 0
        %v1488 = vsel %vm433, %v1481, 0
        %v1490 = vsel %vm433, %v1483, 0
        %1492 = vmatpush.xpose.msra.mxu0 0.0
        %1493 = vmatpush.xpose.msra.mxu0 0.0
        %1494 = vmatpush.xpose.msra.mxu0 0.0
        %1495 = vmatpush.xpose.msra.mxu0 0.0
        %1496 = vmatpush.xpose.msra.mxu0 0.0
        %1497 = vmatpush.xpose.msra.mxu0 0.0
        %1498 = vmatpush.xpose.msra.mxu0 0.0
        %1499 = vmatpush.xpose.msra.mxu0 0.0
        %1500 = vmatpush.xpose.msra.mxu0 0.0
        %1501 = vmatpush.xpose.msra.mxu0 0.0
        %1502 = vmatpush.xpose.msra.mxu0 0.0
        %1503 = vmatpush.xpose.msra.mxu0 0.0
        %1504 = vmatpush.xpose.msra.mxu0 0.0
        %1505 = vmatpush.xpose.msra.mxu0 0.0
        %1506 = vmatpush.xpose.msra.mxu0 %v1490
        %1507 = vmatpush.xpose.msra.mxu0 %v1488
        %1508 = vmatmul.f32.gmra.mxu0 %v1484
        %v1509 = vpop.f32.mrf.mxu0
        %v1510 = vadd.f32 0.0, %v1509
        %1511 = vmatmul.f32.gmra.mxu0 %v1486
        %v1512 = vpop.f32.mrf.mxu0
        %v1513 = vadd.f32 0.0, %v1512
        %1514 = vdwg.mxu0
        %1515 = vrot.lane.b32.xlu0 %v426, 96
        %v1516 = vpop.permute.xlu0 %1515
        %1517 = vrot.lane.b32.xlu0 %v428, 96
        %v1518 = vpop.permute.xlu0 %1517
        %v1519 = vsel %vm433, %v426, 0
        %v1521 = vsel %vm433, %v428, 0
        %v1523 = vsel %vm433, %v1516, 0
        %v1525 = vsel %vm433, %v1518, 0
        %1527 = vmatpush.xpose.msra.mxu0 0.0
        %1528 = vmatpush.xpose.msra.mxu0 0.0
        %1529 = vmatpush.xpose.msra.mxu0 0.0
        %1530 = vmatpush.xpose.msra.mxu0 0.0
        %1531 = vmatpush.xpose.msra.mxu0 0.0
        %1532 = vmatpush.xpose.msra.mxu0 0.0
        %1533 = vmatpush.xpose.msra.mxu0 0.0
        %1534 = vmatpush.xpose.msra.mxu0 0.0
        %1535 = vmatpush.xpose.msra.mxu0 0.0
        %1536 = vmatpush.xpose.msra.mxu0 0.0
        %1537 = vmatpush.xpose.msra.mxu0 0.0
        %1538 = vmatpush.xpose.msra.mxu0 0.0
        %1539 = vmatpush.xpose.msra.mxu0 0.0
        %1540 = vmatpush.xpose.msra.mxu0 0.0
        %1541 = vmatpush.xpose.msra.mxu0 %v1525
        %1542 = vmatpush.xpose.msra.mxu0 %v1523
        %1543 = vmatmul.f32.gmra.mxu0 %v1519
        %v1544 = vpop.f32.mrf.mxu0
        %v1545 = vadd.f32 0.0, %v1544
        %1546 = vmatmul.f32.gmra.mxu0 %v1521
        %v1547 = vpop.f32.mrf.mxu0
        %v1548 = vadd.f32 0.0, %v1547
        %1549 = vdwg.mxu0
        %vm1550 = vcmask 130048
        %v1551 = vsel %vm1550, %v460, -inf
        %1552 = vmax.xlane.f32.xlu0 %v1551
        %v1553 = vpop.xlane.xlu0 %1552
        %v1554 = vsel %vm1550, %v463, -inf
        %1555 = vmax.xlane.f32.xlu0 %v1554
        %v1556 = vpop.xlane.xlu0 %1555
        %v1557 = vsel %vm1550, %v495, -inf
        %1558 = vmax.xlane.f32.xlu0 %v1557
        %v1559 = vpop.xlane.xlu0 %1558
        %v1560 = vsel %vm1550, %v498, -inf
        %1561 = vmax.xlane.f32.xlu0 %v1560
        %v1562 = vpop.xlane.xlu0 %1561
        %v1563 = vsel %vm1550, %v530, -inf
        %1564 = vmax.xlane.f32.xlu0 %v1563
        %v1565 = vpop.xlane.xlu0 %1564
        %v1566 = vsel %vm1550, %v533, -inf
        %1567 = vmax.xlane.f32.xlu0 %v1566
        %v1568 = vpop.xlane.xlu0 %1567
        %v1569 = vsel %vm1550, %v565, -inf
        %1570 = vmax.xlane.f32.xlu0 %v1569
        %v1571 = vpop.xlane.xlu0 %1570
        %v1572 = vsel %vm1550, %v568, -inf
        %1573 = vmax.xlane.f32.xlu0 %v1572
        %v1574 = vpop.xlane.xlu0 %1573
        %v1575 = vsel %vm1550, %v600, -inf
        %1576 = vmax.xlane.f32.xlu0 %v1575
        %v1577 = vpop.xlane.xlu0 %1576
        %v1578 = vsel %vm1550, %v603, -inf
        %1579 = vmax.xlane.f32.xlu0 %v1578
        %v1580 = vpop.xlane.xlu0 %1579
        %v1581 = vsel %vm1550, %v635, -inf
        %1582 = vmax.xlane.f32.xlu0 %v1581
        %v1583 = vpop.xlane.xlu0 %1582
        %v1584 = vsel %vm1550, %v638, -inf
        %1585 = vmax.xlane.f32.xlu0 %v1584
        %v1586 = vpop.xlane.xlu0 %1585
        %v1587 = vsel %vm1550, %v670, -inf
        %1588 = vmax.xlane.f32.xlu0 %v1587
        %v1589 = vpop.xlane.xlu0 %1588
        %v1590 = vsel %vm1550, %v673, -inf
        %1591 = vmax.xlane.f32.xlu0 %v1590
        %v1592 = vpop.xlane.xlu0 %1591
        %v1593 = vsel %vm1550, %v705, -inf
        %1594 = vmax.xlane.f32.xlu0 %v1593
        %v1595 = vpop.xlane.xlu0 %1594
        %v1596 = vsel %vm1550, %v708, -inf
        %1597 = vmax.xlane.f32.xlu0 %v1596
        %v1598 = vpop.xlane.xlu0 %1597
        %v1599 = vsel %vm1550, %v740, -inf
        %1600 = vmax.xlane.f32.xlu0 %v1599
        %v1601 = vpop.xlane.xlu0 %1600
        %v1602 = vsel %vm1550, %v743, -inf
        %1603 = vmax.xlane.f32.xlu0 %v1602
        %v1604 = vpop.xlane.xlu0 %1603
        %v1605 = vsel %vm1550, %v775, -inf
        %1606 = vmax.xlane.f32.xlu0 %v1605
        %v1607 = vpop.xlane.xlu0 %1606
        %v1608 = vsel %vm1550, %v778, -inf
        %1609 = vmax.xlane.f32.xlu0 %v1608
        %v1610 = vpop.xlane.xlu0 %1609
        %v1611 = vsel %vm1550, %v810, -inf
        %1612 = vmax.xlane.f32.xlu0 %v1611
        %v1613 = vpop.xlane.xlu0 %1612
        %v1614 = vsel %vm1550, %v813, -inf
        %1615 = vmax.xlane.f32.xlu0 %v1614
        %v1616 = vpop.xlane.xlu0 %1615
        %v1617 = vsel %vm1550, %v845, -inf
        %1618 = vmax.xlane.f32.xlu0 %v1617
        %v1619 = vpop.xlane.xlu0 %1618
        %v1620 = vsel %vm1550, %v848, -inf
        %1621 = vmax.xlane.f32.xlu0 %v1620
        %v1622 = vpop.xlane.xlu0 %1621
        %v1623 = vsel %vm1550, %v880, -inf
        %1624 = vmax.xlane.f32.xlu0 %v1623
        %v1625 = vpop.xlane.xlu0 %1624
        %v1626 = vsel %vm1550, %v883, -inf
        %1627 = vmax.xlane.f32.xlu0 %v1626
        %v1628 = vpop.xlane.xlu0 %1627
        %v1629 = vsel %vm1550, %v915, -inf
        %1630 = vmax.xlane.f32.xlu0 %v1629
        %v1631 = vpop.xlane.xlu0 %1630
        %v1632 = vsel %vm1550, %v918, -inf
        %1633 = vmax.xlane.f32.xlu0 %v1632
        %v1634 = vpop.xlane.xlu0 %1633
        %v1635 = vsel %vm1550, %v950, -inf
        %1636 = vmax.xlane.f32.xlu0 %v1635
        %v1637 = vpop.xlane.xlu0 %1636
        %v1638 = vsel %vm1550, %v953, -inf
        %1639 = vmax.xlane.f32.xlu0 %v1638
        %v1640 = vpop.xlane.xlu0 %1639
        %v1641 = vsel %vm1550, %v985, -inf
        %1642 = vmax.xlane.f32.xlu0 %v1641
        %v1643 = vpop.xlane.xlu0 %1642
        %v1644 = vsel %vm1550, %v988, -inf
        %1645 = vmax.xlane.f32.xlu0 %v1644
        %v1646 = vpop.xlane.xlu0 %1645
        %v1647 = vsel %vm1550, %v1020, -inf
        %1648 = vmax.xlane.f32.xlu0 %v1647
        %v1649 = vpop.xlane.xlu0 %1648
        %v1650 = vsel %vm1550, %v1023, -inf
        %1651 = vmax.xlane.f32.xlu0 %v1650
        %v1652 = vpop.xlane.xlu0 %1651
        %v1653 = vsel %vm1550, %v1055, -inf
        %1654 = vmax.xlane.f32.xlu0 %v1653
        %v1655 = vpop.xlane.xlu0 %1654
        %v1656 = vsel %vm1550, %v1058, -inf
        %1657 = vmax.xlane.f32.xlu0 %v1656
        %v1658 = vpop.xlane.xlu0 %1657
        %v1659 = vsel %vm1550, %v1090, -inf
        %1660 = vmax.xlane.f32.xlu0 %v1659
        %v1661 = vpop.xlane.xlu0 %1660
        %v1662 = vsel %vm1550, %v1093, -inf
        %1663 = vmax.xlane.f32.xlu0 %v1662
        %v1664 = vpop.xlane.xlu0 %1663
        %v1665 = vsel %vm1550, %v1125, -inf
        %1666 = vmax.xlane.f32.xlu0 %v1665
        %v1667 = vpop.xlane.xlu0 %1666
        %v1668 = vsel %vm1550, %v1128, -inf
        %1669 = vmax.xlane.f32.xlu0 %v1668
        %v1670 = vpop.xlane.xlu0 %1669
        %v1671 = vsel %vm1550, %v1160, -inf
        %1672 = vmax.xlane.f32.xlu0 %v1671
        %v1673 = vpop.xlane.xlu0 %1672
        %v1674 = vsel %vm1550, %v1163, -inf
        %1675 = vmax.xlane.f32.xlu0 %v1674
        %v1676 = vpop.xlane.xlu0 %1675
        %v1677 = vsel %vm1550, %v1195, -inf
        %1678 = vmax.xlane.f32.xlu0 %v1677
        %v1679 = vpop.xlane.xlu0 %1678
        %v1680 = vsel %vm1550, %v1198, -inf
        %1681 = vmax.xlane.f32.xlu0 %v1680
        %v1682 = vpop.xlane.xlu0 %1681
        %v1683 = vsel %vm1550, %v1230, -inf
        %1684 = vmax.xlane.f32.xlu0 %v1683
        %v1685 = vpop.xlane.xlu0 %1684
        %v1686 = vsel %vm1550, %v1233, -inf
        %1687 = vmax.xlane.f32.xlu0 %v1686
        %v1688 = vpop.xlane.xlu0 %1687
        %v1689 = vsel %vm1550, %v1265, -inf
        %1690 = vmax.xlane.f32.xlu0 %v1689
        %v1691 = vpop.xlane.xlu0 %1690
        %v1692 = vsel %vm1550, %v1268, -inf
        %1693 = vmax.xlane.f32.xlu0 %v1692
        %v1694 = vpop.xlane.xlu0 %1693
        %v1695 = vsel %vm1550, %v1300, -inf
        %1696 = vmax.xlane.f32.xlu0 %v1695
        %v1697 = vpop.xlane.xlu0 %1696
        %v1698 = vsel %vm1550, %v1303, -inf
        %1699 = vmax.xlane.f32.xlu0 %v1698
        %v1700 = vpop.xlane.xlu0 %1699
        %v1701 = vsel %vm1550, %v1335, -inf
        %1702 = vmax.xlane.f32.xlu0 %v1701
        %v1703 = vpop.xlane.xlu0 %1702
        %v1704 = vsel %vm1550, %v1338, -inf
        %1705 = vmax.xlane.f32.xlu0 %v1704
        %v1706 = vpop.xlane.xlu0 %1705
        %v1707 = vsel %vm1550, %v1370, -inf
        %1708 = vmax.xlane.f32.xlu0 %v1707
        %v1709 = vpop.xlane.xlu0 %1708
        %v1710 = vsel %vm1550, %v1373, -inf
        %1711 = vmax.xlane.f32.xlu0 %v1710
        %v1712 = vpop.xlane.xlu0 %1711
        %v1713 = vsel %vm1550, %v1405, -inf
        %1714 = vmax.xlane.f32.xlu0 %v1713
        %v1715 = vpop.xlane.xlu0 %1714
        %v1716 = vsel %vm1550, %v1408, -inf
        %1717 = vmax.xlane.f32.xlu0 %v1716
        %v1718 = vpop.xlane.xlu0 %1717
        %v1719 = vsel %vm1550, %v1440, -inf
        %1720 = vmax.xlane.f32.xlu0 %v1719
        %v1721 = vpop.xlane.xlu0 %1720
        %v1722 = vsel %vm1550, %v1443, -inf
        %1723 = vmax.xlane.f32.xlu0 %v1722
        %v1724 = vpop.xlane.xlu0 %1723
        %v1725 = vsel %vm1550, %v1475, -inf
        %1726 = vmax.xlane.f32.xlu0 %v1725
        %v1727 = vpop.xlane.xlu0 %1726
        %v1728 = vsel %vm1550, %v1478, -inf
        %1729 = vmax.xlane.f32.xlu0 %v1728
        %v1730 = vpop.xlane.xlu0 %1729
        %v1731 = vsel %vm1550, %v1510, -inf
        %1732 = vmax.xlane.f32.xlu0 %v1731
        %v1733 = vpop.xlane.xlu0 %1732
        %v1734 = vsel %vm1550, %v1513, -inf
        %1735 = vmax.xlane.f32.xlu0 %v1734
        %v1736 = vpop.xlane.xlu0 %1735
        %v1737 = vsel %vm1550, %v1545, -inf
        %1738 = vmax.xlane.f32.xlu0 %v1737
        %v1739 = vpop.xlane.xlu0 %1738
        %v1740 = vsel %vm1550, %v1548, -inf
        %1741 = vmax.xlane.f32.xlu0 %v1740
        %v1742 = vpop.xlane.xlu0 %1741
        %v1743 = vsub.f32 %v460, %v1553
        %v1744 = vsub.f32 %v463, %v1556
        %v1745 = vsub.f32 %v495, %v1559
        %v1746 = vsub.f32 %v498, %v1562
        %v1747 = vsub.f32 %v530, %v1565
        %v1748 = vsub.f32 %v533, %v1568
        %v1749 = vsub.f32 %v565, %v1571
        %v1750 = vsub.f32 %v568, %v1574
        %v1751 = vsub.f32 %v600, %v1577
        %v1752 = vsub.f32 %v603, %v1580
        %v1753 = vsub.f32 %v635, %v1583
        %v1754 = vsub.f32 %v638, %v1586
        %v1755 = vsub.f32 %v670, %v1589
        %v1756 = vsub.f32 %v673, %v1592
        %v1757 = vsub.f32 %v705, %v1595
        %v1758 = vsub.f32 %v708, %v1598
        %v1759 = vsub.f32 %v740, %v1601
        %v1760 = vsub.f32 %v743, %v1604
        %v1761 = vsub.f32 %v775, %v1607
        %v1762 = vsub.f32 %v778, %v1610
        %v1763 = vsub.f32 %v810, %v1613
        %v1764 = vsub.f32 %v813, %v1616
        %v1765 = vsub.f32 %v845, %v1619
        %v1766 = vsub.f32 %v848, %v1622
        %v1767 = vsub.f32 %v880, %v1625
        %v1768 = vsub.f32 %v883, %v1628
        %v1769 = vsub.f32 %v915, %v1631
        %v1770 = vsub.f32 %v918, %v1634
        %v1771 = vsub.f32 %v950, %v1637
        %v1772 = vsub.f32 %v953, %v1640
        %v1773 = vsub.f32 %v985, %v1643
        %v1774 = vsub.f32 %v988, %v1646
        %v1775 = vsub.f32 %v1020, %v1649
        %v1776 = vsub.f32 %v1023, %v1652
        %v1777 = vsub.f32 %v1055, %v1655
        %v1778 = vsub.f32 %v1058, %v1658
        %v1779 = vsub.f32 %v1090, %v1661
        %v1780 = vsub.f32 %v1093, %v1664
        %v1781 = vsub.f32 %v1125, %v1667
        %v1782 = vsub.f32 %v1128, %v1670
        %v1783 = vsub.f32 %v1160, %v1673
        %v1784 = vsub.f32 %v1163, %v1676
        %v1785 = vsub.f32 %v1195, %v1679
        %v1786 = vsub.f32 %v1198, %v1682
        %v1787 = vsub.f32 %v1230, %v1685
        %v1788 = vsub.f32 %v1233, %v1688
        %v1789 = vsub.f32 %v1265, %v1691
        %v1790 = vsub.f32 %v1268, %v1694
        %v1791 = vsub.f32 %v1300, %v1697
        %v1792 = vsub.f32 %v1303, %v1700
        %v1793 = vsub.f32 %v1335, %v1703
        %v1794 = vsub.f32 %v1338, %v1706
        %v1795 = vsub.f32 %v1370, %v1709
        %v1796 = vsub.f32 %v1373, %v1712
        %v1797 = vsub.f32 %v1405, %v1715
        %v1798 = vsub.f32 %v1408, %v1718
        %v1799 = vsub.f32 %v1440, %v1721
        %v1800 = vsub.f32 %v1443, %v1724
        %v1801 = vsub.f32 %v1475, %v1727
        %v1802 = vsub.f32 %v1478, %v1730
        %v1803 = vsub.f32 %v1510, %v1733
        %v1804 = vsub.f32 %v1513, %v1736
        %v1805 = vsub.f32 %v1545, %v1739
        %v1806 = vsub.f32 %v1548, %v1742
        %v1807 = vmul.f32 %v1743, 1.442695
        %v1808 = vpow.pop %v1807
        %v1809 = vmul.f32 %v1744, 1.442695
        %v1810 = vpow.pop %v1809
        %v1811 = vmul.f32 %v1745, 1.442695
        %v1812 = vpow.pop %v1811
        %v1813 = vmul.f32 %v1746, 1.442695
        %v1814 = vpow.pop %v1813
        %v1815 = vmul.f32 %v1747, 1.442695
        %v1816 = vpow.pop %v1815
        %v1817 = vmul.f32 %v1748, 1.442695
        %v1818 = vpow.pop %v1817
        %v1819 = vmul.f32 %v1749, 1.442695
        %v1820 = vpow.pop %v1819
        %v1821 = vmul.f32 %v1750, 1.442695
        %v1822 = vpow.pop %v1821
        %v1823 = vmul.f32 %v1751, 1.442695
        %v1824 = vpow.pop %v1823
        %v1825 = vmul.f32 %v1752, 1.442695
        %v1826 = vpow.pop %v1825
        %v1827 = vmul.f32 %v1753, 1.442695
        %v1828 = vpow.pop %v1827
        %v1829 = vmul.f32 %v1754, 1.442695
        %v1830 = vpow.pop %v1829
        %v1831 = vmul.f32 %v1755, 1.442695
        %v1832 = vpow.pop %v1831
        %v1833 = vmul.f32 %v1756, 1.442695
        %v1834 = vpow.pop %v1833
        %v1835 = vmul.f32 %v1757, 1.442695
        %v1836 = vpow.pop %v1835
        %v1837 = vmul.f32 %v1758, 1.442695
        %v1838 = vpow.pop %v1837
        %v1839 = vmul.f32 %v1759, 1.442695
        %v1840 = vpow.pop %v1839
        %v1841 = vmul.f32 %v1760, 1.442695
        %v1842 = vpow.pop %v1841
        %v1843 = vmul.f32 %v1761, 1.442695
        %v1844 = vpow.pop %v1843
        %v1845 = vmul.f32 %v1762, 1.442695
        %v1846 = vpow.pop %v1845
        %v1847 = vmul.f32 %v1763, 1.442695
        %v1848 = vpow.pop %v1847
        %v1849 = vmul.f32 %v1764, 1.442695
        %v1850 = vpow.pop %v1849
        %v1851 = vmul.f32 %v1765, 1.442695
        %v1852 = vpow.pop %v1851
        %v1853 = vmul.f32 %v1766, 1.442695
        %v1854 = vpow.pop %v1853
        %v1855 = vmul.f32 %v1767, 1.442695
        %v1856 = vpow.pop %v1855
        %v1857 = vmul.f32 %v1768, 1.442695
        %v1858 = vpow.pop %v1857
        %v1859 = vmul.f32 %v1769, 1.442695
        %v1860 = vpow.pop %v1859
        %v1861 = vmul.f32 %v1770, 1.442695
        %v1862 = vpow.pop %v1861
        %v1863 = vmul.f32 %v1771, 1.442695
        %v1864 = vpow.pop %v1863
        %v1865 = vmul.f32 %v1772, 1.442695
        %v1866 = vpow.pop %v1865
        %v1867 = vmul.f32 %v1773, 1.442695
        %v1868 = vpow.pop %v1867
        %v1869 = vmul.f32 %v1774, 1.442695
        %v1870 = vpow.pop %v1869
        %v1871 = vmul.f32 %v1775, 1.442695
        %v1872 = vpow.pop %v1871
        %v1873 = vmul.f32 %v1776, 1.442695
        %v1874 = vpow.pop %v1873
        %v1875 = vmul.f32 %v1777, 1.442695
        %v1876 = vpow.pop %v1875
        %v1877 = vmul.f32 %v1778, 1.442695
        %v1878 = vpow.pop %v1877
        %v1879 = vmul.f32 %v1779, 1.442695
        %v1880 = vpow.pop %v1879
        %v1881 = vmul.f32 %v1780, 1.442695
        %v1882 = vpow.pop %v1881
        %v1883 = vmul.f32 %v1781, 1.442695
        %v1884 = vpow.pop %v1883
        %v1885 = vmul.f32 %v1782, 1.442695
        %v1886 = vpow.pop %v1885
        %v1887 = vmul.f32 %v1783, 1.442695
        %v1888 = vpow.pop %v1887
        %v1889 = vmul.f32 %v1784, 1.442695
        %v1890 = vpow.pop %v1889
        %v1891 = vmul.f32 %v1785, 1.442695
        %v1892 = vpow.pop %v1891
        %v1893 = vmul.f32 %v1786, 1.442695
        %v1894 = vpow.pop %v1893
        %v1895 = vmul.f32 %v1787, 1.442695
        %v1896 = vpow.pop %v1895
        %v1897 = vmul.f32 %v1788, 1.442695
        %v1898 = vpow.pop %v1897
        %v1899 = vmul.f32 %v1789, 1.442695
        %v1900 = vpow.pop %v1899
        %v1901 = vmul.f32 %v1790, 1.442695
        %v1902 = vpow.pop %v1901
        %v1903 = vmul.f32 %v1791, 1.442695
        %v1904 = vpow.pop %v1903
        %v1905 = vmul.f32 %v1792, 1.442695
        %v1906 = vpow.pop %v1905
        %v1907 = vmul.f32 %v1793, 1.442695
        %v1908 = vpow.pop %v1907
        %v1909 = vmul.f32 %v1794, 1.442695
        %v1910 = vpow.pop %v1909
        %v1911 = vmul.f32 %v1795, 1.442695
        %v1912 = vpow.pop %v1911
        %v1913 = vmul.f32 %v1796, 1.442695
        %v1914 = vpow.pop %v1913
        %v1915 = vmul.f32 %v1797, 1.442695
        %v1916 = vpow.pop %v1915
        %v1917 = vmul.f32 %v1798, 1.442695
        %v1918 = vpow.pop %v1917
        %v1919 = vmul.f32 %v1799, 1.442695
        %v1920 = vpow.pop %v1919
        %v1921 = vmul.f32 %v1800, 1.442695
        %v1922 = vpow.pop %v1921
        %v1923 = vmul.f32 %v1801, 1.442695
        %v1924 = vpow.pop %v1923
        %v1925 = vmul.f32 %v1802, 1.442695
        %v1926 = vpow.pop %v1925
        %v1927 = vmul.f32 %v1803, 1.442695
        %v1928 = vpow.pop %v1927
        %v1929 = vmul.f32 %v1804, 1.442695
        %v1930 = vpow.pop %v1929
        %v1931 = vmul.f32 %v1805, 1.442695
        %v1932 = vpow.pop %v1931
        %v1933 = vmul.f32 %v1806, 1.442695
        %v1934 = vpow.pop %v1933
        %v1935 = vsel %vm1550, %v1808, 0.0
        %1936 = vadd.xlane.f32.xlu0 %v1935
        %v1937 = vpop.xlane.xlu0 %1936
        %v1938 = vsel %vm1550, %v1810, 0.0
        %1939 = vadd.xlane.f32.xlu0 %v1938
        %v1940 = vpop.xlane.xlu0 %1939
        %v1941 = vsel %vm1550, %v1812, 0.0
        %1942 = vadd.xlane.f32.xlu0 %v1941
        %v1943 = vpop.xlane.xlu0 %1942
        %v1944 = vsel %vm1550, %v1814, 0.0
        %1945 = vadd.xlane.f32.xlu0 %v1944
        %v1946 = vpop.xlane.xlu0 %1945
        %v1947 = vsel %vm1550, %v1816, 0.0
        %1948 = vadd.xlane.f32.xlu0 %v1947
        %v1949 = vpop.xlane.xlu0 %1948
        %v1950 = vsel %vm1550, %v1818, 0.0
        %1951 = vadd.xlane.f32.xlu0 %v1950
        %v1952 = vpop.xlane.xlu0 %1951
        %v1953 = vsel %vm1550, %v1820, 0.0
        %1954 = vadd.xlane.f32.xlu0 %v1953
        %v1955 = vpop.xlane.xlu0 %1954
        %v1956 = vsel %vm1550, %v1822, 0.0
        %1957 = vadd.xlane.f32.xlu0 %v1956
        %v1958 = vpop.xlane.xlu0 %1957
        %v1959 = vsel %vm1550, %v1824, 0.0
        %1960 = vadd.xlane.f32.xlu0 %v1959
        %v1961 = vpop.xlane.xlu0 %1960
        %v1962 = vsel %vm1550, %v1826, 0.0
        %1963 = vadd.xlane.f32.xlu0 %v1962
        %v1964 = vpop.xlane.xlu0 %1963
        %v1965 = vsel %vm1550, %v1828, 0.0
        %1966 = vadd.xlane.f32.xlu0 %v1965
        %v1967 = vpop.xlane.xlu0 %1966
        %v1968 = vsel %vm1550, %v1830, 0.0
        %1969 = vadd.xlane.f32.xlu0 %v1968
        %v1970 = vpop.xlane.xlu0 %1969
        %v1971 = vsel %vm1550, %v1832, 0.0
        %1972 = vadd.xlane.f32.xlu0 %v1971
        %v1973 = vpop.xlane.xlu0 %1972
        %v1974 = vsel %vm1550, %v1834, 0.0
        %1975 = vadd.xlane.f32.xlu0 %v1974
        %v1976 = vpop.xlane.xlu0 %1975
        %v1977 = vsel %vm1550, %v1836, 0.0
        %1978 = vadd.xlane.f32.xlu0 %v1977
        %v1979 = vpop.xlane.xlu0 %1978
        %v1980 = vsel %vm1550, %v1838, 0.0
        %1981 = vadd.xlane.f32.xlu0 %v1980
        %v1982 = vpop.xlane.xlu0 %1981
        %v1983 = vsel %vm1550, %v1840, 0.0
        %1984 = vadd.xlane.f32.xlu0 %v1983
        %v1985 = vpop.xlane.xlu0 %1984
        %v1986 = vsel %vm1550, %v1842, 0.0
        %1987 = vadd.xlane.f32.xlu0 %v1986
        %v1988 = vpop.xlane.xlu0 %1987
        %v1989 = vsel %vm1550, %v1844, 0.0
        %1990 = vadd.xlane.f32.xlu0 %v1989
        %v1991 = vpop.xlane.xlu0 %1990
        %v1992 = vsel %vm1550, %v1846, 0.0
        %1993 = vadd.xlane.f32.xlu0 %v1992
        %v1994 = vpop.xlane.xlu0 %1993
        %v1995 = vsel %vm1550, %v1848, 0.0
        %1996 = vadd.xlane.f32.xlu0 %v1995
        %v1997 = vpop.xlane.xlu0 %1996
        %v1998 = vsel %vm1550, %v1850, 0.0
        %1999 = vadd.xlane.f32.xlu0 %v1998
        %v2000 = vpop.xlane.xlu0 %1999
        %v2001 = vsel %vm1550, %v1852, 0.0
        %2002 = vadd.xlane.f32.xlu0 %v2001
        %v2003 = vpop.xlane.xlu0 %2002
        %v2004 = vsel %vm1550, %v1854, 0.0
        %2005 = vadd.xlane.f32.xlu0 %v2004
        %v2006 = vpop.xlane.xlu0 %2005
        %v2007 = vsel %vm1550, %v1856, 0.0
        %2008 = vadd.xlane.f32.xlu0 %v2007
        %v2009 = vpop.xlane.xlu0 %2008
        %v2010 = vsel %vm1550, %v1858, 0.0
        %2011 = vadd.xlane.f32.xlu0 %v2010
        %v2012 = vpop.xlane.xlu0 %2011
        %v2013 = vsel %vm1550, %v1860, 0.0
        %2014 = vadd.xlane.f32.xlu0 %v2013
        %v2015 = vpop.xlane.xlu0 %2014
        %v2016 = vsel %vm1550, %v1862, 0.0
        %2017 = vadd.xlane.f32.xlu0 %v2016
        %v2018 = vpop.xlane.xlu0 %2017
        %v2019 = vsel %vm1550, %v1864, 0.0
        %2020 = vadd.xlane.f32.xlu0 %v2019
        %v2021 = vpop.xlane.xlu0 %2020
        %v2022 = vsel %vm1550, %v1866, 0.0
        %2023 = vadd.xlane.f32.xlu0 %v2022
        %v2024 = vpop.xlane.xlu0 %2023
        %v2025 = vsel %vm1550, %v1868, 0.0
        %2026 = vadd.xlane.f32.xlu0 %v2025
        %v2027 = vpop.xlane.xlu0 %2026
        %v2028 = vsel %vm1550, %v1870, 0.0
        %2029 = vadd.xlane.f32.xlu0 %v2028
        %v2030 = vpop.xlane.xlu0 %2029
        %v2031 = vsel %vm1550, %v1872, 0.0
        %2032 = vadd.xlane.f32.xlu0 %v2031
        %v2033 = vpop.xlane.xlu0 %2032
        %v2034 = vsel %vm1550, %v1874, 0.0
        %2035 = vadd.xlane.f32.xlu0 %v2034
        %v2036 = vpop.xlane.xlu0 %2035
        %v2037 = vsel %vm1550, %v1876, 0.0
        %2038 = vadd.xlane.f32.xlu0 %v2037
        %v2039 = vpop.xlane.xlu0 %2038
        %v2040 = vsel %vm1550, %v1878, 0.0
        %2041 = vadd.xlane.f32.xlu0 %v2040
        %v2042 = vpop.xlane.xlu0 %2041
        %v2043 = vsel %vm1550, %v1880, 0.0
        %2044 = vadd.xlane.f32.xlu0 %v2043
        %v2045 = vpop.xlane.xlu0 %2044
        %v2046 = vsel %vm1550, %v1882, 0.0
        %2047 = vadd.xlane.f32.xlu0 %v2046
        %v2048 = vpop.xlane.xlu0 %2047
        %v2049 = vsel %vm1550, %v1884, 0.0
        %2050 = vadd.xlane.f32.xlu0 %v2049
        %v2051 = vpop.xlane.xlu0 %2050
        %v2052 = vsel %vm1550, %v1886, 0.0
        %2053 = vadd.xlane.f32.xlu0 %v2052
        %v2054 = vpop.xlane.xlu0 %2053
        %v2055 = vsel %vm1550, %v1888, 0.0
        %2056 = vadd.xlane.f32.xlu0 %v2055
        %v2057 = vpop.xlane.xlu0 %2056
        %v2058 = vsel %vm1550, %v1890, 0.0
        %2059 = vadd.xlane.f32.xlu0 %v2058
        %v2060 = vpop.xlane.xlu0 %2059
        %v2061 = vsel %vm1550, %v1892, 0.0
        %2062 = vadd.xlane.f32.xlu0 %v2061
        %v2063 = vpop.xlane.xlu0 %2062
        %v2064 = vsel %vm1550, %v1894, 0.0
        %2065 = vadd.xlane.f32.xlu0 %v2064
        %v2066 = vpop.xlane.xlu0 %2065
        %v2067 = vsel %vm1550, %v1896, 0.0
        %2068 = vadd.xlane.f32.xlu0 %v2067
        %v2069 = vpop.xlane.xlu0 %2068
        %v2070 = vsel %vm1550, %v1898, 0.0
        %2071 = vadd.xlane.f32.xlu0 %v2070
        %v2072 = vpop.xlane.xlu0 %2071
        %v2073 = vsel %vm1550, %v1900, 0.0
        %2074 = vadd.xlane.f32.xlu0 %v2073
        %v2075 = vpop.xlane.xlu0 %2074
        %v2076 = vsel %vm1550, %v1902, 0.0
        %2077 = vadd.xlane.f32.xlu0 %v2076
        %v2078 = vpop.xlane.xlu0 %2077
        %v2079 = vsel %vm1550, %v1904, 0.0
        %2080 = vadd.xlane.f32.xlu0 %v2079
        %v2081 = vpop.xlane.xlu0 %2080
        %v2082 = vsel %vm1550, %v1906, 0.0
        %2083 = vadd.xlane.f32.xlu0 %v2082
        %v2084 = vpop.xlane.xlu0 %2083
        %v2085 = vsel %vm1550, %v1908, 0.0
        %2086 = vadd.xlane.f32.xlu0 %v2085
        %v2087 = vpop.xlane.xlu0 %2086
        %v2088 = vsel %vm1550, %v1910, 0.0
        %2089 = vadd.xlane.f32.xlu0 %v2088
        %v2090 = vpop.xlane.xlu0 %2089
        %v2091 = vsel %vm1550, %v1912, 0.0
        %2092 = vadd.xlane.f32.xlu0 %v2091
        %v2093 = vpop.xlane.xlu0 %2092
        %v2094 = vsel %vm1550, %v1914, 0.0
        %2095 = vadd.xlane.f32.xlu0 %v2094
        %v2096 = vpop.xlane.xlu0 %2095
        %v2097 = vsel %vm1550, %v1916, 0.0
        %2098 = vadd.xlane.f32.xlu0 %v2097
        %v2099 = vpop.xlane.xlu0 %2098
        %v2100 = vsel %vm1550, %v1918, 0.0
        %2101 = vadd.xlane.f32.xlu0 %v2100
        %v2102 = vpop.xlane.xlu0 %2101
        %v2103 = vsel %vm1550, %v1920, 0.0
        %2104 = vadd.xlane.f32.xlu0 %v2103
        %v2105 = vpop.xlane.xlu0 %2104
        %v2106 = vsel %vm1550, %v1922, 0.0
        %2107 = vadd.xlane.f32.xlu0 %v2106
        %v2108 = vpop.xlane.xlu0 %2107
        %v2109 = vsel %vm1550, %v1924, 0.0
        %2110 = vadd.xlane.f32.xlu0 %v2109
        %v2111 = vpop.xlane.xlu0 %2110
        %v2112 = vsel %vm1550, %v1926, 0.0
        %2113 = vadd.xlane.f32.xlu0 %v2112
        %v2114 = vpop.xlane.xlu0 %2113
        %v2115 = vsel %vm1550, %v1928, 0.0
        %2116 = vadd.xlane.f32.xlu0 %v2115
        %v2117 = vpop.xlane.xlu0 %2116
        %v2118 = vsel %vm1550, %v1930, 0.0
        %2119 = vadd.xlane.f32.xlu0 %v2118
        %v2120 = vpop.xlane.xlu0 %2119
        %v2121 = vsel %vm1550, %v1932, 0.0
        %2122 = vadd.xlane.f32.xlu0 %v2121
        %v2123 = vpop.xlane.xlu0 %2122
        %v2124 = vsel %vm1550, %v1934, 0.0
        %2125 = vadd.xlane.f32.xlu0 %v2124
        %v2126 = vpop.xlane.xlu0 %2125
        %2127 = vrot.lane.b32.xlu0 %v270, 64
        %v2128 = vpop.permute.xlu0 %2127
        %2129 = vrot.lane.b32.xlu0 %v273, 64
        %v2130 = vpop.permute.xlu0 %2129
        %v2134 = vsel %vm1550, %v1808, 0
        %v2137 = vsel %vm1550, %v1810, 0
        %2139 = vmatpush.msra.mxu0 0.0
        %2140 = vmatpush.msra.mxu0 0.0
        %2141 = vmatpush.msra.mxu0 0.0
        %2142 = vmatpush.msra.mxu0 0.0
        %2143 = vmatpush.msra.mxu0 0.0
        %2144 = vmatpush.msra.mxu0 0.0
        %2145 = vmatpush.msra.mxu0 0.0
        %2146 = vmatpush.msra.mxu0 0.0
        %2147 = vmatpush.msra.mxu0 0.0
        %2148 = vmatpush.msra.mxu0 0.0
        %2149 = vmatpush.msra.mxu0 0.0
        %2150 = vmatpush.msra.mxu0 0.0
        %2151 = vmatpush.msra.mxu0 0.0
        %2152 = vmatpush.msra.mxu0 0.0
        %2153 = vmatpush.msra.mxu0 %v2130
        %2154 = vmatpush.msra.mxu0 %v2128
        %2155 = vmatmul.f32.gmra.mxu0 %v2134
        %v2156 = vpop.f32.mrf.mxu0
        %v2157 = vadd.f32 0.0, %v2156
        %2158 = vmatmul.f32.gmra.mxu0 %v2137
        %v2159 = vpop.f32.mrf.mxu0
        %v2160 = vadd.f32 0.0, %v2159
        %2161 = vdwg.mxu0
        %2162 = vrot.lane.b32.xlu0 %v276, 64
        %v2163 = vpop.permute.xlu0 %2162
        %2164 = vrot.lane.b32.xlu0 %v279, 64
        %v2165 = vpop.permute.xlu0 %2164
        %v2169 = vsel %vm1550, %v1812, 0
        %v2172 = vsel %vm1550, %v1814, 0
        %2174 = vmatpush.msra.mxu0 0.0
        %2175 = vmatpush.msra.mxu0 0.0
        %2176 = vmatpush.msra.mxu0 0.0
        %2177 = vmatpush.msra.mxu0 0.0
        %2178 = vmatpush.msra.mxu0 0.0
        %2179 = vmatpush.msra.mxu0 0.0
        %2180 = vmatpush.msra.mxu0 0.0
        %2181 = vmatpush.msra.mxu0 0.0
        %2182 = vmatpush.msra.mxu0 0.0
        %2183 = vmatpush.msra.mxu0 0.0
        %2184 = vmatpush.msra.mxu0 0.0
        %2185 = vmatpush.msra.mxu0 0.0
        %2186 = vmatpush.msra.mxu0 0.0
        %2187 = vmatpush.msra.mxu0 0.0
        %2188 = vmatpush.msra.mxu0 %v2165
        %2189 = vmatpush.msra.mxu0 %v2163
        %2190 = vmatmul.f32.gmra.mxu0 %v2169
        %v2191 = vpop.f32.mrf.mxu0
        %v2192 = vadd.f32 0.0, %v2191
        %2193 = vmatmul.f32.gmra.mxu0 %v2172
        %v2194 = vpop.f32.mrf.mxu0
        %v2195 = vadd.f32 0.0, %v2194
        %2196 = vdwg.mxu0
        %2197 = vrot.lane.b32.xlu0 %v282, 64
        %v2198 = vpop.permute.xlu0 %2197
        %2199 = vrot.lane.b32.xlu0 %v285, 64
        %v2200 = vpop.permute.xlu0 %2199
        %v2204 = vsel %vm1550, %v1816, 0
        %v2207 = vsel %vm1550, %v1818, 0
        %2209 = vmatpush.msra.mxu0 0.0
        %2210 = vmatpush.msra.mxu0 0.0
        %2211 = vmatpush.msra.mxu0 0.0
        %2212 = vmatpush.msra.mxu0 0.0
        %2213 = vmatpush.msra.mxu0 0.0
        %2214 = vmatpush.msra.mxu0 0.0
        %2215 = vmatpush.msra.mxu0 0.0
        %2216 = vmatpush.msra.mxu0 0.0
        %2217 = vmatpush.msra.mxu0 0.0
        %2218 = vmatpush.msra.mxu0 0.0
        %2219 = vmatpush.msra.mxu0 0.0
        %2220 = vmatpush.msra.mxu0 0.0
        %2221 = vmatpush.msra.mxu0 0.0
        %2222 = vmatpush.msra.mxu0 0.0
        %2223 = vmatpush.msra.mxu0 %v2200
        %2224 = vmatpush.msra.mxu0 %v2198
        %2225 = vmatmul.f32.gmra.mxu0 %v2204
        %v2226 = vpop.f32.mrf.mxu0
        %v2227 = vadd.f32 0.0, %v2226
        %2228 = vmatmul.f32.gmra.mxu0 %v2207
        %v2229 = vpop.f32.mrf.mxu0
        %v2230 = vadd.f32 0.0, %v2229
        %2231 = vdwg.mxu0
        %2232 = vrot.lane.b32.xlu0 %v288, 64
        %v2233 = vpop.permute.xlu0 %2232
        %2234 = vrot.lane.b32.xlu0 %v291, 64
        %v2235 = vpop.permute.xlu0 %2234
        %v2239 = vsel %vm1550, %v1820, 0
        %v2242 = vsel %vm1550, %v1822, 0
        %2244 = vmatpush.msra.mxu0 0.0
        %2245 = vmatpush.msra.mxu0 0.0
        %2246 = vmatpush.msra.mxu0 0.0
        %2247 = vmatpush.msra.mxu0 0.0
        %2248 = vmatpush.msra.mxu0 0.0
        %2249 = vmatpush.msra.mxu0 0.0
        %2250 = vmatpush.msra.mxu0 0.0
        %2251 = vmatpush.msra.mxu0 0.0
        %2252 = vmatpush.msra.mxu0 0.0
        %2253 = vmatpush.msra.mxu0 0.0
        %2254 = vmatpush.msra.mxu0 0.0
        %2255 = vmatpush.msra.mxu0 0.0
        %2256 = vmatpush.msra.mxu0 0.0
        %2257 = vmatpush.msra.mxu0 0.0
        %2258 = vmatpush.msra.mxu0 %v2235
        %2259 = vmatpush.msra.mxu0 %v2233
        %2260 = vmatmul.f32.gmra.mxu0 %v2239
        %v2261 = vpop.f32.mrf.mxu0
        %v2262 = vadd.f32 0.0, %v2261
        %2263 = vmatmul.f32.gmra.mxu0 %v2242
        %v2264 = vpop.f32.mrf.mxu0
        %v2265 = vadd.f32 0.0, %v2264
        %2266 = vdwg.mxu0
        %2267 = vrot.lane.b32.xlu0 %v294, 64
        %v2268 = vpop.permute.xlu0 %2267
        %2269 = vrot.lane.b32.xlu0 %v297, 64
        %v2270 = vpop.permute.xlu0 %2269
        %v2274 = vsel %vm1550, %v1824, 0
        %v2277 = vsel %vm1550, %v1826, 0
        %2279 = vmatpush.msra.mxu0 0.0
        %2280 = vmatpush.msra.mxu0 0.0
        %2281 = vmatpush.msra.mxu0 0.0
        %2282 = vmatpush.msra.mxu0 0.0
        %2283 = vmatpush.msra.mxu0 0.0
        %2284 = vmatpush.msra.mxu0 0.0
        %2285 = vmatpush.msra.mxu0 0.0
        %2286 = vmatpush.msra.mxu0 0.0
        %2287 = vmatpush.msra.mxu0 0.0
        %2288 = vmatpush.msra.mxu0 0.0
        %2289 = vmatpush.msra.mxu0 0.0
        %2290 = vmatpush.msra.mxu0 0.0
        %2291 = vmatpush.msra.mxu0 0.0
        %2292 = vmatpush.msra.mxu0 0.0
        %2293 = vmatpush.msra.mxu0 %v2270
        %2294 = vmatpush.msra.mxu0 %v2268
        %2295 = vmatmul.f32.gmra.mxu0 %v2274
        %v2296 = vpop.f32.mrf.mxu0
        %v2297 = vadd.f32 0.0, %v2296
        %2298 = vmatmul.f32.gmra.mxu0 %v2277
        %v2299 = vpop.f32.mrf.mxu0
        %v2300 = vadd.f32 0.0, %v2299
        %2301 = vdwg.mxu0
        %2302 = vrot.lane.b32.xlu0 %v300, 64
        %v2303 = vpop.permute.xlu0 %2302
        %2304 = vrot.lane.b32.xlu0 %v303, 64
        %v2305 = vpop.permute.xlu0 %2304
        %v2309 = vsel %vm1550, %v1828, 0
        %v2312 = vsel %vm1550, %v1830, 0
        %2314 = vmatpush.msra.mxu0 0.0
        %2315 = vmatpush.msra.mxu0 0.0
        %2316 = vmatpush.msra.mxu0 0.0
        %2317 = vmatpush.msra.mxu0 0.0
        %2318 = vmatpush.msra.mxu0 0.0
        %2319 = vmatpush.msra.mxu0 0.0
        %2320 = vmatpush.msra.mxu0 0.0
        %2321 = vmatpush.msra.mxu0 0.0
        %2322 = vmatpush.msra.mxu0 0.0
        %2323 = vmatpush.msra.mxu0 0.0
        %2324 = vmatpush.msra.mxu0 0.0
        %2325 = vmatpush.msra.mxu0 0.0
        %2326 = vmatpush.msra.mxu0 0.0
        %2327 = vmatpush.msra.mxu0 0.0
        %2328 = vmatpush.msra.mxu0 %v2305
        %2329 = vmatpush.msra.mxu0 %v2303
        %2330 = vmatmul.f32.gmra.mxu0 %v2309
        %v2331 = vpop.f32.mrf.mxu0
        %v2332 = vadd.f32 0.0, %v2331
        %2333 = vmatmul.f32.gmra.mxu0 %v2312
        %v2334 = vpop.f32.mrf.mxu0
        %v2335 = vadd.f32 0.0, %v2334
        %2336 = vdwg.mxu0
        %2337 = vrot.lane.b32.xlu0 %v306, 64
        %v2338 = vpop.permute.xlu0 %2337
        %2339 = vrot.lane.b32.xlu0 %v309, 64
        %v2340 = vpop.permute.xlu0 %2339
        %v2344 = vsel %vm1550, %v1832, 0
        %v2347 = vsel %vm1550, %v1834, 0
        %2349 = vmatpush.msra.mxu0 0.0
        %2350 = vmatpush.msra.mxu0 0.0
        %2351 = vmatpush.msra.mxu0 0.0
        %2352 = vmatpush.msra.mxu0 0.0
        %2353 = vmatpush.msra.mxu0 0.0
        %2354 = vmatpush.msra.mxu0 0.0
        %2355 = vmatpush.msra.mxu0 0.0
        %2356 = vmatpush.msra.mxu0 0.0
        %2357 = vmatpush.msra.mxu0 0.0
        %2358 = vmatpush.msra.mxu0 0.0
        %2359 = vmatpush.msra.mxu0 0.0
        %2360 = vmatpush.msra.mxu0 0.0
        %2361 = vmatpush.msra.mxu0 0.0
        %2362 = vmatpush.msra.mxu0 0.0
        %2363 = vmatpush.msra.mxu0 %v2340
        %2364 = vmatpush.msra.mxu0 %v2338
        %2365 = vmatmul.f32.gmra.mxu0 %v2344
        %v2366 = vpop.f32.mrf.mxu0
        %v2367 = vadd.f32 0.0, %v2366
        %2368 = vmatmul.f32.gmra.mxu0 %v2347
        %v2369 = vpop.f32.mrf.mxu0
        %v2370 = vadd.f32 0.0, %v2369
        %2371 = vdwg.mxu0
        %2372 = vrot.lane.b32.xlu0 %v312, 64
        %v2373 = vpop.permute.xlu0 %2372
        %2374 = vrot.lane.b32.xlu0 %v315, 64
        %v2375 = vpop.permute.xlu0 %2374
        %v2379 = vsel %vm1550, %v1836, 0
        %v2382 = vsel %vm1550, %v1838, 0
        %2384 = vmatpush.msra.mxu0 0.0
        %2385 = vmatpush.msra.mxu0 0.0
        %2386 = vmatpush.msra.mxu0 0.0
        %2387 = vmatpush.msra.mxu0 0.0
        %2388 = vmatpush.msra.mxu0 0.0
        %2389 = vmatpush.msra.mxu0 0.0
        %2390 = vmatpush.msra.mxu0 0.0
        %2391 = vmatpush.msra.mxu0 0.0
        %2392 = vmatpush.msra.mxu0 0.0
        %2393 = vmatpush.msra.mxu0 0.0
        %2394 = vmatpush.msra.mxu0 0.0
        %2395 = vmatpush.msra.mxu0 0.0
        %2396 = vmatpush.msra.mxu0 0.0
        %2397 = vmatpush.msra.mxu0 0.0
        %2398 = vmatpush.msra.mxu0 %v2375
        %2399 = vmatpush.msra.mxu0 %v2373
        %2400 = vmatmul.f32.gmra.mxu0 %v2379
        %v2401 = vpop.f32.mrf.mxu0
        %v2402 = vadd.f32 0.0, %v2401
        %2403 = vmatmul.f32.gmra.mxu0 %v2382
        %v2404 = vpop.f32.mrf.mxu0
        %v2405 = vadd.f32 0.0, %v2404
        %2406 = vdwg.mxu0
        %2407 = vrot.lane.b32.xlu0 %v334, 64
        %v2408 = vpop.permute.xlu0 %2407
        %2409 = vrot.lane.b32.xlu0 %v336, 64
        %v2410 = vpop.permute.xlu0 %2409
        %v2414 = vsel %vm1550, %v1840, 0
        %v2417 = vsel %vm1550, %v1842, 0
        %2419 = vmatpush.msra.mxu0 0.0
        %2420 = vmatpush.msra.mxu0 0.0
        %2421 = vmatpush.msra.mxu0 0.0
        %2422 = vmatpush.msra.mxu0 0.0
        %2423 = vmatpush.msra.mxu0 0.0
        %2424 = vmatpush.msra.mxu0 0.0
        %2425 = vmatpush.msra.mxu0 0.0
        %2426 = vmatpush.msra.mxu0 0.0
        %2427 = vmatpush.msra.mxu0 0.0
        %2428 = vmatpush.msra.mxu0 0.0
        %2429 = vmatpush.msra.mxu0 0.0
        %2430 = vmatpush.msra.mxu0 0.0
        %2431 = vmatpush.msra.mxu0 0.0
        %2432 = vmatpush.msra.mxu0 0.0
        %2433 = vmatpush.msra.mxu0 %v2410
        %2434 = vmatpush.msra.mxu0 %v2408
        %2435 = vmatmul.f32.gmra.mxu0 %v2414
        %v2436 = vpop.f32.mrf.mxu0
        %v2437 = vadd.f32 0.0, %v2436
        %2438 = vmatmul.f32.gmra.mxu0 %v2417
        %v2439 = vpop.f32.mrf.mxu0
        %v2440 = vadd.f32 0.0, %v2439
        %2441 = vdwg.mxu0
        %2442 = vrot.lane.b32.xlu0 %v338, 64
        %v2443 = vpop.permute.xlu0 %2442
        %2444 = vrot.lane.b32.xlu0 %v340, 64
        %v2445 = vpop.permute.xlu0 %2444
        %v2449 = vsel %vm1550, %v1844, 0
        %v2452 = vsel %vm1550, %v1846, 0
        %2454 = vmatpush.msra.mxu0 0.0
        %2455 = vmatpush.msra.mxu0 0.0
        %2456 = vmatpush.msra.mxu0 0.0
        %2457 = vmatpush.msra.mxu0 0.0
        %2458 = vmatpush.msra.mxu0 0.0
        %2459 = vmatpush.msra.mxu0 0.0
        %2460 = vmatpush.msra.mxu0 0.0
        %2461 = vmatpush.msra.mxu0 0.0
        %2462 = vmatpush.msra.mxu0 0.0
        %2463 = vmatpush.msra.mxu0 0.0
        %2464 = vmatpush.msra.mxu0 0.0
        %2465 = vmatpush.msra.mxu0 0.0
        %2466 = vmatpush.msra.mxu0 0.0
        %2467 = vmatpush.msra.mxu0 0.0
        %2468 = vmatpush.msra.mxu0 %v2445
        %2469 = vmatpush.msra.mxu0 %v2443
        %2470 = vmatmul.f32.gmra.mxu0 %v2449
        %v2471 = vpop.f32.mrf.mxu0
        %v2472 = vadd.f32 0.0, %v2471
        %2473 = vmatmul.f32.gmra.mxu0 %v2452
        %v2474 = vpop.f32.mrf.mxu0
        %v2475 = vadd.f32 0.0, %v2474
        %2476 = vdwg.mxu0
        %2477 = vrot.lane.b32.xlu0 %v342, 64
        %v2478 = vpop.permute.xlu0 %2477
        %2479 = vrot.lane.b32.xlu0 %v344, 64
        %v2480 = vpop.permute.xlu0 %2479
        %v2484 = vsel %vm1550, %v1848, 0
        %v2487 = vsel %vm1550, %v1850, 0
        %2489 = vmatpush.msra.mxu0 0.0
        %2490 = vmatpush.msra.mxu0 0.0
        %2491 = vmatpush.msra.mxu0 0.0
        %2492 = vmatpush.msra.mxu0 0.0
        %2493 = vmatpush.msra.mxu0 0.0
        %2494 = vmatpush.msra.mxu0 0.0
        %2495 = vmatpush.msra.mxu0 0.0
        %2496 = vmatpush.msra.mxu0 0.0
        %2497 = vmatpush.msra.mxu0 0.0
        %2498 = vmatpush.msra.mxu0 0.0
        %2499 = vmatpush.msra.mxu0 0.0
        %2500 = vmatpush.msra.mxu0 0.0
        %2501 = vmatpush.msra.mxu0 0.0
        %2502 = vmatpush.msra.mxu0 0.0
        %2503 = vmatpush.msra.mxu0 %v2480
        %2504 = vmatpush.msra.mxu0 %v2478
        %2505 = vmatmul.f32.gmra.mxu0 %v2484
        %v2506 = vpop.f32.mrf.mxu0
        %v2507 = vadd.f32 0.0, %v2506
        %2508 = vmatmul.f32.gmra.mxu0 %v2487
        %v2509 = vpop.f32.mrf.mxu0
        %v2510 = vadd.f32 0.0, %v2509
        %2511 = vdwg.mxu0
        %2512 = vrot.lane.b32.xlu0 %v346, 64
        %v2513 = vpop.permute.xlu0 %2512
        %2514 = vrot.lane.b32.xlu0 %v348, 64
        %v2515 = vpop.permute.xlu0 %2514
        %v2519 = vsel %vm1550, %v1852, 0
        %v2522 = vsel %vm1550, %v1854, 0
        %2524 = vmatpush.msra.mxu0 0.0
        %2525 = vmatpush.msra.mxu0 0.0
        %2526 = vmatpush.msra.mxu0 0.0
        %2527 = vmatpush.msra.mxu0 0.0
        %2528 = vmatpush.msra.mxu0 0.0
        %2529 = vmatpush.msra.mxu0 0.0
        %2530 = vmatpush.msra.mxu0 0.0
        %2531 = vmatpush.msra.mxu0 0.0
        %2532 = vmatpush.msra.mxu0 0.0
        %2533 = vmatpush.msra.mxu0 0.0
        %2534 = vmatpush.msra.mxu0 0.0
        %2535 = vmatpush.msra.mxu0 0.0
        %2536 = vmatpush.msra.mxu0 0.0
        %2537 = vmatpush.msra.mxu0 0.0
        %2538 = vmatpush.msra.mxu0 %v2515
        %2539 = vmatpush.msra.mxu0 %v2513
        %2540 = vmatmul.f32.gmra.mxu0 %v2519
        %v2541 = vpop.f32.mrf.mxu0
        %v2542 = vadd.f32 0.0, %v2541
        %2543 = vmatmul.f32.gmra.mxu0 %v2522
        %v2544 = vpop.f32.mrf.mxu0
        %v2545 = vadd.f32 0.0, %v2544
        %2546 = vdwg.mxu0
        %2547 = vrot.lane.b32.xlu0 %v350, 64
        %v2548 = vpop.permute.xlu0 %2547
        %2549 = vrot.lane.b32.xlu0 %v352, 64
        %v2550 = vpop.permute.xlu0 %2549
        %v2554 = vsel %vm1550, %v1856, 0
        %v2557 = vsel %vm1550, %v1858, 0
        %2559 = vmatpush.msra.mxu0 0.0
        %2560 = vmatpush.msra.mxu0 0.0
        %2561 = vmatpush.msra.mxu0 0.0
        %2562 = vmatpush.msra.mxu0 0.0
        %2563 = vmatpush.msra.mxu0 0.0
        %2564 = vmatpush.msra.mxu0 0.0
        %2565 = vmatpush.msra.mxu0 0.0
        %2566 = vmatpush.msra.mxu0 0.0
        %2567 = vmatpush.msra.mxu0 0.0
        %2568 = vmatpush.msra.mxu0 0.0
        %2569 = vmatpush.msra.mxu0 0.0
        %2570 = vmatpush.msra.mxu0 0.0
        %2571 = vmatpush.msra.mxu0 0.0
        %2572 = vmatpush.msra.mxu0 0.0
        %2573 = vmatpush.msra.mxu0 %v2550
        %2574 = vmatpush.msra.mxu0 %v2548
        %2575 = vmatmul.f32.gmra.mxu0 %v2554
        %v2576 = vpop.f32.mrf.mxu0
        %v2577 = vadd.f32 0.0, %v2576
        %2578 = vmatmul.f32.gmra.mxu0 %v2557
        %v2579 = vpop.f32.mrf.mxu0
        %v2580 = vadd.f32 0.0, %v2579
        %2581 = vdwg.mxu0
        %2582 = vrot.lane.b32.xlu0 %v354, 64
        %v2583 = vpop.permute.xlu0 %2582
        %2584 = vrot.lane.b32.xlu0 %v356, 64
        %v2585 = vpop.permute.xlu0 %2584
        %v2589 = vsel %vm1550, %v1860, 0
        %v2592 = vsel %vm1550, %v1862, 0
        %2594 = vmatpush.msra.mxu0 0.0
        %2595 = vmatpush.msra.mxu0 0.0
        %2596 = vmatpush.msra.mxu0 0.0
        %2597 = vmatpush.msra.mxu0 0.0
        %2598 = vmatpush.msra.mxu0 0.0
        %2599 = vmatpush.msra.mxu0 0.0
        %2600 = vmatpush.msra.mxu0 0.0
        %2601 = vmatpush.msra.mxu0 0.0
        %2602 = vmatpush.msra.mxu0 0.0
        %2603 = vmatpush.msra.mxu0 0.0
        %2604 = vmatpush.msra.mxu0 0.0
        %2605 = vmatpush.msra.mxu0 0.0
        %2606 = vmatpush.msra.mxu0 0.0
        %2607 = vmatpush.msra.mxu0 0.0
        %2608 = vmatpush.msra.mxu0 %v2585
        %2609 = vmatpush.msra.mxu0 %v2583
        %2610 = vmatmul.f32.gmra.mxu0 %v2589
        %v2611 = vpop.f32.mrf.mxu0
        %v2612 = vadd.f32 0.0, %v2611
        %2613 = vmatmul.f32.gmra.mxu0 %v2592
        %v2614 = vpop.f32.mrf.mxu0
        %v2615 = vadd.f32 0.0, %v2614
        %2616 = vdwg.mxu0
        %2617 = vrot.lane.b32.xlu0 %v358, 64
        %v2618 = vpop.permute.xlu0 %2617
        %2619 = vrot.lane.b32.xlu0 %v360, 64
        %v2620 = vpop.permute.xlu0 %2619
        %v2624 = vsel %vm1550, %v1864, 0
        %v2627 = vsel %vm1550, %v1866, 0
        %2629 = vmatpush.msra.mxu0 0.0
        %2630 = vmatpush.msra.mxu0 0.0
        %2631 = vmatpush.msra.mxu0 0.0
        %2632 = vmatpush.msra.mxu0 0.0
        %2633 = vmatpush.msra.mxu0 0.0
        %2634 = vmatpush.msra.mxu0 0.0
        %2635 = vmatpush.msra.mxu0 0.0
        %2636 = vmatpush.msra.mxu0 0.0
        %2637 = vmatpush.msra.mxu0 0.0
        %2638 = vmatpush.msra.mxu0 0.0
        %2639 = vmatpush.msra.mxu0 0.0
        %2640 = vmatpush.msra.mxu0 0.0
        %2641 = vmatpush.msra.mxu0 0.0
        %2642 = vmatpush.msra.mxu0 0.0
        %2643 = vmatpush.msra.mxu0 %v2620
        %2644 = vmatpush.msra.mxu0 %v2618
        %2645 = vmatmul.f32.gmra.mxu0 %v2624
        %v2646 = vpop.f32.mrf.mxu0
        %v2647 = vadd.f32 0.0, %v2646
        %2648 = vmatmul.f32.gmra.mxu0 %v2627
        %v2649 = vpop.f32.mrf.mxu0
        %v2650 = vadd.f32 0.0, %v2649
        %2651 = vdwg.mxu0
        %2652 = vrot.lane.b32.xlu0 %v362, 64
        %v2653 = vpop.permute.xlu0 %2652
        %2654 = vrot.lane.b32.xlu0 %v364, 64
        %v2655 = vpop.permute.xlu0 %2654
        %v2659 = vsel %vm1550, %v1868, 0
        %v2662 = vsel %vm1550, %v1870, 0
        %2664 = vmatpush.msra.mxu0 0.0
        %2665 = vmatpush.msra.mxu0 0.0
        %2666 = vmatpush.msra.mxu0 0.0
        %2667 = vmatpush.msra.mxu0 0.0
        %2668 = vmatpush.msra.mxu0 0.0
        %2669 = vmatpush.msra.mxu0 0.0
        %2670 = vmatpush.msra.mxu0 0.0
        %2671 = vmatpush.msra.mxu0 0.0
        %2672 = vmatpush.msra.mxu0 0.0
        %2673 = vmatpush.msra.mxu0 0.0
        %2674 = vmatpush.msra.mxu0 0.0
        %2675 = vmatpush.msra.mxu0 0.0
        %2676 = vmatpush.msra.mxu0 0.0
        %2677 = vmatpush.msra.mxu0 0.0
        %2678 = vmatpush.msra.mxu0 %v2655
        %2679 = vmatpush.msra.mxu0 %v2653
        %2680 = vmatmul.f32.gmra.mxu0 %v2659
        %v2681 = vpop.f32.mrf.mxu0
        %v2682 = vadd.f32 0.0, %v2681
        %2683 = vmatmul.f32.gmra.mxu0 %v2662
        %v2684 = vpop.f32.mrf.mxu0
        %v2685 = vadd.f32 0.0, %v2684
        %2686 = vdwg.mxu0
        %2687 = vrot.lane.b32.xlu0 %v366, 64
        %v2688 = vpop.permute.xlu0 %2687
        %2689 = vrot.lane.b32.xlu0 %v368, 64
        %v2690 = vpop.permute.xlu0 %2689
        %v2694 = vsel %vm1550, %v1872, 0
        %v2697 = vsel %vm1550, %v1874, 0
        %2699 = vmatpush.msra.mxu0 0.0
        %2700 = vmatpush.msra.mxu0 0.0
        %2701 = vmatpush.msra.mxu0 0.0
        %2702 = vmatpush.msra.mxu0 0.0
        %2703 = vmatpush.msra.mxu0 0.0
        %2704 = vmatpush.msra.mxu0 0.0
        %2705 = vmatpush.msra.mxu0 0.0
        %2706 = vmatpush.msra.mxu0 0.0
        %2707 = vmatpush.msra.mxu0 0.0
        %2708 = vmatpush.msra.mxu0 0.0
        %2709 = vmatpush.msra.mxu0 0.0
        %2710 = vmatpush.msra.mxu0 0.0
        %2711 = vmatpush.msra.mxu0 0.0
        %2712 = vmatpush.msra.mxu0 0.0
        %2713 = vmatpush.msra.mxu0 %v2690
        %2714 = vmatpush.msra.mxu0 %v2688
        %2715 = vmatmul.f32.gmra.mxu0 %v2694
        %v2716 = vpop.f32.mrf.mxu0
        %v2717 = vadd.f32 0.0, %v2716
        %2718 = vmatmul.f32.gmra.mxu0 %v2697
        %v2719 = vpop.f32.mrf.mxu0
        %v2720 = vadd.f32 0.0, %v2719
        %2721 = vdwg.mxu0
        %2722 = vrot.lane.b32.xlu0 %v370, 64
        %v2723 = vpop.permute.xlu0 %2722
        %2724 = vrot.lane.b32.xlu0 %v372, 64
        %v2725 = vpop.permute.xlu0 %2724
        %v2729 = vsel %vm1550, %v1876, 0
        %v2732 = vsel %vm1550, %v1878, 0
        %2734 = vmatpush.msra.mxu0 0.0
        %2735 = vmatpush.msra.mxu0 0.0
        %2736 = vmatpush.msra.mxu0 0.0
        %2737 = vmatpush.msra.mxu0 0.0
        %2738 = vmatpush.msra.mxu0 0.0
        %2739 = vmatpush.msra.mxu0 0.0
        %2740 = vmatpush.msra.mxu0 0.0
        %2741 = vmatpush.msra.mxu0 0.0
        %2742 = vmatpush.msra.mxu0 0.0
        %2743 = vmatpush.msra.mxu0 0.0
        %2744 = vmatpush.msra.mxu0 0.0
        %2745 = vmatpush.msra.mxu0 0.0
        %2746 = vmatpush.msra.mxu0 0.0
        %2747 = vmatpush.msra.mxu0 0.0
        %2748 = vmatpush.msra.mxu0 %v2725
        %2749 = vmatpush.msra.mxu0 %v2723
        %2750 = vmatmul.f32.gmra.mxu0 %v2729
        %v2751 = vpop.f32.mrf.mxu0
        %v2752 = vadd.f32 0.0, %v2751
        %2753 = vmatmul.f32.gmra.mxu0 %v2732
        %v2754 = vpop.f32.mrf.mxu0
        %v2755 = vadd.f32 0.0, %v2754
        %2756 = vdwg.mxu0
        %2757 = vrot.lane.b32.xlu0 %v374, 64
        %v2758 = vpop.permute.xlu0 %2757
        %2759 = vrot.lane.b32.xlu0 %v376, 64
        %v2760 = vpop.permute.xlu0 %2759
        %v2764 = vsel %vm1550, %v1880, 0
        %v2767 = vsel %vm1550, %v1882, 0
        %2769 = vmatpush.msra.mxu0 0.0
        %2770 = vmatpush.msra.mxu0 0.0
        %2771 = vmatpush.msra.mxu0 0.0
        %2772 = vmatpush.msra.mxu0 0.0
        %2773 = vmatpush.msra.mxu0 0.0
        %2774 = vmatpush.msra.mxu0 0.0
        %2775 = vmatpush.msra.mxu0 0.0
        %2776 = vmatpush.msra.mxu0 0.0
        %2777 = vmatpush.msra.mxu0 0.0
        %2778 = vmatpush.msra.mxu0 0.0
        %2779 = vmatpush.msra.mxu0 0.0
        %2780 = vmatpush.msra.mxu0 0.0
        %2781 = vmatpush.msra.mxu0 0.0
        %2782 = vmatpush.msra.mxu0 0.0
        %2783 = vmatpush.msra.mxu0 %v2760
        %2784 = vmatpush.msra.mxu0 %v2758
        %2785 = vmatmul.f32.gmra.mxu0 %v2764
        %v2786 = vpop.f32.mrf.mxu0
        %v2787 = vadd.f32 0.0, %v2786
        %2788 = vmatmul.f32.gmra.mxu0 %v2767
        %v2789 = vpop.f32.mrf.mxu0
        %v2790 = vadd.f32 0.0, %v2789
        %2791 = vdwg.mxu0
        %2792 = vrot.lane.b32.xlu0 %v378, 64
        %v2793 = vpop.permute.xlu0 %2792
        %2794 = vrot.lane.b32.xlu0 %v380, 64
        %v2795 = vpop.permute.xlu0 %2794
        %v2799 = vsel %vm1550, %v1884, 0
        %v2802 = vsel %vm1550, %v1886, 0
        %2804 = vmatpush.msra.mxu0 0.0
        %2805 = vmatpush.msra.mxu0 0.0
        %2806 = vmatpush.msra.mxu0 0.0
        %2807 = vmatpush.msra.mxu0 0.0
        %2808 = vmatpush.msra.mxu0 0.0
        %2809 = vmatpush.msra.mxu0 0.0
        %2810 = vmatpush.msra.mxu0 0.0
        %2811 = vmatpush.msra.mxu0 0.0
        %2812 = vmatpush.msra.mxu0 0.0
        %2813 = vmatpush.msra.mxu0 0.0
        %2814 = vmatpush.msra.mxu0 0.0
        %2815 = vmatpush.msra.mxu0 0.0
        %2816 = vmatpush.msra.mxu0 0.0
        %2817 = vmatpush.msra.mxu0 0.0
        %2818 = vmatpush.msra.mxu0 %v2795
        %2819 = vmatpush.msra.mxu0 %v2793
        %2820 = vmatmul.f32.gmra.mxu0 %v2799
        %v2821 = vpop.f32.mrf.mxu0
        %v2822 = vadd.f32 0.0, %v2821
        %2823 = vmatmul.f32.gmra.mxu0 %v2802
        %v2824 = vpop.f32.mrf.mxu0
        %v2825 = vadd.f32 0.0, %v2824
        %2826 = vdwg.mxu0
        %2827 = vrot.lane.b32.xlu0 %v382, 64
        %v2828 = vpop.permute.xlu0 %2827
        %2829 = vrot.lane.b32.xlu0 %v384, 64
        %v2830 = vpop.permute.xlu0 %2829
        %v2834 = vsel %vm1550, %v1888, 0
        %v2837 = vsel %vm1550, %v1890, 0
        %2839 = vmatpush.msra.mxu0 0.0
        %2840 = vmatpush.msra.mxu0 0.0
        %2841 = vmatpush.msra.mxu0 0.0
        %2842 = vmatpush.msra.mxu0 0.0
        %2843 = vmatpush.msra.mxu0 0.0
        %2844 = vmatpush.msra.mxu0 0.0
        %2845 = vmatpush.msra.mxu0 0.0
        %2846 = vmatpush.msra.mxu0 0.0
        %2847 = vmatpush.msra.mxu0 0.0
        %2848 = vmatpush.msra.mxu0 0.0
        %2849 = vmatpush.msra.mxu0 0.0
        %2850 = vmatpush.msra.mxu0 0.0
        %2851 = vmatpush.msra.mxu0 0.0
        %2852 = vmatpush.msra.mxu0 0.0
        %2853 = vmatpush.msra.mxu0 %v2830
        %2854 = vmatpush.msra.mxu0 %v2828
        %2855 = vmatmul.f32.gmra.mxu0 %v2834
        %v2856 = vpop.f32.mrf.mxu0
        %v2857 = vadd.f32 0.0, %v2856
        %2858 = vmatmul.f32.gmra.mxu0 %v2837
        %v2859 = vpop.f32.mrf.mxu0
        %v2860 = vadd.f32 0.0, %v2859
        %2861 = vdwg.mxu0
        %2862 = vrot.lane.b32.xlu0 %v386, 64
        %v2863 = vpop.permute.xlu0 %2862
        %2864 = vrot.lane.b32.xlu0 %v388, 64
        %v2865 = vpop.permute.xlu0 %2864
        %v2869 = vsel %vm1550, %v1892, 0
        %v2872 = vsel %vm1550, %v1894, 0
        %2874 = vmatpush.msra.mxu0 0.0
        %2875 = vmatpush.msra.mxu0 0.0
        %2876 = vmatpush.msra.mxu0 0.0
        %2877 = vmatpush.msra.mxu0 0.0
        %2878 = vmatpush.msra.mxu0 0.0
        %2879 = vmatpush.msra.mxu0 0.0
        %2880 = vmatpush.msra.mxu0 0.0
        %2881 = vmatpush.msra.mxu0 0.0
        %2882 = vmatpush.msra.mxu0 0.0
        %2883 = vmatpush.msra.mxu0 0.0
        %2884 = vmatpush.msra.mxu0 0.0
        %2885 = vmatpush.msra.mxu0 0.0
        %2886 = vmatpush.msra.mxu0 0.0
        %2887 = vmatpush.msra.mxu0 0.0
        %2888 = vmatpush.msra.mxu0 %v2865
        %2889 = vmatpush.msra.mxu0 %v2863
        %2890 = vmatmul.f32.gmra.mxu0 %v2869
        %v2891 = vpop.f32.mrf.mxu0
        %v2892 = vadd.f32 0.0, %v2891
        %2893 = vmatmul.f32.gmra.mxu0 %v2872
        %v2894 = vpop.f32.mrf.mxu0
        %v2895 = vadd.f32 0.0, %v2894
        %2896 = vdwg.mxu0
        %2897 = vrot.lane.b32.xlu0 %v390, 64
        %v2898 = vpop.permute.xlu0 %2897
        %2899 = vrot.lane.b32.xlu0 %v392, 64
        %v2900 = vpop.permute.xlu0 %2899
        %v2904 = vsel %vm1550, %v1896, 0
        %v2907 = vsel %vm1550, %v1898, 0
        %2909 = vmatpush.msra.mxu0 0.0
        %2910 = vmatpush.msra.mxu0 0.0
        %2911 = vmatpush.msra.mxu0 0.0
        %2912 = vmatpush.msra.mxu0 0.0
        %2913 = vmatpush.msra.mxu0 0.0
        %2914 = vmatpush.msra.mxu0 0.0
        %2915 = vmatpush.msra.mxu0 0.0
        %2916 = vmatpush.msra.mxu0 0.0
        %2917 = vmatpush.msra.mxu0 0.0
        %2918 = vmatpush.msra.mxu0 0.0
        %2919 = vmatpush.msra.mxu0 0.0
        %2920 = vmatpush.msra.mxu0 0.0
        %2921 = vmatpush.msra.mxu0 0.0
        %2922 = vmatpush.msra.mxu0 0.0
        %2923 = vmatpush.msra.mxu0 %v2900
        %2924 = vmatpush.msra.mxu0 %v2898
        %2925 = vmatmul.f32.gmra.mxu0 %v2904
        %v2926 = vpop.f32.mrf.mxu0
        %v2927 = vadd.f32 0.0, %v2926
        %2928 = vmatmul.f32.gmra.mxu0 %v2907
        %v2929 = vpop.f32.mrf.mxu0
        %v2930 = vadd.f32 0.0, %v2929
        %2931 = vdwg.mxu0
        %2932 = vrot.lane.b32.xlu0 %v394, 64
        %v2933 = vpop.permute.xlu0 %2932
        %2934 = vrot.lane.b32.xlu0 %v396, 64
        %v2935 = vpop.permute.xlu0 %2934
        %v2939 = vsel %vm1550, %v1900, 0
        %v2942 = vsel %vm1550, %v1902, 0
        %2944 = vmatpush.msra.mxu0 0.0
        %2945 = vmatpush.msra.mxu0 0.0
        %2946 = vmatpush.msra.mxu0 0.0
        %2947 = vmatpush.msra.mxu0 0.0
        %2948 = vmatpush.msra.mxu0 0.0
        %2949 = vmatpush.msra.mxu0 0.0
        %2950 = vmatpush.msra.mxu0 0.0
        %2951 = vmatpush.msra.mxu0 0.0
        %2952 = vmatpush.msra.mxu0 0.0
        %2953 = vmatpush.msra.mxu0 0.0
        %2954 = vmatpush.msra.mxu0 0.0
        %2955 = vmatpush.msra.mxu0 0.0
        %2956 = vmatpush.msra.mxu0 0.0
        %2957 = vmatpush.msra.mxu0 0.0
        %2958 = vmatpush.msra.mxu0 %v2935
        %2959 = vmatpush.msra.mxu0 %v2933
        %2960 = vmatmul.f32.gmra.mxu0 %v2939
        %v2961 = vpop.f32.mrf.mxu0
        %v2962 = vadd.f32 0.0, %v2961
        %2963 = vmatmul.f32.gmra.mxu0 %v2942
        %v2964 = vpop.f32.mrf.mxu0
        %v2965 = vadd.f32 0.0, %v2964
        %2966 = vdwg.mxu0
        %2967 = vrot.lane.b32.xlu0 %v398, 64
        %v2968 = vpop.permute.xlu0 %2967
        %2969 = vrot.lane.b32.xlu0 %v400, 64
        %v2970 = vpop.permute.xlu0 %2969
        %v2974 = vsel %vm1550, %v1904, 0
        %v2977 = vsel %vm1550, %v1906, 0
        %2979 = vmatpush.msra.mxu0 0.0
        %2980 = vmatpush.msra.mxu0 0.0
        %2981 = vmatpush.msra.mxu0 0.0
        %2982 = vmatpush.msra.mxu0 0.0
        %2983 = vmatpush.msra.mxu0 0.0
        %2984 = vmatpush.msra.mxu0 0.0
        %2985 = vmatpush.msra.mxu0 0.0
        %2986 = vmatpush.msra.mxu0 0.0
        %2987 = vmatpush.msra.mxu0 0.0
        %2988 = vmatpush.msra.mxu0 0.0
        %2989 = vmatpush.msra.mxu0 0.0
        %2990 = vmatpush.msra.mxu0 0.0
        %2991 = vmatpush.msra.mxu0 0.0
        %2992 = vmatpush.msra.mxu0 0.0
        %2993 = vmatpush.msra.mxu0 %v2970
        %2994 = vmatpush.msra.mxu0 %v2968
        %2995 = vmatmul.f32.gmra.mxu0 %v2974
        %v2996 = vpop.f32.mrf.mxu0
        %v2997 = vadd.f32 0.0, %v2996
        %2998 = vmatmul.f32.gmra.mxu0 %v2977
        %v2999 = vpop.f32.mrf.mxu0
        %v3000 = vadd.f32 0.0, %v2999
        %3001 = vdwg.mxu0
        %3002 = vrot.lane.b32.xlu0 %v402, 64
        %v3003 = vpop.permute.xlu0 %3002
        %3004 = vrot.lane.b32.xlu0 %v404, 64
        %v3005 = vpop.permute.xlu0 %3004
        %v3009 = vsel %vm1550, %v1908, 0
        %v3012 = vsel %vm1550, %v1910, 0
        %3014 = vmatpush.msra.mxu0 0.0
        %3015 = vmatpush.msra.mxu0 0.0
        %3016 = vmatpush.msra.mxu0 0.0
        %3017 = vmatpush.msra.mxu0 0.0
        %3018 = vmatpush.msra.mxu0 0.0
        %3019 = vmatpush.msra.mxu0 0.0
        %3020 = vmatpush.msra.mxu0 0.0
        %3021 = vmatpush.msra.mxu0 0.0
        %3022 = vmatpush.msra.mxu0 0.0
        %3023 = vmatpush.msra.mxu0 0.0
        %3024 = vmatpush.msra.mxu0 0.0
        %3025 = vmatpush.msra.mxu0 0.0
        %3026 = vmatpush.msra.mxu0 0.0
        %3027 = vmatpush.msra.mxu0 0.0
        %3028 = vmatpush.msra.mxu0 %v3005
        %3029 = vmatpush.msra.mxu0 %v3003
        %3030 = vmatmul.f32.gmra.mxu0 %v3009
        %v3031 = vpop.f32.mrf.mxu0
        %v3032 = vadd.f32 0.0, %v3031
        %3033 = vmatmul.f32.gmra.mxu0 %v3012
        %v3034 = vpop.f32.mrf.mxu0
        %v3035 = vadd.f32 0.0, %v3034
        %3036 = vdwg.mxu0
        %3037 = vrot.lane.b32.xlu0 %v406, 64
        %v3038 = vpop.permute.xlu0 %3037
        %3039 = vrot.lane.b32.xlu0 %v408, 64
        %v3040 = vpop.permute.xlu0 %3039
        %v3044 = vsel %vm1550, %v1912, 0
        %v3047 = vsel %vm1550, %v1914, 0
        %3049 = vmatpush.msra.mxu0 0.0
        %3050 = vmatpush.msra.mxu0 0.0
        %3051 = vmatpush.msra.mxu0 0.0
        %3052 = vmatpush.msra.mxu0 0.0
        %3053 = vmatpush.msra.mxu0 0.0
        %3054 = vmatpush.msra.mxu0 0.0
        %3055 = vmatpush.msra.mxu0 0.0
        %3056 = vmatpush.msra.mxu0 0.0
        %3057 = vmatpush.msra.mxu0 0.0
        %3058 = vmatpush.msra.mxu0 0.0
        %3059 = vmatpush.msra.mxu0 0.0
        %3060 = vmatpush.msra.mxu0 0.0
        %3061 = vmatpush.msra.mxu0 0.0
        %3062 = vmatpush.msra.mxu0 0.0
        %3063 = vmatpush.msra.mxu0 %v3040
        %3064 = vmatpush.msra.mxu0 %v3038
        %3065 = vmatmul.f32.gmra.mxu0 %v3044
        %v3066 = vpop.f32.mrf.mxu0
        %v3067 = vadd.f32 0.0, %v3066
        %3068 = vmatmul.f32.gmra.mxu0 %v3047
        %v3069 = vpop.f32.mrf.mxu0
        %v3070 = vadd.f32 0.0, %v3069
        %3071 = vdwg.mxu0
        %3072 = vrot.lane.b32.xlu0 %v410, 64
        %v3073 = vpop.permute.xlu0 %3072
        %3074 = vrot.lane.b32.xlu0 %v412, 64
        %v3075 = vpop.permute.xlu0 %3074
        %v3079 = vsel %vm1550, %v1916, 0
        %v3082 = vsel %vm1550, %v1918, 0
        %3084 = vmatpush.msra.mxu0 0.0
        %3085 = vmatpush.msra.mxu0 0.0
        %3086 = vmatpush.msra.mxu0 0.0
        %3087 = vmatpush.msra.mxu0 0.0
        %3088 = vmatpush.msra.mxu0 0.0
        %3089 = vmatpush.msra.mxu0 0.0
        %3090 = vmatpush.msra.mxu0 0.0
        %3091 = vmatpush.msra.mxu0 0.0
        %3092 = vmatpush.msra.mxu0 0.0
        %3093 = vmatpush.msra.mxu0 0.0
        %3094 = vmatpush.msra.mxu0 0.0
        %3095 = vmatpush.msra.mxu0 0.0
        %3096 = vmatpush.msra.mxu0 0.0
        %3097 = vmatpush.msra.mxu0 0.0
        %3098 = vmatpush.msra.mxu0 %v3075
        %3099 = vmatpush.msra.mxu0 %v3073
        %3100 = vmatmul.f32.gmra.mxu0 %v3079
        %v3101 = vpop.f32.mrf.mxu0
        %v3102 = vadd.f32 0.0, %v3101
        %3103 = vmatmul.f32.gmra.mxu0 %v3082
        %v3104 = vpop.f32.mrf.mxu0
        %v3105 = vadd.f32 0.0, %v3104
        %3106 = vdwg.mxu0
        %3107 = vrot.lane.b32.xlu0 %v414, 64
        %v3108 = vpop.permute.xlu0 %3107
        %3109 = vrot.lane.b32.xlu0 %v416, 64
        %v3110 = vpop.permute.xlu0 %3109
        %v3114 = vsel %vm1550, %v1920, 0
        %v3117 = vsel %vm1550, %v1922, 0
        %3119 = vmatpush.msra.mxu0 0.0
        %3120 = vmatpush.msra.mxu0 0.0
        %3121 = vmatpush.msra.mxu0 0.0
        %3122 = vmatpush.msra.mxu0 0.0
        %3123 = vmatpush.msra.mxu0 0.0
        %3124 = vmatpush.msra.mxu0 0.0
        %3125 = vmatpush.msra.mxu0 0.0
        %3126 = vmatpush.msra.mxu0 0.0
        %3127 = vmatpush.msra.mxu0 0.0
        %3128 = vmatpush.msra.mxu0 0.0
        %3129 = vmatpush.msra.mxu0 0.0
        %3130 = vmatpush.msra.mxu0 0.0
        %3131 = vmatpush.msra.mxu0 0.0
        %3132 = vmatpush.msra.mxu0 0.0
        %3133 = vmatpush.msra.mxu0 %v3110
        %3134 = vmatpush.msra.mxu0 %v3108
        %3135 = vmatmul.f32.gmra.mxu0 %v3114
        %v3136 = vpop.f32.mrf.mxu0
        %v3137 = vadd.f32 0.0, %v3136
        %3138 = vmatmul.f32.gmra.mxu0 %v3117
        %v3139 = vpop.f32.mrf.mxu0
        %v3140 = vadd.f32 0.0, %v3139
        %3141 = vdwg.mxu0
        %3142 = vrot.lane.b32.xlu0 %v418, 64
        %v3143 = vpop.permute.xlu0 %3142
        %3144 = vrot.lane.b32.xlu0 %v420, 64
        %v3145 = vpop.permute.xlu0 %3144
        %v3149 = vsel %vm1550, %v1924, 0
        %v3152 = vsel %vm1550, %v1926, 0
        %3154 = vmatpush.msra.mxu0 0.0
        %3155 = vmatpush.msra.mxu0 0.0
        %3156 = vmatpush.msra.mxu0 0.0
        %3157 = vmatpush.msra.mxu0 0.0
        %3158 = vmatpush.msra.mxu0 0.0
        %3159 = vmatpush.msra.mxu0 0.0
        %3160 = vmatpush.msra.mxu0 0.0
        %3161 = vmatpush.msra.mxu0 0.0
        %3162 = vmatpush.msra.mxu0 0.0
        %3163 = vmatpush.msra.mxu0 0.0
        %3164 = vmatpush.msra.mxu0 0.0
        %3165 = vmatpush.msra.mxu0 0.0
        %3166 = vmatpush.msra.mxu0 0.0
        %3167 = vmatpush.msra.mxu0 0.0
        %3168 = vmatpush.msra.mxu0 %v3145
        %3169 = vmatpush.msra.mxu0 %v3143
        %3170 = vmatmul.f32.gmra.mxu0 %v3149
        %v3171 = vpop.f32.mrf.mxu0
        %v3172 = vadd.f32 0.0, %v3171
        %3173 = vmatmul.f32.gmra.mxu0 %v3152
        %v3174 = vpop.f32.mrf.mxu0
        %v3175 = vadd.f32 0.0, %v3174
        %3176 = vdwg.mxu0
        %3177 = vrot.lane.b32.xlu0 %v422, 64
        %v3178 = vpop.permute.xlu0 %3177
        %3179 = vrot.lane.b32.xlu0 %v424, 64
        %v3180 = vpop.permute.xlu0 %3179
        %v3184 = vsel %vm1550, %v1928, 0
        %v3187 = vsel %vm1550, %v1930, 0
        %3189 = vmatpush.msra.mxu0 0.0
        %3190 = vmatpush.msra.mxu0 0.0
        %3191 = vmatpush.msra.mxu0 0.0
        %3192 = vmatpush.msra.mxu0 0.0
        %3193 = vmatpush.msra.mxu0 0.0
        %3194 = vmatpush.msra.mxu0 0.0
        %3195 = vmatpush.msra.mxu0 0.0
        %3196 = vmatpush.msra.mxu0 0.0
        %3197 = vmatpush.msra.mxu0 0.0
        %3198 = vmatpush.msra.mxu0 0.0
        %3199 = vmatpush.msra.mxu0 0.0
        %3200 = vmatpush.msra.mxu0 0.0
        %3201 = vmatpush.msra.mxu0 0.0
        %3202 = vmatpush.msra.mxu0 0.0
        %3203 = vmatpush.msra.mxu0 %v3180
        %3204 = vmatpush.msra.mxu0 %v3178
        %3205 = vmatmul.f32.gmra.mxu0 %v3184
        %v3206 = vpop.f32.mrf.mxu0
        %v3207 = vadd.f32 0.0, %v3206
        %3208 = vmatmul.f32.gmra.mxu0 %v3187
        %v3209 = vpop.f32.mrf.mxu0
        %v3210 = vadd.f32 0.0, %v3209
        %3211 = vdwg.mxu0
        %3212 = vrot.lane.b32.xlu0 %v426, 64
        %v3213 = vpop.permute.xlu0 %3212
        %3214 = vrot.lane.b32.xlu0 %v428, 64
        %v3215 = vpop.permute.xlu0 %3214
        %v3219 = vsel %vm1550, %v1932, 0
        %v3222 = vsel %vm1550, %v1934, 0
        %3224 = vmatpush.msra.mxu0 0.0
        %3225 = vmatpush.msra.mxu0 0.0
        %3226 = vmatpush.msra.mxu0 0.0
        %3227 = vmatpush.msra.mxu0 0.0
        %3228 = vmatpush.msra.mxu0 0.0
        %3229 = vmatpush.msra.mxu0 0.0
        %3230 = vmatpush.msra.mxu0 0.0
        %3231 = vmatpush.msra.mxu0 0.0
        %3232 = vmatpush.msra.mxu0 0.0
        %3233 = vmatpush.msra.mxu0 0.0
        %3234 = vmatpush.msra.mxu0 0.0
        %3235 = vmatpush.msra.mxu0 0.0
        %3236 = vmatpush.msra.mxu0 0.0
        %3237 = vmatpush.msra.mxu0 0.0
        %3238 = vmatpush.msra.mxu0 %v3215
        %3239 = vmatpush.msra.mxu0 %v3213
        %3240 = vmatmul.f32.gmra.mxu0 %v3219
        %v3241 = vpop.f32.mrf.mxu0
        %v3242 = vadd.f32 0.0, %v3241
        %3243 = vmatmul.f32.gmra.mxu0 %v3222
        %v3244 = vpop.f32.mrf.mxu0
        %v3245 = vadd.f32 0.0, %v3244
        %3246 = vdwg.mxu0
        %v3247 = vrcp.pop %v1937
        %v3248 = vrcp.pop %v1940
        %v3249 = vrcp.pop %v1943
        %v3250 = vrcp.pop %v1946
        %v3251 = vrcp.pop %v1949
        %v3252 = vrcp.pop %v1952
        %v3253 = vrcp.pop %v1955
        %v3254 = vrcp.pop %v1958
        %v3255 = vrcp.pop %v1961
        %v3256 = vrcp.pop %v1964
        %v3257 = vrcp.pop %v1967
        %v3258 = vrcp.pop %v1970
        %v3259 = vrcp.pop %v1973
        %v3260 = vrcp.pop %v1976
        %v3261 = vrcp.pop %v1979
        %v3262 = vrcp.pop %v1982
        %v3263 = vrcp.pop %v1985
        %v3264 = vrcp.pop %v1988
        %v3265 = vrcp.pop %v1991
        %v3266 = vrcp.pop %v1994
        %v3267 = vrcp.pop %v1997
        %v3268 = vrcp.pop %v2000
        %v3269 = vrcp.pop %v2003
        %v3270 = vrcp.pop %v2006
        %v3271 = vrcp.pop %v2009
        %v3272 = vrcp.pop %v2012
        %v3273 = vrcp.pop %v2015
        %v3274 = vrcp.pop %v2018
        %v3275 = vrcp.pop %v2021
        %v3276 = vrcp.pop %v2024
        %v3277 = vrcp.pop %v2027
        %v3278 = vrcp.pop %v2030
        %v3279 = vrcp.pop %v2033
        %v3280 = vrcp.pop %v2036
        %v3281 = vrcp.pop %v2039
        %v3282 = vrcp.pop %v2042
        %v3283 = vrcp.pop %v2045
        %v3284 = vrcp.pop %v2048
        %v3285 = vrcp.pop %v2051
        %v3286 = vrcp.pop %v2054
        %v3287 = vrcp.pop %v2057
        %v3288 = vrcp.pop %v2060
        %v3289 = vrcp.pop %v2063
        %v3290 = vrcp.pop %v2066
        %v3291 = vrcp.pop %v2069
        %v3292 = vrcp.pop %v2072
        %v3293 = vrcp.pop %v2075
        %v3294 = vrcp.pop %v2078
        %v3295 = vrcp.pop %v2081
        %v3296 = vrcp.pop %v2084
        %v3297 = vrcp.pop %v2087
        %v3298 = vrcp.pop %v2090
        %v3299 = vrcp.pop %v2093
        %v3300 = vrcp.pop %v2096
        %v3301 = vrcp.pop %v2099
        %v3302 = vrcp.pop %v2102
        %v3303 = vrcp.pop %v2105
        %v3304 = vrcp.pop %v2108
        %v3305 = vrcp.pop %v2111
        %v3306 = vrcp.pop %v2114
        %v3307 = vrcp.pop %v2117
        %v3308 = vrcp.pop %v2120
        %v3309 = vrcp.pop %v2123
        %v3310 = vrcp.pop %v2126
        %v3311 = vmul.f32 %v2157, %v3247
        %v3312 = vmul.f32 %v2160, %v3248
        %v3313 = vmul.f32 %v2192, %v3249
        %v3314 = vmul.f32 %v2195, %v3250
        %v3315 = vmul.f32 %v2227, %v3251
        %v3316 = vmul.f32 %v2230, %v3252
        %v3317 = vmul.f32 %v2262, %v3253
        %v3318 = vmul.f32 %v2265, %v3254
        %v3319 = vmul.f32 %v2297, %v3255
        %v3320 = vmul.f32 %v2300, %v3256
        %v3321 = vmul.f32 %v2332, %v3257
        %v3322 = vmul.f32 %v2335, %v3258
        %v3323 = vmul.f32 %v2367, %v3259
        %v3324 = vmul.f32 %v2370, %v3260
        %v3325 = vmul.f32 %v2402, %v3261
        %v3326 = vmul.f32 %v2405, %v3262
        %v3327 = vmul.f32 %v2437, %v3263
        %v3328 = vmul.f32 %v2440, %v3264
        %v3329 = vmul.f32 %v2472, %v3265
        %v3330 = vmul.f32 %v2475, %v3266
        %v3331 = vmul.f32 %v2507, %v3267
        %v3332 = vmul.f32 %v2510, %v3268
        %v3333 = vmul.f32 %v2542, %v3269
        %v3334 = vmul.f32 %v2545, %v3270
        %v3335 = vmul.f32 %v2577, %v3271
        %v3336 = vmul.f32 %v2580, %v3272
        %v3337 = vmul.f32 %v2612, %v3273
        %v3338 = vmul.f32 %v2615, %v3274
        %v3339 = vmul.f32 %v2647, %v3275
        %v3340 = vmul.f32 %v2650, %v3276
        %v3341 = vmul.f32 %v2682, %v3277
        %v3342 = vmul.f32 %v2685, %v3278
        %v3343 = vmul.f32 %v2717, %v3279
        %v3344 = vmul.f32 %v2720, %v3280
        %v3345 = vmul.f32 %v2752, %v3281
        %v3346 = vmul.f32 %v2755, %v3282
        %v3347 = vmul.f32 %v2787, %v3283
        %v3348 = vmul.f32 %v2790, %v3284
        %v3349 = vmul.f32 %v2822, %v3285
        %v3350 = vmul.f32 %v2825, %v3286
        %v3351 = vmul.f32 %v2857, %v3287
        %v3352 = vmul.f32 %v2860, %v3288
        %v3353 = vmul.f32 %v2892, %v3289
        %v3354 = vmul.f32 %v2895, %v3290
        %v3355 = vmul.f32 %v2927, %v3291
        %v3356 = vmul.f32 %v2930, %v3292
        %v3357 = vmul.f32 %v2962, %v3293
        %v3358 = vmul.f32 %v2965, %v3294
        %v3359 = vmul.f32 %v2997, %v3295
        %v3360 = vmul.f32 %v3000, %v3296
        %v3361 = vmul.f32 %v3032, %v3297
        %v3362 = vmul.f32 %v3035, %v3298
        %v3363 = vmul.f32 %v3067, %v3299
        %v3364 = vmul.f32 %v3070, %v3300
        %v3365 = vmul.f32 %v3102, %v3301
        %v3366 = vmul.f32 %v3105, %v3302
        %v3367 = vmul.f32 %v3137, %v3303
        %v3368 = vmul.f32 %v3140, %v3304
        %v3369 = vmul.f32 %v3172, %v3305
        %v3370 = vmul.f32 %v3175, %v3306
        %v3371 = vmul.f32 %v3207, %v3307
        %v3372 = vmul.f32 %v3210, %v3308
        %v3373 = vmul.f32 %v3242, %v3309
        %v3374 = vmul.f32 %v3245, %v3310
        %3391 = vrot.lane.b32.xlu0 %v3327, 8
        %v3392 = vpop.permute.xlu0 %3391
        %3393 = vrot.lane.b32.xlu0 %v3328, 8
        %v3394 = vpop.permute.xlu0 %3393
        %3395 = vrot.lane.b32.xlu0 %v3329, 8
        %v3396 = vpop.permute.xlu0 %3395
        %3397 = vrot.lane.b32.xlu0 %v3330, 8
        %v3398 = vpop.permute.xlu0 %3397
        %3399 = vrot.lane.b32.xlu0 %v3331, 8
        %v3400 = vpop.permute.xlu0 %3399
        %3401 = vrot.lane.b32.xlu0 %v3332, 8
        %v3402 = vpop.permute.xlu0 %3401
        %3403 = vrot.lane.b32.xlu0 %v3333, 8
        %v3404 = vpop.permute.xlu0 %3403
        %3405 = vrot.lane.b32.xlu0 %v3334, 8
        %v3406 = vpop.permute.xlu0 %3405
        %3407 = vrot.lane.b32.xlu0 %v3335, 8
        %v3408 = vpop.permute.xlu0 %3407
        %3409 = vrot.lane.b32.xlu0 %v3336, 8
        %v3410 = vpop.permute.xlu0 %3409
        %3411 = vrot.lane.b32.xlu0 %v3337, 8
        %v3412 = vpop.permute.xlu0 %3411
        %3413 = vrot.lane.b32.xlu0 %v3338, 8
        %v3414 = vpop.permute.xlu0 %3413
        %3415 = vrot.lane.b32.xlu0 %v3339, 8
        %v3416 = vpop.permute.xlu0 %3415
        %3417 = vrot.lane.b32.xlu0 %v3340, 8
        %v3418 = vpop.permute.xlu0 %3417
        %3419 = vrot.lane.b32.xlu0 %v3341, 8
        %v3420 = vpop.permute.xlu0 %3419
        %3421 = vrot.lane.b32.xlu0 %v3342, 8
        %v3422 = vpop.permute.xlu0 %3421
        %3455 = vrot.lane.b32.xlu0 %v3343, 16
        %v3456 = vpop.permute.xlu0 %3455
        %3457 = vrot.lane.b32.xlu0 %v3344, 16
        %v3458 = vpop.permute.xlu0 %3457
        %3459 = vrot.lane.b32.xlu0 %v3345, 16
        %v3460 = vpop.permute.xlu0 %3459
        %3461 = vrot.lane.b32.xlu0 %v3346, 16
        %v3462 = vpop.permute.xlu0 %3461
        %3463 = vrot.lane.b32.xlu0 %v3347, 16
        %v3464 = vpop.permute.xlu0 %3463
        %3465 = vrot.lane.b32.xlu0 %v3348, 16
        %v3466 = vpop.permute.xlu0 %3465
        %3467 = vrot.lane.b32.xlu0 %v3349, 16
        %v3468 = vpop.permute.xlu0 %3467
        %3469 = vrot.lane.b32.xlu0 %v3350, 16
        %v3470 = vpop.permute.xlu0 %3469
        %3471 = vrot.lane.b32.xlu0 %v3351, 16
        %v3472 = vpop.permute.xlu0 %3471
        %3473 = vrot.lane.b32.xlu0 %v3352, 16
        %v3474 = vpop.permute.xlu0 %3473
        %3475 = vrot.lane.b32.xlu0 %v3353, 16
        %v3476 = vpop.permute.xlu0 %3475
        %3477 = vrot.lane.b32.xlu0 %v3354, 16
        %v3478 = vpop.permute.xlu0 %3477
        %3479 = vrot.lane.b32.xlu0 %v3355, 16
        %v3480 = vpop.permute.xlu0 %3479
        %3481 = vrot.lane.b32.xlu0 %v3356, 16
        %v3482 = vpop.permute.xlu0 %3481
        %3483 = vrot.lane.b32.xlu0 %v3357, 16
        %v3484 = vpop.permute.xlu0 %3483
        %3485 = vrot.lane.b32.xlu0 %v3358, 16
        %v3486 = vpop.permute.xlu0 %3485
        %3519 = vrot.lane.b32.xlu0 %v3359, 24
        %v3520 = vpop.permute.xlu0 %3519
        %3521 = vrot.lane.b32.xlu0 %v3360, 24
        %v3522 = vpop.permute.xlu0 %3521
        %3523 = vrot.lane.b32.xlu0 %v3361, 24
        %v3524 = vpop.permute.xlu0 %3523
        %3525 = vrot.lane.b32.xlu0 %v3362, 24
        %v3526 = vpop.permute.xlu0 %3525
        %3527 = vrot.lane.b32.xlu0 %v3363, 24
        %v3528 = vpop.permute.xlu0 %3527
        %3529 = vrot.lane.b32.xlu0 %v3364, 24
        %v3530 = vpop.permute.xlu0 %3529
        %3531 = vrot.lane.b32.xlu0 %v3365, 24
        %v3532 = vpop.permute.xlu0 %3531
        %3533 = vrot.lane.b32.xlu0 %v3366, 24
        %v3534 = vpop.permute.xlu0 %3533
        %3535 = vrot.lane.b32.xlu0 %v3367, 24
        %v3536 = vpop.permute.xlu0 %3535
        %3537 = vrot.lane.b32.xlu0 %v3368, 24
        %v3538 = vpop.permute.xlu0 %3537
        %3539 = vrot.lane.b32.xlu0 %v3369, 24
        %v3540 = vpop.permute.xlu0 %3539
        %3541 = vrot.lane.b32.xlu0 %v3370, 24
        %v3542 = vpop.permute.xlu0 %3541
        %3543 = vrot.lane.b32.xlu0 %v3371, 24
        %v3544 = vpop.permute.xlu0 %3543
        %3545 = vrot.lane.b32.xlu0 %v3372, 24
        %v3546 = vpop.permute.xlu0 %3545
        %3547 = vrot.lane.b32.xlu0 %v3373, 24
        %v3548 = vpop.permute.xlu0 %3547
        %3549 = vrot.lane.b32.xlu0 %v3374, 24
        %v3550 = vpop.permute.xlu0 %3549
        %v3567 = vsel %vm433, %v3311, %v3392
        %v3568 = vsel %vm433, %v3312, %v3394
        %v3569 = vsel %vm433, %v3313, %v3396
        %v3570 = vsel %vm433, %v3314, %v3398
        %v3571 = vsel %vm433, %v3315, %v3400
        %v3572 = vsel %vm433, %v3316, %v3402
        %v3573 = vsel %vm433, %v3317, %v3404
        %v3574 = vsel %vm433, %v3318, %v3406
        %v3575 = vsel %vm433, %v3319, %v3408
        %v3576 = vsel %vm433, %v3320, %v3410
        %v3577 = vsel %vm433, %v3321, %v3412
        %v3578 = vsel %vm433, %v3322, %v3414
        %v3579 = vsel %vm433, %v3323, %v3416
        %v3580 = vsel %vm433, %v3324, %v3418
        %v3581 = vsel %vm433, %v3325, %v3420
        %v3582 = vsel %vm433, %v3326, %v3422
        %v3583 = vsel %vm1550, %v3567, %v3456
        %v3584 = vsel %vm1550, %v3568, %v3458
        %v3585 = vsel %vm1550, %v3569, %v3460
        %v3586 = vsel %vm1550, %v3570, %v3462
        %v3587 = vsel %vm1550, %v3571, %v3464
        %v3588 = vsel %vm1550, %v3572, %v3466
        %v3589 = vsel %vm1550, %v3573, %v3468
        %v3590 = vsel %vm1550, %v3574, %v3470
        %v3591 = vsel %vm1550, %v3575, %v3472
        %v3592 = vsel %vm1550, %v3576, %v3474
        %v3593 = vsel %vm1550, %v3577, %v3476
        %v3594 = vsel %vm1550, %v3578, %v3478
        %v3595 = vsel %vm1550, %v3579, %v3480
        %v3596 = vsel %vm1550, %v3580, %v3482
        %v3597 = vsel %vm1550, %v3581, %v3484
        %v3598 = vsel %vm1550, %v3582, %v3486
        %vm3599 = vcmask 195584
        %v3600 = vsel %vm3599, %v3583, %v3520
        %v3601 = vsel %vm3599, %v3584, %v3522
        %v3602 = vsel %vm3599, %v3585, %v3524
        %v3603 = vsel %vm3599, %v3586, %v3526
        %v3604 = vsel %vm3599, %v3587, %v3528
        %v3605 = vsel %vm3599, %v3588, %v3530
        %v3606 = vsel %vm3599, %v3589, %v3532
        %v3607 = vsel %vm3599, %v3590, %v3534
        %v3608 = vsel %vm3599, %v3591, %v3536
        %v3609 = vsel %vm3599, %v3592, %v3538
        %v3610 = vsel %vm3599, %v3593, %v3540
        %v3611 = vsel %vm3599, %v3594, %v3542
        %v3612 = vsel %vm3599, %v3595, %v3544
        %v3613 = vsel %vm3599, %v3596, %v3546
        %v3614 = vsel %vm3599, %v3597, %v3548
        %v3615 = vsel %vm3599, %v3598, %v3550
        %v3616 = vrot.slane %v3604, 4
        %vm3617 = vcmask 1047556
        %v3618 = vsel %vm3617, %v3616, %v3600
        %v3619 = vrot.slane %v3600, 4
        %v3620 = vsel %vm3617, %v3604, %v3619
        %v3622 = vunpack.c.l.s4 1983009808
        %v3623 = vunpack.c.0.s8 %v3622
        %v3624 = vperm.slane %v3618, %v3623
        %v3626 = vunpack.c.l.s4 1983009808
        %v3627 = vunpack.c.0.s8 %v3626
        %v3628 = vperm.slane %v3620, %v3627
        %v3629 = vrot.slane %v3606, 4
        %v3630 = vsel %vm3617, %v3629, %v3602
        %v3631 = vrot.slane %v3602, 4
        %v3632 = vsel %vm3617, %v3606, %v3631
        %v3634 = vunpack.c.l.s4 1983009808
        %v3635 = vunpack.c.0.s8 %v3634
        %v3636 = vperm.slane %v3630, %v3635
        %v3638 = vunpack.c.l.s4 1983009808
        %v3639 = vunpack.c.0.s8 %v3638
        %v3640 = vperm.slane %v3632, %v3639
        %v3641 = vrot.slane %v3612, 4
        %v3642 = vsel %vm3617, %v3641, %v3608
        %v3643 = vrot.slane %v3608, 4
        %v3644 = vsel %vm3617, %v3612, %v3643
        %v3646 = vunpack.c.l.s4 1983009808
        %v3647 = vunpack.c.0.s8 %v3646
        %v3648 = vperm.slane %v3642, %v3647
        %v3650 = vunpack.c.l.s4 1983009808
        %v3651 = vunpack.c.0.s8 %v3650
        %v3652 = vperm.slane %v3644, %v3651
        %v3653 = vrot.slane %v3614, 4
        %v3654 = vsel %vm3617, %v3653, %v3610
        %v3655 = vrot.slane %v3610, 4
        %v3656 = vsel %vm3617, %v3614, %v3655
        %v3658 = vunpack.c.l.s4 1983009808
        %v3659 = vunpack.c.0.s8 %v3658
        %v3660 = vperm.slane %v3654, %v3659
        %v3662 = vunpack.c.l.s4 1983009808
        %v3663 = vunpack.c.0.s8 %v3662
        %v3664 = vperm.slane %v3656, %v3663
        %v3665 = vrot.slane %v3636, 4
        %v3666 = vsel %vm3617, %v3665, %v3624
        %v3667 = vrot.slane %v3624, 4
        %v3668 = vsel %vm3617, %v3636, %v3667
        %v3670 = vunpack.c.l.s4 1934713408
        %v3671 = vunpack.c.0.s8 %v3670
        %v3672 = vperm.slane %v3666, %v3671
        %v3674 = vunpack.c.l.s4 1934713408
        %v3675 = vunpack.c.0.s8 %v3674
        %v3676 = vperm.slane %v3668, %v3675
        %v3677 = vrot.slane %v3640, 4
        %v3678 = vsel %vm3617, %v3677, %v3628
        %v3679 = vrot.slane %v3628, 4
        %v3680 = vsel %vm3617, %v3640, %v3679
        %v3682 = vunpack.c.l.s4 1934713408
        %v3683 = vunpack.c.0.s8 %v3682
        %v3684 = vperm.slane %v3678, %v3683
        %v3686 = vunpack.c.l.s4 1934713408
        %v3687 = vunpack.c.0.s8 %v3686
        %v3688 = vperm.slane %v3680, %v3687
        %v3689 = vrot.slane %v3660, 4
        %v3690 = vsel %vm3617, %v3689, %v3648
        %v3691 = vrot.slane %v3648, 4
        %v3692 = vsel %vm3617, %v3660, %v3691
        %v3694 = vunpack.c.l.s4 1934713408
        %v3695 = vunpack.c.0.s8 %v3694
        %v3696 = vperm.slane %v3690, %v3695
        %v3698 = vunpack.c.l.s4 1934713408
        %v3699 = vunpack.c.0.s8 %v3698
        %v3700 = vperm.slane %v3692, %v3699
        %v3701 = vrot.slane %v3664, 4
        %v3702 = vsel %vm3617, %v3701, %v3652
        %v3703 = vrot.slane %v3652, 4
        %v3704 = vsel %vm3617, %v3664, %v3703
        %v3706 = vunpack.c.l.s4 1934713408
        %v3707 = vunpack.c.0.s8 %v3706
        %v3708 = vperm.slane %v3702, %v3707
        %v3710 = vunpack.c.l.s4 1934713408
        %v3711 = vunpack.c.0.s8 %v3710
        %v3712 = vperm.slane %v3704, %v3711
        %v3713 = vrot.slane %v3696, 4
        %v3714 = vsel %vm3617, %v3713, %v3672
        %v3715 = vrot.slane %v3672, 4
        %v3716 = vsel %vm3617, %v3696, %v3715
        %v3717 = vrot.slane %v3700, 4
        %v3718 = vsel %vm3617, %v3717, %v3676
        %v3719 = vrot.slane %v3676, 4
        %v3720 = vsel %vm3617, %v3700, %v3719
        %v3721 = vrot.slane %v3708, 4
        %v3722 = vsel %vm3617, %v3721, %v3684
        %v3723 = vrot.slane %v3684, 4
        %v3724 = vsel %vm3617, %v3708, %v3723
        %v3725 = vrot.slane %v3712, 4
        %v3726 = vsel %vm3617, %v3725, %v3688
        %v3727 = vrot.slane %v3688, 4
        %v3728 = vsel %vm3617, %v3712, %v3727
        %v3729 = vrot.slane %v3605, 4
        %v3730 = vsel %vm3617, %v3729, %v3601
        %v3731 = vrot.slane %v3601, 4
        %v3732 = vsel %vm3617, %v3605, %v3731
        %v3734 = vunpack.c.l.s4 1983009808
        %v3735 = vunpack.c.0.s8 %v3734
        %v3736 = vperm.slane %v3730, %v3735
        %v3738 = vunpack.c.l.s4 1983009808
        %v3739 = vunpack.c.0.s8 %v3738
        %v3740 = vperm.slane %v3732, %v3739
        %v3741 = vrot.slane %v3607, 4
        %v3742 = vsel %vm3617, %v3741, %v3603
        %v3743 = vrot.slane %v3603, 4
        %v3744 = vsel %vm3617, %v3607, %v3743
        %v3746 = vunpack.c.l.s4 1983009808
        %v3747 = vunpack.c.0.s8 %v3746
        %v3748 = vperm.slane %v3742, %v3747
        %v3750 = vunpack.c.l.s4 1983009808
        %v3751 = vunpack.c.0.s8 %v3750
        %v3752 = vperm.slane %v3744, %v3751
        %v3753 = vrot.slane %v3613, 4
        %v3754 = vsel %vm3617, %v3753, %v3609
        %v3755 = vrot.slane %v3609, 4
        %v3756 = vsel %vm3617, %v3613, %v3755
        %v3758 = vunpack.c.l.s4 1983009808
        %v3759 = vunpack.c.0.s8 %v3758
        %v3760 = vperm.slane %v3754, %v3759
        %v3762 = vunpack.c.l.s4 1983009808
        %v3763 = vunpack.c.0.s8 %v3762
        %v3764 = vperm.slane %v3756, %v3763
        %v3765 = vrot.slane %v3615, 4
        %v3766 = vsel %vm3617, %v3765, %v3611
        %v3767 = vrot.slane %v3611, 4
        %v3768 = vsel %vm3617, %v3615, %v3767
        %v3770 = vunpack.c.l.s4 1983009808
        %v3771 = vunpack.c.0.s8 %v3770
        %v3772 = vperm.slane %v3766, %v3771
        %v3774 = vunpack.c.l.s4 1983009808
        %v3775 = vunpack.c.0.s8 %v3774
        %v3776 = vperm.slane %v3768, %v3775
        %v3777 = vrot.slane %v3748, 4
        %v3778 = vsel %vm3617, %v3777, %v3736
        %v3779 = vrot.slane %v3736, 4
        %v3780 = vsel %vm3617, %v3748, %v3779
        %v3782 = vunpack.c.l.s4 1934713408
        %v3783 = vunpack.c.0.s8 %v3782
        %v3784 = vperm.slane %v3778, %v3783
        %v3786 = vunpack.c.l.s4 1934713408
        %v3787 = vunpack.c.0.s8 %v3786
        %v3788 = vperm.slane %v3780, %v3787
        %v3789 = vrot.slane %v3752, 4
        %v3790 = vsel %vm3617, %v3789, %v3740
        %v3791 = vrot.slane %v3740, 4
        %v3792 = vsel %vm3617, %v3752, %v3791
        %v3794 = vunpack.c.l.s4 1934713408
        %v3795 = vunpack.c.0.s8 %v3794
        %v3796 = vperm.slane %v3790, %v3795
        %v3798 = vunpack.c.l.s4 1934713408
        %v3799 = vunpack.c.0.s8 %v3798
        %v3800 = vperm.slane %v3792, %v3799
        %v3801 = vrot.slane %v3772, 4
        %v3802 = vsel %vm3617, %v3801, %v3760
        %v3803 = vrot.slane %v3760, 4
        %v3804 = vsel %vm3617, %v3772, %v3803
        %v3806 = vunpack.c.l.s4 1934713408
        %v3807 = vunpack.c.0.s8 %v3806
        %v3808 = vperm.slane %v3802, %v3807
        %v3810 = vunpack.c.l.s4 1934713408
        %v3811 = vunpack.c.0.s8 %v3810
        %v3812 = vperm.slane %v3804, %v3811
        %v3813 = vrot.slane %v3776, 4
        %v3814 = vsel %vm3617, %v3813, %v3764
        %v3815 = vrot.slane %v3764, 4
        %v3816 = vsel %vm3617, %v3776, %v3815
        %v3818 = vunpack.c.l.s4 1934713408
        %v3819 = vunpack.c.0.s8 %v3818
        %v3820 = vperm.slane %v3814, %v3819
        %v3822 = vunpack.c.l.s4 1934713408
        %v3823 = vunpack.c.0.s8 %v3822
        %v3824 = vperm.slane %v3816, %v3823
        %v3825 = vrot.slane %v3808, 4
        %v3826 = vsel %vm3617, %v3825, %v3784
        %v3827 = vrot.slane %v3784, 4
        %v3828 = vsel %vm3617, %v3808, %v3827
        %v3829 = vrot.slane %v3812, 4
        %v3830 = vsel %vm3617, %v3829, %v3788
        %v3831 = vrot.slane %v3788, 4
        %v3832 = vsel %vm3617, %v3812, %v3831
        %v3833 = vrot.slane %v3820, 4
        %v3834 = vsel %vm3617, %v3833, %v3796
        %v3835 = vrot.slane %v3796, 4
        %v3836 = vsel %vm3617, %v3820, %v3835
        %v3837 = vrot.slane %v3824, 4
        %v3838 = vsel %vm3617, %v3837, %v3800
        %v3839 = vrot.slane %v3800, 4
        %v3840 = vsel %vm3617, %v3824, %v3839
        %3842 = vrot.lane.b32.xlu0 %v3716, 32
        %v3843 = vpop.permute.xlu0 %3842
        %3846 = vrot.lane.b32.xlu0 %v3718, 64
        %v3847 = vpop.permute.xlu0 %3846
        %3850 = vrot.lane.b32.xlu0 %v3720, 96
        %v3851 = vpop.permute.xlu0 %3850
        %3854 = vrot.lane.b32.xlu0 %v3724, 32
        %v3855 = vpop.permute.xlu0 %3854
        %3858 = vrot.lane.b32.xlu0 %v3726, 64
        %v3859 = vpop.permute.xlu0 %3858
        %3862 = vrot.lane.b32.xlu0 %v3728, 96
        %v3863 = vpop.permute.xlu0 %3862
        %3866 = vrot.lane.b32.xlu0 %v3828, 32
        %v3867 = vpop.permute.xlu0 %3866
        %3870 = vrot.lane.b32.xlu0 %v3830, 64
        %v3871 = vpop.permute.xlu0 %3870
        %3874 = vrot.lane.b32.xlu0 %v3832, 96
        %v3875 = vpop.permute.xlu0 %3874
        %3878 = vrot.lane.b32.xlu0 %v3836, 32
        %v3879 = vpop.permute.xlu0 %3878
        %3882 = vrot.lane.b32.xlu0 %v3838, 64
        %v3883 = vpop.permute.xlu0 %3882
        %3886 = vrot.lane.b32.xlu0 %v3840, 96
        %v3887 = vpop.permute.xlu0 %3886
        %v3889 = vsel %vm203, %v3714, %v3843
        %vm3890 = vcmask 523264
        %v3891 = vsel %vm3890, %v3889, %v3847
        %vm3892 = vcmask 785408
        %v3893 = vsel %vm3892, %v3891, %v3851
        %v3894 = vsel %vm203, %v3722, %v3855
        %v3895 = vsel %vm3890, %v3894, %v3859
        %v3896 = vsel %vm3892, %v3895, %v3863
        %v3897 = vsel %vm203, %v3826, %v3867
        %v3898 = vsel %vm3890, %v3897, %v3871
        %v3899 = vsel %vm3892, %v3898, %v3875
        %v3900 = vsel %vm203, %v3834, %v3879
        %v3901 = vsel %vm3890, %v3900, %v3883
        %v3902 = vsel %vm3892, %v3901, %v3887
        %3903 = vst [vmem:[%s181] sm:$0xff] %v3893
        %3904 = vst [vmem:[%s181 + $0x8] sm:$0xff] %v3896
        %3905 = vst [vmem:[%s181 + $0x10] sm:$0xff] %v3899
        %3906 = vst [vmem:[%s181 + $0x18] sm:$0xff] %v3902
        %s3907 = sand.u32 %s75, 1
        %s3908 = scalar_lea.sflag [#allocation4], %s3907
        %s3909 = sand.u32 %s75, 1
        %s3910 = smul.addr %s3909, 32
        %s3911 = scalar_lea.vmem [#allocation7], %s3910
        // Predicated region
        $region37: #{tpu_custom_call.1} parent=27 // pred_check
          %p3912 = pneg %p85
        $region38: #{tpu_custom_call.1} parent=27 // pred_check_branch
          %3914 = sbr.rel (%p3912) target = $region40
        $region39: #{tpu_custom_call.1} parent=27 // pred_region
          %3916 = vsyncadd %s3908, 0
          %s3917 = smul.addr %s20, 4
          %s3918 = smul.addr %s3917, 8
          %s3919 = scalar_lea.hbm %s2, %s3918
          %s3921 = sshll.u32 %s3911, 4
          %s3922 = int_to_ptr.vmem [resolvable:$true] %s3921
          %s3923 = sshll.u32 %s3919, 4
          %s3924 = int_to_ptr.hbm [resolvable:$true] %s3923
          %3926 = dma.vmem_to_hbm [thread:$0]  %s3922, 512, %s3924, %s3908
        $region40: #{tpu_custom_call.1} parent=27 // pred_fallthru
          _
      $region28: #{tpu_custom_call.1} parent=5 // pred_fallthru
        _
      %p3927 = scmp.le.s32.totalorder 2, %s15
      // Predicated region
      $region41: #{tpu_custom_call.1} parent=5 // pred_check
        %p3928 = pneg %p3927
      $region42: #{tpu_custom_call.1} parent=5 // pred_check_branch
        %3930 = sbr.rel (%p3928) target = $region44
      $region43: #{tpu_custom_call.1} parent=5 // pred_region
        %s3931 = ssub.s32 %s15, 2
        // Predicated region
        $region45: #{tpu_custom_call.1} parent=43 // pred_check
          %p3932 = pneg %p91
        $region46: #{tpu_custom_call.1} parent=43 // pred_check_branch
          %3934 = sbr.rel (%p3932) target = $region48
        $region47: #{tpu_custom_call.1} parent=43 // pred_region
          %s3935 = sand.u32 %s76, 1
          %s3936 = scalar_lea.sflag [#allocation4], %s3935
          %s3937 = sand.u32 %s76, 1
          %s3938 = smul.addr %s3937, 32
          %s3939 = scalar_lea.vmem [#allocation7], %s3938
          %3941 = dma.done %s3936, 512
        $region48: #{tpu_custom_call.1} parent=43 // pred_fallthru
          _
      $region44: #{tpu_custom_call.1} parent=5 // pred_fallthru
        _
    $region6: #{tpu_custom_call.1} parent=1 // loop_footer
      %s19 = sadd.s32 1, %s15
    $region7: #{tpu_custom_call.1} parent=1 // loop_footer_branch
      %14 = sbr.rel target = $region3
    $region8: #{tpu_custom_call.1} parent=1 // loop_exit
      _
    %3942 = vsyncpa [#allocation3], 1
    %s3943 = scalar_lea.sflag [#allocation3], 1
    %3944 = vsyncpa %s3943, 1
    %3945 = vsyncpa [#allocation6], 1
    %3946 = vsyncpa [#allocation4], 1
    %s3947 = scalar_lea.sflag [#allocation4], 1
    %3948 = vsyncpa %s3947, 1

// kernel: tpu_custom_call.1
$region0: #{tpu_custom_call.1}
  #allocation0 [shape = 'u32[]', space=smem, size = 0x4, offset = 0x4, fixed_abs, tag = 'smem constant byte address 0x4 - core index']
  #allocation1 [shape = 'u32[72,128]{1,0:T(1,128)}', space=vmem, size = 0x9000, scoped, tag = 'internal scratch']
  %s0 = inlined_call_operand.hbm [shape: f32[32,16,32], index: 0, kind: input, shape index: {}]
  %s1 = inlined_call_operand.hbm [shape: f32[32,96], index: 1, kind: input, shape index: {}]
  %s2 = inlined_call_operand.hbm [shape: f32[32,16,32], index: 2, kind: output, shape index: {}]
  %s3 = sld [smem:[#allocation0]]
  $region49: #{tpu_custom_call.1} parent=0
    _
  %s5 = ssub.s32 1, %s3
  %s6 = scalar_select 0, %s5, %s3
  $region1: #{tpu_custom_call.1} parent=0
    #allocation2 [shape = 'u8[131072]{0}', space=vmem, size = 0x20000, scoped, tag = 'input window, operand 0']
    #allocation3 [shape = 's32[2]{0}', space=sflag, size = 0x8, scoped, tag = 'scoped memory for tpu_custom_call.1']
    #allocation4 [shape = 's32[2]{0}', space=sflag, size = 0x8, scoped, tag = 'scoped memory for tpu_custom_call.1']
    #allocation5 [shape = 'u8[16384]{0}', space=vmem, size = 0x4000, scoped, tag = 'input window, operand 1, single buffered']
    #allocation6 [shape = 's32[1]{0}', space=sflag, size = 0x4, scoped, tag = 'scoped memory for tpu_custom_call.1']
    #allocation7 [shape = 'u8[131072]{0}', space=vmem, size = 0x20000, scoped, tag = 'output window, operand 0']
    %7 = vsyncpa [#allocation3], 0
    %s8 = scalar_lea.sflag [#allocation3], 1
    %9 = vsyncpa %s8, 0
    %10 = vsyncpa [#allocation6], 0
    %11 = vsyncpa [#allocation4], 0
    %s12 = scalar_lea.sflag [#allocation4], 1
    %13 = vsyncpa %s12, 0
    loop: start=0, step=1, limit=6
    $region2: #{tpu_custom_call.1} parent=1 // loop_pre_header
      _
    $region3: #{tpu_custom_call.1} parent=1 // loop_header
      %s15 = sphi 0, %s19
      %p16 = scmp.ge.s32.totalorder %s15, 6
      %s25 = sphi 0, %s27
      %s28 = sphi 0, %s25
      %s29 = sphi 0, %s28
      %s45 = sphi 0, %s29
      %s49 = sphi 0, %s49
      %s51 = sphi 0, %s49
      %s52 = sphi 0, %s51
      %s66 = sphi 0, %s52
      %s72 = sphi 0, %s74
      %s75 = sphi 0, %s72
      %s76 = sphi 0, %s75
      %s92 = sphi 0, %s76
    $region4: #{tpu_custom_call.1} parent=1 // loop_header_branch
      %18 = sbr.rel (%p16) target = $region8
    $region5: #{tpu_custom_call.1} parent=1 // loop_body
      %s20 = ssub.s32 %s15, 1
      %s21 = ssub.s32 %s15, 2
      %s22 = sadd.s32 %s15, 1
      %s23 = ssub.s32 %s15, %s22
      %p24 = scmp.eq.s32.totalorder %s23, 0
      %s26 = sadd.s32 %s25, 1
      %s27 = scalar_select %p24, %s25, %s26
      %p30 = pneg %p24
      %p31 = scmp.eq.s32.totalorder %s15, 3
      %p32 = por %p30, %p31
      %p33 = scmp.ne.s32.totalorder %s25, %s28
      %p34 = scmp.eq.s32.totalorder %s15, 0
      %p35 = por %p33, %p34
      %p36 = scmp.ne.s32.totalorder %s25, %s28
      %p37 = scmp.eq.s32.totalorder %s20, 3
      %p38 = por %p36, %p37
      %p39 = scmp.ne.s32.totalorder %s28, %s29
      %p40 = scmp.eq.s32.totalorder %s20, 0
      %p41 = por %p39, %p40
      %p42 = scmp.ne.s32.totalorder %s28, %s29
      %p43 = scmp.eq.s32.totalorder %s21, 3
      %p44 = por %p42, %p43
      %p46 = scmp.ne.s32.totalorder %s29, %s45
      %p47 = scmp.eq.s32.totalorder %s21, 0
      %p48 = por %p46, %p47
      %s50 = sadd.s32 %s49, 1
      %p53 = scmp.eq.s32.totalorder %s15, 3
      %p54 = scmp.ne.s32.totalorder %s49, %s51
      %p55 = scmp.eq.s32.totalorder %s15, 0
      %p56 = por %p54, %p55
      %p57 = scmp.ne.s32.totalorder %s49, %s51
      %p58 = scmp.eq.s32.totalorder %s20, 3
      %p59 = por %p57, %p58
      %p60 = scmp.ne.s32.totalorder %s51, %s52
      %p61 = scmp.eq.s32.totalorder %s20, 0
      %p62 = por %p60, %p61
      %p63 = scmp.ne.s32.totalorder %s51, %s52
      %p64 = scmp.eq.s32.totalorder %s21, 3
      %p65 = por %p63, %p64
      %p67 = scmp.ne.s32.totalorder %s52, %s66
      %p68 = scmp.eq.s32.totalorder %s21, 0
      %p69 = por %p67, %p68
      %s70 = ssub.s32 %s15, %s22
      %p71 = scmp.eq.s32.totalorder %s70, 0
      %s73 = sadd.s32 %s72, 1
      %s74 = scalar_select %p71, %s72, %s73
      %p77 = pneg %p71
      %p78 = scmp.eq.s32.totalorder %s15, 3
      %p79 = por %p77, %p78
      %p80 = scmp.ne.s32.totalorder %s72, %s75
      %p81 = scmp.eq.s32.totalorder %s15, 0
      %p82 = por %p80, %p81
      %p83 = scmp.ne.s32.totalorder %s72, %s75
      %p84 = scmp.eq.s32.totalorder %s20, 3
      %p85 = por %p83, %p84
      %p86 = scmp.ne.s32.totalorder %s75, %s76
      %p87 = scmp.eq.s32.totalorder %s20, 0
      %p88 = por %p86, %p87
      %p89 = scmp.ne.s32.totalorder %s75, %s76
      %p90 = scmp.eq.s32.totalorder %s21, 3
      %p91 = por %p89, %p90
      %p93 = scmp.ne.s32.totalorder %s76, %s92
      %p94 = scmp.eq.s32.totalorder %s21, 0
      %p95 = por %p93, %p94
      %p96 = scmp.le.s32.totalorder 1, %s15
      %p97 = scmp.lt.s32.totalorder %s15, 5
      %p98 = pnand %p96, %p97
      %p99 = pneg %p98
      // Predicated region
      $region9: #{tpu_custom_call.1} parent=5 // pred_check
        _
      $region10: #{tpu_custom_call.1} parent=5 // pred_check_branch
        %101 = sbr.rel (%p98) target = $region12
      $region11: #{tpu_custom_call.1} parent=5 // pred_region
        %s102 = ssub.s32 %s15, 1
        // Predicated region
        $region13: #{tpu_custom_call.1} parent=11 // pred_check
          %p103 = pneg %p62
        $region14: #{tpu_custom_call.1} parent=11 // pred_check_branch
          %105 = sbr.rel (%p103) target = $region16
        $region15: #{tpu_custom_call.1} parent=11 // pred_region
          %107 = vsyncadd [#allocation6], 0
          %s108 = sshll.u32 %s1, 4
          %s109 = int_to_ptr.hbm [resolvable:$true] %s108
          %s110 = sshll.u32 [#allocation5], 4
          %s111 = int_to_ptr.vmem [resolvable:$true] %s110
          %116 = dma.hbm_to_vmem [thread:$0]  %s109, 512, %s111, [#allocation6], 128, 128, 8
        $region16: #{tpu_custom_call.1} parent=11 // pred_fallthru
          _
      $region12: #{tpu_custom_call.1} parent=5 // pred_fallthru
        _
      %p117 = scmp.lt.s32.totalorder %s15, 4
      // Predicated region
      $region17: #{tpu_custom_call.1} parent=5 // pred_check
        %p118 = pneg %p117
      $region18: #{tpu_custom_call.1} parent=5 // pred_check_branch
        %120 = sbr.rel (%p118) target = $region20
      $region19: #{tpu_custom_call.1} parent=5 // pred_region
        // Predicated region
        $region21: #{tpu_custom_call.1} parent=19 // pred_check
          %p121 = pneg %p35
        $region22: #{tpu_custom_call.1} parent=19 // pred_check_branch
          %123 = sbr.rel (%p121) target = $region24
        $region23: #{tpu_custom_call.1} parent=19 // pred_region
          %s124 = sand.u32 %s25, 1
          %s125 = scalar_lea.sflag [#allocation3], %s124
          %s126 = sand.u32 %s25, 1
          %s127 = smul.addr %s126, 128
          %s128 = scalar_lea.vmem [#allocation2], %s127
          %s129 = smul.u32 8, %s15
          %131 = vsyncadd %s125, 0
          %s132 = smul.addr %s129, 2
          %s133 = smul.addr %s132, 8
          %s134 = scalar_lea.hbm %s0, %s133
          %s135 = sshll.u32 %s134, 4
          %s136 = int_to_ptr.hbm [resolvable:$true] %s135
          %s137 = sshll.u32 %s128, 4
          %s138 = int_to_ptr.vmem [resolvable:$true] %s137
          %143 = dma.hbm_to_vmem [thread:$0]  %s136, 2048, %s138, %s125, 128, 128, 8
        $region24: #{tpu_custom_call.1} parent=19 // pred_fallthru
          _
      $region20: #{tpu_custom_call.1} parent=5 // pred_fallthru
        _
      %p144 = scmp.le.s32.totalorder 1, %s15
      %p145 = scmp.lt.s32.totalorder %s15, 5
      %p146 = pnand %p144, %p145
      %p147 = pneg %p146
      // Predicated region
      $region25: #{tpu_custom_call.1} parent=5 // pred_check
        _
      $region26: #{tpu_custom_call.1} parent=5 // pred_check_branch
        %149 = sbr.rel (%p146) target = $region28
      $region27: #{tpu_custom_call.1} parent=5 // pred_region
        %s150 = ssub.s32 %s15, 1
        %s151 = sand.u32 %s28, 1
        %s152 = scalar_lea.sflag [#allocation3], %s151
        %s153 = sand.u32 %s28, 1
        %s154 = smul.addr %s153, 128
        %s155 = scalar_lea.vmem [#allocation2], %s154
        // Predicated region
        $region29: #{tpu_custom_call.1} parent=27 // pred_check
          %p156 = pneg %p41
        $region30: #{tpu_custom_call.1} parent=27 // pred_check_branch
          %158 = sbr.rel (%p156) target = $region32
        $region31: #{tpu_custom_call.1} parent=27 // pred_region
          %160 = dma.done %s152, 2048
        $region32: #{tpu_custom_call.1} parent=27 // pred_fallthru
          _
        // Predicated region
        $region33: #{tpu_custom_call.1} parent=27 // pred_check
          %p161 = pneg %p62
        $region34: #{tpu_custom_call.1} parent=27 // pred_check_branch
          %163 = sbr.rel (%p161) target = $region36
        $region35: #{tpu_custom_call.1} parent=27 // pred_region
          %165 = dma.done [#allocation6], 512
        $region36: #{tpu_custom_call.1} parent=27 // pred_fallthru
          _
        %s166 = sand.u32 %s28, 1
        %s167 = scalar_lea.sflag [#allocation3], %s166
        %s168 = sand.u32 %s28, 1
        %s169 = smul.addr %s168, 128
        %s170 = scalar_lea.vmem [#allocation2], %s169
        %p171 = pneg %p41
        %p172 = pneg %p38
        %p173 = pneg %p62
        %p174 = pneg %p59
        %p175 = pneg %p88
        %p176 = pneg %p85
        %s177 = sand.u32 %s75, 1
        %s178 = scalar_lea.sflag [#allocation4], %s177
        %s179 = sand.u32 %s75, 1
        %s180 = smul.addr %s179, 128
        %s181 = scalar_lea.vmem [#allocation7], %s180
        %s182 = smul.u32 8, %s20
        %s183 = smul.u32 8, %s20
        %v184 = vld [vmem:[%s155] sm:$0xff]
        %v185 = vld [vmem:[%s155 + $0x8] sm:$0xff]
        %v186 = vld [vmem:[%s155 + $0x10] sm:$0xff]
        %v187 = vld [vmem:[%s155 + $0x18] sm:$0xff]
        %v188 = vld [vmem:[%s155 + $0x20] sm:$0xff]
        %v189 = vld [vmem:[%s155 + $0x28] sm:$0xff]
        %v190 = vld [vmem:[%s155 + $0x30] sm:$0xff]
        %v191 = vld [vmem:[%s155 + $0x38] sm:$0xff]
        %v192 = vld [vmem:[%s155 + $0x40] sm:$0xff]
        %v193 = vld [vmem:[%s155 + $0x48] sm:$0xff]
        %v194 = vld [vmem:[%s155 + $0x50] sm:$0xff]
        %v195 = vld [vmem:[%s155 + $0x58] sm:$0xff]
        %v196 = vld [vmem:[%s155 + $0x60] sm:$0xff]
        %v197 = vld [vmem:[%s155 + $0x68] sm:$0xff]
        %v198 = vld [vmem:[%s155 + $0x70] sm:$0xff]
        %v199 = vld [vmem:[%s155 + $0x78] sm:$0xff]
        %v200 = vld [vmem:[#allocation5] sm:$0xff]
        %v201 = vld [vmem:[#allocation5 + $0x8] sm:$0xff]
        %v202 = vld [vmem:[#allocation5 + $0x10] sm:$0xff]
        %v203 = vld [vmem:[#allocation5 + $0x18] sm:$0xff]
        %vm204 = vcmask 261120
        %v206 = vsel %vm204, %v184, 0
        %v209 = vsel %vm204, %v185, 0
        %v212 = vsel %vm204, %v186, 0
        %v215 = vsel %vm204, %v187, 0
        %v218 = vsel %vm204, %v188, 0
        %v221 = vsel %vm204, %v189, 0
        %v224 = vsel %vm204, %v190, 0
        %v227 = vsel %vm204, %v191, 0
        %v230 = vsel %vm204, %v192, 0
        %v233 = vsel %vm204, %v193, 0
        %v236 = vsel %vm204, %v194, 0
        %v239 = vsel %vm204, %v195, 0
        %v242 = vsel %vm204, %v196, 0
        %v245 = vsel %vm204, %v197, 0
        %v248 = vsel %vm204, %v198, 0
        %v251 = vsel %vm204, %v199, 0
        %253 = vmatpush.msra.mxu0 0.0
        %254 = vmatpush.msra.mxu0 0.0
        %255 = vmatpush.msra.mxu0 0.0
        %256 = vmatpush.msra.mxu0 0.0
        %257 = vmatpush.msra.mxu0 0.0
        %258 = vmatpush.msra.mxu0 0.0
        %259 = vmatpush.msra.mxu0 0.0
        %260 = vmatpush.msra.mxu0 0.0
        %261 = vmatpush.msra.mxu0 0.0
        %262 = vmatpush.msra.mxu0 0.0
        %263 = vmatpush.msra.mxu0 0.0
        %264 = vmatpush.msra.mxu0 0.0
        %265 = vmatpush.msra.mxu0 %v203
        %266 = vmatpush.msra.mxu0 %v202
        %267 = vmatpush.msra.mxu0 %v201
        %268 = vmatpush.msra.mxu0 %v200
        %269 = vmatmul.f32.gmra.mxu0 %v206
        %v270 = vpop.f32.mrf.mxu0
        %v271 = vadd.f32 0.0, %v270
        %272 = vmatmul.f32.gmra.mxu0 %v209
        %v273 = vpop.f32.mrf.mxu0
        %v274 = vadd.f32 0.0, %v273
        %275 = vmatmul.f32.gmra.mxu0 %v212
        %v276 = vpop.f32.mrf.mxu0
        %v277 = vadd.f32 0.0, %v276
        %278 = vmatmul.f32.gmra.mxu0 %v215
        %v279 = vpop.f32.mrf.mxu0
        %v280 = vadd.f32 0.0, %v279
        %281 = vmatmul.f32.gmra.mxu0 %v218
        %v282 = vpop.f32.mrf.mxu0
        %v283 = vadd.f32 0.0, %v282
        %284 = vmatmul.f32.gmra.mxu0 %v221
        %v285 = vpop.f32.mrf.mxu0
        %v286 = vadd.f32 0.0, %v285
        %287 = vmatmul.f32.gmra.mxu0 %v224
        %v288 = vpop.f32.mrf.mxu0
        %v289 = vadd.f32 0.0, %v288
        %290 = vmatmul.f32.gmra.mxu0 %v227
        %v291 = vpop.f32.mrf.mxu0
        %v292 = vadd.f32 0.0, %v291
        %293 = vmatmul.f32.gmra.mxu0 %v230
        %v294 = vpop.f32.mrf.mxu0
        %v295 = vadd.f32 0.0, %v294
        %296 = vmatmul.f32.gmra.mxu0 %v233
        %v297 = vpop.f32.mrf.mxu0
        %v298 = vadd.f32 0.0, %v297
        %299 = vmatmul.f32.gmra.mxu0 %v236
        %v300 = vpop.f32.mrf.mxu0
        %v301 = vadd.f32 0.0, %v300
        %302 = vmatmul.f32.gmra.mxu0 %v239
        %v303 = vpop.f32.mrf.mxu0
        %v304 = vadd.f32 0.0, %v303
        %305 = vmatmul.f32.gmra.mxu0 %v242
        %v306 = vpop.f32.mrf.mxu0
        %v307 = vadd.f32 0.0, %v306
        %308 = vmatmul.f32.gmra.mxu0 %v245
        %v309 = vpop.f32.mrf.mxu0
        %v310 = vadd.f32 0.0, %v309
        %311 = vmatmul.f32.gmra.mxu0 %v248
        %v312 = vpop.f32.mrf.mxu0
        %v313 = vadd.f32 0.0, %v312
        %314 = vmatmul.f32.gmra.mxu0 %v251
        %v315 = vpop.f32.mrf.mxu0
        %v316 = vadd.f32 0.0, %v315
        %317 = vdwg.mxu0
        %334 = vrot.lane.b32.xlu0 %v271, 120
        %v335 = vpop.permute.xlu0 %334
        %336 = vrot.lane.b32.xlu0 %v274, 120
        %v337 = vpop.permute.xlu0 %336
        %338 = vrot.lane.b32.xlu0 %v277, 120
        %v339 = vpop.permute.xlu0 %338
        %340 = vrot.lane.b32.xlu0 %v280, 120
        %v341 = vpop.permute.xlu0 %340
        %342 = vrot.lane.b32.xlu0 %v283, 120
        %v343 = vpop.permute.xlu0 %342
        %344 = vrot.lane.b32.xlu0 %v286, 120
        %v345 = vpop.permute.xlu0 %344
        %346 = vrot.lane.b32.xlu0 %v289, 120
        %v347 = vpop.permute.xlu0 %346
        %348 = vrot.lane.b32.xlu0 %v292, 120
        %v349 = vpop.permute.xlu0 %348
        %350 = vrot.lane.b32.xlu0 %v295, 120
        %v351 = vpop.permute.xlu0 %350
        %352 = vrot.lane.b32.xlu0 %v298, 120
        %v353 = vpop.permute.xlu0 %352
        %354 = vrot.lane.b32.xlu0 %v301, 120
        %v355 = vpop.permute.xlu0 %354
        %356 = vrot.lane.b32.xlu0 %v304, 120
        %v357 = vpop.permute.xlu0 %356
        %358 = vrot.lane.b32.xlu0 %v307, 120
        %v359 = vpop.permute.xlu0 %358
        %360 = vrot.lane.b32.xlu0 %v310, 120
        %v361 = vpop.permute.xlu0 %360
        %362 = vrot.lane.b32.xlu0 %v313, 120
        %v363 = vpop.permute.xlu0 %362
        %364 = vrot.lane.b32.xlu0 %v316, 120
        %v365 = vpop.permute.xlu0 %364
        %366 = vrot.lane.b32.xlu0 %v271, 112
        %v367 = vpop.permute.xlu0 %366
        %368 = vrot.lane.b32.xlu0 %v274, 112
        %v369 = vpop.permute.xlu0 %368
        %370 = vrot.lane.b32.xlu0 %v277, 112
        %v371 = vpop.permute.xlu0 %370
        %372 = vrot.lane.b32.xlu0 %v280, 112
        %v373 = vpop.permute.xlu0 %372
        %374 = vrot.lane.b32.xlu0 %v283, 112
        %v375 = vpop.permute.xlu0 %374
        %376 = vrot.lane.b32.xlu0 %v286, 112
        %v377 = vpop.permute.xlu0 %376
        %378 = vrot.lane.b32.xlu0 %v289, 112
        %v379 = vpop.permute.xlu0 %378
        %380 = vrot.lane.b32.xlu0 %v292, 112
        %v381 = vpop.permute.xlu0 %380
        %382 = vrot.lane.b32.xlu0 %v295, 112
        %v383 = vpop.permute.xlu0 %382
        %384 = vrot.lane.b32.xlu0 %v298, 112
        %v385 = vpop.permute.xlu0 %384
        %386 = vrot.lane.b32.xlu0 %v301, 112
        %v387 = vpop.permute.xlu0 %386
        %388 = vrot.lane.b32.xlu0 %v304, 112
        %v389 = vpop.permute.xlu0 %388
        %390 = vrot.lane.b32.xlu0 %v307, 112
        %v391 = vpop.permute.xlu0 %390
        %392 = vrot.lane.b32.xlu0 %v310, 112
        %v393 = vpop.permute.xlu0 %392
        %394 = vrot.lane.b32.xlu0 %v313, 112
        %v395 = vpop.permute.xlu0 %394
        %396 = vrot.lane.b32.xlu0 %v316, 112
        %v397 = vpop.permute.xlu0 %396
        %398 = vrot.lane.b32.xlu0 %v271, 104
        %v399 = vpop.permute.xlu0 %398
        %400 = vrot.lane.b32.xlu0 %v274, 104
        %v401 = vpop.permute.xlu0 %400
        %402 = vrot.lane.b32.xlu0 %v277, 104
        %v403 = vpop.permute.xlu0 %402
        %404 = vrot.lane.b32.xlu0 %v280, 104
        %v405 = vpop.permute.xlu0 %404
        %406 = vrot.lane.b32.xlu0 %v283, 104
        %v407 = vpop.permute.xlu0 %406
        %408 = vrot.lane.b32.xlu0 %v286, 104
        %v409 = vpop.permute.xlu0 %408
        %410 = vrot.lane.b32.xlu0 %v289, 104
        %v411 = vpop.permute.xlu0 %410
        %412 = vrot.lane.b32.xlu0 %v292, 104
        %v413 = vpop.permute.xlu0 %412
        %414 = vrot.lane.b32.xlu0 %v295, 104
        %v415 = vpop.permute.xlu0 %414
        %416 = vrot.lane.b32.xlu0 %v298, 104
        %v417 = vpop.permute.xlu0 %416
        %418 = vrot.lane.b32.xlu0 %v301, 104
        %v419 = vpop.permute.xlu0 %418
        %420 = vrot.lane.b32.xlu0 %v304, 104
        %v421 = vpop.permute.xlu0 %420
        %422 = vrot.lane.b32.xlu0 %v307, 104
        %v423 = vpop.permute.xlu0 %422
        %424 = vrot.lane.b32.xlu0 %v310, 104
        %v425 = vpop.permute.xlu0 %424
        %426 = vrot.lane.b32.xlu0 %v313, 104
        %v427 = vpop.permute.xlu0 %426
        %428 = vrot.lane.b32.xlu0 %v316, 104
        %v429 = vpop.permute.xlu0 %428
        %430 = vrot.lane.b32.xlu0 %v271, 96
        %v431 = vpop.permute.xlu0 %430
        %432 = vrot.lane.b32.xlu0 %v274, 96
        %v433 = vpop.permute.xlu0 %432
        %vm434 = vcmask 64512
        %v435 = vsel %vm434, %v271, 0
        %v437 = vsel %vm434, %v274, 0
        %v439 = vsel %vm434, %v431, 0
        %v441 = vsel %vm434, %v433, 0
        %443 = vmatpush.xpose.msra.mxu0 0.0
        %444 = vmatpush.xpose.msra.mxu0 0.0
        %445 = vmatpush.xpose.msra.mxu0 0.0
        %446 = vmatpush.xpose.msra.mxu0 0.0
        %447 = vmatpush.xpose.msra.mxu0 0.0
        %448 = vmatpush.xpose.msra.mxu0 0.0
        %449 = vmatpush.xpose.msra.mxu0 0.0
        %450 = vmatpush.xpose.msra.mxu0 0.0
        %451 = vmatpush.xpose.msra.mxu0 0.0
        %452 = vmatpush.xpose.msra.mxu0 0.0
        %453 = vmatpush.xpose.msra.mxu0 0.0
        %454 = vmatpush.xpose.msra.mxu0 0.0
        %455 = vmatpush.xpose.msra.mxu0 0.0
        %456 = vmatpush.xpose.msra.mxu0 0.0
        %457 = vmatpush.xpose.msra.mxu0 %v441
        %458 = vmatpush.xpose.msra.mxu0 %v439
        %459 = vmatmul.f32.gmra.mxu0 %v435
        %v460 = vpop.f32.mrf.mxu0
        %v461 = vadd.f32 0.0, %v460
        %462 = vmatmul.f32.gmra.mxu0 %v437
        %v463 = vpop.f32.mrf.mxu0
        %v464 = vadd.f32 0.0, %v463
        %465 = vdwg.mxu0
        %466 = vrot.lane.b32.xlu0 %v277, 96
        %v467 = vpop.permute.xlu0 %466
        %468 = vrot.lane.b32.xlu0 %v280, 96
        %v469 = vpop.permute.xlu0 %468
        %v470 = vsel %vm434, %v277, 0
        %v472 = vsel %vm434, %v280, 0
        %v474 = vsel %vm434, %v467, 0
        %v476 = vsel %vm434, %v469, 0
        %478 = vmatpush.xpose.msra.mxu0 0.0
        %479 = vmatpush.xpose.msra.mxu0 0.0
        %480 = vmatpush.xpose.msra.mxu0 0.0
        %481 = vmatpush.xpose.msra.mxu0 0.0
        %482 = vmatpush.xpose.msra.mxu0 0.0
        %483 = vmatpush.xpose.msra.mxu0 0.0
        %484 = vmatpush.xpose.msra.mxu0 0.0
        %485 = vmatpush.xpose.msra.mxu0 0.0
        %486 = vmatpush.xpose.msra.mxu0 0.0
        %487 = vmatpush.xpose.msra.mxu0 0.0
        %488 = vmatpush.xpose.msra.mxu0 0.0
        %489 = vmatpush.xpose.msra.mxu0 0.0
        %490 = vmatpush.xpose.msra.mxu0 0.0
        %491 = vmatpush.xpose.msra.mxu0 0.0
        %492 = vmatpush.xpose.msra.mxu0 %v476
        %493 = vmatpush.xpose.msra.mxu0 %v474
        %494 = vmatmul.f32.gmra.mxu0 %v470
        %v495 = vpop.f32.mrf.mxu0
        %v496 = vadd.f32 0.0, %v495
        %497 = vmatmul.f32.gmra.mxu0 %v472
        %v498 = vpop.f32.mrf.mxu0
        %v499 = vadd.f32 0.0, %v498
        %500 = vdwg.mxu0
        %501 = vrot.lane.b32.xlu0 %v283, 96
        %v502 = vpop.permute.xlu0 %501
        %503 = vrot.lane.b32.xlu0 %v286, 96
        %v504 = vpop.permute.xlu0 %503
        %v505 = vsel %vm434, %v283, 0
        %v507 = vsel %vm434, %v286, 0
        %v509 = vsel %vm434, %v502, 0
        %v511 = vsel %vm434, %v504, 0
        %513 = vmatpush.xpose.msra.mxu0 0.0
        %514 = vmatpush.xpose.msra.mxu0 0.0
        %515 = vmatpush.xpose.msra.mxu0 0.0
        %516 = vmatpush.xpose.msra.mxu0 0.0
        %517 = vmatpush.xpose.msra.mxu0 0.0
        %518 = vmatpush.xpose.msra.mxu0 0.0
        %519 = vmatpush.xpose.msra.mxu0 0.0
        %520 = vmatpush.xpose.msra.mxu0 0.0
        %521 = vmatpush.xpose.msra.mxu0 0.0
        %522 = vmatpush.xpose.msra.mxu0 0.0
        %523 = vmatpush.xpose.msra.mxu0 0.0
        %524 = vmatpush.xpose.msra.mxu0 0.0
        %525 = vmatpush.xpose.msra.mxu0 0.0
        %526 = vmatpush.xpose.msra.mxu0 0.0
        %527 = vmatpush.xpose.msra.mxu0 %v511
        %528 = vmatpush.xpose.msra.mxu0 %v509
        %529 = vmatmul.f32.gmra.mxu0 %v505
        %v530 = vpop.f32.mrf.mxu0
        %v531 = vadd.f32 0.0, %v530
        %532 = vmatmul.f32.gmra.mxu0 %v507
        %v533 = vpop.f32.mrf.mxu0
        %v534 = vadd.f32 0.0, %v533
        %535 = vdwg.mxu0
        %536 = vrot.lane.b32.xlu0 %v289, 96
        %v537 = vpop.permute.xlu0 %536
        %538 = vrot.lane.b32.xlu0 %v292, 96
        %v539 = vpop.permute.xlu0 %538
        %v540 = vsel %vm434, %v289, 0
        %v542 = vsel %vm434, %v292, 0
        %v544 = vsel %vm434, %v537, 0
        %v546 = vsel %vm434, %v539, 0
        %548 = vmatpush.xpose.msra.mxu0 0.0
        %549 = vmatpush.xpose.msra.mxu0 0.0
        %550 = vmatpush.xpose.msra.mxu0 0.0
        %551 = vmatpush.xpose.msra.mxu0 0.0
        %552 = vmatpush.xpose.msra.mxu0 0.0
        %553 = vmatpush.xpose.msra.mxu0 0.0
        %554 = vmatpush.xpose.msra.mxu0 0.0
        %555 = vmatpush.xpose.msra.mxu0 0.0
        %556 = vmatpush.xpose.msra.mxu0 0.0
        %557 = vmatpush.xpose.msra.mxu0 0.0
        %558 = vmatpush.xpose.msra.mxu0 0.0
        %559 = vmatpush.xpose.msra.mxu0 0.0
        %560 = vmatpush.xpose.msra.mxu0 0.0
        %561 = vmatpush.xpose.msra.mxu0 0.0
        %562 = vmatpush.xpose.msra.mxu0 %v546
        %563 = vmatpush.xpose.msra.mxu0 %v544
        %564 = vmatmul.f32.gmra.mxu0 %v540
        %v565 = vpop.f32.mrf.mxu0
        %v566 = vadd.f32 0.0, %v565
        %567 = vmatmul.f32.gmra.mxu0 %v542
        %v568 = vpop.f32.mrf.mxu0
        %v569 = vadd.f32 0.0, %v568
        %570 = vdwg.mxu0
        %571 = vrot.lane.b32.xlu0 %v295, 96
        %v572 = vpop.permute.xlu0 %571
        %573 = vrot.lane.b32.xlu0 %v298, 96
        %v574 = vpop.permute.xlu0 %573
        %v575 = vsel %vm434, %v295, 0
        %v577 = vsel %vm434, %v298, 0
        %v579 = vsel %vm434, %v572, 0
        %v581 = vsel %vm434, %v574, 0
        %583 = vmatpush.xpose.msra.mxu0 0.0
        %584 = vmatpush.xpose.msra.mxu0 0.0
        %585 = vmatpush.xpose.msra.mxu0 0.0
        %586 = vmatpush.xpose.msra.mxu0 0.0
        %587 = vmatpush.xpose.msra.mxu0 0.0
        %588 = vmatpush.xpose.msra.mxu0 0.0
        %589 = vmatpush.xpose.msra.mxu0 0.0
        %590 = vmatpush.xpose.msra.mxu0 0.0
        %591 = vmatpush.xpose.msra.mxu0 0.0
        %592 = vmatpush.xpose.msra.mxu0 0.0
        %593 = vmatpush.xpose.msra.mxu0 0.0
        %594 = vmatpush.xpose.msra.mxu0 0.0
        %595 = vmatpush.xpose.msra.mxu0 0.0
        %596 = vmatpush.xpose.msra.mxu0 0.0
        %597 = vmatpush.xpose.msra.mxu0 %v581
        %598 = vmatpush.xpose.msra.mxu0 %v579
        %599 = vmatmul.f32.gmra.mxu0 %v575
        %v600 = vpop.f32.mrf.mxu0
        %v601 = vadd.f32 0.0, %v600
        %602 = vmatmul.f32.gmra.mxu0 %v577
        %v603 = vpop.f32.mrf.mxu0
        %v604 = vadd.f32 0.0, %v603
        %605 = vdwg.mxu0
        %606 = vrot.lane.b32.xlu0 %v301, 96
        %v607 = vpop.permute.xlu0 %606
        %608 = vrot.lane.b32.xlu0 %v304, 96
        %v609 = vpop.permute.xlu0 %608
        %v610 = vsel %vm434, %v301, 0
        %v612 = vsel %vm434, %v304, 0
        %v614 = vsel %vm434, %v607, 0
        %v616 = vsel %vm434, %v609, 0
        %618 = vmatpush.xpose.msra.mxu0 0.0
        %619 = vmatpush.xpose.msra.mxu0 0.0
        %620 = vmatpush.xpose.msra.mxu0 0.0
        %621 = vmatpush.xpose.msra.mxu0 0.0
        %622 = vmatpush.xpose.msra.mxu0 0.0
        %623 = vmatpush.xpose.msra.mxu0 0.0
        %624 = vmatpush.xpose.msra.mxu0 0.0
        %625 = vmatpush.xpose.msra.mxu0 0.0
        %626 = vmatpush.xpose.msra.mxu0 0.0
        %627 = vmatpush.xpose.msra.mxu0 0.0
        %628 = vmatpush.xpose.msra.mxu0 0.0
        %629 = vmatpush.xpose.msra.mxu0 0.0
        %630 = vmatpush.xpose.msra.mxu0 0.0
        %631 = vmatpush.xpose.msra.mxu0 0.0
        %632 = vmatpush.xpose.msra.mxu0 %v616
        %633 = vmatpush.xpose.msra.mxu0 %v614
        %634 = vmatmul.f32.gmra.mxu0 %v610
        %v635 = vpop.f32.mrf.mxu0
        %v636 = vadd.f32 0.0, %v635
        %637 = vmatmul.f32.gmra.mxu0 %v612
        %v638 = vpop.f32.mrf.mxu0
        %v639 = vadd.f32 0.0, %v638
        %640 = vdwg.mxu0
        %641 = vrot.lane.b32.xlu0 %v307, 96
        %v642 = vpop.permute.xlu0 %641
        %643 = vrot.lane.b32.xlu0 %v310, 96
        %v644 = vpop.permute.xlu0 %643
        %v645 = vsel %vm434, %v307, 0
        %v647 = vsel %vm434, %v310, 0
        %v649 = vsel %vm434, %v642, 0
        %v651 = vsel %vm434, %v644, 0
        %653 = vmatpush.xpose.msra.mxu0 0.0
        %654 = vmatpush.xpose.msra.mxu0 0.0
        %655 = vmatpush.xpose.msra.mxu0 0.0
        %656 = vmatpush.xpose.msra.mxu0 0.0
        %657 = vmatpush.xpose.msra.mxu0 0.0
        %658 = vmatpush.xpose.msra.mxu0 0.0
        %659 = vmatpush.xpose.msra.mxu0 0.0
        %660 = vmatpush.xpose.msra.mxu0 0.0
        %661 = vmatpush.xpose.msra.mxu0 0.0
        %662 = vmatpush.xpose.msra.mxu0 0.0
        %663 = vmatpush.xpose.msra.mxu0 0.0
        %664 = vmatpush.xpose.msra.mxu0 0.0
        %665 = vmatpush.xpose.msra.mxu0 0.0
        %666 = vmatpush.xpose.msra.mxu0 0.0
        %667 = vmatpush.xpose.msra.mxu0 %v651
        %668 = vmatpush.xpose.msra.mxu0 %v649
        %669 = vmatmul.f32.gmra.mxu0 %v645
        %v670 = vpop.f32.mrf.mxu0
        %v671 = vadd.f32 0.0, %v670
        %672 = vmatmul.f32.gmra.mxu0 %v647
        %v673 = vpop.f32.mrf.mxu0
        %v674 = vadd.f32 0.0, %v673
        %675 = vdwg.mxu0
        %676 = vrot.lane.b32.xlu0 %v313, 96
        %v677 = vpop.permute.xlu0 %676
        %678 = vrot.lane.b32.xlu0 %v316, 96
        %v679 = vpop.permute.xlu0 %678
        %v680 = vsel %vm434, %v313, 0
        %v682 = vsel %vm434, %v316, 0
        %v684 = vsel %vm434, %v677, 0
        %v686 = vsel %vm434, %v679, 0
        %688 = vmatpush.xpose.msra.mxu0 0.0
        %689 = vmatpush.xpose.msra.mxu0 0.0
        %690 = vmatpush.xpose.msra.mxu0 0.0
        %691 = vmatpush.xpose.msra.mxu0 0.0
        %692 = vmatpush.xpose.msra.mxu0 0.0
        %693 = vmatpush.xpose.msra.mxu0 0.0
        %694 = vmatpush.xpose.msra.mxu0 0.0
        %695 = vmatpush.xpose.msra.mxu0 0.0
        %696 = vmatpush.xpose.msra.mxu0 0.0
        %697 = vmatpush.xpose.msra.mxu0 0.0
        %698 = vmatpush.xpose.msra.mxu0 0.0
        %699 = vmatpush.xpose.msra.mxu0 0.0
        %700 = vmatpush.xpose.msra.mxu0 0.0
        %701 = vmatpush.xpose.msra.mxu0 0.0
        %702 = vmatpush.xpose.msra.mxu0 %v686
        %703 = vmatpush.xpose.msra.mxu0 %v684
        %704 = vmatmul.f32.gmra.mxu0 %v680
        %v705 = vpop.f32.mrf.mxu0
        %v706 = vadd.f32 0.0, %v705
        %707 = vmatmul.f32.gmra.mxu0 %v682
        %v708 = vpop.f32.mrf.mxu0
        %v709 = vadd.f32 0.0, %v708
        %710 = vdwg.mxu0
        %711 = vrot.lane.b32.xlu0 %v335, 96
        %v712 = vpop.permute.xlu0 %711
        %713 = vrot.lane.b32.xlu0 %v337, 96
        %v714 = vpop.permute.xlu0 %713
        %v715 = vsel %vm434, %v335, 0
        %v717 = vsel %vm434, %v337, 0
        %v719 = vsel %vm434, %v712, 0
        %v721 = vsel %vm434, %v714, 0
        %723 = vmatpush.xpose.msra.mxu0 0.0
        %724 = vmatpush.xpose.msra.mxu0 0.0
        %725 = vmatpush.xpose.msra.mxu0 0.0
        %726 = vmatpush.xpose.msra.mxu0 0.0
        %727 = vmatpush.xpose.msra.mxu0 0.0
        %728 = vmatpush.xpose.msra.mxu0 0.0
        %729 = vmatpush.xpose.msra.mxu0 0.0
        %730 = vmatpush.xpose.msra.mxu0 0.0
        %731 = vmatpush.xpose.msra.mxu0 0.0
        %732 = vmatpush.xpose.msra.mxu0 0.0
        %733 = vmatpush.xpose.msra.mxu0 0.0
        %734 = vmatpush.xpose.msra.mxu0 0.0
        %735 = vmatpush.xpose.msra.mxu0 0.0
        %736 = vmatpush.xpose.msra.mxu0 0.0
        %737 = vmatpush.xpose.msra.mxu0 %v721
        %738 = vmatpush.xpose.msra.mxu0 %v719
        %739 = vmatmul.f32.gmra.mxu0 %v715
        %v740 = vpop.f32.mrf.mxu0
        %v741 = vadd.f32 0.0, %v740
        %742 = vmatmul.f32.gmra.mxu0 %v717
        %v743 = vpop.f32.mrf.mxu0
        %v744 = vadd.f32 0.0, %v743
        %745 = vdwg.mxu0
        %746 = vrot.lane.b32.xlu0 %v339, 96
        %v747 = vpop.permute.xlu0 %746
        %748 = vrot.lane.b32.xlu0 %v341, 96
        %v749 = vpop.permute.xlu0 %748
        %v750 = vsel %vm434, %v339, 0
        %v752 = vsel %vm434, %v341, 0
        %v754 = vsel %vm434, %v747, 0
        %v756 = vsel %vm434, %v749, 0
        %758 = vmatpush.xpose.msra.mxu0 0.0
        %759 = vmatpush.xpose.msra.mxu0 0.0
        %760 = vmatpush.xpose.msra.mxu0 0.0
        %761 = vmatpush.xpose.msra.mxu0 0.0
        %762 = vmatpush.xpose.msra.mxu0 0.0
        %763 = vmatpush.xpose.msra.mxu0 0.0
        %764 = vmatpush.xpose.msra.mxu0 0.0
        %765 = vmatpush.xpose.msra.mxu0 0.0
        %766 = vmatpush.xpose.msra.mxu0 0.0
        %767 = vmatpush.xpose.msra.mxu0 0.0
        %768 = vmatpush.xpose.msra.mxu0 0.0
        %769 = vmatpush.xpose.msra.mxu0 0.0
        %770 = vmatpush.xpose.msra.mxu0 0.0
        %771 = vmatpush.xpose.msra.mxu0 0.0
        %772 = vmatpush.xpose.msra.mxu0 %v756
        %773 = vmatpush.xpose.msra.mxu0 %v754
        %774 = vmatmul.f32.gmra.mxu0 %v750
        %v775 = vpop.f32.mrf.mxu0
        %v776 = vadd.f32 0.0, %v775
        %777 = vmatmul.f32.gmra.mxu0 %v752
        %v778 = vpop.f32.mrf.mxu0
        %v779 = vadd.f32 0.0, %v778
        %780 = vdwg.mxu0
        %781 = vrot.lane.b32.xlu0 %v343, 96
        %v782 = vpop.permute.xlu0 %781
        %783 = vrot.lane.b32.xlu0 %v345, 96
        %v784 = vpop.permute.xlu0 %783
        %v785 = vsel %vm434, %v343, 0
        %v787 = vsel %vm434, %v345, 0
        %v789 = vsel %vm434, %v782, 0
        %v791 = vsel %vm434, %v784, 0
        %793 = vmatpush.xpose.msra.mxu0 0.0
        %794 = vmatpush.xpose.msra.mxu0 0.0
        %795 = vmatpush.xpose.msra.mxu0 0.0
        %796 = vmatpush.xpose.msra.mxu0 0.0
        %797 = vmatpush.xpose.msra.mxu0 0.0
        %798 = vmatpush.xpose.msra.mxu0 0.0
        %799 = vmatpush.xpose.msra.mxu0 0.0
        %800 = vmatpush.xpose.msra.mxu0 0.0
        %801 = vmatpush.xpose.msra.mxu0 0.0
        %802 = vmatpush.xpose.msra.mxu0 0.0
        %803 = vmatpush.xpose.msra.mxu0 0.0
        %804 = vmatpush.xpose.msra.mxu0 0.0
        %805 = vmatpush.xpose.msra.mxu0 0.0
        %806 = vmatpush.xpose.msra.mxu0 0.0
        %807 = vmatpush.xpose.msra.mxu0 %v791
        %808 = vmatpush.xpose.msra.mxu0 %v789
        %809 = vmatmul.f32.gmra.mxu0 %v785
        %v810 = vpop.f32.mrf.mxu0
        %v811 = vadd.f32 0.0, %v810
        %812 = vmatmul.f32.gmra.mxu0 %v787
        %v813 = vpop.f32.mrf.mxu0
        %v814 = vadd.f32 0.0, %v813
        %815 = vdwg.mxu0
        %816 = vrot.lane.b32.xlu0 %v347, 96
        %v817 = vpop.permute.xlu0 %816
        %818 = vrot.lane.b32.xlu0 %v349, 96
        %v819 = vpop.permute.xlu0 %818
        %v820 = vsel %vm434, %v347, 0
        %v822 = vsel %vm434, %v349, 0
        %v824 = vsel %vm434, %v817, 0
        %v826 = vsel %vm434, %v819, 0
        %828 = vmatpush.xpose.msra.mxu0 0.0
        %829 = vmatpush.xpose.msra.mxu0 0.0
        %830 = vmatpush.xpose.msra.mxu0 0.0
        %831 = vmatpush.xpose.msra.mxu0 0.0
        %832 = vmatpush.xpose.msra.mxu0 0.0
        %833 = vmatpush.xpose.msra.mxu0 0.0
        %834 = vmatpush.xpose.msra.mxu0 0.0
        %835 = vmatpush.xpose.msra.mxu0 0.0
        %836 = vmatpush.xpose.msra.mxu0 0.0
        %837 = vmatpush.xpose.msra.mxu0 0.0
        %838 = vmatpush.xpose.msra.mxu0 0.0
        %839 = vmatpush.xpose.msra.mxu0 0.0
        %840 = vmatpush.xpose.msra.mxu0 0.0
        %841 = vmatpush.xpose.msra.mxu0 0.0
        %842 = vmatpush.xpose.msra.mxu0 %v826
        %843 = vmatpush.xpose.msra.mxu0 %v824
        %844 = vmatmul.f32.gmra.mxu0 %v820
        %v845 = vpop.f32.mrf.mxu0
        %v846 = vadd.f32 0.0, %v845
        %847 = vmatmul.f32.gmra.mxu0 %v822
        %v848 = vpop.f32.mrf.mxu0
        %v849 = vadd.f32 0.0, %v848
        %850 = vdwg.mxu0
        %851 = vrot.lane.b32.xlu0 %v351, 96
        %v852 = vpop.permute.xlu0 %851
        %853 = vrot.lane.b32.xlu0 %v353, 96
        %v854 = vpop.permute.xlu0 %853
        %v855 = vsel %vm434, %v351, 0
        %v857 = vsel %vm434, %v353, 0
        %v859 = vsel %vm434, %v852, 0
        %v861 = vsel %vm434, %v854, 0
        %863 = vmatpush.xpose.msra.mxu0 0.0
        %864 = vmatpush.xpose.msra.mxu0 0.0
        %865 = vmatpush.xpose.msra.mxu0 0.0
        %866 = vmatpush.xpose.msra.mxu0 0.0
        %867 = vmatpush.xpose.msra.mxu0 0.0
        %868 = vmatpush.xpose.msra.mxu0 0.0
        %869 = vmatpush.xpose.msra.mxu0 0.0
        %870 = vmatpush.xpose.msra.mxu0 0.0
        %871 = vmatpush.xpose.msra.mxu0 0.0
        %872 = vmatpush.xpose.msra.mxu0 0.0
        %873 = vmatpush.xpose.msra.mxu0 0.0
        %874 = vmatpush.xpose.msra.mxu0 0.0
        %875 = vmatpush.xpose.msra.mxu0 0.0
        %876 = vmatpush.xpose.msra.mxu0 0.0
        %877 = vmatpush.xpose.msra.mxu0 %v861
        %878 = vmatpush.xpose.msra.mxu0 %v859
        %879 = vmatmul.f32.gmra.mxu0 %v855
        %v880 = vpop.f32.mrf.mxu0
        %v881 = vadd.f32 0.0, %v880
        %882 = vmatmul.f32.gmra.mxu0 %v857
        %v883 = vpop.f32.mrf.mxu0
        %v884 = vadd.f32 0.0, %v883
        %885 = vdwg.mxu0
        %886 = vrot.lane.b32.xlu0 %v355, 96
        %v887 = vpop.permute.xlu0 %886
        %888 = vrot.lane.b32.xlu0 %v357, 96
        %v889 = vpop.permute.xlu0 %888
        %v890 = vsel %vm434, %v355, 0
        %v892 = vsel %vm434, %v357, 0
        %v894 = vsel %vm434, %v887, 0
        %v896 = vsel %vm434, %v889, 0
        %898 = vmatpush.xpose.msra.mxu0 0.0
        %899 = vmatpush.xpose.msra.mxu0 0.0
        %900 = vmatpush.xpose.msra.mxu0 0.0
        %901 = vmatpush.xpose.msra.mxu0 0.0
        %902 = vmatpush.xpose.msra.mxu0 0.0
        %903 = vmatpush.xpose.msra.mxu0 0.0
        %904 = vmatpush.xpose.msra.mxu0 0.0
        %905 = vmatpush.xpose.msra.mxu0 0.0
        %906 = vmatpush.xpose.msra.mxu0 0.0
        %907 = vmatpush.xpose.msra.mxu0 0.0
        %908 = vmatpush.xpose.msra.mxu0 0.0
        %909 = vmatpush.xpose.msra.mxu0 0.0
        %910 = vmatpush.xpose.msra.mxu0 0.0
        %911 = vmatpush.xpose.msra.mxu0 0.0
        %912 = vmatpush.xpose.msra.mxu0 %v896
        %913 = vmatpush.xpose.msra.mxu0 %v894
        %914 = vmatmul.f32.gmra.mxu0 %v890
        %v915 = vpop.f32.mrf.mxu0
        %v916 = vadd.f32 0.0, %v915
        %917 = vmatmul.f32.gmra.mxu0 %v892
        %v918 = vpop.f32.mrf.mxu0
        %v919 = vadd.f32 0.0, %v918
        %920 = vdwg.mxu0
        %921 = vrot.lane.b32.xlu0 %v359, 96
        %v922 = vpop.permute.xlu0 %921
        %923 = vrot.lane.b32.xlu0 %v361, 96
        %v924 = vpop.permute.xlu0 %923
        %v925 = vsel %vm434, %v359, 0
        %v927 = vsel %vm434, %v361, 0
        %v929 = vsel %vm434, %v922, 0
        %v931 = vsel %vm434, %v924, 0
        %933 = vmatpush.xpose.msra.mxu0 0.0
        %934 = vmatpush.xpose.msra.mxu0 0.0
        %935 = vmatpush.xpose.msra.mxu0 0.0
        %936 = vmatpush.xpose.msra.mxu0 0.0
        %937 = vmatpush.xpose.msra.mxu0 0.0
        %938 = vmatpush.xpose.msra.mxu0 0.0
        %939 = vmatpush.xpose.msra.mxu0 0.0
        %940 = vmatpush.xpose.msra.mxu0 0.0
        %941 = vmatpush.xpose.msra.mxu0 0.0
        %942 = vmatpush.xpose.msra.mxu0 0.0
        %943 = vmatpush.xpose.msra.mxu0 0.0
        %944 = vmatpush.xpose.msra.mxu0 0.0
        %945 = vmatpush.xpose.msra.mxu0 0.0
        %946 = vmatpush.xpose.msra.mxu0 0.0
        %947 = vmatpush.xpose.msra.mxu0 %v931
        %948 = vmatpush.xpose.msra.mxu0 %v929
        %949 = vmatmul.f32.gmra.mxu0 %v925
        %v950 = vpop.f32.mrf.mxu0
        %v951 = vadd.f32 0.0, %v950
        %952 = vmatmul.f32.gmra.mxu0 %v927
        %v953 = vpop.f32.mrf.mxu0
        %v954 = vadd.f32 0.0, %v953
        %955 = vdwg.mxu0
        %956 = vrot.lane.b32.xlu0 %v363, 96
        %v957 = vpop.permute.xlu0 %956
        %958 = vrot.lane.b32.xlu0 %v365, 96
        %v959 = vpop.permute.xlu0 %958
        %v960 = vsel %vm434, %v363, 0
        %v962 = vsel %vm434, %v365, 0
        %v964 = vsel %vm434, %v957, 0
        %v966 = vsel %vm434, %v959, 0
        %968 = vmatpush.xpose.msra.mxu0 0.0
        %969 = vmatpush.xpose.msra.mxu0 0.0
        %970 = vmatpush.xpose.msra.mxu0 0.0
        %971 = vmatpush.xpose.msra.mxu0 0.0
        %972 = vmatpush.xpose.msra.mxu0 0.0
        %973 = vmatpush.xpose.msra.mxu0 0.0
        %974 = vmatpush.xpose.msra.mxu0 0.0
        %975 = vmatpush.xpose.msra.mxu0 0.0
        %976 = vmatpush.xpose.msra.mxu0 0.0
        %977 = vmatpush.xpose.msra.mxu0 0.0
        %978 = vmatpush.xpose.msra.mxu0 0.0
        %979 = vmatpush.xpose.msra.mxu0 0.0
        %980 = vmatpush.xpose.msra.mxu0 0.0
        %981 = vmatpush.xpose.msra.mxu0 0.0
        %982 = vmatpush.xpose.msra.mxu0 %v966
        %983 = vmatpush.xpose.msra.mxu0 %v964
        %984 = vmatmul.f32.gmra.mxu0 %v960
        %v985 = vpop.f32.mrf.mxu0
        %v986 = vadd.f32 0.0, %v985
        %987 = vmatmul.f32.gmra.mxu0 %v962
        %v988 = vpop.f32.mrf.mxu0
        %v989 = vadd.f32 0.0, %v988
        %990 = vdwg.mxu0
        %991 = vrot.lane.b32.xlu0 %v367, 96
        %v992 = vpop.permute.xlu0 %991
        %993 = vrot.lane.b32.xlu0 %v369, 96
        %v994 = vpop.permute.xlu0 %993
        %v995 = vsel %vm434, %v367, 0
        %v997 = vsel %vm434, %v369, 0
        %v999 = vsel %vm434, %v992, 0
        %v1001 = vsel %vm434, %v994, 0
        %1003 = vmatpush.xpose.msra.mxu0 0.0
        %1004 = vmatpush.xpose.msra.mxu0 0.0
        %1005 = vmatpush.xpose.msra.mxu0 0.0
        %1006 = vmatpush.xpose.msra.mxu0 0.0
        %1007 = vmatpush.xpose.msra.mxu0 0.0
        %1008 = vmatpush.xpose.msra.mxu0 0.0
        %1009 = vmatpush.xpose.msra.mxu0 0.0
        %1010 = vmatpush.xpose.msra.mxu0 0.0
        %1011 = vmatpush.xpose.msra.mxu0 0.0
        %1012 = vmatpush.xpose.msra.mxu0 0.0
        %1013 = vmatpush.xpose.msra.mxu0 0.0
        %1014 = vmatpush.xpose.msra.mxu0 0.0
        %1015 = vmatpush.xpose.msra.mxu0 0.0
        %1016 = vmatpush.xpose.msra.mxu0 0.0
        %1017 = vmatpush.xpose.msra.mxu0 %v1001
        %1018 = vmatpush.xpose.msra.mxu0 %v999
        %1019 = vmatmul.f32.gmra.mxu0 %v995
        %v1020 = vpop.f32.mrf.mxu0
        %v1021 = vadd.f32 0.0, %v1020
        %1022 = vmatmul.f32.gmra.mxu0 %v997
        %v1023 = vpop.f32.mrf.mxu0
        %v1024 = vadd.f32 0.0, %v1023
        %1025 = vdwg.mxu0
        %1026 = vrot.lane.b32.xlu0 %v371, 96
        %v1027 = vpop.permute.xlu0 %1026
        %1028 = vrot.lane.b32.xlu0 %v373, 96
        %v1029 = vpop.permute.xlu0 %1028
        %v1030 = vsel %vm434, %v371, 0
        %v1032 = vsel %vm434, %v373, 0
        %v1034 = vsel %vm434, %v1027, 0
        %v1036 = vsel %vm434, %v1029, 0
        %1038 = vmatpush.xpose.msra.mxu0 0.0
        %1039 = vmatpush.xpose.msra.mxu0 0.0
        %1040 = vmatpush.xpose.msra.mxu0 0.0
        %1041 = vmatpush.xpose.msra.mxu0 0.0
        %1042 = vmatpush.xpose.msra.mxu0 0.0
        %1043 = vmatpush.xpose.msra.mxu0 0.0
        %1044 = vmatpush.xpose.msra.mxu0 0.0
        %1045 = vmatpush.xpose.msra.mxu0 0.0
        %1046 = vmatpush.xpose.msra.mxu0 0.0
        %1047 = vmatpush.xpose.msra.mxu0 0.0
        %1048 = vmatpush.xpose.msra.mxu0 0.0
        %1049 = vmatpush.xpose.msra.mxu0 0.0
        %1050 = vmatpush.xpose.msra.mxu0 0.0
        %1051 = vmatpush.xpose.msra.mxu0 0.0
        %1052 = vmatpush.xpose.msra.mxu0 %v1036
        %1053 = vmatpush.xpose.msra.mxu0 %v1034
        %1054 = vmatmul.f32.gmra.mxu0 %v1030
        %v1055 = vpop.f32.mrf.mxu0
        %v1056 = vadd.f32 0.0, %v1055
        %1057 = vmatmul.f32.gmra.mxu0 %v1032
        %v1058 = vpop.f32.mrf.mxu0
        %v1059 = vadd.f32 0.0, %v1058
        %1060 = vdwg.mxu0
        %1061 = vrot.lane.b32.xlu0 %v375, 96
        %v1062 = vpop.permute.xlu0 %1061
        %1063 = vrot.lane.b32.xlu0 %v377, 96
        %v1064 = vpop.permute.xlu0 %1063
        %v1065 = vsel %vm434, %v375, 0
        %v1067 = vsel %vm434, %v377, 0
        %v1069 = vsel %vm434, %v1062, 0
        %v1071 = vsel %vm434, %v1064, 0
        %1073 = vmatpush.xpose.msra.mxu0 0.0
        %1074 = vmatpush.xpose.msra.mxu0 0.0
        %1075 = vmatpush.xpose.msra.mxu0 0.0
        %1076 = vmatpush.xpose.msra.mxu0 0.0
        %1077 = vmatpush.xpose.msra.mxu0 0.0
        %1078 = vmatpush.xpose.msra.mxu0 0.0
        %1079 = vmatpush.xpose.msra.mxu0 0.0
        %1080 = vmatpush.xpose.msra.mxu0 0.0
        %1081 = vmatpush.xpose.msra.mxu0 0.0
        %1082 = vmatpush.xpose.msra.mxu0 0.0
        %1083 = vmatpush.xpose.msra.mxu0 0.0
        %1084 = vmatpush.xpose.msra.mxu0 0.0
        %1085 = vmatpush.xpose.msra.mxu0 0.0
        %1086 = vmatpush.xpose.msra.mxu0 0.0
        %1087 = vmatpush.xpose.msra.mxu0 %v1071
        %1088 = vmatpush.xpose.msra.mxu0 %v1069
        %1089 = vmatmul.f32.gmra.mxu0 %v1065
        %v1090 = vpop.f32.mrf.mxu0
        %v1091 = vadd.f32 0.0, %v1090
        %1092 = vmatmul.f32.gmra.mxu0 %v1067
        %v1093 = vpop.f32.mrf.mxu0
        %v1094 = vadd.f32 0.0, %v1093
        %1095 = vdwg.mxu0
        %1096 = vrot.lane.b32.xlu0 %v379, 96
        %v1097 = vpop.permute.xlu0 %1096
        %1098 = vrot.lane.b32.xlu0 %v381, 96
        %v1099 = vpop.permute.xlu0 %1098
        %v1100 = vsel %vm434, %v379, 0
        %v1102 = vsel %vm434, %v381, 0
        %v1104 = vsel %vm434, %v1097, 0
        %v1106 = vsel %vm434, %v1099, 0
        %1108 = vmatpush.xpose.msra.mxu0 0.0
        %1109 = vmatpush.xpose.msra.mxu0 0.0
        %1110 = vmatpush.xpose.msra.mxu0 0.0
        %1111 = vmatpush.xpose.msra.mxu0 0.0
        %1112 = vmatpush.xpose.msra.mxu0 0.0
        %1113 = vmatpush.xpose.msra.mxu0 0.0
        %1114 = vmatpush.xpose.msra.mxu0 0.0
        %1115 = vmatpush.xpose.msra.mxu0 0.0
        %1116 = vmatpush.xpose.msra.mxu0 0.0
        %1117 = vmatpush.xpose.msra.mxu0 0.0
        %1118 = vmatpush.xpose.msra.mxu0 0.0
        %1119 = vmatpush.xpose.msra.mxu0 0.0
        %1120 = vmatpush.xpose.msra.mxu0 0.0
        %1121 = vmatpush.xpose.msra.mxu0 0.0
        %1122 = vmatpush.xpose.msra.mxu0 %v1106
        %1123 = vmatpush.xpose.msra.mxu0 %v1104
        %1124 = vmatmul.f32.gmra.mxu0 %v1100
        %v1125 = vpop.f32.mrf.mxu0
        %v1126 = vadd.f32 0.0, %v1125
        %1127 = vmatmul.f32.gmra.mxu0 %v1102
        %v1128 = vpop.f32.mrf.mxu0
        %v1129 = vadd.f32 0.0, %v1128
        %1130 = vdwg.mxu0
        %1131 = vrot.lane.b32.xlu0 %v383, 96
        %v1132 = vpop.permute.xlu0 %1131
        %1133 = vrot.lane.b32.xlu0 %v385, 96
        %v1134 = vpop.permute.xlu0 %1133
        %v1135 = vsel %vm434, %v383, 0
        %v1137 = vsel %vm434, %v385, 0
        %v1139 = vsel %vm434, %v1132, 0
        %v1141 = vsel %vm434, %v1134, 0
        %1143 = vmatpush.xpose.msra.mxu0 0.0
        %1144 = vmatpush.xpose.msra.mxu0 0.0
        %1145 = vmatpush.xpose.msra.mxu0 0.0
        %1146 = vmatpush.xpose.msra.mxu0 0.0
        %1147 = vmatpush.xpose.msra.mxu0 0.0
        %1148 = vmatpush.xpose.msra.mxu0 0.0
        %1149 = vmatpush.xpose.msra.mxu0 0.0
        %1150 = vmatpush.xpose.msra.mxu0 0.0
        %1151 = vmatpush.xpose.msra.mxu0 0.0
        %1152 = vmatpush.xpose.msra.mxu0 0.0
        %1153 = vmatpush.xpose.msra.mxu0 0.0
        %1154 = vmatpush.xpose.msra.mxu0 0.0
        %1155 = vmatpush.xpose.msra.mxu0 0.0
        %1156 = vmatpush.xpose.msra.mxu0 0.0
        %1157 = vmatpush.xpose.msra.mxu0 %v1141
        %1158 = vmatpush.xpose.msra.mxu0 %v1139
        %1159 = vmatmul.f32.gmra.mxu0 %v1135
        %v1160 = vpop.f32.mrf.mxu0
        %v1161 = vadd.f32 0.0, %v1160
        %1162 = vmatmul.f32.gmra.mxu0 %v1137
        %v1163 = vpop.f32.mrf.mxu0
        %v1164 = vadd.f32 0.0, %v1163
        %1165 = vdwg.mxu0
        %1166 = vrot.lane.b32.xlu0 %v387, 96
        %v1167 = vpop.permute.xlu0 %1166
        %1168 = vrot.lane.b32.xlu0 %v389, 96
        %v1169 = vpop.permute.xlu0 %1168
        %v1170 = vsel %vm434, %v387, 0
        %v1172 = vsel %vm434, %v389, 0
        %v1174 = vsel %vm434, %v1167, 0
        %v1176 = vsel %vm434, %v1169, 0
        %1178 = vmatpush.xpose.msra.mxu0 0.0
        %1179 = vmatpush.xpose.msra.mxu0 0.0
        %1180 = vmatpush.xpose.msra.mxu0 0.0
        %1181 = vmatpush.xpose.msra.mxu0 0.0
        %1182 = vmatpush.xpose.msra.mxu0 0.0
        %1183 = vmatpush.xpose.msra.mxu0 0.0
        %1184 = vmatpush.xpose.msra.mxu0 0.0
        %1185 = vmatpush.xpose.msra.mxu0 0.0
        %1186 = vmatpush.xpose.msra.mxu0 0.0
        %1187 = vmatpush.xpose.msra.mxu0 0.0
        %1188 = vmatpush.xpose.msra.mxu0 0.0
        %1189 = vmatpush.xpose.msra.mxu0 0.0
        %1190 = vmatpush.xpose.msra.mxu0 0.0
        %1191 = vmatpush.xpose.msra.mxu0 0.0
        %1192 = vmatpush.xpose.msra.mxu0 %v1176
        %1193 = vmatpush.xpose.msra.mxu0 %v1174
        %1194 = vmatmul.f32.gmra.mxu0 %v1170
        %v1195 = vpop.f32.mrf.mxu0
        %v1196 = vadd.f32 0.0, %v1195
        %1197 = vmatmul.f32.gmra.mxu0 %v1172
        %v1198 = vpop.f32.mrf.mxu0
        %v1199 = vadd.f32 0.0, %v1198
        %1200 = vdwg.mxu0
        %1201 = vrot.lane.b32.xlu0 %v391, 96
        %v1202 = vpop.permute.xlu0 %1201
        %1203 = vrot.lane.b32.xlu0 %v393, 96
        %v1204 = vpop.permute.xlu0 %1203
        %v1205 = vsel %vm434, %v391, 0
        %v1207 = vsel %vm434, %v393, 0
        %v1209 = vsel %vm434, %v1202, 0
        %v1211 = vsel %vm434, %v1204, 0
        %1213 = vmatpush.xpose.msra.mxu0 0.0
        %1214 = vmatpush.xpose.msra.mxu0 0.0
        %1215 = vmatpush.xpose.msra.mxu0 0.0
        %1216 = vmatpush.xpose.msra.mxu0 0.0
        %1217 = vmatpush.xpose.msra.mxu0 0.0
        %1218 = vmatpush.xpose.msra.mxu0 0.0
        %1219 = vmatpush.xpose.msra.mxu0 0.0
        %1220 = vmatpush.xpose.msra.mxu0 0.0
        %1221 = vmatpush.xpose.msra.mxu0 0.0
        %1222 = vmatpush.xpose.msra.mxu0 0.0
        %1223 = vmatpush.xpose.msra.mxu0 0.0
        %1224 = vmatpush.xpose.msra.mxu0 0.0
        %1225 = vmatpush.xpose.msra.mxu0 0.0
        %1226 = vmatpush.xpose.msra.mxu0 0.0
        %1227 = vmatpush.xpose.msra.mxu0 %v1211
        %1228 = vmatpush.xpose.msra.mxu0 %v1209
        %1229 = vmatmul.f32.gmra.mxu0 %v1205
        %v1230 = vpop.f32.mrf.mxu0
        %v1231 = vadd.f32 0.0, %v1230
        %1232 = vmatmul.f32.gmra.mxu0 %v1207
        %v1233 = vpop.f32.mrf.mxu0
        %v1234 = vadd.f32 0.0, %v1233
        %1235 = vdwg.mxu0
        %1236 = vrot.lane.b32.xlu0 %v395, 96
        %v1237 = vpop.permute.xlu0 %1236
        %1238 = vrot.lane.b32.xlu0 %v397, 96
        %v1239 = vpop.permute.xlu0 %1238
        %v1240 = vsel %vm434, %v395, 0
        %v1242 = vsel %vm434, %v397, 0
        %v1244 = vsel %vm434, %v1237, 0
        %v1246 = vsel %vm434, %v1239, 0
        %1248 = vmatpush.xpose.msra.mxu0 0.0
        %1249 = vmatpush.xpose.msra.mxu0 0.0
        %1250 = vmatpush.xpose.msra.mxu0 0.0
        %1251 = vmatpush.xpose.msra.mxu0 0.0
        %1252 = vmatpush.xpose.msra.mxu0 0.0
        %1253 = vmatpush.xpose.msra.mxu0 0.0
        %1254 = vmatpush.xpose.msra.mxu0 0.0
        %1255 = vmatpush.xpose.msra.mxu0 0.0
        %1256 = vmatpush.xpose.msra.mxu0 0.0
        %1257 = vmatpush.xpose.msra.mxu0 0.0
        %1258 = vmatpush.xpose.msra.mxu0 0.0
        %1259 = vmatpush.xpose.msra.mxu0 0.0
        %1260 = vmatpush.xpose.msra.mxu0 0.0
        %1261 = vmatpush.xpose.msra.mxu0 0.0
        %1262 = vmatpush.xpose.msra.mxu0 %v1246
        %1263 = vmatpush.xpose.msra.mxu0 %v1244
        %1264 = vmatmul.f32.gmra.mxu0 %v1240
        %v1265 = vpop.f32.mrf.mxu0
        %v1266 = vadd.f32 0.0, %v1265
        %1267 = vmatmul.f32.gmra.mxu0 %v1242
        %v1268 = vpop.f32.mrf.mxu0
        %v1269 = vadd.f32 0.0, %v1268
        %1270 = vdwg.mxu0
        %1271 = vrot.lane.b32.xlu0 %v399, 96
        %v1272 = vpop.permute.xlu0 %1271
        %1273 = vrot.lane.b32.xlu0 %v401, 96
        %v1274 = vpop.permute.xlu0 %1273
        %v1275 = vsel %vm434, %v399, 0
        %v1277 = vsel %vm434, %v401, 0
        %v1279 = vsel %vm434, %v1272, 0
        %v1281 = vsel %vm434, %v1274, 0
        %1283 = vmatpush.xpose.msra.mxu0 0.0
        %1284 = vmatpush.xpose.msra.mxu0 0.0
        %1285 = vmatpush.xpose.msra.mxu0 0.0
        %1286 = vmatpush.xpose.msra.mxu0 0.0
        %1287 = vmatpush.xpose.msra.mxu0 0.0
        %1288 = vmatpush.xpose.msra.mxu0 0.0
        %1289 = vmatpush.xpose.msra.mxu0 0.0
        %1290 = vmatpush.xpose.msra.mxu0 0.0
        %1291 = vmatpush.xpose.msra.mxu0 0.0
        %1292 = vmatpush.xpose.msra.mxu0 0.0
        %1293 = vmatpush.xpose.msra.mxu0 0.0
        %1294 = vmatpush.xpose.msra.mxu0 0.0
        %1295 = vmatpush.xpose.msra.mxu0 0.0
        %1296 = vmatpush.xpose.msra.mxu0 0.0
        %1297 = vmatpush.xpose.msra.mxu0 %v1281
        %1298 = vmatpush.xpose.msra.mxu0 %v1279
        %1299 = vmatmul.f32.gmra.mxu0 %v1275
        %v1300 = vpop.f32.mrf.mxu0
        %v1301 = vadd.f32 0.0, %v1300
        %1302 = vmatmul.f32.gmra.mxu0 %v1277
        %v1303 = vpop.f32.mrf.mxu0
        %v1304 = vadd.f32 0.0, %v1303
        %1305 = vdwg.mxu0
        %1306 = vrot.lane.b32.xlu0 %v403, 96
        %v1307 = vpop.permute.xlu0 %1306
        %1308 = vrot.lane.b32.xlu0 %v405, 96
        %v1309 = vpop.permute.xlu0 %1308
        %v1310 = vsel %vm434, %v403, 0
        %v1312 = vsel %vm434, %v405, 0
        %v1314 = vsel %vm434, %v1307, 0
        %v1316 = vsel %vm434, %v1309, 0
        %1318 = vmatpush.xpose.msra.mxu0 0.0
        %1319 = vmatpush.xpose.msra.mxu0 0.0
        %1320 = vmatpush.xpose.msra.mxu0 0.0
        %1321 = vmatpush.xpose.msra.mxu0 0.0
        %1322 = vmatpush.xpose.msra.mxu0 0.0
        %1323 = vmatpush.xpose.msra.mxu0 0.0
        %1324 = vmatpush.xpose.msra.mxu0 0.0
        %1325 = vmatpush.xpose.msra.mxu0 0.0
        %1326 = vmatpush.xpose.msra.mxu0 0.0
        %1327 = vmatpush.xpose.msra.mxu0 0.0
        %1328 = vmatpush.xpose.msra.mxu0 0.0
        %1329 = vmatpush.xpose.msra.mxu0 0.0
        %1330 = vmatpush.xpose.msra.mxu0 0.0
        %1331 = vmatpush.xpose.msra.mxu0 0.0
        %1332 = vmatpush.xpose.msra.mxu0 %v1316
        %1333 = vmatpush.xpose.msra.mxu0 %v1314
        %1334 = vmatmul.f32.gmra.mxu0 %v1310
        %v1335 = vpop.f32.mrf.mxu0
        %v1336 = vadd.f32 0.0, %v1335
        %1337 = vmatmul.f32.gmra.mxu0 %v1312
        %v1338 = vpop.f32.mrf.mxu0
        %v1339 = vadd.f32 0.0, %v1338
        %1340 = vdwg.mxu0
        %1341 = vrot.lane.b32.xlu0 %v407, 96
        %v1342 = vpop.permute.xlu0 %1341
        %1343 = vrot.lane.b32.xlu0 %v409, 96
        %v1344 = vpop.permute.xlu0 %1343
        %v1345 = vsel %vm434, %v407, 0
        %v1347 = vsel %vm434, %v409, 0
        %v1349 = vsel %vm434, %v1342, 0
        %v1351 = vsel %vm434, %v1344, 0
        %1353 = vmatpush.xpose.msra.mxu0 0.0
        %1354 = vmatpush.xpose.msra.mxu0 0.0
        %1355 = vmatpush.xpose.msra.mxu0 0.0
        %1356 = vmatpush.xpose.msra.mxu0 0.0
        %1357 = vmatpush.xpose.msra.mxu0 0.0
        %1358 = vmatpush.xpose.msra.mxu0 0.0
        %1359 = vmatpush.xpose.msra.mxu0 0.0
        %1360 = vmatpush.xpose.msra.mxu0 0.0
        %1361 = vmatpush.xpose.msra.mxu0 0.0
        %1362 = vmatpush.xpose.msra.mxu0 0.0
        %1363 = vmatpush.xpose.msra.mxu0 0.0
        %1364 = vmatpush.xpose.msra.mxu0 0.0
        %1365 = vmatpush.xpose.msra.mxu0 0.0
        %1366 = vmatpush.xpose.msra.mxu0 0.0
        %1367 = vmatpush.xpose.msra.mxu0 %v1351
        %1368 = vmatpush.xpose.msra.mxu0 %v1349
        %1369 = vmatmul.f32.gmra.mxu0 %v1345
        %v1370 = vpop.f32.mrf.mxu0
        %v1371 = vadd.f32 0.0, %v1370
        %1372 = vmatmul.f32.gmra.mxu0 %v1347
        %v1373 = vpop.f32.mrf.mxu0
        %v1374 = vadd.f32 0.0, %v1373
        %1375 = vdwg.mxu0
        %1376 = vrot.lane.b32.xlu0 %v411, 96
        %v1377 = vpop.permute.xlu0 %1376
        %1378 = vrot.lane.b32.xlu0 %v413, 96
        %v1379 = vpop.permute.xlu0 %1378
        %v1380 = vsel %vm434, %v411, 0
        %v1382 = vsel %vm434, %v413, 0
        %v1384 = vsel %vm434, %v1377, 0
        %v1386 = vsel %vm434, %v1379, 0
        %1388 = vmatpush.xpose.msra.mxu0 0.0
        %1389 = vmatpush.xpose.msra.mxu0 0.0
        %1390 = vmatpush.xpose.msra.mxu0 0.0
        %1391 = vmatpush.xpose.msra.mxu0 0.0
        %1392 = vmatpush.xpose.msra.mxu0 0.0
        %1393 = vmatpush.xpose.msra.mxu0 0.0
        %1394 = vmatpush.xpose.msra.mxu0 0.0
        %1395 = vmatpush.xpose.msra.mxu0 0.0
        %1396 = vmatpush.xpose.msra.mxu0 0.0
        %1397 = vmatpush.xpose.msra.mxu0 0.0
        %1398 = vmatpush.xpose.msra.mxu0 0.0
        %1399 = vmatpush.xpose.msra.mxu0 0.0
        %1400 = vmatpush.xpose.msra.mxu0 0.0
        %1401 = vmatpush.xpose.msra.mxu0 0.0
        %1402 = vmatpush.xpose.msra.mxu0 %v1386
        %1403 = vmatpush.xpose.msra.mxu0 %v1384
        %1404 = vmatmul.f32.gmra.mxu0 %v1380
        %v1405 = vpop.f32.mrf.mxu0
        %v1406 = vadd.f32 0.0, %v1405
        %1407 = vmatmul.f32.gmra.mxu0 %v1382
        %v1408 = vpop.f32.mrf.mxu0
        %v1409 = vadd.f32 0.0, %v1408
        %1410 = vdwg.mxu0
        %1411 = vrot.lane.b32.xlu0 %v415, 96
        %v1412 = vpop.permute.xlu0 %1411
        %1413 = vrot.lane.b32.xlu0 %v417, 96
        %v1414 = vpop.permute.xlu0 %1413
        %v1415 = vsel %vm434, %v415, 0
        %v1417 = vsel %vm434, %v417, 0
        %v1419 = vsel %vm434, %v1412, 0
        %v1421 = vsel %vm434, %v1414, 0
        %1423 = vmatpush.xpose.msra.mxu0 0.0
        %1424 = vmatpush.xpose.msra.mxu0 0.0
        %1425 = vmatpush.xpose.msra.mxu0 0.0
        %1426 = vmatpush.xpose.msra.mxu0 0.0
        %1427 = vmatpush.xpose.msra.mxu0 0.0
        %1428 = vmatpush.xpose.msra.mxu0 0.0
        %1429 = vmatpush.xpose.msra.mxu0 0.0
        %1430 = vmatpush.xpose.msra.mxu0 0.0
        %1431 = vmatpush.xpose.msra.mxu0 0.0
        %1432 = vmatpush.xpose.msra.mxu0 0.0
        %1433 = vmatpush.xpose.msra.mxu0 0.0
        %1434 = vmatpush.xpose.msra.mxu0 0.0
        %1435 = vmatpush.xpose.msra.mxu0 0.0
        %1436 = vmatpush.xpose.msra.mxu0 0.0
        %1437 = vmatpush.xpose.msra.mxu0 %v1421
        %1438 = vmatpush.xpose.msra.mxu0 %v1419
        %1439 = vmatmul.f32.gmra.mxu0 %v1415
        %v1440 = vpop.f32.mrf.mxu0
        %v1441 = vadd.f32 0.0, %v1440
        %1442 = vmatmul.f32.gmra.mxu0 %v1417
        %v1443 = vpop.f32.mrf.mxu0
        %v1444 = vadd.f32 0.0, %v1443
        %1445 = vdwg.mxu0
        %1446 = vrot.lane.b32.xlu0 %v419, 96
        %v1447 = vpop.permute.xlu0 %1446
        %1448 = vrot.lane.b32.xlu0 %v421, 96
        %v1449 = vpop.permute.xlu0 %1448
        %v1450 = vsel %vm434, %v419, 0
        %v1452 = vsel %vm434, %v421, 0
        %v1454 = vsel %vm434, %v1447, 0
        %v1456 = vsel %vm434, %v1449, 0
        %1458 = vmatpush.xpose.msra.mxu0 0.0
        %1459 = vmatpush.xpose.msra.mxu0 0.0
        %1460 = vmatpush.xpose.msra.mxu0 0.0
        %1461 = vmatpush.xpose.msra.mxu0 0.0
        %1462 = vmatpush.xpose.msra.mxu0 0.0
        %1463 = vmatpush.xpose.msra.mxu0 0.0
        %1464 = vmatpush.xpose.msra.mxu0 0.0
        %1465 = vmatpush.xpose.msra.mxu0 0.0
        %1466 = vmatpush.xpose.msra.mxu0 0.0
        %1467 = vmatpush.xpose.msra.mxu0 0.0
        %1468 = vmatpush.xpose.msra.mxu0 0.0
        %1469 = vmatpush.xpose.msra.mxu0 0.0
        %1470 = vmatpush.xpose.msra.mxu0 0.0
        %1471 = vmatpush.xpose.msra.mxu0 0.0
        %1472 = vmatpush.xpose.msra.mxu0 %v1456
        %1473 = vmatpush.xpose.msra.mxu0 %v1454
        %1474 = vmatmul.f32.gmra.mxu0 %v1450
        %v1475 = vpop.f32.mrf.mxu0
        %v1476 = vadd.f32 0.0, %v1475
        %1477 = vmatmul.f32.gmra.mxu0 %v1452
        %v1478 = vpop.f32.mrf.mxu0
        %v1479 = vadd.f32 0.0, %v1478
        %1480 = vdwg.mxu0
        %1481 = vrot.lane.b32.xlu0 %v423, 96
        %v1482 = vpop.permute.xlu0 %1481
        %1483 = vrot.lane.b32.xlu0 %v425, 96
        %v1484 = vpop.permute.xlu0 %1483
        %v1485 = vsel %vm434, %v423, 0
        %v1487 = vsel %vm434, %v425, 0
        %v1489 = vsel %vm434, %v1482, 0
        %v1491 = vsel %vm434, %v1484, 0
        %1493 = vmatpush.xpose.msra.mxu0 0.0
        %1494 = vmatpush.xpose.msra.mxu0 0.0
        %1495 = vmatpush.xpose.msra.mxu0 0.0
        %1496 = vmatpush.xpose.msra.mxu0 0.0
        %1497 = vmatpush.xpose.msra.mxu0 0.0
        %1498 = vmatpush.xpose.msra.mxu0 0.0
        %1499 = vmatpush.xpose.msra.mxu0 0.0
        %1500 = vmatpush.xpose.msra.mxu0 0.0
        %1501 = vmatpush.xpose.msra.mxu0 0.0
        %1502 = vmatpush.xpose.msra.mxu0 0.0
        %1503 = vmatpush.xpose.msra.mxu0 0.0
        %1504 = vmatpush.xpose.msra.mxu0 0.0
        %1505 = vmatpush.xpose.msra.mxu0 0.0
        %1506 = vmatpush.xpose.msra.mxu0 0.0
        %1507 = vmatpush.xpose.msra.mxu0 %v1491
        %1508 = vmatpush.xpose.msra.mxu0 %v1489
        %1509 = vmatmul.f32.gmra.mxu0 %v1485
        %v1510 = vpop.f32.mrf.mxu0
        %v1511 = vadd.f32 0.0, %v1510
        %1512 = vmatmul.f32.gmra.mxu0 %v1487
        %v1513 = vpop.f32.mrf.mxu0
        %v1514 = vadd.f32 0.0, %v1513
        %1515 = vdwg.mxu0
        %1516 = vrot.lane.b32.xlu0 %v427, 96
        %v1517 = vpop.permute.xlu0 %1516
        %1518 = vrot.lane.b32.xlu0 %v429, 96
        %v1519 = vpop.permute.xlu0 %1518
        %v1520 = vsel %vm434, %v427, 0
        %v1522 = vsel %vm434, %v429, 0
        %v1524 = vsel %vm434, %v1517, 0
        %v1526 = vsel %vm434, %v1519, 0
        %1528 = vmatpush.xpose.msra.mxu0 0.0
        %1529 = vmatpush.xpose.msra.mxu0 0.0
        %1530 = vmatpush.xpose.msra.mxu0 0.0
        %1531 = vmatpush.xpose.msra.mxu0 0.0
        %1532 = vmatpush.xpose.msra.mxu0 0.0
        %1533 = vmatpush.xpose.msra.mxu0 0.0
        %1534 = vmatpush.xpose.msra.mxu0 0.0
        %1535 = vmatpush.xpose.msra.mxu0 0.0
        %1536 = vmatpush.xpose.msra.mxu0 0.0
        %1537 = vmatpush.xpose.msra.mxu0 0.0
        %1538 = vmatpush.xpose.msra.mxu0 0.0
        %1539 = vmatpush.xpose.msra.mxu0 0.0
        %1540 = vmatpush.xpose.msra.mxu0 0.0
        %1541 = vmatpush.xpose.msra.mxu0 0.0
        %1542 = vmatpush.xpose.msra.mxu0 %v1526
        %1543 = vmatpush.xpose.msra.mxu0 %v1524
        %1544 = vmatmul.f32.gmra.mxu0 %v1520
        %v1545 = vpop.f32.mrf.mxu0
        %v1546 = vadd.f32 0.0, %v1545
        %1547 = vmatmul.f32.gmra.mxu0 %v1522
        %v1548 = vpop.f32.mrf.mxu0
        %v1549 = vadd.f32 0.0, %v1548
        %1550 = vdwg.mxu0
        %vm1551 = vcmask 130048
        %v1552 = vsel %vm1551, %v461, -inf
        %1553 = vmax.xlane.f32.xlu0 %v1552
        %v1554 = vpop.xlane.xlu0 %1553
        %v1555 = vsel %vm1551, %v464, -inf
        %1556 = vmax.xlane.f32.xlu0 %v1555
        %v1557 = vpop.xlane.xlu0 %1556
        %v1558 = vsel %vm1551, %v496, -inf
        %1559 = vmax.xlane.f32.xlu0 %v1558
        %v1560 = vpop.xlane.xlu0 %1559
        %v1561 = vsel %vm1551, %v499, -inf
        %1562 = vmax.xlane.f32.xlu0 %v1561
        %v1563 = vpop.xlane.xlu0 %1562
        %v1564 = vsel %vm1551, %v531, -inf
        %1565 = vmax.xlane.f32.xlu0 %v1564
        %v1566 = vpop.xlane.xlu0 %1565
        %v1567 = vsel %vm1551, %v534, -inf
        %1568 = vmax.xlane.f32.xlu0 %v1567
        %v1569 = vpop.xlane.xlu0 %1568
        %v1570 = vsel %vm1551, %v566, -inf
        %1571 = vmax.xlane.f32.xlu0 %v1570
        %v1572 = vpop.xlane.xlu0 %1571
        %v1573 = vsel %vm1551, %v569, -inf
        %1574 = vmax.xlane.f32.xlu0 %v1573
        %v1575 = vpop.xlane.xlu0 %1574
        %v1576 = vsel %vm1551, %v601, -inf
        %1577 = vmax.xlane.f32.xlu0 %v1576
        %v1578 = vpop.xlane.xlu0 %1577
        %v1579 = vsel %vm1551, %v604, -inf
        %1580 = vmax.xlane.f32.xlu0 %v1579
        %v1581 = vpop.xlane.xlu0 %1580
        %v1582 = vsel %vm1551, %v636, -inf
        %1583 = vmax.xlane.f32.xlu0 %v1582
        %v1584 = vpop.xlane.xlu0 %1583
        %v1585 = vsel %vm1551, %v639, -inf
        %1586 = vmax.xlane.f32.xlu0 %v1585
        %v1587 = vpop.xlane.xlu0 %1586
        %v1588 = vsel %vm1551, %v671, -inf
        %1589 = vmax.xlane.f32.xlu0 %v1588
        %v1590 = vpop.xlane.xlu0 %1589
        %v1591 = vsel %vm1551, %v674, -inf
        %1592 = vmax.xlane.f32.xlu0 %v1591
        %v1593 = vpop.xlane.xlu0 %1592
        %v1594 = vsel %vm1551, %v706, -inf
        %1595 = vmax.xlane.f32.xlu0 %v1594
        %v1596 = vpop.xlane.xlu0 %1595
        %v1597 = vsel %vm1551, %v709, -inf
        %1598 = vmax.xlane.f32.xlu0 %v1597
        %v1599 = vpop.xlane.xlu0 %1598
        %v1600 = vsel %vm1551, %v741, -inf
        %1601 = vmax.xlane.f32.xlu0 %v1600
        %v1602 = vpop.xlane.xlu0 %1601
        %v1603 = vsel %vm1551, %v744, -inf
        %1604 = vmax.xlane.f32.xlu0 %v1603
        %v1605 = vpop.xlane.xlu0 %1604
        %v1606 = vsel %vm1551, %v776, -inf
        %1607 = vmax.xlane.f32.xlu0 %v1606
        %v1608 = vpop.xlane.xlu0 %1607
        %v1609 = vsel %vm1551, %v779, -inf
        %1610 = vmax.xlane.f32.xlu0 %v1609
        %v1611 = vpop.xlane.xlu0 %1610
        %v1612 = vsel %vm1551, %v811, -inf
        %1613 = vmax.xlane.f32.xlu0 %v1612
        %v1614 = vpop.xlane.xlu0 %1613
        %v1615 = vsel %vm1551, %v814, -inf
        %1616 = vmax.xlane.f32.xlu0 %v1615
        %v1617 = vpop.xlane.xlu0 %1616
        %v1618 = vsel %vm1551, %v846, -inf
        %1619 = vmax.xlane.f32.xlu0 %v1618
        %v1620 = vpop.xlane.xlu0 %1619
        %v1621 = vsel %vm1551, %v849, -inf
        %1622 = vmax.xlane.f32.xlu0 %v1621
        %v1623 = vpop.xlane.xlu0 %1622
        %v1624 = vsel %vm1551, %v881, -inf
        %1625 = vmax.xlane.f32.xlu0 %v1624
        %v1626 = vpop.xlane.xlu0 %1625
        %v1627 = vsel %vm1551, %v884, -inf
        %1628 = vmax.xlane.f32.xlu0 %v1627
        %v1629 = vpop.xlane.xlu0 %1628
        %v1630 = vsel %vm1551, %v916, -inf
        %1631 = vmax.xlane.f32.xlu0 %v1630
        %v1632 = vpop.xlane.xlu0 %1631
        %v1633 = vsel %vm1551, %v919, -inf
        %1634 = vmax.xlane.f32.xlu0 %v1633
        %v1635 = vpop.xlane.xlu0 %1634
        %v1636 = vsel %vm1551, %v951, -inf
        %1637 = vmax.xlane.f32.xlu0 %v1636
        %v1638 = vpop.xlane.xlu0 %1637
        %v1639 = vsel %vm1551, %v954, -inf
        %1640 = vmax.xlane.f32.xlu0 %v1639
        %v1641 = vpop.xlane.xlu0 %1640
        %v1642 = vsel %vm1551, %v986, -inf
        %1643 = vmax.xlane.f32.xlu0 %v1642
        %v1644 = vpop.xlane.xlu0 %1643
        %v1645 = vsel %vm1551, %v989, -inf
        %1646 = vmax.xlane.f32.xlu0 %v1645
        %v1647 = vpop.xlane.xlu0 %1646
        %v1648 = vsel %vm1551, %v1021, -inf
        %1649 = vmax.xlane.f32.xlu0 %v1648
        %v1650 = vpop.xlane.xlu0 %1649
        %v1651 = vsel %vm1551, %v1024, -inf
        %1652 = vmax.xlane.f32.xlu0 %v1651
        %v1653 = vpop.xlane.xlu0 %1652
        %v1654 = vsel %vm1551, %v1056, -inf
        %1655 = vmax.xlane.f32.xlu0 %v1654
        %v1656 = vpop.xlane.xlu0 %1655
        %v1657 = vsel %vm1551, %v1059, -inf
        %1658 = vmax.xlane.f32.xlu0 %v1657
        %v1659 = vpop.xlane.xlu0 %1658
        %v1660 = vsel %vm1551, %v1091, -inf
        %1661 = vmax.xlane.f32.xlu0 %v1660
        %v1662 = vpop.xlane.xlu0 %1661
        %v1663 = vsel %vm1551, %v1094, -inf
        %1664 = vmax.xlane.f32.xlu0 %v1663
        %v1665 = vpop.xlane.xlu0 %1664
        %v1666 = vsel %vm1551, %v1126, -inf
        %1667 = vmax.xlane.f32.xlu0 %v1666
        %v1668 = vpop.xlane.xlu0 %1667
        %v1669 = vsel %vm1551, %v1129, -inf
        %1670 = vmax.xlane.f32.xlu0 %v1669
        %v1671 = vpop.xlane.xlu0 %1670
        %v1672 = vsel %vm1551, %v1161, -inf
        %1673 = vmax.xlane.f32.xlu0 %v1672
        %v1674 = vpop.xlane.xlu0 %1673
        %v1675 = vsel %vm1551, %v1164, -inf
        %1676 = vmax.xlane.f32.xlu0 %v1675
        %v1677 = vpop.xlane.xlu0 %1676
        %v1678 = vsel %vm1551, %v1196, -inf
        %1679 = vmax.xlane.f32.xlu0 %v1678
        %v1680 = vpop.xlane.xlu0 %1679
        %v1681 = vsel %vm1551, %v1199, -inf
        %1682 = vmax.xlane.f32.xlu0 %v1681
        %v1683 = vpop.xlane.xlu0 %1682
        %v1684 = vsel %vm1551, %v1231, -inf
        %1685 = vmax.xlane.f32.xlu0 %v1684
        %v1686 = vpop.xlane.xlu0 %1685
        %v1687 = vsel %vm1551, %v1234, -inf
        %1688 = vmax.xlane.f32.xlu0 %v1687
        %v1689 = vpop.xlane.xlu0 %1688
        %v1690 = vsel %vm1551, %v1266, -inf
        %1691 = vmax.xlane.f32.xlu0 %v1690
        %v1692 = vpop.xlane.xlu0 %1691
        %v1693 = vsel %vm1551, %v1269, -inf
        %1694 = vmax.xlane.f32.xlu0 %v1693
        %v1695 = vpop.xlane.xlu0 %1694
        %v1696 = vsel %vm1551, %v1301, -inf
        %1697 = vmax.xlane.f32.xlu0 %v1696
        %v1698 = vpop.xlane.xlu0 %1697
        %v1699 = vsel %vm1551, %v1304, -inf
        %1700 = vmax.xlane.f32.xlu0 %v1699
        %v1701 = vpop.xlane.xlu0 %1700
        %v1702 = vsel %vm1551, %v1336, -inf
        %1703 = vmax.xlane.f32.xlu0 %v1702
        %v1704 = vpop.xlane.xlu0 %1703
        %v1705 = vsel %vm1551, %v1339, -inf
        %1706 = vmax.xlane.f32.xlu0 %v1705
        %v1707 = vpop.xlane.xlu0 %1706
        %v1708 = vsel %vm1551, %v1371, -inf
        %1709 = vmax.xlane.f32.xlu0 %v1708
        %v1710 = vpop.xlane.xlu0 %1709
        %v1711 = vsel %vm1551, %v1374, -inf
        %1712 = vmax.xlane.f32.xlu0 %v1711
        %v1713 = vpop.xlane.xlu0 %1712
        %v1714 = vsel %vm1551, %v1406, -inf
        %1715 = vmax.xlane.f32.xlu0 %v1714
        %v1716 = vpop.xlane.xlu0 %1715
        %v1717 = vsel %vm1551, %v1409, -inf
        %1718 = vmax.xlane.f32.xlu0 %v1717
        %v1719 = vpop.xlane.xlu0 %1718
        %v1720 = vsel %vm1551, %v1441, -inf
        %1721 = vmax.xlane.f32.xlu0 %v1720
        %v1722 = vpop.xlane.xlu0 %1721
        %v1723 = vsel %vm1551, %v1444, -inf
        %1724 = vmax.xlane.f32.xlu0 %v1723
        %v1725 = vpop.xlane.xlu0 %1724
        %v1726 = vsel %vm1551, %v1476, -inf
        %1727 = vmax.xlane.f32.xlu0 %v1726
        %v1728 = vpop.xlane.xlu0 %1727
        %v1729 = vsel %vm1551, %v1479, -inf
        %1730 = vmax.xlane.f32.xlu0 %v1729
        %v1731 = vpop.xlane.xlu0 %1730
        %v1732 = vsel %vm1551, %v1511, -inf
        %1733 = vmax.xlane.f32.xlu0 %v1732
        %v1734 = vpop.xlane.xlu0 %1733
        %v1735 = vsel %vm1551, %v1514, -inf
        %1736 = vmax.xlane.f32.xlu0 %v1735
        %v1737 = vpop.xlane.xlu0 %1736
        %v1738 = vsel %vm1551, %v1546, -inf
        %1739 = vmax.xlane.f32.xlu0 %v1738
        %v1740 = vpop.xlane.xlu0 %1739
        %v1741 = vsel %vm1551, %v1549, -inf
        %1742 = vmax.xlane.f32.xlu0 %v1741
        %v1743 = vpop.xlane.xlu0 %1742
        %v1744 = vsub.f32 %v461, %v1554
        %v1745 = vsub.f32 %v464, %v1557
        %v1746 = vsub.f32 %v496, %v1560
        %v1747 = vsub.f32 %v499, %v1563
        %v1748 = vsub.f32 %v531, %v1566
        %v1749 = vsub.f32 %v534, %v1569
        %v1750 = vsub.f32 %v566, %v1572
        %v1751 = vsub.f32 %v569, %v1575
        %v1752 = vsub.f32 %v601, %v1578
        %v1753 = vsub.f32 %v604, %v1581
        %v1754 = vsub.f32 %v636, %v1584
        %v1755 = vsub.f32 %v639, %v1587
        %v1756 = vsub.f32 %v671, %v1590
        %v1757 = vsub.f32 %v674, %v1593
        %v1758 = vsub.f32 %v706, %v1596
        %v1759 = vsub.f32 %v709, %v1599
        %v1760 = vsub.f32 %v741, %v1602
        %v1761 = vsub.f32 %v744, %v1605
        %v1762 = vsub.f32 %v776, %v1608
        %v1763 = vsub.f32 %v779, %v1611
        %v1764 = vsub.f32 %v811, %v1614
        %v1765 = vsub.f32 %v814, %v1617
        %v1766 = vsub.f32 %v846, %v1620
        %v1767 = vsub.f32 %v849, %v1623
        %v1768 = vsub.f32 %v881, %v1626
        %v1769 = vsub.f32 %v884, %v1629
        %v1770 = vsub.f32 %v916, %v1632
        %v1771 = vsub.f32 %v919, %v1635
        %v1772 = vsub.f32 %v951, %v1638
        %v1773 = vsub.f32 %v954, %v1641
        %v1774 = vsub.f32 %v986, %v1644
        %v1775 = vsub.f32 %v989, %v1647
        %v1776 = vsub.f32 %v1021, %v1650
        %v1777 = vsub.f32 %v1024, %v1653
        %v1778 = vsub.f32 %v1056, %v1656
        %v1779 = vsub.f32 %v1059, %v1659
        %v1780 = vsub.f32 %v1091, %v1662
        %v1781 = vsub.f32 %v1094, %v1665
        %v1782 = vsub.f32 %v1126, %v1668
        %v1783 = vsub.f32 %v1129, %v1671
        %v1784 = vsub.f32 %v1161, %v1674
        %v1785 = vsub.f32 %v1164, %v1677
        %v1786 = vsub.f32 %v1196, %v1680
        %v1787 = vsub.f32 %v1199, %v1683
        %v1788 = vsub.f32 %v1231, %v1686
        %v1789 = vsub.f32 %v1234, %v1689
        %v1790 = vsub.f32 %v1266, %v1692
        %v1791 = vsub.f32 %v1269, %v1695
        %v1792 = vsub.f32 %v1301, %v1698
        %v1793 = vsub.f32 %v1304, %v1701
        %v1794 = vsub.f32 %v1336, %v1704
        %v1795 = vsub.f32 %v1339, %v1707
        %v1796 = vsub.f32 %v1371, %v1710
        %v1797 = vsub.f32 %v1374, %v1713
        %v1798 = vsub.f32 %v1406, %v1716
        %v1799 = vsub.f32 %v1409, %v1719
        %v1800 = vsub.f32 %v1441, %v1722
        %v1801 = vsub.f32 %v1444, %v1725
        %v1802 = vsub.f32 %v1476, %v1728
        %v1803 = vsub.f32 %v1479, %v1731
        %v1804 = vsub.f32 %v1511, %v1734
        %v1805 = vsub.f32 %v1514, %v1737
        %v1806 = vsub.f32 %v1546, %v1740
        %v1807 = vsub.f32 %v1549, %v1743
        %v1808 = vmul.f32 %v1744, 1.442695
        %v1809 = vpow.pop %v1808
        %v1810 = vmul.f32 %v1745, 1.442695
        %v1811 = vpow.pop %v1810
        %v1812 = vmul.f32 %v1746, 1.442695
        %v1813 = vpow.pop %v1812
        %v1814 = vmul.f32 %v1747, 1.442695
        %v1815 = vpow.pop %v1814
        %v1816 = vmul.f32 %v1748, 1.442695
        %v1817 = vpow.pop %v1816
        %v1818 = vmul.f32 %v1749, 1.442695
        %v1819 = vpow.pop %v1818
        %v1820 = vmul.f32 %v1750, 1.442695
        %v1821 = vpow.pop %v1820
        %v1822 = vmul.f32 %v1751, 1.442695
        %v1823 = vpow.pop %v1822
        %v1824 = vmul.f32 %v1752, 1.442695
        %v1825 = vpow.pop %v1824
        %v1826 = vmul.f32 %v1753, 1.442695
        %v1827 = vpow.pop %v1826
        %v1828 = vmul.f32 %v1754, 1.442695
        %v1829 = vpow.pop %v1828
        %v1830 = vmul.f32 %v1755, 1.442695
        %v1831 = vpow.pop %v1830
        %v1832 = vmul.f32 %v1756, 1.442695
        %v1833 = vpow.pop %v1832
        %v1834 = vmul.f32 %v1757, 1.442695
        %v1835 = vpow.pop %v1834
        %v1836 = vmul.f32 %v1758, 1.442695
        %v1837 = vpow.pop %v1836
        %v1838 = vmul.f32 %v1759, 1.442695
        %v1839 = vpow.pop %v1838
        %v1840 = vmul.f32 %v1760, 1.442695
        %v1841 = vpow.pop %v1840
        %v1842 = vmul.f32 %v1761, 1.442695
        %v1843 = vpow.pop %v1842
        %v1844 = vmul.f32 %v1762, 1.442695
        %v1845 = vpow.pop %v1844
        %v1846 = vmul.f32 %v1763, 1.442695
        %v1847 = vpow.pop %v1846
        %v1848 = vmul.f32 %v1764, 1.442695
        %v1849 = vpow.pop %v1848
        %v1850 = vmul.f32 %v1765, 1.442695
        %v1851 = vpow.pop %v1850
        %v1852 = vmul.f32 %v1766, 1.442695
        %v1853 = vpow.pop %v1852
        %v1854 = vmul.f32 %v1767, 1.442695
        %v1855 = vpow.pop %v1854
        %v1856 = vmul.f32 %v1768, 1.442695
        %v1857 = vpow.pop %v1856
        %v1858 = vmul.f32 %v1769, 1.442695
        %v1859 = vpow.pop %v1858
        %v1860 = vmul.f32 %v1770, 1.442695
        %v1861 = vpow.pop %v1860
        %v1862 = vmul.f32 %v1771, 1.442695
        %v1863 = vpow.pop %v1862
        %v1864 = vmul.f32 %v1772, 1.442695
        %v1865 = vpow.pop %v1864
        %v1866 = vmul.f32 %v1773, 1.442695
        %v1867 = vpow.pop %v1866
        %v1868 = vmul.f32 %v1774, 1.442695
        %v1869 = vpow.pop %v1868
        %v1870 = vmul.f32 %v1775, 1.442695
        %v1871 = vpow.pop %v1870
        %v1872 = vmul.f32 %v1776, 1.442695
        %v1873 = vpow.pop %v1872
        %v1874 = vmul.f32 %v1777, 1.442695
        %v1875 = vpow.pop %v1874
        %v1876 = vmul.f32 %v1778, 1.442695
        %v1877 = vpow.pop %v1876
        %v1878 = vmul.f32 %v1779, 1.442695
        %v1879 = vpow.pop %v1878
        %v1880 = vmul.f32 %v1780, 1.442695
        %v1881 = vpow.pop %v1880
        %v1882 = vmul.f32 %v1781, 1.442695
        %v1883 = vpow.pop %v1882
        %v1884 = vmul.f32 %v1782, 1.442695
        %v1885 = vpow.pop %v1884
        %v1886 = vmul.f32 %v1783, 1.442695
        %v1887 = vpow.pop %v1886
        %v1888 = vmul.f32 %v1784, 1.442695
        %v1889 = vpow.pop %v1888
        %v1890 = vmul.f32 %v1785, 1.442695
        %v1891 = vpow.pop %v1890
        %v1892 = vmul.f32 %v1786, 1.442695
        %v1893 = vpow.pop %v1892
        %v1894 = vmul.f32 %v1787, 1.442695
        %v1895 = vpow.pop %v1894
        %v1896 = vmul.f32 %v1788, 1.442695
        %v1897 = vpow.pop %v1896
        %v1898 = vmul.f32 %v1789, 1.442695
        %v1899 = vpow.pop %v1898
        %v1900 = vmul.f32 %v1790, 1.442695
        %v1901 = vpow.pop %v1900
        %v1902 = vmul.f32 %v1791, 1.442695
        %v1903 = vpow.pop %v1902
        %v1904 = vmul.f32 %v1792, 1.442695
        %v1905 = vpow.pop %v1904
        %v1906 = vmul.f32 %v1793, 1.442695
        %v1907 = vpow.pop %v1906
        %v1908 = vmul.f32 %v1794, 1.442695
        %v1909 = vpow.pop %v1908
        %v1910 = vmul.f32 %v1795, 1.442695
        %v1911 = vpow.pop %v1910
        %v1912 = vmul.f32 %v1796, 1.442695
        %v1913 = vpow.pop %v1912
        %v1914 = vmul.f32 %v1797, 1.442695
        %v1915 = vpow.pop %v1914
        %v1916 = vmul.f32 %v1798, 1.442695
        %v1917 = vpow.pop %v1916
        %v1918 = vmul.f32 %v1799, 1.442695
        %v1919 = vpow.pop %v1918
        %v1920 = vmul.f32 %v1800, 1.442695
        %v1921 = vpow.pop %v1920
        %v1922 = vmul.f32 %v1801, 1.442695
        %v1923 = vpow.pop %v1922
        %v1924 = vmul.f32 %v1802, 1.442695
        %v1925 = vpow.pop %v1924
        %v1926 = vmul.f32 %v1803, 1.442695
        %v1927 = vpow.pop %v1926
        %v1928 = vmul.f32 %v1804, 1.442695
        %v1929 = vpow.pop %v1928
        %v1930 = vmul.f32 %v1805, 1.442695
        %v1931 = vpow.pop %v1930
        %v1932 = vmul.f32 %v1806, 1.442695
        %v1933 = vpow.pop %v1932
        %v1934 = vmul.f32 %v1807, 1.442695
        %v1935 = vpow.pop %v1934
        %v1936 = vsel %vm1551, %v1809, 0.0
        %1937 = vadd.xlane.f32.xlu0 %v1936
        %v1938 = vpop.xlane.xlu0 %1937
        %v1939 = vsel %vm1551, %v1811, 0.0
        %1940 = vadd.xlane.f32.xlu0 %v1939
        %v1941 = vpop.xlane.xlu0 %1940
        %v1942 = vsel %vm1551, %v1813, 0.0
        %1943 = vadd.xlane.f32.xlu0 %v1942
        %v1944 = vpop.xlane.xlu0 %1943
        %v1945 = vsel %vm1551, %v1815, 0.0
        %1946 = vadd.xlane.f32.xlu0 %v1945
        %v1947 = vpop.xlane.xlu0 %1946
        %v1948 = vsel %vm1551, %v1817, 0.0
        %1949 = vadd.xlane.f32.xlu0 %v1948
        %v1950 = vpop.xlane.xlu0 %1949
        %v1951 = vsel %vm1551, %v1819, 0.0
        %1952 = vadd.xlane.f32.xlu0 %v1951
        %v1953 = vpop.xlane.xlu0 %1952
        %v1954 = vsel %vm1551, %v1821, 0.0
        %1955 = vadd.xlane.f32.xlu0 %v1954
        %v1956 = vpop.xlane.xlu0 %1955
        %v1957 = vsel %vm1551, %v1823, 0.0
        %1958 = vadd.xlane.f32.xlu0 %v1957
        %v1959 = vpop.xlane.xlu0 %1958
        %v1960 = vsel %vm1551, %v1825, 0.0
        %1961 = vadd.xlane.f32.xlu0 %v1960
        %v1962 = vpop.xlane.xlu0 %1961
        %v1963 = vsel %vm1551, %v1827, 0.0
        %1964 = vadd.xlane.f32.xlu0 %v1963
        %v1965 = vpop.xlane.xlu0 %1964
        %v1966 = vsel %vm1551, %v1829, 0.0
        %1967 = vadd.xlane.f32.xlu0 %v1966
        %v1968 = vpop.xlane.xlu0 %1967
        %v1969 = vsel %vm1551, %v1831, 0.0
        %1970 = vadd.xlane.f32.xlu0 %v1969
        %v1971 = vpop.xlane.xlu0 %1970
        %v1972 = vsel %vm1551, %v1833, 0.0
        %1973 = vadd.xlane.f32.xlu0 %v1972
        %v1974 = vpop.xlane.xlu0 %1973
        %v1975 = vsel %vm1551, %v1835, 0.0
        %1976 = vadd.xlane.f32.xlu0 %v1975
        %v1977 = vpop.xlane.xlu0 %1976
        %v1978 = vsel %vm1551, %v1837, 0.0
        %1979 = vadd.xlane.f32.xlu0 %v1978
        %v1980 = vpop.xlane.xlu0 %1979
        %v1981 = vsel %vm1551, %v1839, 0.0
        %1982 = vadd.xlane.f32.xlu0 %v1981
        %v1983 = vpop.xlane.xlu0 %1982
        %v1984 = vsel %vm1551, %v1841, 0.0
        %1985 = vadd.xlane.f32.xlu0 %v1984
        %v1986 = vpop.xlane.xlu0 %1985
        %v1987 = vsel %vm1551, %v1843, 0.0
        %1988 = vadd.xlane.f32.xlu0 %v1987
        %v1989 = vpop.xlane.xlu0 %1988
        %v1990 = vsel %vm1551, %v1845, 0.0
        %1991 = vadd.xlane.f32.xlu0 %v1990
        %v1992 = vpop.xlane.xlu0 %1991
        %v1993 = vsel %vm1551, %v1847, 0.0
        %1994 = vadd.xlane.f32.xlu0 %v1993
        %v1995 = vpop.xlane.xlu0 %1994
        %v1996 = vsel %vm1551, %v1849, 0.0
        %1997 = vadd.xlane.f32.xlu0 %v1996
        %v1998 = vpop.xlane.xlu0 %1997
        %v1999 = vsel %vm1551, %v1851, 0.0
        %2000 = vadd.xlane.f32.xlu0 %v1999
        %v2001 = vpop.xlane.xlu0 %2000
        %v2002 = vsel %vm1551, %v1853, 0.0
        %2003 = vadd.xlane.f32.xlu0 %v2002
        %v2004 = vpop.xlane.xlu0 %2003
        %v2005 = vsel %vm1551, %v1855, 0.0
        %2006 = vadd.xlane.f32.xlu0 %v2005
        %v2007 = vpop.xlane.xlu0 %2006
        %v2008 = vsel %vm1551, %v1857, 0.0
        %2009 = vadd.xlane.f32.xlu0 %v2008
        %v2010 = vpop.xlane.xlu0 %2009
        %v2011 = vsel %vm1551, %v1859, 0.0
        %2012 = vadd.xlane.f32.xlu0 %v2011
        %v2013 = vpop.xlane.xlu0 %2012
        %v2014 = vsel %vm1551, %v1861, 0.0
        %2015 = vadd.xlane.f32.xlu0 %v2014
        %v2016 = vpop.xlane.xlu0 %2015
        %v2017 = vsel %vm1551, %v1863, 0.0
        %2018 = vadd.xlane.f32.xlu0 %v2017
        %v2019 = vpop.xlane.xlu0 %2018
        %v2020 = vsel %vm1551, %v1865, 0.0
        %2021 = vadd.xlane.f32.xlu0 %v2020
        %v2022 = vpop.xlane.xlu0 %2021
        %v2023 = vsel %vm1551, %v1867, 0.0
        %2024 = vadd.xlane.f32.xlu0 %v2023
        %v2025 = vpop.xlane.xlu0 %2024
        %v2026 = vsel %vm1551, %v1869, 0.0
        %2027 = vadd.xlane.f32.xlu0 %v2026
        %v2028 = vpop.xlane.xlu0 %2027
        %v2029 = vsel %vm1551, %v1871, 0.0
        %2030 = vadd.xlane.f32.xlu0 %v2029
        %v2031 = vpop.xlane.xlu0 %2030
        %v2032 = vsel %vm1551, %v1873, 0.0
        %2033 = vadd.xlane.f32.xlu0 %v2032
        %v2034 = vpop.xlane.xlu0 %2033
        %v2035 = vsel %vm1551, %v1875, 0.0
        %2036 = vadd.xlane.f32.xlu0 %v2035
        %v2037 = vpop.xlane.xlu0 %2036
        %v2038 = vsel %vm1551, %v1877, 0.0
        %2039 = vadd.xlane.f32.xlu0 %v2038
        %v2040 = vpop.xlane.xlu0 %2039
        %v2041 = vsel %vm1551, %v1879, 0.0
        %2042 = vadd.xlane.f32.xlu0 %v2041
        %v2043 = vpop.xlane.xlu0 %2042
        %v2044 = vsel %vm1551, %v1881, 0.0
        %2045 = vadd.xlane.f32.xlu0 %v2044
        %v2046 = vpop.xlane.xlu0 %2045
        %v2047 = vsel %vm1551, %v1883, 0.0
        %2048 = vadd.xlane.f32.xlu0 %v2047
        %v2049 = vpop.xlane.xlu0 %2048
        %v2050 = vsel %vm1551, %v1885, 0.0
        %2051 = vadd.xlane.f32.xlu0 %v2050
        %v2052 = vpop.xlane.xlu0 %2051
        %v2053 = vsel %vm1551, %v1887, 0.0
        %2054 = vadd.xlane.f32.xlu0 %v2053
        %v2055 = vpop.xlane.xlu0 %2054
        %v2056 = vsel %vm1551, %v1889, 0.0
        %2057 = vadd.xlane.f32.xlu0 %v2056
        %v2058 = vpop.xlane.xlu0 %2057
        %v2059 = vsel %vm1551, %v1891, 0.0
        %2060 = vadd.xlane.f32.xlu0 %v2059
        %v2061 = vpop.xlane.xlu0 %2060
        %v2062 = vsel %vm1551, %v1893, 0.0
        %2063 = vadd.xlane.f32.xlu0 %v2062
        %v2064 = vpop.xlane.xlu0 %2063
        %v2065 = vsel %vm1551, %v1895, 0.0
        %2066 = vadd.xlane.f32.xlu0 %v2065
        %v2067 = vpop.xlane.xlu0 %2066
        %v2068 = vsel %vm1551, %v1897, 0.0
        %2069 = vadd.xlane.f32.xlu0 %v2068
        %v2070 = vpop.xlane.xlu0 %2069
        %v2071 = vsel %vm1551, %v1899, 0.0
        %2072 = vadd.xlane.f32.xlu0 %v2071
        %v2073 = vpop.xlane.xlu0 %2072
        %v2074 = vsel %vm1551, %v1901, 0.0
        %2075 = vadd.xlane.f32.xlu0 %v2074
        %v2076 = vpop.xlane.xlu0 %2075
        %v2077 = vsel %vm1551, %v1903, 0.0
        %2078 = vadd.xlane.f32.xlu0 %v2077
        %v2079 = vpop.xlane.xlu0 %2078
        %v2080 = vsel %vm1551, %v1905, 0.0
        %2081 = vadd.xlane.f32.xlu0 %v2080
        %v2082 = vpop.xlane.xlu0 %2081
        %v2083 = vsel %vm1551, %v1907, 0.0
        %2084 = vadd.xlane.f32.xlu0 %v2083
        %v2085 = vpop.xlane.xlu0 %2084
        %v2086 = vsel %vm1551, %v1909, 0.0
        %2087 = vadd.xlane.f32.xlu0 %v2086
        %v2088 = vpop.xlane.xlu0 %2087
        %v2089 = vsel %vm1551, %v1911, 0.0
        %2090 = vadd.xlane.f32.xlu0 %v2089
        %v2091 = vpop.xlane.xlu0 %2090
        %v2092 = vsel %vm1551, %v1913, 0.0
        %2093 = vadd.xlane.f32.xlu0 %v2092
        %v2094 = vpop.xlane.xlu0 %2093
        %v2095 = vsel %vm1551, %v1915, 0.0
        %2096 = vadd.xlane.f32.xlu0 %v2095
        %v2097 = vpop.xlane.xlu0 %2096
        %v2098 = vsel %vm1551, %v1917, 0.0
        %2099 = vadd.xlane.f32.xlu0 %v2098
        %v2100 = vpop.xlane.xlu0 %2099
        %v2101 = vsel %vm1551, %v1919, 0.0
        %2102 = vadd.xlane.f32.xlu0 %v2101
        %v2103 = vpop.xlane.xlu0 %2102
        %v2104 = vsel %vm1551, %v1921, 0.0
        %2105 = vadd.xlane.f32.xlu0 %v2104
        %v2106 = vpop.xlane.xlu0 %2105
        %v2107 = vsel %vm1551, %v1923, 0.0
        %2108 = vadd.xlane.f32.xlu0 %v2107
        %v2109 = vpop.xlane.xlu0 %2108
        %v2110 = vsel %vm1551, %v1925, 0.0
        %2111 = vadd.xlane.f32.xlu0 %v2110
        %v2112 = vpop.xlane.xlu0 %2111
        %v2113 = vsel %vm1551, %v1927, 0.0
        %2114 = vadd.xlane.f32.xlu0 %v2113
        %v2115 = vpop.xlane.xlu0 %2114
        %v2116 = vsel %vm1551, %v1929, 0.0
        %2117 = vadd.xlane.f32.xlu0 %v2116
        %v2118 = vpop.xlane.xlu0 %2117
        %v2119 = vsel %vm1551, %v1931, 0.0
        %2120 = vadd.xlane.f32.xlu0 %v2119
        %v2121 = vpop.xlane.xlu0 %2120
        %v2122 = vsel %vm1551, %v1933, 0.0
        %2123 = vadd.xlane.f32.xlu0 %v2122
        %v2124 = vpop.xlane.xlu0 %2123
        %v2125 = vsel %vm1551, %v1935, 0.0
        %2126 = vadd.xlane.f32.xlu0 %v2125
        %v2127 = vpop.xlane.xlu0 %2126
        %2128 = vrot.lane.b32.xlu0 %v271, 64
        %v2129 = vpop.permute.xlu0 %2128
        %2130 = vrot.lane.b32.xlu0 %v274, 64
        %v2131 = vpop.permute.xlu0 %2130
        %v2135 = vsel %vm1551, %v1809, 0
        %v2138 = vsel %vm1551, %v1811, 0
        %2140 = vmatpush.msra.mxu0 0.0
        %2141 = vmatpush.msra.mxu0 0.0
        %2142 = vmatpush.msra.mxu0 0.0
        %2143 = vmatpush.msra.mxu0 0.0
        %2144 = vmatpush.msra.mxu0 0.0
        %2145 = vmatpush.msra.mxu0 0.0
        %2146 = vmatpush.msra.mxu0 0.0
        %2147 = vmatpush.msra.mxu0 0.0
        %2148 = vmatpush.msra.mxu0 0.0
        %2149 = vmatpush.msra.mxu0 0.0
        %2150 = vmatpush.msra.mxu0 0.0
        %2151 = vmatpush.msra.mxu0 0.0
        %2152 = vmatpush.msra.mxu0 0.0
        %2153 = vmatpush.msra.mxu0 0.0
        %2154 = vmatpush.msra.mxu0 %v2131
        %2155 = vmatpush.msra.mxu0 %v2129
        %2156 = vmatmul.f32.gmra.mxu0 %v2135
        %v2157 = vpop.f32.mrf.mxu0
        %v2158 = vadd.f32 0.0, %v2157
        %2159 = vmatmul.f32.gmra.mxu0 %v2138
        %v2160 = vpop.f32.mrf.mxu0
        %v2161 = vadd.f32 0.0, %v2160
        %2162 = vdwg.mxu0
        %2163 = vrot.lane.b32.xlu0 %v277, 64
        %v2164 = vpop.permute.xlu0 %2163
        %2165 = vrot.lane.b32.xlu0 %v280, 64
        %v2166 = vpop.permute.xlu0 %2165
        %v2170 = vsel %vm1551, %v1813, 0
        %v2173 = vsel %vm1551, %v1815, 0
        %2175 = vmatpush.msra.mxu0 0.0
        %2176 = vmatpush.msra.mxu0 0.0
        %2177 = vmatpush.msra.mxu0 0.0
        %2178 = vmatpush.msra.mxu0 0.0
        %2179 = vmatpush.msra.mxu0 0.0
        %2180 = vmatpush.msra.mxu0 0.0
        %2181 = vmatpush.msra.mxu0 0.0
        %2182 = vmatpush.msra.mxu0 0.0
        %2183 = vmatpush.msra.mxu0 0.0
        %2184 = vmatpush.msra.mxu0 0.0
        %2185 = vmatpush.msra.mxu0 0.0
        %2186 = vmatpush.msra.mxu0 0.0
        %2187 = vmatpush.msra.mxu0 0.0
        %2188 = vmatpush.msra.mxu0 0.0
        %2189 = vmatpush.msra.mxu0 %v2166
        %2190 = vmatpush.msra.mxu0 %v2164
        %2191 = vmatmul.f32.gmra.mxu0 %v2170
        %v2192 = vpop.f32.mrf.mxu0
        %v2193 = vadd.f32 0.0, %v2192
        %2194 = vmatmul.f32.gmra.mxu0 %v2173
        %v2195 = vpop.f32.mrf.mxu0
        %v2196 = vadd.f32 0.0, %v2195
        %2197 = vdwg.mxu0
        %2198 = vrot.lane.b32.xlu0 %v283, 64
        %v2199 = vpop.permute.xlu0 %2198
        %2200 = vrot.lane.b32.xlu0 %v286, 64
        %v2201 = vpop.permute.xlu0 %2200
        %v2205 = vsel %vm1551, %v1817, 0
        %v2208 = vsel %vm1551, %v1819, 0
        %2210 = vmatpush.msra.mxu0 0.0
        %2211 = vmatpush.msra.mxu0 0.0
        %2212 = vmatpush.msra.mxu0 0.0
        %2213 = vmatpush.msra.mxu0 0.0
        %2214 = vmatpush.msra.mxu0 0.0
        %2215 = vmatpush.msra.mxu0 0.0
        %2216 = vmatpush.msra.mxu0 0.0
        %2217 = vmatpush.msra.mxu0 0.0
        %2218 = vmatpush.msra.mxu0 0.0
        %2219 = vmatpush.msra.mxu0 0.0
        %2220 = vmatpush.msra.mxu0 0.0
        %2221 = vmatpush.msra.mxu0 0.0
        %2222 = vmatpush.msra.mxu0 0.0
        %2223 = vmatpush.msra.mxu0 0.0
        %2224 = vmatpush.msra.mxu0 %v2201
        %2225 = vmatpush.msra.mxu0 %v2199
        %2226 = vmatmul.f32.gmra.mxu0 %v2205
        %v2227 = vpop.f32.mrf.mxu0
        %v2228 = vadd.f32 0.0, %v2227
        %2229 = vmatmul.f32.gmra.mxu0 %v2208
        %v2230 = vpop.f32.mrf.mxu0
        %v2231 = vadd.f32 0.0, %v2230
        %2232 = vdwg.mxu0
        %2233 = vrot.lane.b32.xlu0 %v289, 64
        %v2234 = vpop.permute.xlu0 %2233
        %2235 = vrot.lane.b32.xlu0 %v292, 64
        %v2236 = vpop.permute.xlu0 %2235
        %v2240 = vsel %vm1551, %v1821, 0
        %v2243 = vsel %vm1551, %v1823, 0
        %2245 = vmatpush.msra.mxu0 0.0
        %2246 = vmatpush.msra.mxu0 0.0
        %2247 = vmatpush.msra.mxu0 0.0
        %2248 = vmatpush.msra.mxu0 0.0
        %2249 = vmatpush.msra.mxu0 0.0
        %2250 = vmatpush.msra.mxu0 0.0
        %2251 = vmatpush.msra.mxu0 0.0
        %2252 = vmatpush.msra.mxu0 0.0
        %2253 = vmatpush.msra.mxu0 0.0
        %2254 = vmatpush.msra.mxu0 0.0
        %2255 = vmatpush.msra.mxu0 0.0
        %2256 = vmatpush.msra.mxu0 0.0
        %2257 = vmatpush.msra.mxu0 0.0
        %2258 = vmatpush.msra.mxu0 0.0
        %2259 = vmatpush.msra.mxu0 %v2236
        %2260 = vmatpush.msra.mxu0 %v2234
        %2261 = vmatmul.f32.gmra.mxu0 %v2240
        %v2262 = vpop.f32.mrf.mxu0
        %v2263 = vadd.f32 0.0, %v2262
        %2264 = vmatmul.f32.gmra.mxu0 %v2243
        %v2265 = vpop.f32.mrf.mxu0
        %v2266 = vadd.f32 0.0, %v2265
        %2267 = vdwg.mxu0
        %2268 = vrot.lane.b32.xlu0 %v295, 64
        %v2269 = vpop.permute.xlu0 %2268
        %2270 = vrot.lane.b32.xlu0 %v298, 64
        %v2271 = vpop.permute.xlu0 %2270
        %v2275 = vsel %vm1551, %v1825, 0
        %v2278 = vsel %vm1551, %v1827, 0
        %2280 = vmatpush.msra.mxu0 0.0
        %2281 = vmatpush.msra.mxu0 0.0
        %2282 = vmatpush.msra.mxu0 0.0
        %2283 = vmatpush.msra.mxu0 0.0
        %2284 = vmatpush.msra.mxu0 0.0
        %2285 = vmatpush.msra.mxu0 0.0
        %2286 = vmatpush.msra.mxu0 0.0
        %2287 = vmatpush.msra.mxu0 0.0
        %2288 = vmatpush.msra.mxu0 0.0
        %2289 = vmatpush.msra.mxu0 0.0
        %2290 = vmatpush.msra.mxu0 0.0
        %2291 = vmatpush.msra.mxu0 0.0
        %2292 = vmatpush.msra.mxu0 0.0
        %2293 = vmatpush.msra.mxu0 0.0
        %2294 = vmatpush.msra.mxu0 %v2271
        %2295 = vmatpush.msra.mxu0 %v2269
        %2296 = vmatmul.f32.gmra.mxu0 %v2275
        %v2297 = vpop.f32.mrf.mxu0
        %v2298 = vadd.f32 0.0, %v2297
        %2299 = vmatmul.f32.gmra.mxu0 %v2278
        %v2300 = vpop.f32.mrf.mxu0
        %v2301 = vadd.f32 0.0, %v2300
        %2302 = vdwg.mxu0
        %2303 = vrot.lane.b32.xlu0 %v301, 64
        %v2304 = vpop.permute.xlu0 %2303
        %2305 = vrot.lane.b32.xlu0 %v304, 64
        %v2306 = vpop.permute.xlu0 %2305
        %v2310 = vsel %vm1551, %v1829, 0
        %v2313 = vsel %vm1551, %v1831, 0
        %2315 = vmatpush.msra.mxu0 0.0
        %2316 = vmatpush.msra.mxu0 0.0
        %2317 = vmatpush.msra.mxu0 0.0
        %2318 = vmatpush.msra.mxu0 0.0
        %2319 = vmatpush.msra.mxu0 0.0
        %2320 = vmatpush.msra.mxu0 0.0
        %2321 = vmatpush.msra.mxu0 0.0
        %2322 = vmatpush.msra.mxu0 0.0
        %2323 = vmatpush.msra.mxu0 0.0
        %2324 = vmatpush.msra.mxu0 0.0
        %2325 = vmatpush.msra.mxu0 0.0
        %2326 = vmatpush.msra.mxu0 0.0
        %2327 = vmatpush.msra.mxu0 0.0
        %2328 = vmatpush.msra.mxu0 0.0
        %2329 = vmatpush.msra.mxu0 %v2306
        %2330 = vmatpush.msra.mxu0 %v2304
        %2331 = vmatmul.f32.gmra.mxu0 %v2310
        %v2332 = vpop.f32.mrf.mxu0
        %v2333 = vadd.f32 0.0, %v2332
        %2334 = vmatmul.f32.gmra.mxu0 %v2313
        %v2335 = vpop.f32.mrf.mxu0
        %v2336 = vadd.f32 0.0, %v2335
        %2337 = vdwg.mxu0
        %2338 = vrot.lane.b32.xlu0 %v307, 64
        %v2339 = vpop.permute.xlu0 %2338
        %2340 = vrot.lane.b32.xlu0 %v310, 64
        %v2341 = vpop.permute.xlu0 %2340
        %v2345 = vsel %vm1551, %v1833, 0
        %v2348 = vsel %vm1551, %v1835, 0
        %2350 = vmatpush.msra.mxu0 0.0
        %2351 = vmatpush.msra.mxu0 0.0
        %2352 = vmatpush.msra.mxu0 0.0
        %2353 = vmatpush.msra.mxu0 0.0
        %2354 = vmatpush.msra.mxu0 0.0
        %2355 = vmatpush.msra.mxu0 0.0
        %2356 = vmatpush.msra.mxu0 0.0
        %2357 = vmatpush.msra.mxu0 0.0
        %2358 = vmatpush.msra.mxu0 0.0
        %2359 = vmatpush.msra.mxu0 0.0
        %2360 = vmatpush.msra.mxu0 0.0
        %2361 = vmatpush.msra.mxu0 0.0
        %2362 = vmatpush.msra.mxu0 0.0
        %2363 = vmatpush.msra.mxu0 0.0
        %2364 = vmatpush.msra.mxu0 %v2341
        %2365 = vmatpush.msra.mxu0 %v2339
        %2366 = vmatmul.f32.gmra.mxu0 %v2345
        %v2367 = vpop.f32.mrf.mxu0
        %v2368 = vadd.f32 0.0, %v2367
        %2369 = vmatmul.f32.gmra.mxu0 %v2348
        %v2370 = vpop.f32.mrf.mxu0
        %v2371 = vadd.f32 0.0, %v2370
        %2372 = vdwg.mxu0
        %2373 = vrot.lane.b32.xlu0 %v313, 64
        %v2374 = vpop.permute.xlu0 %2373
        %2375 = vrot.lane.b32.xlu0 %v316, 64
        %v2376 = vpop.permute.xlu0 %2375
        %v2380 = vsel %vm1551, %v1837, 0
        %v2383 = vsel %vm1551, %v1839, 0
        %2385 = vmatpush.msra.mxu0 0.0
        %2386 = vmatpush.msra.mxu0 0.0
        %2387 = vmatpush.msra.mxu0 0.0
        %2388 = vmatpush.msra.mxu0 0.0
        %2389 = vmatpush.msra.mxu0 0.0
        %2390 = vmatpush.msra.mxu0 0.0
        %2391 = vmatpush.msra.mxu0 0.0
        %2392 = vmatpush.msra.mxu0 0.0
        %2393 = vmatpush.msra.mxu0 0.0
        %2394 = vmatpush.msra.mxu0 0.0
        %2395 = vmatpush.msra.mxu0 0.0
        %2396 = vmatpush.msra.mxu0 0.0
        %2397 = vmatpush.msra.mxu0 0.0
        %2398 = vmatpush.msra.mxu0 0.0
        %2399 = vmatpush.msra.mxu0 %v2376
        %2400 = vmatpush.msra.mxu0 %v2374
        %2401 = vmatmul.f32.gmra.mxu0 %v2380
        %v2402 = vpop.f32.mrf.mxu0
        %v2403 = vadd.f32 0.0, %v2402
        %2404 = vmatmul.f32.gmra.mxu0 %v2383
        %v2405 = vpop.f32.mrf.mxu0
        %v2406 = vadd.f32 0.0, %v2405
        %2407 = vdwg.mxu0
        %2408 = vrot.lane.b32.xlu0 %v335, 64
        %v2409 = vpop.permute.xlu0 %2408
        %2410 = vrot.lane.b32.xlu0 %v337, 64
        %v2411 = vpop.permute.xlu0 %2410
        %v2415 = vsel %vm1551, %v1841, 0
        %v2418 = vsel %vm1551, %v1843, 0
        %2420 = vmatpush.msra.mxu0 0.0
        %2421 = vmatpush.msra.mxu0 0.0
        %2422 = vmatpush.msra.mxu0 0.0
        %2423 = vmatpush.msra.mxu0 0.0
        %2424 = vmatpush.msra.mxu0 0.0
        %2425 = vmatpush.msra.mxu0 0.0
        %2426 = vmatpush.msra.mxu0 0.0
        %2427 = vmatpush.msra.mxu0 0.0
        %2428 = vmatpush.msra.mxu0 0.0
        %2429 = vmatpush.msra.mxu0 0.0
        %2430 = vmatpush.msra.mxu0 0.0
        %2431 = vmatpush.msra.mxu0 0.0
        %2432 = vmatpush.msra.mxu0 0.0
        %2433 = vmatpush.msra.mxu0 0.0
        %2434 = vmatpush.msra.mxu0 %v2411
        %2435 = vmatpush.msra.mxu0 %v2409
        %2436 = vmatmul.f32.gmra.mxu0 %v2415
        %v2437 = vpop.f32.mrf.mxu0
        %v2438 = vadd.f32 0.0, %v2437
        %2439 = vmatmul.f32.gmra.mxu0 %v2418
        %v2440 = vpop.f32.mrf.mxu0
        %v2441 = vadd.f32 0.0, %v2440
        %2442 = vdwg.mxu0
        %2443 = vrot.lane.b32.xlu0 %v339, 64
        %v2444 = vpop.permute.xlu0 %2443
        %2445 = vrot.lane.b32.xlu0 %v341, 64
        %v2446 = vpop.permute.xlu0 %2445
        %v2450 = vsel %vm1551, %v1845, 0
        %v2453 = vsel %vm1551, %v1847, 0
        %2455 = vmatpush.msra.mxu0 0.0
        %2456 = vmatpush.msra.mxu0 0.0
        %2457 = vmatpush.msra.mxu0 0.0
        %2458 = vmatpush.msra.mxu0 0.0
        %2459 = vmatpush.msra.mxu0 0.0
        %2460 = vmatpush.msra.mxu0 0.0
        %2461 = vmatpush.msra.mxu0 0.0
        %2462 = vmatpush.msra.mxu0 0.0
        %2463 = vmatpush.msra.mxu0 0.0
        %2464 = vmatpush.msra.mxu0 0.0
        %2465 = vmatpush.msra.mxu0 0.0
        %2466 = vmatpush.msra.mxu0 0.0
        %2467 = vmatpush.msra.mxu0 0.0
        %2468 = vmatpush.msra.mxu0 0.0
        %2469 = vmatpush.msra.mxu0 %v2446
        %2470 = vmatpush.msra.mxu0 %v2444
        %2471 = vmatmul.f32.gmra.mxu0 %v2450
        %v2472 = vpop.f32.mrf.mxu0
        %v2473 = vadd.f32 0.0, %v2472
        %2474 = vmatmul.f32.gmra.mxu0 %v2453
        %v2475 = vpop.f32.mrf.mxu0
        %v2476 = vadd.f32 0.0, %v2475
        %2477 = vdwg.mxu0
        %2478 = vrot.lane.b32.xlu0 %v343, 64
        %v2479 = vpop.permute.xlu0 %2478
        %2480 = vrot.lane.b32.xlu0 %v345, 64
        %v2481 = vpop.permute.xlu0 %2480
        %v2485 = vsel %vm1551, %v1849, 0
        %v2488 = vsel %vm1551, %v1851, 0
        %2490 = vmatpush.msra.mxu0 0.0
        %2491 = vmatpush.msra.mxu0 0.0
        %2492 = vmatpush.msra.mxu0 0.0
        %2493 = vmatpush.msra.mxu0 0.0
        %2494 = vmatpush.msra.mxu0 0.0
        %2495 = vmatpush.msra.mxu0 0.0
        %2496 = vmatpush.msra.mxu0 0.0
        %2497 = vmatpush.msra.mxu0 0.0
        %2498 = vmatpush.msra.mxu0 0.0
        %2499 = vmatpush.msra.mxu0 0.0
        %2500 = vmatpush.msra.mxu0 0.0
        %2501 = vmatpush.msra.mxu0 0.0
        %2502 = vmatpush.msra.mxu0 0.0
        %2503 = vmatpush.msra.mxu0 0.0
        %2504 = vmatpush.msra.mxu0 %v2481
        %2505 = vmatpush.msra.mxu0 %v2479
        %2506 = vmatmul.f32.gmra.mxu0 %v2485
        %v2507 = vpop.f32.mrf.mxu0
        %v2508 = vadd.f32 0.0, %v2507
        %2509 = vmatmul.f32.gmra.mxu0 %v2488
        %v2510 = vpop.f32.mrf.mxu0
        %v2511 = vadd.f32 0.0, %v2510
        %2512 = vdwg.mxu0
        %2513 = vrot.lane.b32.xlu0 %v347, 64
        %v2514 = vpop.permute.xlu0 %2513
        %2515 = vrot.lane.b32.xlu0 %v349, 64
        %v2516 = vpop.permute.xlu0 %2515
        %v2520 = vsel %vm1551, %v1853, 0
        %v2523 = vsel %vm1551, %v1855, 0
        %2525 = vmatpush.msra.mxu0 0.0
        %2526 = vmatpush.msra.mxu0 0.0
        %2527 = vmatpush.msra.mxu0 0.0
        %2528 = vmatpush.msra.mxu0 0.0
        %2529 = vmatpush.msra.mxu0 0.0
        %2530 = vmatpush.msra.mxu0 0.0
        %2531 = vmatpush.msra.mxu0 0.0
        %2532 = vmatpush.msra.mxu0 0.0
        %2533 = vmatpush.msra.mxu0 0.0
        %2534 = vmatpush.msra.mxu0 0.0
        %2535 = vmatpush.msra.mxu0 0.0
        %2536 = vmatpush.msra.mxu0 0.0
        %2537 = vmatpush.msra.mxu0 0.0
        %2538 = vmatpush.msra.mxu0 0.0
        %2539 = vmatpush.msra.mxu0 %v2516
        %2540 = vmatpush.msra.mxu0 %v2514
        %2541 = vmatmul.f32.gmra.mxu0 %v2520
        %v2542 = vpop.f32.mrf.mxu0
        %v2543 = vadd.f32 0.0, %v2542
        %2544 = vmatmul.f32.gmra.mxu0 %v2523
        %v2545 = vpop.f32.mrf.mxu0
        %v2546 = vadd.f32 0.0, %v2545
        %2547 = vdwg.mxu0
        %2548 = vrot.lane.b32.xlu0 %v351, 64
        %v2549 = vpop.permute.xlu0 %2548
        %2550 = vrot.lane.b32.xlu0 %v353, 64
        %v2551 = vpop.permute.xlu0 %2550
        %v2555 = vsel %vm1551, %v1857, 0
        %v2558 = vsel %vm1551, %v1859, 0
        %2560 = vmatpush.msra.mxu0 0.0
        %2561 = vmatpush.msra.mxu0 0.0
        %2562 = vmatpush.msra.mxu0 0.0
        %2563 = vmatpush.msra.mxu0 0.0
        %2564 = vmatpush.msra.mxu0 0.0
        %2565 = vmatpush.msra.mxu0 0.0
        %2566 = vmatpush.msra.mxu0 0.0
        %2567 = vmatpush.msra.mxu0 0.0
        %2568 = vmatpush.msra.mxu0 0.0
        %2569 = vmatpush.msra.mxu0 0.0
        %2570 = vmatpush.msra.mxu0 0.0
        %2571 = vmatpush.msra.mxu0 0.0
        %2572 = vmatpush.msra.mxu0 0.0
        %2573 = vmatpush.msra.mxu0 0.0
        %2574 = vmatpush.msra.mxu0 %v2551
        %2575 = vmatpush.msra.mxu0 %v2549
        %2576 = vmatmul.f32.gmra.mxu0 %v2555
        %v2577 = vpop.f32.mrf.mxu0
        %v2578 = vadd.f32 0.0, %v2577
        %2579 = vmatmul.f32.gmra.mxu0 %v2558
        %v2580 = vpop.f32.mrf.mxu0
        %v2581 = vadd.f32 0.0, %v2580
        %2582 = vdwg.mxu0
        %2583 = vrot.lane.b32.xlu0 %v355, 64
        %v2584 = vpop.permute.xlu0 %2583
        %2585 = vrot.lane.b32.xlu0 %v357, 64
        %v2586 = vpop.permute.xlu0 %2585
        %v2590 = vsel %vm1551, %v1861, 0
        %v2593 = vsel %vm1551, %v1863, 0
        %2595 = vmatpush.msra.mxu0 0.0
        %2596 = vmatpush.msra.mxu0 0.0
        %2597 = vmatpush.msra.mxu0 0.0
        %2598 = vmatpush.msra.mxu0 0.0
        %2599 = vmatpush.msra.mxu0 0.0
        %2600 = vmatpush.msra.mxu0 0.0
        %2601 = vmatpush.msra.mxu0 0.0
        %2602 = vmatpush.msra.mxu0 0.0
        %2603 = vmatpush.msra.mxu0 0.0
        %2604 = vmatpush.msra.mxu0 0.0
        %2605 = vmatpush.msra.mxu0 0.0
        %2606 = vmatpush.msra.mxu0 0.0
        %2607 = vmatpush.msra.mxu0 0.0
        %2608 = vmatpush.msra.mxu0 0.0
        %2609 = vmatpush.msra.mxu0 %v2586
        %2610 = vmatpush.msra.mxu0 %v2584
        %2611 = vmatmul.f32.gmra.mxu0 %v2590
        %v2612 = vpop.f32.mrf.mxu0
        %v2613 = vadd.f32 0.0, %v2612
        %2614 = vmatmul.f32.gmra.mxu0 %v2593
        %v2615 = vpop.f32.mrf.mxu0
        %v2616 = vadd.f32 0.0, %v2615
        %2617 = vdwg.mxu0
        %2618 = vrot.lane.b32.xlu0 %v359, 64
        %v2619 = vpop.permute.xlu0 %2618
        %2620 = vrot.lane.b32.xlu0 %v361, 64
        %v2621 = vpop.permute.xlu0 %2620
        %v2625 = vsel %vm1551, %v1865, 0
        %v2628 = vsel %vm1551, %v1867, 0
        %2630 = vmatpush.msra.mxu0 0.0
        %2631 = vmatpush.msra.mxu0 0.0
        %2632 = vmatpush.msra.mxu0 0.0
        %2633 = vmatpush.msra.mxu0 0.0
        %2634 = vmatpush.msra.mxu0 0.0
        %2635 = vmatpush.msra.mxu0 0.0
        %2636 = vmatpush.msra.mxu0 0.0
        %2637 = vmatpush.msra.mxu0 0.0
        %2638 = vmatpush.msra.mxu0 0.0
        %2639 = vmatpush.msra.mxu0 0.0
        %2640 = vmatpush.msra.mxu0 0.0
        %2641 = vmatpush.msra.mxu0 0.0
        %2642 = vmatpush.msra.mxu0 0.0
        %2643 = vmatpush.msra.mxu0 0.0
        %2644 = vmatpush.msra.mxu0 %v2621
        %2645 = vmatpush.msra.mxu0 %v2619
        %2646 = vmatmul.f32.gmra.mxu0 %v2625
        %v2647 = vpop.f32.mrf.mxu0
        %v2648 = vadd.f32 0.0, %v2647
        %2649 = vmatmul.f32.gmra.mxu0 %v2628
        %v2650 = vpop.f32.mrf.mxu0
        %v2651 = vadd.f32 0.0, %v2650
        %2652 = vdwg.mxu0
        %2653 = vrot.lane.b32.xlu0 %v363, 64
        %v2654 = vpop.permute.xlu0 %2653
        %2655 = vrot.lane.b32.xlu0 %v365, 64
        %v2656 = vpop.permute.xlu0 %2655
        %v2660 = vsel %vm1551, %v1869, 0
        %v2663 = vsel %vm1551, %v1871, 0
        %2665 = vmatpush.msra.mxu0 0.0
        %2666 = vmatpush.msra.mxu0 0.0
        %2667 = vmatpush.msra.mxu0 0.0
        %2668 = vmatpush.msra.mxu0 0.0
        %2669 = vmatpush.msra.mxu0 0.0
        %2670 = vmatpush.msra.mxu0 0.0
        %2671 = vmatpush.msra.mxu0 0.0
        %2672 = vmatpush.msra.mxu0 0.0
        %2673 = vmatpush.msra.mxu0 0.0
        %2674 = vmatpush.msra.mxu0 0.0
        %2675 = vmatpush.msra.mxu0 0.0
        %2676 = vmatpush.msra.mxu0 0.0
        %2677 = vmatpush.msra.mxu0 0.0
        %2678 = vmatpush.msra.mxu0 0.0
        %2679 = vmatpush.msra.mxu0 %v2656
        %2680 = vmatpush.msra.mxu0 %v2654
        %2681 = vmatmul.f32.gmra.mxu0 %v2660
        %v2682 = vpop.f32.mrf.mxu0
        %v2683 = vadd.f32 0.0, %v2682
        %2684 = vmatmul.f32.gmra.mxu0 %v2663
        %v2685 = vpop.f32.mrf.mxu0
        %v2686 = vadd.f32 0.0, %v2685
        %2687 = vdwg.mxu0
        %2688 = vrot.lane.b32.xlu0 %v367, 64
        %v2689 = vpop.permute.xlu0 %2688
        %2690 = vrot.lane.b32.xlu0 %v369, 64
        %v2691 = vpop.permute.xlu0 %2690
        %v2695 = vsel %vm1551, %v1873, 0
        %v2698 = vsel %vm1551, %v1875, 0
        %2700 = vmatpush.msra.mxu0 0.0
        %2701 = vmatpush.msra.mxu0 0.0
        %2702 = vmatpush.msra.mxu0 0.0
        %2703 = vmatpush.msra.mxu0 0.0
        %2704 = vmatpush.msra.mxu0 0.0
        %2705 = vmatpush.msra.mxu0 0.0
        %2706 = vmatpush.msra.mxu0 0.0
        %2707 = vmatpush.msra.mxu0 0.0
        %2708 = vmatpush.msra.mxu0 0.0
        %2709 = vmatpush.msra.mxu0 0.0
        %2710 = vmatpush.msra.mxu0 0.0
        %2711 = vmatpush.msra.mxu0 0.0
        %2712 = vmatpush.msra.mxu0 0.0
        %2713 = vmatpush.msra.mxu0 0.0
        %2714 = vmatpush.msra.mxu0 %v2691
        %2715 = vmatpush.msra.mxu0 %v2689
        %2716 = vmatmul.f32.gmra.mxu0 %v2695
        %v2717 = vpop.f32.mrf.mxu0
        %v2718 = vadd.f32 0.0, %v2717
        %2719 = vmatmul.f32.gmra.mxu0 %v2698
        %v2720 = vpop.f32.mrf.mxu0
        %v2721 = vadd.f32 0.0, %v2720
        %2722 = vdwg.mxu0
        %2723 = vrot.lane.b32.xlu0 %v371, 64
        %v2724 = vpop.permute.xlu0 %2723
        %2725 = vrot.lane.b32.xlu0 %v373, 64
        %v2726 = vpop.permute.xlu0 %2725
        %v2730 = vsel %vm1551, %v1877, 0
        %v2733 = vsel %vm1551, %v1879, 0
        %2735 = vmatpush.msra.mxu0 0.0
        %2736 = vmatpush.msra.mxu0 0.0
        %2737 = vmatpush.msra.mxu0 0.0
        %2738 = vmatpush.msra.mxu0 0.0
        %2739 = vmatpush.msra.mxu0 0.0
        %2740 = vmatpush.msra.mxu0 0.0
        %2741 = vmatpush.msra.mxu0 0.0
        %2742 = vmatpush.msra.mxu0 0.0
        %2743 = vmatpush.msra.mxu0 0.0
        %2744 = vmatpush.msra.mxu0 0.0
        %2745 = vmatpush.msra.mxu0 0.0
        %2746 = vmatpush.msra.mxu0 0.0
        %2747 = vmatpush.msra.mxu0 0.0
        %2748 = vmatpush.msra.mxu0 0.0
        %2749 = vmatpush.msra.mxu0 %v2726
        %2750 = vmatpush.msra.mxu0 %v2724
        %2751 = vmatmul.f32.gmra.mxu0 %v2730
        %v2752 = vpop.f32.mrf.mxu0
        %v2753 = vadd.f32 0.0, %v2752
        %2754 = vmatmul.f32.gmra.mxu0 %v2733
        %v2755 = vpop.f32.mrf.mxu0
        %v2756 = vadd.f32 0.0, %v2755
        %2757 = vdwg.mxu0
        %2758 = vrot.lane.b32.xlu0 %v375, 64
        %v2759 = vpop.permute.xlu0 %2758
        %2760 = vrot.lane.b32.xlu0 %v377, 64
        %v2761 = vpop.permute.xlu0 %2760
        %v2765 = vsel %vm1551, %v1881, 0
        %v2768 = vsel %vm1551, %v1883, 0
        %2770 = vmatpush.msra.mxu0 0.0
        %2771 = vmatpush.msra.mxu0 0.0
        %2772 = vmatpush.msra.mxu0 0.0
        %2773 = vmatpush.msra.mxu0 0.0
        %2774 = vmatpush.msra.mxu0 0.0
        %2775 = vmatpush.msra.mxu0 0.0
        %2776 = vmatpush.msra.mxu0 0.0
        %2777 = vmatpush.msra.mxu0 0.0
        %2778 = vmatpush.msra.mxu0 0.0
        %2779 = vmatpush.msra.mxu0 0.0
        %2780 = vmatpush.msra.mxu0 0.0
        %2781 = vmatpush.msra.mxu0 0.0
        %2782 = vmatpush.msra.mxu0 0.0
        %2783 = vmatpush.msra.mxu0 0.0
        %2784 = vmatpush.msra.mxu0 %v2761
        %2785 = vmatpush.msra.mxu0 %v2759
        %2786 = vmatmul.f32.gmra.mxu0 %v2765
        %v2787 = vpop.f32.mrf.mxu0
        %v2788 = vadd.f32 0.0, %v2787
        %2789 = vmatmul.f32.gmra.mxu0 %v2768
        %v2790 = vpop.f32.mrf.mxu0
        %v2791 = vadd.f32 0.0, %v2790
        %2792 = vdwg.mxu0
        %2793 = vrot.lane.b32.xlu0 %v379, 64
        %v2794 = vpop.permute.xlu0 %2793
        %2795 = vrot.lane.b32.xlu0 %v381, 64
        %v2796 = vpop.permute.xlu0 %2795
        %v2800 = vsel %vm1551, %v1885, 0
        %v2803 = vsel %vm1551, %v1887, 0
        %2805 = vmatpush.msra.mxu0 0.0
        %2806 = vmatpush.msra.mxu0 0.0
        %2807 = vmatpush.msra.mxu0 0.0
        %2808 = vmatpush.msra.mxu0 0.0
        %2809 = vmatpush.msra.mxu0 0.0
        %2810 = vmatpush.msra.mxu0 0.0
        %2811 = vmatpush.msra.mxu0 0.0
        %2812 = vmatpush.msra.mxu0 0.0
        %2813 = vmatpush.msra.mxu0 0.0
        %2814 = vmatpush.msra.mxu0 0.0
        %2815 = vmatpush.msra.mxu0 0.0
        %2816 = vmatpush.msra.mxu0 0.0
        %2817 = vmatpush.msra.mxu0 0.0
        %2818 = vmatpush.msra.mxu0 0.0
        %2819 = vmatpush.msra.mxu0 %v2796
        %2820 = vmatpush.msra.mxu0 %v2794
        %2821 = vmatmul.f32.gmra.mxu0 %v2800
        %v2822 = vpop.f32.mrf.mxu0
        %v2823 = vadd.f32 0.0, %v2822
        %2824 = vmatmul.f32.gmra.mxu0 %v2803
        %v2825 = vpop.f32.mrf.mxu0
        %v2826 = vadd.f32 0.0, %v2825
        %2827 = vdwg.mxu0
        %2828 = vrot.lane.b32.xlu0 %v383, 64
        %v2829 = vpop.permute.xlu0 %2828
        %2830 = vrot.lane.b32.xlu0 %v385, 64
        %v2831 = vpop.permute.xlu0 %2830
        %v2835 = vsel %vm1551, %v1889, 0
        %v2838 = vsel %vm1551, %v1891, 0
        %2840 = vmatpush.msra.mxu0 0.0
        %2841 = vmatpush.msra.mxu0 0.0
        %2842 = vmatpush.msra.mxu0 0.0
        %2843 = vmatpush.msra.mxu0 0.0
        %2844 = vmatpush.msra.mxu0 0.0
        %2845 = vmatpush.msra.mxu0 0.0
        %2846 = vmatpush.msra.mxu0 0.0
        %2847 = vmatpush.msra.mxu0 0.0
        %2848 = vmatpush.msra.mxu0 0.0
        %2849 = vmatpush.msra.mxu0 0.0
        %2850 = vmatpush.msra.mxu0 0.0
        %2851 = vmatpush.msra.mxu0 0.0
        %2852 = vmatpush.msra.mxu0 0.0
        %2853 = vmatpush.msra.mxu0 0.0
        %2854 = vmatpush.msra.mxu0 %v2831
        %2855 = vmatpush.msra.mxu0 %v2829
        %2856 = vmatmul.f32.gmra.mxu0 %v2835
        %v2857 = vpop.f32.mrf.mxu0
        %v2858 = vadd.f32 0.0, %v2857
        %2859 = vmatmul.f32.gmra.mxu0 %v2838
        %v2860 = vpop.f32.mrf.mxu0
        %v2861 = vadd.f32 0.0, %v2860
        %2862 = vdwg.mxu0
        %2863 = vrot.lane.b32.xlu0 %v387, 64
        %v2864 = vpop.permute.xlu0 %2863
        %2865 = vrot.lane.b32.xlu0 %v389, 64
        %v2866 = vpop.permute.xlu0 %2865
        %v2870 = vsel %vm1551, %v1893, 0
        %v2873 = vsel %vm1551, %v1895, 0
        %2875 = vmatpush.msra.mxu0 0.0
        %2876 = vmatpush.msra.mxu0 0.0
        %2877 = vmatpush.msra.mxu0 0.0
        %2878 = vmatpush.msra.mxu0 0.0
        %2879 = vmatpush.msra.mxu0 0.0
        %2880 = vmatpush.msra.mxu0 0.0
        %2881 = vmatpush.msra.mxu0 0.0
        %2882 = vmatpush.msra.mxu0 0.0
        %2883 = vmatpush.msra.mxu0 0.0
        %2884 = vmatpush.msra.mxu0 0.0
        %2885 = vmatpush.msra.mxu0 0.0
        %2886 = vmatpush.msra.mxu0 0.0
        %2887 = vmatpush.msra.mxu0 0.0
        %2888 = vmatpush.msra.mxu0 0.0
        %2889 = vmatpush.msra.mxu0 %v2866
        %2890 = vmatpush.msra.mxu0 %v2864
        %2891 = vmatmul.f32.gmra.mxu0 %v2870
        %v2892 = vpop.f32.mrf.mxu0
        %v2893 = vadd.f32 0.0, %v2892
        %2894 = vmatmul.f32.gmra.mxu0 %v2873
        %v2895 = vpop.f32.mrf.mxu0
        %v2896 = vadd.f32 0.0, %v2895
        %2897 = vdwg.mxu0
        %2898 = vrot.lane.b32.xlu0 %v391, 64
        %v2899 = vpop.permute.xlu0 %2898
        %2900 = vrot.lane.b32.xlu0 %v393, 64
        %v2901 = vpop.permute.xlu0 %2900
        %v2905 = vsel %vm1551, %v1897, 0
        %v2908 = vsel %vm1551, %v1899, 0
        %2910 = vmatpush.msra.mxu0 0.0
        %2911 = vmatpush.msra.mxu0 0.0
        %2912 = vmatpush.msra.mxu0 0.0
        %2913 = vmatpush.msra.mxu0 0.0
        %2914 = vmatpush.msra.mxu0 0.0
        %2915 = vmatpush.msra.mxu0 0.0
        %2916 = vmatpush.msra.mxu0 0.0
        %2917 = vmatpush.msra.mxu0 0.0
        %2918 = vmatpush.msra.mxu0 0.0
        %2919 = vmatpush.msra.mxu0 0.0
        %2920 = vmatpush.msra.mxu0 0.0
        %2921 = vmatpush.msra.mxu0 0.0
        %2922 = vmatpush.msra.mxu0 0.0
        %2923 = vmatpush.msra.mxu0 0.0
        %2924 = vmatpush.msra.mxu0 %v2901
        %2925 = vmatpush.msra.mxu0 %v2899
        %2926 = vmatmul.f32.gmra.mxu0 %v2905
        %v2927 = vpop.f32.mrf.mxu0
        %v2928 = vadd.f32 0.0, %v2927
        %2929 = vmatmul.f32.gmra.mxu0 %v2908
        %v2930 = vpop.f32.mrf.mxu0
        %v2931 = vadd.f32 0.0, %v2930
        %2932 = vdwg.mxu0
        %2933 = vrot.lane.b32.xlu0 %v395, 64
        %v2934 = vpop.permute.xlu0 %2933
        %2935 = vrot.lane.b32.xlu0 %v397, 64
        %v2936 = vpop.permute.xlu0 %2935
        %v2940 = vsel %vm1551, %v1901, 0
        %v2943 = vsel %vm1551, %v1903, 0
        %2945 = vmatpush.msra.mxu0 0.0
        %2946 = vmatpush.msra.mxu0 0.0
        %2947 = vmatpush.msra.mxu0 0.0
        %2948 = vmatpush.msra.mxu0 0.0
        %2949 = vmatpush.msra.mxu0 0.0
        %2950 = vmatpush.msra.mxu0 0.0
        %2951 = vmatpush.msra.mxu0 0.0
        %2952 = vmatpush.msra.mxu0 0.0
        %2953 = vmatpush.msra.mxu0 0.0
        %2954 = vmatpush.msra.mxu0 0.0
        %2955 = vmatpush.msra.mxu0 0.0
        %2956 = vmatpush.msra.mxu0 0.0
        %2957 = vmatpush.msra.mxu0 0.0
        %2958 = vmatpush.msra.mxu0 0.0
        %2959 = vmatpush.msra.mxu0 %v2936
        %2960 = vmatpush.msra.mxu0 %v2934
        %2961 = vmatmul.f32.gmra.mxu0 %v2940
        %v2962 = vpop.f32.mrf.mxu0
        %v2963 = vadd.f32 0.0, %v2962
        %2964 = vmatmul.f32.gmra.mxu0 %v2943
        %v2965 = vpop.f32.mrf.mxu0
        %v2966 = vadd.f32 0.0, %v2965
        %2967 = vdwg.mxu0
        %2968 = vrot.lane.b32.xlu0 %v399, 64
        %v2969 = vpop.permute.xlu0 %2968
        %2970 = vrot.lane.b32.xlu0 %v401, 64
        %v2971 = vpop.permute.xlu0 %2970
        %v2975 = vsel %vm1551, %v1905, 0
        %v2978 = vsel %vm1551, %v1907, 0
        %2980 = vmatpush.msra.mxu0 0.0
        %2981 = vmatpush.msra.mxu0 0.0
        %2982 = vmatpush.msra.mxu0 0.0
        %2983 = vmatpush.msra.mxu0 0.0
        %2984 = vmatpush.msra.mxu0 0.0
        %2985 = vmatpush.msra.mxu0 0.0
        %2986 = vmatpush.msra.mxu0 0.0
        %2987 = vmatpush.msra.mxu0 0.0
        %2988 = vmatpush.msra.mxu0 0.0
        %2989 = vmatpush.msra.mxu0 0.0
        %2990 = vmatpush.msra.mxu0 0.0
        %2991 = vmatpush.msra.mxu0 0.0
        %2992 = vmatpush.msra.mxu0 0.0
        %2993 = vmatpush.msra.mxu0 0.0
        %2994 = vmatpush.msra.mxu0 %v2971
        %2995 = vmatpush.msra.mxu0 %v2969
        %2996 = vmatmul.f32.gmra.mxu0 %v2975
        %v2997 = vpop.f32.mrf.mxu0
        %v2998 = vadd.f32 0.0, %v2997
        %2999 = vmatmul.f32.gmra.mxu0 %v2978
        %v3000 = vpop.f32.mrf.mxu0
        %v3001 = vadd.f32 0.0, %v3000
        %3002 = vdwg.mxu0
        %3003 = vrot.lane.b32.xlu0 %v403, 64
        %v3004 = vpop.permute.xlu0 %3003
        %3005 = vrot.lane.b32.xlu0 %v405, 64
        %v3006 = vpop.permute.xlu0 %3005
        %v3010 = vsel %vm1551, %v1909, 0
        %v3013 = vsel %vm1551, %v1911, 0
        %3015 = vmatpush.msra.mxu0 0.0
        %3016 = vmatpush.msra.mxu0 0.0
        %3017 = vmatpush.msra.mxu0 0.0
        %3018 = vmatpush.msra.mxu0 0.0
        %3019 = vmatpush.msra.mxu0 0.0
        %3020 = vmatpush.msra.mxu0 0.0
        %3021 = vmatpush.msra.mxu0 0.0
        %3022 = vmatpush.msra.mxu0 0.0
        %3023 = vmatpush.msra.mxu0 0.0
        %3024 = vmatpush.msra.mxu0 0.0
        %3025 = vmatpush.msra.mxu0 0.0
        %3026 = vmatpush.msra.mxu0 0.0
        %3027 = vmatpush.msra.mxu0 0.0
        %3028 = vmatpush.msra.mxu0 0.0
        %3029 = vmatpush.msra.mxu0 %v3006
        %3030 = vmatpush.msra.mxu0 %v3004
        %3031 = vmatmul.f32.gmra.mxu0 %v3010
        %v3032 = vpop.f32.mrf.mxu0
        %v3033 = vadd.f32 0.0, %v3032
        %3034 = vmatmul.f32.gmra.mxu0 %v3013
        %v3035 = vpop.f32.mrf.mxu0
        %v3036 = vadd.f32 0.0, %v3035
        %3037 = vdwg.mxu0
        %3038 = vrot.lane.b32.xlu0 %v407, 64
        %v3039 = vpop.permute.xlu0 %3038
        %3040 = vrot.lane.b32.xlu0 %v409, 64
        %v3041 = vpop.permute.xlu0 %3040
        %v3045 = vsel %vm1551, %v1913, 0
        %v3048 = vsel %vm1551, %v1915, 0
        %3050 = vmatpush.msra.mxu0 0.0
        %3051 = vmatpush.msra.mxu0 0.0
        %3052 = vmatpush.msra.mxu0 0.0
        %3053 = vmatpush.msra.mxu0 0.0
        %3054 = vmatpush.msra.mxu0 0.0
        %3055 = vmatpush.msra.mxu0 0.0
        %3056 = vmatpush.msra.mxu0 0.0
        %3057 = vmatpush.msra.mxu0 0.0
        %3058 = vmatpush.msra.mxu0 0.0
        %3059 = vmatpush.msra.mxu0 0.0
        %3060 = vmatpush.msra.mxu0 0.0
        %3061 = vmatpush.msra.mxu0 0.0
        %3062 = vmatpush.msra.mxu0 0.0
        %3063 = vmatpush.msra.mxu0 0.0
        %3064 = vmatpush.msra.mxu0 %v3041
        %3065 = vmatpush.msra.mxu0 %v3039
        %3066 = vmatmul.f32.gmra.mxu0 %v3045
        %v3067 = vpop.f32.mrf.mxu0
        %v3068 = vadd.f32 0.0, %v3067
        %3069 = vmatmul.f32.gmra.mxu0 %v3048
        %v3070 = vpop.f32.mrf.mxu0
        %v3071 = vadd.f32 0.0, %v3070
        %3072 = vdwg.mxu0
        %3073 = vrot.lane.b32.xlu0 %v411, 64
        %v3074 = vpop.permute.xlu0 %3073
        %3075 = vrot.lane.b32.xlu0 %v413, 64
        %v3076 = vpop.permute.xlu0 %3075
        %v3080 = vsel %vm1551, %v1917, 0
        %v3083 = vsel %vm1551, %v1919, 0
        %3085 = vmatpush.msra.mxu0 0.0
        %3086 = vmatpush.msra.mxu0 0.0
        %3087 = vmatpush.msra.mxu0 0.0
        %3088 = vmatpush.msra.mxu0 0.0
        %3089 = vmatpush.msra.mxu0 0.0
        %3090 = vmatpush.msra.mxu0 0.0
        %3091 = vmatpush.msra.mxu0 0.0
        %3092 = vmatpush.msra.mxu0 0.0
        %3093 = vmatpush.msra.mxu0 0.0
        %3094 = vmatpush.msra.mxu0 0.0
        %3095 = vmatpush.msra.mxu0 0.0
        %3096 = vmatpush.msra.mxu0 0.0
        %3097 = vmatpush.msra.mxu0 0.0
        %3098 = vmatpush.msra.mxu0 0.0
        %3099 = vmatpush.msra.mxu0 %v3076
        %3100 = vmatpush.msra.mxu0 %v3074
        %3101 = vmatmul.f32.gmra.mxu0 %v3080
        %v3102 = vpop.f32.mrf.mxu0
        %v3103 = vadd.f32 0.0, %v3102
        %3104 = vmatmul.f32.gmra.mxu0 %v3083
        %v3105 = vpop.f32.mrf.mxu0
        %v3106 = vadd.f32 0.0, %v3105
        %3107 = vdwg.mxu0
        %3108 = vrot.lane.b32.xlu0 %v415, 64
        %v3109 = vpop.permute.xlu0 %3108
        %3110 = vrot.lane.b32.xlu0 %v417, 64
        %v3111 = vpop.permute.xlu0 %3110
        %v3115 = vsel %vm1551, %v1921, 0
        %v3118 = vsel %vm1551, %v1923, 0
        %3120 = vmatpush.msra.mxu0 0.0
        %3121 = vmatpush.msra.mxu0 0.0
        %3122 = vmatpush.msra.mxu0 0.0
        %3123 = vmatpush.msra.mxu0 0.0
        %3124 = vmatpush.msra.mxu0 0.0
        %3125 = vmatpush.msra.mxu0 0.0
        %3126 = vmatpush.msra.mxu0 0.0
        %3127 = vmatpush.msra.mxu0 0.0
        %3128 = vmatpush.msra.mxu0 0.0
        %3129 = vmatpush.msra.mxu0 0.0
        %3130 = vmatpush.msra.mxu0 0.0
        %3131 = vmatpush.msra.mxu0 0.0
        %3132 = vmatpush.msra.mxu0 0.0
        %3133 = vmatpush.msra.mxu0 0.0
        %3134 = vmatpush.msra.mxu0 %v3111
        %3135 = vmatpush.msra.mxu0 %v3109
        %3136 = vmatmul.f32.gmra.mxu0 %v3115
        %v3137 = vpop.f32.mrf.mxu0
        %v3138 = vadd.f32 0.0, %v3137
        %3139 = vmatmul.f32.gmra.mxu0 %v3118
        %v3140 = vpop.f32.mrf.mxu0
        %v3141 = vadd.f32 0.0, %v3140
        %3142 = vdwg.mxu0
        %3143 = vrot.lane.b32.xlu0 %v419, 64
        %v3144 = vpop.permute.xlu0 %3143
        %3145 = vrot.lane.b32.xlu0 %v421, 64
        %v3146 = vpop.permute.xlu0 %3145
        %v3150 = vsel %vm1551, %v1925, 0
        %v3153 = vsel %vm1551, %v1927, 0
        %3155 = vmatpush.msra.mxu0 0.0
        %3156 = vmatpush.msra.mxu0 0.0
        %3157 = vmatpush.msra.mxu0 0.0
        %3158 = vmatpush.msra.mxu0 0.0
        %3159 = vmatpush.msra.mxu0 0.0
        %3160 = vmatpush.msra.mxu0 0.0
        %3161 = vmatpush.msra.mxu0 0.0
        %3162 = vmatpush.msra.mxu0 0.0
        %3163 = vmatpush.msra.mxu0 0.0
        %3164 = vmatpush.msra.mxu0 0.0
        %3165 = vmatpush.msra.mxu0 0.0
        %3166 = vmatpush.msra.mxu0 0.0
        %3167 = vmatpush.msra.mxu0 0.0
        %3168 = vmatpush.msra.mxu0 0.0
        %3169 = vmatpush.msra.mxu0 %v3146
        %3170 = vmatpush.msra.mxu0 %v3144
        %3171 = vmatmul.f32.gmra.mxu0 %v3150
        %v3172 = vpop.f32.mrf.mxu0
        %v3173 = vadd.f32 0.0, %v3172
        %3174 = vmatmul.f32.gmra.mxu0 %v3153
        %v3175 = vpop.f32.mrf.mxu0
        %v3176 = vadd.f32 0.0, %v3175
        %3177 = vdwg.mxu0
        %3178 = vrot.lane.b32.xlu0 %v423, 64
        %v3179 = vpop.permute.xlu0 %3178
        %3180 = vrot.lane.b32.xlu0 %v425, 64
        %v3181 = vpop.permute.xlu0 %3180
        %v3185 = vsel %vm1551, %v1929, 0
        %v3188 = vsel %vm1551, %v1931, 0
        %3190 = vmatpush.msra.mxu0 0.0
        %3191 = vmatpush.msra.mxu0 0.0
        %3192 = vmatpush.msra.mxu0 0.0
        %3193 = vmatpush.msra.mxu0 0.0
        %3194 = vmatpush.msra.mxu0 0.0
        %3195 = vmatpush.msra.mxu0 0.0
        %3196 = vmatpush.msra.mxu0 0.0
        %3197 = vmatpush.msra.mxu0 0.0
        %3198 = vmatpush.msra.mxu0 0.0
        %3199 = vmatpush.msra.mxu0 0.0
        %3200 = vmatpush.msra.mxu0 0.0
        %3201 = vmatpush.msra.mxu0 0.0
        %3202 = vmatpush.msra.mxu0 0.0
        %3203 = vmatpush.msra.mxu0 0.0
        %3204 = vmatpush.msra.mxu0 %v3181
        %3205 = vmatpush.msra.mxu0 %v3179
        %3206 = vmatmul.f32.gmra.mxu0 %v3185
        %v3207 = vpop.f32.mrf.mxu0
        %v3208 = vadd.f32 0.0, %v3207
        %3209 = vmatmul.f32.gmra.mxu0 %v3188
        %v3210 = vpop.f32.mrf.mxu0
        %v3211 = vadd.f32 0.0, %v3210
        %3212 = vdwg.mxu0
        %3213 = vrot.lane.b32.xlu0 %v427, 64
        %v3214 = vpop.permute.xlu0 %3213
        %3215 = vrot.lane.b32.xlu0 %v429, 64
        %v3216 = vpop.permute.xlu0 %3215
        %v3220 = vsel %vm1551, %v1933, 0
        %v3223 = vsel %vm1551, %v1935, 0
        %3225 = vmatpush.msra.mxu0 0.0
        %3226 = vmatpush.msra.mxu0 0.0
        %3227 = vmatpush.msra.mxu0 0.0
        %3228 = vmatpush.msra.mxu0 0.0
        %3229 = vmatpush.msra.mxu0 0.0
        %3230 = vmatpush.msra.mxu0 0.0
        %3231 = vmatpush.msra.mxu0 0.0
        %3232 = vmatpush.msra.mxu0 0.0
        %3233 = vmatpush.msra.mxu0 0.0
        %3234 = vmatpush.msra.mxu0 0.0
        %3235 = vmatpush.msra.mxu0 0.0
        %3236 = vmatpush.msra.mxu0 0.0
        %3237 = vmatpush.msra.mxu0 0.0
        %3238 = vmatpush.msra.mxu0 0.0
        %3239 = vmatpush.msra.mxu0 %v3216
        %3240 = vmatpush.msra.mxu0 %v3214
        %3241 = vmatmul.f32.gmra.mxu0 %v3220
        %v3242 = vpop.f32.mrf.mxu0
        %v3243 = vadd.f32 0.0, %v3242
        %3244 = vmatmul.f32.gmra.mxu0 %v3223
        %v3245 = vpop.f32.mrf.mxu0
        %v3246 = vadd.f32 0.0, %v3245
        %3247 = vdwg.mxu0
        %v3248 = vrcp.pop %v1938
        %v3249 = vrcp.pop %v1941
        %v3250 = vrcp.pop %v1944
        %v3251 = vrcp.pop %v1947
        %v3252 = vrcp.pop %v1950
        %v3253 = vrcp.pop %v1953
        %v3254 = vrcp.pop %v1956
        %v3255 = vrcp.pop %v1959
        %v3256 = vrcp.pop %v1962
        %v3257 = vrcp.pop %v1965
        %v3258 = vrcp.pop %v1968
        %v3259 = vrcp.pop %v1971
        %v3260 = vrcp.pop %v1974
        %v3261 = vrcp.pop %v1977
        %v3262 = vrcp.pop %v1980
        %v3263 = vrcp.pop %v1983
        %v3264 = vrcp.pop %v1986
        %v3265 = vrcp.pop %v1989
        %v3266 = vrcp.pop %v1992
        %v3267 = vrcp.pop %v1995
        %v3268 = vrcp.pop %v1998
        %v3269 = vrcp.pop %v2001
        %v3270 = vrcp.pop %v2004
        %v3271 = vrcp.pop %v2007
        %v3272 = vrcp.pop %v2010
        %v3273 = vrcp.pop %v2013
        %v3274 = vrcp.pop %v2016
        %v3275 = vrcp.pop %v2019
        %v3276 = vrcp.pop %v2022
        %v3277 = vrcp.pop %v2025
        %v3278 = vrcp.pop %v2028
        %v3279 = vrcp.pop %v2031
        %v3280 = vrcp.pop %v2034
        %v3281 = vrcp.pop %v2037
        %v3282 = vrcp.pop %v2040
        %v3283 = vrcp.pop %v2043
        %v3284 = vrcp.pop %v2046
        %v3285 = vrcp.pop %v2049
        %v3286 = vrcp.pop %v2052
        %v3287 = vrcp.pop %v2055
        %v3288 = vrcp.pop %v2058
        %v3289 = vrcp.pop %v2061
        %v3290 = vrcp.pop %v2064
        %v3291 = vrcp.pop %v2067
        %v3292 = vrcp.pop %v2070
        %v3293 = vrcp.pop %v2073
        %v3294 = vrcp.pop %v2076
        %v3295 = vrcp.pop %v2079
        %v3296 = vrcp.pop %v2082
        %v3297 = vrcp.pop %v2085
        %v3298 = vrcp.pop %v2088
        %v3299 = vrcp.pop %v2091
        %v3300 = vrcp.pop %v2094
        %v3301 = vrcp.pop %v2097
        %v3302 = vrcp.pop %v2100
        %v3303 = vrcp.pop %v2103
        %v3304 = vrcp.pop %v2106
        %v3305 = vrcp.pop %v2109
        %v3306 = vrcp.pop %v2112
        %v3307 = vrcp.pop %v2115
        %v3308 = vrcp.pop %v2118
        %v3309 = vrcp.pop %v2121
        %v3310 = vrcp.pop %v2124
        %v3311 = vrcp.pop %v2127
        %v3312 = vmul.f32 %v2158, %v3248
        %v3313 = vmul.f32 %v2161, %v3249
        %v3314 = vmul.f32 %v2193, %v3250
        %v3315 = vmul.f32 %v2196, %v3251
        %v3316 = vmul.f32 %v2228, %v3252
        %v3317 = vmul.f32 %v2231, %v3253
        %v3318 = vmul.f32 %v2263, %v3254
        %v3319 = vmul.f32 %v2266, %v3255
        %v3320 = vmul.f32 %v2298, %v3256
        %v3321 = vmul.f32 %v2301, %v3257
        %v3322 = vmul.f32 %v2333, %v3258
        %v3323 = vmul.f32 %v2336, %v3259
        %v3324 = vmul.f32 %v2368, %v3260
        %v3325 = vmul.f32 %v2371, %v3261
        %v3326 = vmul.f32 %v2403, %v3262
        %v3327 = vmul.f32 %v2406, %v3263
        %v3328 = vmul.f32 %v2438, %v3264
        %v3329 = vmul.f32 %v2441, %v3265
        %v3330 = vmul.f32 %v2473, %v3266
        %v3331 = vmul.f32 %v2476, %v3267
        %v3332 = vmul.f32 %v2508, %v3268
        %v3333 = vmul.f32 %v2511, %v3269
        %v3334 = vmul.f32 %v2543, %v3270
        %v3335 = vmul.f32 %v2546, %v3271
        %v3336 = vmul.f32 %v2578, %v3272
        %v3337 = vmul.f32 %v2581, %v3273
        %v3338 = vmul.f32 %v2613, %v3274
        %v3339 = vmul.f32 %v2616, %v3275
        %v3340 = vmul.f32 %v2648, %v3276
        %v3341 = vmul.f32 %v2651, %v3277
        %v3342 = vmul.f32 %v2683, %v3278
        %v3343 = vmul.f32 %v2686, %v3279
        %v3344 = vmul.f32 %v2718, %v3280
        %v3345 = vmul.f32 %v2721, %v3281
        %v3346 = vmul.f32 %v2753, %v3282
        %v3347 = vmul.f32 %v2756, %v3283
        %v3348 = vmul.f32 %v2788, %v3284
        %v3349 = vmul.f32 %v2791, %v3285
        %v3350 = vmul.f32 %v2823, %v3286
        %v3351 = vmul.f32 %v2826, %v3287
        %v3352 = vmul.f32 %v2858, %v3288
        %v3353 = vmul.f32 %v2861, %v3289
        %v3354 = vmul.f32 %v2893, %v3290
        %v3355 = vmul.f32 %v2896, %v3291
        %v3356 = vmul.f32 %v2928, %v3292
        %v3357 = vmul.f32 %v2931, %v3293
        %v3358 = vmul.f32 %v2963, %v3294
        %v3359 = vmul.f32 %v2966, %v3295
        %v3360 = vmul.f32 %v2998, %v3296
        %v3361 = vmul.f32 %v3001, %v3297
        %v3362 = vmul.f32 %v3033, %v3298
        %v3363 = vmul.f32 %v3036, %v3299
        %v3364 = vmul.f32 %v3068, %v3300
        %v3365 = vmul.f32 %v3071, %v3301
        %v3366 = vmul.f32 %v3103, %v3302
        %v3367 = vmul.f32 %v3106, %v3303
        %v3368 = vmul.f32 %v3138, %v3304
        %v3369 = vmul.f32 %v3141, %v3305
        %v3370 = vmul.f32 %v3173, %v3306
        %v3371 = vmul.f32 %v3176, %v3307
        %v3372 = vmul.f32 %v3208, %v3308
        %v3373 = vmul.f32 %v3211, %v3309
        %v3374 = vmul.f32 %v3243, %v3310
        %v3375 = vmul.f32 %v3246, %v3311
        %3392 = vrot.lane.b32.xlu0 %v3328, 8
        %v3393 = vpop.permute.xlu0 %3392
        %3394 = vrot.lane.b32.xlu0 %v3329, 8
        %v3395 = vpop.permute.xlu0 %3394
        %3396 = vrot.lane.b32.xlu0 %v3330, 8
        %v3397 = vpop.permute.xlu0 %3396
        %3398 = vrot.lane.b32.xlu0 %v3331, 8
        %v3399 = vpop.permute.xlu0 %3398
        %3400 = vrot.lane.b32.xlu0 %v3332, 8
        %v3401 = vpop.permute.xlu0 %3400
        %3402 = vrot.lane.b32.xlu0 %v3333, 8
        %v3403 = vpop.permute.xlu0 %3402
        %3404 = vrot.lane.b32.xlu0 %v3334, 8
        %v3405 = vpop.permute.xlu0 %3404
        %3406 = vrot.lane.b32.xlu0 %v3335, 8
        %v3407 = vpop.permute.xlu0 %3406
        %3408 = vrot.lane.b32.xlu0 %v3336, 8
        %v3409 = vpop.permute.xlu0 %3408
        %3410 = vrot.lane.b32.xlu0 %v3337, 8
        %v3411 = vpop.permute.xlu0 %3410
        %3412 = vrot.lane.b32.xlu0 %v3338, 8
        %v3413 = vpop.permute.xlu0 %3412
        %3414 = vrot.lane.b32.xlu0 %v3339, 8
        %v3415 = vpop.permute.xlu0 %3414
        %3416 = vrot.lane.b32.xlu0 %v3340, 8
        %v3417 = vpop.permute.xlu0 %3416
        %3418 = vrot.lane.b32.xlu0 %v3341, 8
        %v3419 = vpop.permute.xlu0 %3418
        %3420 = vrot.lane.b32.xlu0 %v3342, 8
        %v3421 = vpop.permute.xlu0 %3420
        %3422 = vrot.lane.b32.xlu0 %v3343, 8
        %v3423 = vpop.permute.xlu0 %3422
        %3456 = vrot.lane.b32.xlu0 %v3344, 16
        %v3457 = vpop.permute.xlu0 %3456
        %3458 = vrot.lane.b32.xlu0 %v3345, 16
        %v3459 = vpop.permute.xlu0 %3458
        %3460 = vrot.lane.b32.xlu0 %v3346, 16
        %v3461 = vpop.permute.xlu0 %3460
        %3462 = vrot.lane.b32.xlu0 %v3347, 16
        %v3463 = vpop.permute.xlu0 %3462
        %3464 = vrot.lane.b32.xlu0 %v3348, 16
        %v3465 = vpop.permute.xlu0 %3464
        %3466 = vrot.lane.b32.xlu0 %v3349, 16
        %v3467 = vpop.permute.xlu0 %3466
        %3468 = vrot.lane.b32.xlu0 %v3350, 16
        %v3469 = vpop.permute.xlu0 %3468
        %3470 = vrot.lane.b32.xlu0 %v3351, 16
        %v3471 = vpop.permute.xlu0 %3470
        %3472 = vrot.lane.b32.xlu0 %v3352, 16
        %v3473 = vpop.permute.xlu0 %3472
        %3474 = vrot.lane.b32.xlu0 %v3353, 16
        %v3475 = vpop.permute.xlu0 %3474
        %3476 = vrot.lane.b32.xlu0 %v3354, 16
        %v3477 = vpop.permute.xlu0 %3476
        %3478 = vrot.lane.b32.xlu0 %v3355, 16
        %v3479 = vpop.permute.xlu0 %3478
        %3480 = vrot.lane.b32.xlu0 %v3356, 16
        %v3481 = vpop.permute.xlu0 %3480
        %3482 = vrot.lane.b32.xlu0 %v3357, 16
        %v3483 = vpop.permute.xlu0 %3482
        %3484 = vrot.lane.b32.xlu0 %v3358, 16
        %v3485 = vpop.permute.xlu0 %3484
        %3486 = vrot.lane.b32.xlu0 %v3359, 16
        %v3487 = vpop.permute.xlu0 %3486
        %3520 = vrot.lane.b32.xlu0 %v3360, 24
        %v3521 = vpop.permute.xlu0 %3520
        %3522 = vrot.lane.b32.xlu0 %v3361, 24
        %v3523 = vpop.permute.xlu0 %3522
        %3524 = vrot.lane.b32.xlu0 %v3362, 24
        %v3525 = vpop.permute.xlu0 %3524
        %3526 = vrot.lane.b32.xlu0 %v3363, 24
        %v3527 = vpop.permute.xlu0 %3526
        %3528 = vrot.lane.b32.xlu0 %v3364, 24
        %v3529 = vpop.permute.xlu0 %3528
        %3530 = vrot.lane.b32.xlu0 %v3365, 24
        %v3531 = vpop.permute.xlu0 %3530
        %3532 = vrot.lane.b32.xlu0 %v3366, 24
        %v3533 = vpop.permute.xlu0 %3532
        %3534 = vrot.lane.b32.xlu0 %v3367, 24
        %v3535 = vpop.permute.xlu0 %3534
        %3536 = vrot.lane.b32.xlu0 %v3368, 24
        %v3537 = vpop.permute.xlu0 %3536
        %3538 = vrot.lane.b32.xlu0 %v3369, 24
        %v3539 = vpop.permute.xlu0 %3538
        %3540 = vrot.lane.b32.xlu0 %v3370, 24
        %v3541 = vpop.permute.xlu0 %3540
        %3542 = vrot.lane.b32.xlu0 %v3371, 24
        %v3543 = vpop.permute.xlu0 %3542
        %3544 = vrot.lane.b32.xlu0 %v3372, 24
        %v3545 = vpop.permute.xlu0 %3544
        %3546 = vrot.lane.b32.xlu0 %v3373, 24
        %v3547 = vpop.permute.xlu0 %3546
        %3548 = vrot.lane.b32.xlu0 %v3374, 24
        %v3549 = vpop.permute.xlu0 %3548
        %3550 = vrot.lane.b32.xlu0 %v3375, 24
        %v3551 = vpop.permute.xlu0 %3550
        %v3568 = vsel %vm434, %v3312, %v3393
        %v3569 = vsel %vm434, %v3313, %v3395
        %v3570 = vsel %vm434, %v3314, %v3397
        %v3571 = vsel %vm434, %v3315, %v3399
        %v3572 = vsel %vm434, %v3316, %v3401
        %v3573 = vsel %vm434, %v3317, %v3403
        %v3574 = vsel %vm434, %v3318, %v3405
        %v3575 = vsel %vm434, %v3319, %v3407
        %v3576 = vsel %vm434, %v3320, %v3409
        %v3577 = vsel %vm434, %v3321, %v3411
        %v3578 = vsel %vm434, %v3322, %v3413
        %v3579 = vsel %vm434, %v3323, %v3415
        %v3580 = vsel %vm434, %v3324, %v3417
        %v3581 = vsel %vm434, %v3325, %v3419
        %v3582 = vsel %vm434, %v3326, %v3421
        %v3583 = vsel %vm434, %v3327, %v3423
        %v3584 = vsel %vm1551, %v3568, %v3457
        %v3585 = vsel %vm1551, %v3569, %v3459
        %v3586 = vsel %vm1551, %v3570, %v3461
        %v3587 = vsel %vm1551, %v3571, %v3463
        %v3588 = vsel %vm1551, %v3572, %v3465
        %v3589 = vsel %vm1551, %v3573, %v3467
        %v3590 = vsel %vm1551, %v3574, %v3469
        %v3591 = vsel %vm1551, %v3575, %v3471
        %v3592 = vsel %vm1551, %v3576, %v3473
        %v3593 = vsel %vm1551, %v3577, %v3475
        %v3594 = vsel %vm1551, %v3578, %v3477
        %v3595 = vsel %vm1551, %v3579, %v3479
        %v3596 = vsel %vm1551, %v3580, %v3481
        %v3597 = vsel %vm1551, %v3581, %v3483
        %v3598 = vsel %vm1551, %v3582, %v3485
        %v3599 = vsel %vm1551, %v3583, %v3487
        %vm3600 = vcmask 195584
        %v3601 = vsel %vm3600, %v3584, %v3521
        %v3602 = vsel %vm3600, %v3585, %v3523
        %v3603 = vsel %vm3600, %v3586, %v3525
        %v3604 = vsel %vm3600, %v3587, %v3527
        %v3605 = vsel %vm3600, %v3588, %v3529
        %v3606 = vsel %vm3600, %v3589, %v3531
        %v3607 = vsel %vm3600, %v3590, %v3533
        %v3608 = vsel %vm3600, %v3591, %v3535
        %v3609 = vsel %vm3600, %v3592, %v3537
        %v3610 = vsel %vm3600, %v3593, %v3539
        %v3611 = vsel %vm3600, %v3594, %v3541
        %v3612 = vsel %vm3600, %v3595, %v3543
        %v3613 = vsel %vm3600, %v3596, %v3545
        %v3614 = vsel %vm3600, %v3597, %v3547
        %v3615 = vsel %vm3600, %v3598, %v3549
        %v3616 = vsel %vm3600, %v3599, %v3551
        %3617 = vst.msk [vmem:[%s181] sm:$0xff] %vm204, %v3601
        %3618 = vst.msk [vmem:[%s181 + $0x8] sm:$0xff] %vm204, %v3602
        %3619 = vst.msk [vmem:[%s181 + $0x10] sm:$0xff] %vm204, %v3603
        %3620 = vst.msk [vmem:[%s181 + $0x18] sm:$0xff] %vm204, %v3604
        %3621 = vst.msk [vmem:[%s181 + $0x20] sm:$0xff] %vm204, %v3605
        %3622 = vst.msk [vmem:[%s181 + $0x28] sm:$0xff] %vm204, %v3606
        %3623 = vst.msk [vmem:[%s181 + $0x30] sm:$0xff] %vm204, %v3607
        %3624 = vst.msk [vmem:[%s181 + $0x38] sm:$0xff] %vm204, %v3608
        %3625 = vst.msk [vmem:[%s181 + $0x40] sm:$0xff] %vm204, %v3609
        %3626 = vst.msk [vmem:[%s181 + $0x48] sm:$0xff] %vm204, %v3610
        %3627 = vst.msk [vmem:[%s181 + $0x50] sm:$0xff] %vm204, %v3611
        %3628 = vst.msk [vmem:[%s181 + $0x58] sm:$0xff] %vm204, %v3612
        %3629 = vst.msk [vmem:[%s181 + $0x60] sm:$0xff] %vm204, %v3613
        %3630 = vst.msk [vmem:[%s181 + $0x68] sm:$0xff] %vm204, %v3614
        %3631 = vst.msk [vmem:[%s181 + $0x70] sm:$0xff] %vm204, %v3615
        %3632 = vst.msk [vmem:[%s181 + $0x78] sm:$0xff] %vm204, %v3616
        %s3633 = sand.u32 %s75, 1
        %s3634 = scalar_lea.sflag [#allocation4], %s3633
        %s3635 = sand.u32 %s75, 1
        %s3636 = smul.addr %s3635, 128
        %s3637 = scalar_lea.vmem [#allocation7], %s3636
        // Predicated region
        $region37: #{tpu_custom_call.1} parent=27 // pred_check
          %p3638 = pneg %p85
        $region38: #{tpu_custom_call.1} parent=27 // pred_check_branch
          %3640 = sbr.rel (%p3638) target = $region40
        $region39: #{tpu_custom_call.1} parent=27 // pred_region
          %s3641 = smul.u32 8, %s20
          %3643 = vsyncadd %s3634, 0
          %s3644 = smul.addr %s3641, 2
          %s3645 = smul.addr %s3644, 8
          %s3646 = scalar_lea.hbm %s2, %s3645
          %s3647 = sshll.u32 %s3637, 4
          %s3648 = int_to_ptr.vmem [resolvable:$true] %s3647
          %s3649 = sshll.u32 %s3646, 4
          %s3650 = int_to_ptr.hbm [resolvable:$true] %s3649
          %3655 = dma.vmem_to_hbm [thread:$0]  %s3648, 2048, %s3650, %s3634, 128, 128, 8
        $region40: #{tpu_custom_call.1} parent=27 // pred_fallthru
          _
      $region28: #{tpu_custom_call.1} parent=5 // pred_fallthru
        _
      %p3656 = scmp.le.s32.totalorder 2, %s15
      // Predicated region
      $region41: #{tpu_custom_call.1} parent=5 // pred_check
        %p3657 = pneg %p3656
      $region42: #{tpu_custom_call.1} parent=5 // pred_check_branch
        %3659 = sbr.rel (%p3657) target = $region44
      $region43: #{tpu_custom_call.1} parent=5 // pred_region
        %s3660 = ssub.s32 %s15, 2
        // Predicated region
        $region45: #{tpu_custom_call.1} parent=43 // pred_check
          %p3661 = pneg %p91
        $region46: #{tpu_custom_call.1} parent=43 // pred_check_branch
          %3663 = sbr.rel (%p3661) target = $region48
        $region47: #{tpu_custom_call.1} parent=43 // pred_region
          %s3664 = sand.u32 %s76, 1
          %s3665 = scalar_lea.sflag [#allocation4], %s3664
          %s3666 = sand.u32 %s76, 1
          %s3667 = smul.addr %s3666, 128
          %s3668 = scalar_lea.vmem [#allocation7], %s3667
          %3670 = dma.done %s3665, 2048
        $region48: #{tpu_custom_call.1} parent=43 // pred_fallthru
          _
      $region44: #{tpu_custom_call.1} parent=5 // pred_fallthru
        _
    $region6: #{tpu_custom_call.1} parent=1 // loop_footer
      %s19 = sadd.s32 1, %s15
    $region7: #{tpu_custom_call.1} parent=1 // loop_footer_branch
      %14 = sbr.rel target = $region3
    $region8: #{tpu_custom_call.1} parent=1 // loop_exit
      _
    %3671 = vsyncpa [#allocation3], 1
    %s3672 = scalar_lea.sflag [#allocation3], 1
    %3673 = vsyncpa %s3672, 1
    %3674 = vsyncpa [#allocation6], 1
    %3675 = vsyncpa [#allocation4], 1
    %s3676 = scalar_lea.sflag [#allocation4], 1
    %3677 = vsyncpa %s3676, 1

</llo_original>
